<compile_context>
chip_gen: v5e
topology: v5e:2x2
jax: 0.10.0
libtpu: 0.0.40
codegen_flags: <defaults>
</compile_context>

<pallas_src>
import math
import functools

import jax
import jax.numpy as jnp
from jax import lax
from jax.experimental import pallas as pl
from jax.experimental.pallas import tpu as pltpu

_VMEM = functools.partial(pl.BlockSpec, memory_space=pltpu.MemorySpace.VMEM)
_SQRT_2 = math.sqrt(2.0)


def _round_up(x, m):
    return (x + m - 1) // m * m


# ----------------------------------------------------------------------------
# In-kernel math helpers
# ----------------------------------------------------------------------------
def _erf(x):
    # Abramowitz & Stegun 7.1.26 polynomial (|err| < 1.5e-7); exp/abs/where only.
    a1, a2, a3, a4, a5 = 0.254829592, -0.284496736, 1.421413741, -1.453152027, 1.061405429
    p = 0.3275911
    ax = jnp.abs(x)
    t = 1.0 / (1.0 + p * ax)
    poly = ((((a5 * t + a4) * t + a3) * t + a2) * t + a1) * t
    y = 1.0 - poly * jnp.exp(-ax * ax)
    return jnp.where(x >= 0.0, y, -y)


def _gelu(x):
    # exact (erf-based) GELU, matching torch.nn.GELU() default.
    # TODO(synk): tanh-approx GELU would move VALU work to the EUP at production
    #             sizes but changes numerics vs torch's exact GELU; kept exact.
    return 0.5 * x * (1.0 + _erf(x / _SQRT_2))


def _boom(x, w1, b1, w2, b2):
    h = jnp.dot(x, w1, preferred_element_type=jnp.float32) + b1
    h = _gelu(h)
    return jnp.dot(h, w2, preferred_element_type=jnp.float32) + b2


def _bigru_recurrence(T, B, H, gi_ref, whh, bhn_row, sel_row, hid_ref):
    """Fused fwd+bwd GRU recurrence; input-gate projections are pre-hoisted.

    gi_ref : (T*B, 6H) scratch. Row block s holds the projections of x(s) for
             BOTH directions; column layout [r_f r_b z_f z_b n_f n_b].
             r/z columns already contain the folded hidden biases b_hr/b_hz.
    whh    : (2H, 6H) block-diagonal hidden weights (rows [0,H) from h_fwd,
             rows [H,2H) from h_bwd), no bias.
    bhn_row: (1, 2H) = [b_hn_fwd | b_hn_bwd] (must stay inside the r*(...) term).
    sel_row: (1, 6H) f32, 1.0 on backward-direction columns.
    hid_ref: (T*B, 2H) hidden slab; after the post-loop reorder, row block t
             holds [h_fwd(t) | h_bwd(t)].
    Returns h_last (B, 2H) = [h_fwd(T-1) | h_bwd(orig time 0)].
    """
    H2, H4, H6 = 2 * H, 4 * H, 6 * H
    # Hoisted per-call constants (JAX does not CSE broadcast_in_dim).
    is_bwd = jnp.broadcast_to(sel_row, (B, H6)) > 0.5
    bhn = jnp.broadcast_to(bhn_row, (B, H2))
    h = jnp.zeros((B, H2), jnp.float32)
    for s in range(T):                      # T static & small -> fully unrolled
        gi_f = gi_ref[s * B:(s + 1) * B, :]
        gi_b = gi_ref[(T - 1 - s) * B:(T - s) * B, :]
        gi = jnp.where(is_bwd, gi_b, gi_f)  # loads only -> off the serial chain
        gh = jnp.dot(h, whh, preferred_element_type=jnp.float32)
        rz = jax.nn.sigmoid(gi[:, 0:H4] + gh[:, 0:H4])   # r & z in ONE sigmoid
        r, z = rz[:, 0:H2], rz[:, H2:H4]
        n = jnp.tanh(gi[:, H4:H6] + r * (gh[:, H4:H6] + bhn))
        h = n + z * (h - n)                 # == (1-z)*n + z*h
        hid_ref[s * B:(s + 1) * B, :] = h   # single full-width store per step
    # Fix the backward half's time order (independent swaps, off the chain).
    for s in range(T // 2):
        a = hid_ref[s * B:(s + 1) * B, H:H2]
        b = hid_ref[(T - 1 - s) * B:(T - s) * B, H:H2]
        hid_ref[s * B:(s + 1) * B, H:H2] = b
        hid_ref[(T - 1 - s) * B:(T - s) * B, H:H2] = a
    return h


# ----------------------------------------------------------------------------
# The single fused kernel
# ----------------------------------------------------------------------------
def _scopeit_kernel(T, B, H,
                    x_ref, sel_ref,
                    wih1_ref, bih1_ref, whh1_ref, bhn1_ref,
                    tb_w1, tb_b1, tb_w2, tb_b2, tl_w, tl_b,
                    wih2_ref, bih2_ref, whh2_ref, bhn2_ref,
                    sb_w1, sb_b1, sb_w2, sb_b2, sl_w, sl_b,
                    cb_w1, cb_b1, cb_w2, cb_b2, u_ref,
                    db_w1, db_b1, db_w2, db_b2, dl_w, dl_b,
                    tok_ref, sent_out_ref, doc_out_ref, coref_out_ref,
                    gi1_ref, hid1_ref, gi2_ref, hid2_ref):
    H2 = 2 * H
    sel = sel_ref[...]

    # ---- biGRU-1: hoisted input projections (one (T*B,D)@(D,6H) matmul) ----
    gi1_ref[...] = (jnp.dot(x_ref[...], wih1_ref[...],
                            preferred_element_type=jnp.float32) + bih1_ref[...])
    h_last1 = _bigru_recurrence(T, B, H, gi1_ref, whh1_ref[...], bhn1_ref[...],
                                sel, hid1_ref)

    # ---- biGRU-2 over sentence embeddings (seq = B sentences, batch = 1) ----
    sent_emb = h_last1[:, 0:H] + h_last1[:, H:H2]                   # (B, H)
    gi2_ref[...] = (jnp.dot(sent_emb, wih2_ref[...],
                            preferred_element_type=jnp.float32) + bih2_ref[...])
    h_last2 = _bigru_recurrence(B, 1, H, gi2_ref, whh2_ref[...], bhn2_ref[...],
                                sel, hid2_ref)

    # ---- token head: Boom + Linear on the VMEM-resident hidden slab ----
    boomed_tok = _boom(hid1_ref[...], tb_w1[...], tb_b1[...], tb_w2[...], tb_b2[...])
    tok_ref[...] = (jnp.dot(boomed_tok, tl_w[...],
                            preferred_element_type=jnp.float32) + tl_b[...])

    # ---- sentence / coref / document heads ----
    sent2 = hid2_ref[...]                                           # (num_sents, 2H)
    boomed_sent = _boom(sent2, sb_w1[...], sb_b1[...], sb_w2[...], sb_b2[...])
    sent_out_ref[...] = (jnp.dot(boomed_sent, sl_w[...],
                                 preferred_element_type=jnp.float32) + sl_b[...])

    coref_h = _boom(sent2, cb_w1[...], cb_b1[...], cb_w2[...], cb_b2[...])
    au = jnp.dot(coref_h, u_ref[...], preferred_element_type=jnp.float32)
    coref_out_ref[...] = lax.dot_general(au, coref_h, (((1,), (1,)), ((), ())),
                                         preferred_element_type=jnp.float32)

    doc_emb = h_last2[:, 0:H] + h_last2[:, H:H2]                    # (1, H)
    boomed_doc = _boom(doc_emb, db_w1[...], db_b1[...], db_w2[...], db_b2[...])
    doc_out_ref[...] = (jnp.dot(boomed_doc, dl_w[...],
                                preferred_element_type=jnp.float32) + dl_b[...])


# ----------------------------------------------------------------------------
# One-time (weight-static) packing -- hoisted out of the per-forward path
# ----------------------------------------------------------------------------
def _pack_bigru(p, D, H):
    """Pack per-gate GRU weights into MXU/lane-friendly concatenated matrices.

    Column layout (6H wide): [r_f r_b z_f z_b n_f n_b], each H lanes.
    wih (D, 6H): both directions' gate weights act on x(t); the backward chain
                 reads its columns from the time-reversed row block in-kernel.
    whh (2H, 6H): block-diagonal, rows [0,H) from h_fwd, rows [H,2H) from h_bwd.
    bih (1, 6H): input bias, with b_hr / b_hz folded in (exact).
    bhn (1, 2H): [b_hn_fwd | b_hn_bwd], kept separate (lives inside r*(...)).
    """
    wih = jnp.zeros((D, 6 * H), jnp.float32)
    whh = jnp.zeros((2 * H, 6 * H), jnp.float32)
    bih = jnp.zeros((1, 6 * H), jnp.float32)
    for g in range(3):                       # PyTorch gate order (r, z, n)
        cf = slice(2 * g * H, (2 * g + 1) * H)
        cb = slice((2 * g + 1) * H, (2 * g + 2) * H)
        wih = wih.at[:, cf].set(p["wih_f"][g])
        wih = wih.at[:, cb].set(p["wih_b"][g])
        whh = whh.at[0:H, cf].set(p["whh_f"][g])
        whh = whh.at[H:2 * H, cb].set(p["whh_b"][g])
        extra_f = p["bhh_f"][g] if g < 2 else 0.0   # fold b_hr, b_hz only
        extra_b = p["bhh_b"][g] if g < 2 else 0.0
        bih = bih.at[:, cf].set(p["bih_f"][g] + extra_f)
        bih = bih.at[:, cb].set(p["bih_b"][g] + extra_b)
    bhn = jnp.concatenate([p["bhh_f"][2], p["bhh_b"][2]], axis=-1)   # (1, 2H)
    return wih, bih, whh, bhn


def pack_params(params, num_token_labels):
    """Run once at model load; the jitted forward sees only packed arrays."""
    D = params["bigru1"]["wih_f"].shape[1]
    H = params["bigru1"]["whh_f"].shape[-1]
    H2 = 2 * H
    pad_labels = _round_up(num_token_labels, 128)

    packed = {}
    (packed["wih1"], packed["bih1"], packed["whh1"], packed["bhn1"]) = _pack_bigru(
        params["bigru1"], D, H)
    (packed["wih2"], packed["bih2"], packed["whh2"], packed["bhn2"]) = _pack_bigru(
        params["bigru2"], H, H)

    # backward-column selector mask (same 6H layout for both GRUs)
    sel = jnp.zeros((1, 6 * H), jnp.float32)
    for g in range(3):
        sel = sel.at[:, (2 * g + 1) * H:(2 * g + 2) * H].set(1.0)
    packed["gate_sel"] = sel

    tb, tl = params["token_boomer"], params["token_linear"]
    packed["tb_w1"], packed["tb_b1"] = tb["w1"], tb["b1"]
    packed["tb_w2"], packed["tb_b2"] = tb["w2"], tb["b2"]
    packed["tl_w"] = jnp.zeros((H2, pad_labels), jnp.float32).at[:, :num_token_labels].set(tl["w"])
    packed["tl_b"] = jnp.zeros((1, pad_labels), jnp.float32).at[:, :num_token_labels].set(tl["b"])

    sb, sl = params["sent_boomer"], params["sent_linear"]
    packed["sb_w1"], packed["sb_b1"] = sb["w1"], sb["b1"]
    packed["sb_w2"], packed["sb_b2"] = sb["w2"], sb["b2"]
    packed["sl_w"], packed["sl_b"] = sl["w"], sl["b"]

    cb = params["coref_mlp1"]
    packed["cb_w1"], packed["cb_b1"] = cb["w1"], cb["b1"]
    packed["cb_w2"], packed["cb_b2"] = cb["w2"], cb["b2"]
    packed["biaffine_U"] = params["biaffine_U"]

    db, dl = params["doc_boomer"], params["doc_linear"]
    packed["db_w1"], packed["db_b1"] = db["w1"], db["b1"]
    packed["db_w2"], packed["db_b2"] = db["w2"], db["b2"]
    packed["dl_w"], packed["dl_b"] = dl["w"], dl["b"]
    return packed


# ----------------------------------------------------------------------------
# Full model forward (ONE pallas_call)
# ----------------------------------------------------------------------------
def scopeit_forward(packed, embeddings, *, num_token_labels):
    # embeddings: (num_sents, seq_len, encoder_hidden)  -- batch_first like torch
    B, T, D = embeddings.shape
    H = packed["whh1"].shape[0] // 2
    H2 = 2 * H
    pad_labels = packed["tl_w"].shape[1]

    x_tm = jnp.transpose(embeddings, (1, 0, 2)).reshape(T * B, D)   # time-major

    args = (
        x_tm, packed["gate_sel"],
        packed["wih1"], packed["bih1"], packed["whh1"], packed["bhn1"],
        packed["tb_w1"], packed["tb_b1"], packed["tb_w2"], packed["tb_b2"],
        packed["tl_w"], packed["tl_b"],
        packed["wih2"], packed["bih2"], packed["whh2"], packed["bhn2"],
        packed["sb_w1"], packed["sb_b1"], packed["sb_w2"], packed["sb_b2"],
        packed["sl_w"], packed["sl_b"],
        packed["cb_w1"], packed["cb_b1"], packed["cb_w2"], packed["cb_b2"],
        packed["biaffine_U"],
        packed["db_w1"], packed["db_b1"], packed["db_w2"], packed["db_b2"],
        packed["dl_w"], packed["dl_b"],
    )

    tok_pad, sent_logits, doc_logit, coref_logits = pl.pallas_call(
        functools.partial(_scopeit_kernel, T, B, H),
        out_shape=(jax.ShapeDtypeStruct((T * B, pad_labels), jnp.float32),
                   jax.ShapeDtypeStruct((B, 1), jnp.float32),
                   jax.ShapeDtypeStruct((1, 1), jnp.float32),
                   jax.ShapeDtypeStruct((B, B), jnp.float32)),
        in_specs=[_VMEM()] * len(args),
        out_specs=(_VMEM(), _VMEM(), _VMEM(), _VMEM()),
        scratch_shapes=[pltpu.VMEM((T * B, 6 * H), jnp.float32),    # gi1
                        pltpu.VMEM((T * B, H2), jnp.float32),       # hidden slab 1
                        pltpu.VMEM((B, 6 * H), jnp.float32),        # gi2
                        pltpu.VMEM((B, H2), jnp.float32)],          # hidden slab 2
    )(*args)

    token_logits = tok_pad[:, :num_token_labels].reshape(T, B, num_token_labels)
    token_logits = jnp.transpose(token_logits, (1, 0, 2))           # (B, T, L)
    return token_logits, sent_logits, doc_logit.reshape(1), coref_logits


# ----------------------------------------------------------------------------
# Deterministic parameter initialization (shapes from the torch __init__)
# ----------------------------------------------------------------------------
def _dense_params(key, d_in, d_out):
    kw, kb = jax.random.split(key)
    s = 1.0 / math.sqrt(d_in)
    return {"w": jax.random.uniform(kw, (d_in, d_out), jnp.float32, -s, s),
            "b": jax.random.uniform(kb, (1, d_out), jnp.float32, -s, s)}


def _boom_params(key, d_model, d_ff):
    k1, k2 = jax.random.split(key)
    l1 = _dense_params(k1, d_model, d_ff)
    l2 = _dense_params(k2, d_ff, d_model)
    return {"w1": l1["w"], "b1": l1["b"], "w2": l2["w"], "b2": l2["b"]}


def _gru_params(key, d_in, h):
    keys = jax.random.split(key, 8)
    s = 1.0 / math.sqrt(h)

    def u(k, shape):
        return jax.random.uniform(k, shape, jnp.float32, -s, s)

    return {"wih_f": u(keys[0], (3, d_in, h)), "whh_f": u(keys[1], (3, h, h)),
            "bih_f": u(keys[2], (3, 1, h)), "bhh_f": u(keys[3], (3, 1, h)),
            "wih_b": u(keys[4], (3, d_in, h)), "whh_b": u(keys[5], (3, h, h)),
            "bih_b": u(keys[6], (3, 1, h)), "bhh_b": u(keys[7], (3, 1, h))}


def init_params(key, encoder_hidden, hidden, num_token_labels):
    keys = jax.random.split(key, 10)
    h2 = hidden * 2
    xav = math.sqrt(6.0 / (h2 + h2))
    return {
        "bigru1": _gru_params(keys[0], encoder_hidden, hidden),
        "bigru2": _gru_params(keys[1], hidden, hidden),
        "token_boomer": _boom_params(keys[2], h2, h2 * 4),
        "token_linear": _dense_params(keys[3], h2, num_token_labels),
        "sent_boomer": _boom_params(keys[4], h2, h2 * 4),
        "sent_linear": _dense_params(keys[5], h2, 1),
        "doc_boomer": _boom_params(keys[6], hidden, hidden * 4),
        "doc_linear": _dense_params(keys[7], hidden, 1),
        "coref_mlp1": _boom_params(keys[8], h2, h2 * 4),
        "biaffine_U": jax.random.uniform(keys[9], (h2, h2), jnp.float32, -xav, xav),
    }


# ----------------------------------------------------------------------------
# Pure-JAX reference (for correctness check)
# ----------------------------------------------------------------------------
def _ref_gru_dir(x_tm, wih, whh, bih, bhh):
    Hh = whh.shape[-1]

    def step(h, x_t):
        gi = jnp.einsum("bd,gdh->gbh", x_t, wih) + bih
        gh = jnp.einsum("bh,ghk->gbk", h, whh) + bhh
        r = jax.nn.sigmoid(gi[0] + gh[0])
        z = jax.nn.sigmoid(gi[1] + gh[1])
        n = jnp.tanh(gi[2] + r * gh[2])
        h_new = (1.0 - z) * n + z * h
        return h_new, h_new

    h0 = jnp.zeros((x_tm.shape[1], Hh), jnp.float32)
    last, outs = lax.scan(step, h0, x_tm)
    return outs, last


def _ref_bigru(x, p):
    xt = jnp.transpose(x, (1, 0, 2))
    out_f, last_f = _ref_gru_dir(xt, p["wih_f"], p["whh_f"], p["bih_f"], p["bhh_f"])
    out_b_rev, last_b = _ref_gru_dir(xt[::-1], p["wih_b"], p["whh_b"], p["bih_b"], p["bhh_b"])
    out_b = out_b_rev[::-1]
    all_h = jnp.concatenate([out_f, out_b], axis=-1).transpose(1, 0, 2)
    return all_h, jnp.stack([last_f, last_b], axis=0)


def _ref_boom(x, p):
    h = jax.nn.gelu(x @ p["w1"] + p["b1"], approximate=False)
    return h @ p["w2"] + p["b2"]


def _ref_linear(x, p):
    return x @ p["w"] + p["b"]


def _ref_forward(params, embeddings):
    B, T, _ = embeddings.shape
    H = params["bigru1"]["whh_f"].shape[-1]
    gru1_all, gru1_last = _ref_bigru(embeddings, params["bigru1"])
    boomed_tokens = _ref_boom(gru1_all.reshape(B * T, 2 * H), params["token_boomer"])
    token_logits = _ref_linear(boomed_tokens, params["token_linear"]).reshape(B, T, -1)
    sent_emb = gru1_last[0] + gru1_last[1]
    gru2_all, gru2_last = _ref_bigru(sent_emb[None], params["bigru2"])
    sent_emb2 = gru2_all[0]
    sent_logits = _ref_linear(_ref_boom(sent_emb2, params["sent_boomer"]),
                              params["sent_linear"])
    coref_hidden = _ref_boom(sent_emb2, params["coref_mlp1"])
    coref_logits = coref_hidden @ params["biaffine_U"] @ coref_hidden.T
    doc_emb = gru2_last[0, 0, :] + gru2_last[1, 0, :]
    doc_logit = _ref_linear(_ref_boom(doc_emb[None], params["doc_boomer"]),
                            params["doc_linear"]).reshape(1)
    return token_logits, sent_logits, doc_logit, coref_logits


# ----------------------------------------------------------------------------
if __name__ == "__main__":
    key = jax.random.PRNGKey(0)
    k_params, k_x = jax.random.split(key)

    encoder_hidden, hidden, num_token_labels = 48, 32, 15
    num_sents, seq_len = 8, 16

    params = init_params(k_params, encoder_hidden, hidden, num_token_labels)
    embeddings = jax.random.normal(k_x, (num_sents, seq_len, encoder_hidden), jnp.float32)

    # one-time packing (weight-static; NOT in the per-forward path)
    packed = pack_params(params, num_token_labels)

    fwd = jax.jit(scopeit_forward, static_argnames=("num_token_labels",))
    outs = fwd(packed, embeddings, num_token_labels=num_token_labels)
    outs = jax.block_until_ready(outs)

    refs = _ref_forward(params, embeddings)
    names = ["token_logits", "sent_logits", "doc_logit", "coref_logits"]
    for name, o, r in zip(names, outs, refs):
        assert o.shape == r.shape, (name, o.shape, r.shape)
        err = float(jnp.max(jnp.abs(o - r)))
        assert jnp.allclose(o, r, atol=2e-3, rtol=2e-3), (name, err)

    print("KERNEL_OK")
</pallas_src>

<mosaic_0001>
module attributes {stable_mosaic.version = 11 : i64} {
  func.func @_scopeit_kernel(%arg0: memref<128x48xf32, #tpu.memory_space<vmem>>, %arg1: memref<1x192xf32, #tpu.memory_space<vmem>>, %arg2: memref<48x192xf32, #tpu.memory_space<vmem>>, %arg3: memref<1x192xf32, #tpu.memory_space<vmem>>, %arg4: memref<64x192xf32, #tpu.memory_space<vmem>>, %arg5: memref<1x64xf32, #tpu.memory_space<vmem>>, %arg6: memref<64x256xf32, #tpu.memory_space<vmem>>, %arg7: memref<1x256xf32, #tpu.memory_space<vmem>>, %arg8: memref<256x64xf32, #tpu.memory_space<vmem>>, %arg9: memref<1x64xf32, #tpu.memory_space<vmem>>, %arg10: memref<64x128xf32, #tpu.memory_space<vmem>>, %arg11: memref<1x128xf32, #tpu.memory_space<vmem>>, %arg12: memref<32x192xf32, #tpu.memory_space<vmem>>, %arg13: memref<1x192xf32, #tpu.memory_space<vmem>>, %arg14: memref<64x192xf32, #tpu.memory_space<vmem>>, %arg15: memref<1x64xf32, #tpu.memory_space<vmem>>, %arg16: memref<64x256xf32, #tpu.memory_space<vmem>>, %arg17: memref<1x256xf32, #tpu.memory_space<vmem>>, %arg18: memref<256x64xf32, #tpu.memory_space<vmem>>, %arg19: memref<1x64xf32, #tpu.memory_space<vmem>>, %arg20: memref<64x1xf32, #tpu.memory_space<vmem>>, %arg21: memref<1x1xf32, #tpu.memory_space<vmem>>, %arg22: memref<64x256xf32, #tpu.memory_space<vmem>>, %arg23: memref<1x256xf32, #tpu.memory_space<vmem>>, %arg24: memref<256x64xf32, #tpu.memory_space<vmem>>, %arg25: memref<1x64xf32, #tpu.memory_space<vmem>>, %arg26: memref<64x64xf32, #tpu.memory_space<vmem>>, %arg27: memref<32x128xf32, #tpu.memory_space<vmem>>, %arg28: memref<1x128xf32, #tpu.memory_space<vmem>>, %arg29: memref<128x32xf32, #tpu.memory_space<vmem>>, %arg30: memref<1x32xf32, #tpu.memory_space<vmem>>, %arg31: memref<32x1xf32, #tpu.memory_space<vmem>>, %arg32: memref<1x1xf32, #tpu.memory_space<vmem>>, %arg33: memref<128x128xf32, #tpu.memory_space<vmem>>, %arg34: memref<8x1xf32, #tpu.memory_space<vmem>>, %arg35: memref<1x1xf32, #tpu.memory_space<vmem>>, %arg36: memref<8x8xf32, #tpu.memory_space<vmem>>, %arg37: memref<128x192xf32, #tpu.memory_space<vmem>>, %arg38: memref<128x64xf32, #tpu.memory_space<vmem>>, %arg39: memref<8x192xf32, #tpu.memory_space<vmem>>, %arg40: memref<8x64xf32, #tpu.memory_space<vmem>>) attributes {dimension_semantics = [], scalar_prefetch = 0 : i64, scratch_operands = 4 : i64, tpu.core_type = #tpu.core_type<tc>} {
    %c0 = arith.constant 0 : index
    %c0_0 = arith.constant 0 : index
    %0 = vector.load %arg1[%c0, %c0_0] : memref<1x192xf32, #tpu.memory_space<vmem>>, vector<1x192xf32>
    %c0_1 = arith.constant 0 : index
    %c0_2 = arith.constant 0 : index
    %1 = vector.load %arg0[%c0_1, %c0_2] : memref<128x48xf32, #tpu.memory_space<vmem>>, vector<128x48xf32>
    %c0_3 = arith.constant 0 : index
    %c0_4 = arith.constant 0 : index
    %2 = vector.load %arg2[%c0_3, %c0_4] : memref<48x192xf32, #tpu.memory_space<vmem>>, vector<48x192xf32>
    %cst = arith.constant dense<0.000000e+00> : vector<128x192xf32>
    %3 = tpu.matmul %1, %2, %cst {dimension_numbers = #tpu.dot_dimension_numbers<[1], [0], [0], [1], [0, 0, 1, 1], [], []>} : vector<128x48xf32>, vector<48x192xf32>, vector<128x192xf32> -> vector<128x192xf32>
    %c0_5 = arith.constant 0 : index
    %c0_6 = arith.constant 0 : index
    %4 = vector.load %arg3[%c0_5, %c0_6] : memref<1x192xf32, #tpu.memory_space<vmem>>, vector<1x192xf32>
    %5 = vector.broadcast %4 : vector<1x192xf32> to vector<128x192xf32>
    %6 = arith.addf %3, %5 : vector<128x192xf32>
    %c0_7 = arith.constant 0 : index
    %c0_8 = arith.constant 0 : index
    %7 = vector.load %arg37[%c0_7, %c0_8] : memref<128x192xf32, #tpu.memory_space<vmem>>, vector<128x192xf32>
    tpu.vector_store %arg37[%c0_7, %c0_8], %6 {strides = array<i32>} : memref<128x192xf32, #tpu.memory_space<vmem>>, vector<128x192xf32>,
    %c0_9 = arith.constant 0 : index
    %c0_10 = arith.constant 0 : index
    %8 = vector.load %arg4[%c0_9, %c0_10] : memref<64x192xf32, #tpu.memory_space<vmem>>, vector<64x192xf32>
    %c0_11 = arith.constant 0 : index
    %c0_12 = arith.constant 0 : index
    %9 = vector.load %arg5[%c0_11, %c0_12] : memref<1x64xf32, #tpu.memory_space<vmem>>, vector<1x64xf32>
    %10 = vector.shape_cast %0 : vector<1x192xf32> to vector<1x192xf32>
    %11 = vector.broadcast %10 : vector<1x192xf32> to vector<8x192xf32>
    %cst_13 = arith.constant 5.000000e-01 : f32
    %12 = vector.broadcast %cst_13 : f32 to vector<8x192xf32>
    %13 = arith.cmpf ogt, %11, %12 : vector<8x192xf32>
    %14 = vector.shape_cast %9 : vector<1x64xf32> to vector<1x64xf32>
    %15 = vector.broadcast %14 : vector<1x64xf32> to vector<8x64xf32>
    %cst_14 = arith.constant 0.000000e+00 : f32
    %16 = vector.broadcast %cst_14 : f32 to vector<8x64xf32>
    %c0_15 = arith.constant 0 : index
    %c0_16 = arith.constant 0 : index
    %17 = vector.load %arg37[%c0_15, %c0_16] : memref<128x192xf32, #tpu.memory_space<vmem>>, vector<8x192xf32>
    %c120 = arith.constant 120 : index
    %c0_17 = arith.constant 0 : index
    %18 = vector.load %arg37[%c120, %c0_17] : memref<128x192xf32, #tpu.memory_space<vmem>>, vector<8x192xf32>
    %19 = arith.select %13, %18, %17 : vector<8x192xi1>, vector<8x192xf32>
    %cst_18 = arith.constant dense<0.000000e+00> : vector<8x192xf32>
    %20 = tpu.matmul %16, %8, %cst_18 {dimension_numbers = #tpu.dot_dimension_numbers<[1], [0], [0], [1], [0, 0, 1, 1], [], []>} : vector<8x64xf32>, vector<64x192xf32>, vector<8x192xf32> -> vector<8x192xf32>
    %21 = vector.extract_strided_slice %19 {offsets = [0, 0], sizes = [8, 128], strides = [1, 1]} : vector<8x192xf32> to vector<8x128xf32>
    %22 = vector.extract_strided_slice %20 {offsets = [0, 0], sizes = [8, 128], strides = [1, 1]} : vector<8x192xf32> to vector<8x128xf32>
    %23 = arith.addf %21, %22 : vector<8x128xf32>
    %24 = arith.negf %23 : vector<8x128xf32>
    %25 = math.exp %24 : vector<8x128xf32>
    %cst_19 = arith.constant 1.000000e+00 : f32
    %26 = vector.broadcast %cst_19 : f32 to vector<8x128xf32>
    %27 = arith.addf %26, %25 : vector<8x128xf32>
    %28 = arith.divf %26, %27 : vector<8x128xf32>
    %29 = vector.extract_strided_slice %28 {offsets = [0, 0], sizes = [8, 64], strides = [1, 1]} : vector<8x128xf32> to vector<8x64xf32>
    %30 = vector.extract_strided_slice %28 {offsets = [0, 64], sizes = [8, 64], strides = [1, 1]} : vector<8x128xf32> to vector<8x64xf32>
    %31 = vector.extract_strided_slice %19 {offsets = [0, 128], sizes = [8, 64], strides = [1, 1]} : vector<8x192xf32> to vector<8x64xf32>
    %32 = vector.extract_strided_slice %20 {offsets = [0, 128], sizes = [8, 64], strides = [1, 1]} : vector<8x192xf32> to vector<8x64xf32>
    %33 = arith.addf %32, %15 : vector<8x64xf32>
    %34 = arith.mulf %29, %33 : vector<8x64xf32>
    %35 = arith.addf %31, %34 : vector<8x64xf32>
    %36 = math.tanh %35 : vector<8x64xf32>
    %37 = arith.subf %16, %36 : vector<8x64xf32>
    %38 = arith.mulf %30, %37 : vector<8x64xf32>
    %39 = arith.addf %36, %38 : vector<8x64xf32>
    %c0_20 = arith.constant 0 : index
    %c0_21 = arith.constant 0 : index
    %40 = vector.load %arg38[%c0_20, %c0_21] : memref<128x64xf32, #tpu.memory_space<vmem>>, vector<8x64xf32>
    tpu.vector_store %arg38[%c0_20, %c0_21], %39 {strides = array<i32>} : memref<128x64xf32, #tpu.memory_space<vmem>>, vector<8x64xf32>,
    %c8 = arith.constant 8 : index
    %c0_22 = arith.constant 0 : index
    %41 = vector.load %arg37[%c8, %c0_22] : memref<128x192xf32, #tpu.memory_space<vmem>>, vector<8x192xf32>
    %c112 = arith.constant 112 : index
    %c0_23 = arith.constant 0 : index
    %42 = vector.load %arg37[%c112, %c0_23] : memref<128x192xf32, #tpu.memory_space<vmem>>, vector<8x192xf32>
    %43 = arith.select %13, %42, %41 : vector<8x192xi1>, vector<8x192xf32>
    %cst_24 = arith.constant dense<0.000000e+00> : vector<8x192xf32>
    %44 = tpu.matmul %39, %8, %cst_24 {dimension_numbers = #tpu.dot_dimension_numbers<[1], [0], [0], [1], [0, 0, 1, 1], [], []>} : vector<8x64xf32>, vector<64x192xf32>, vector<8x192xf32> -> vector<8x192xf32>
    %45 = vector.extract_strided_slice %43 {offsets = [0, 0], sizes = [8, 128], strides = [1, 1]} : vector<8x192xf32> to vector<8x128xf32>
    %46 = vector.extract_strided_slice %44 {offsets = [0, 0], sizes = [8, 128], strides = [1, 1]} : vector<8x192xf32> to vector<8x128xf32>
    %47 = arith.addf %45, %46 : vector<8x128xf32>
    %48 = arith.negf %47 : vector<8x128xf32>
    %49 = math.exp %48 : vector<8x128xf32>
    %cst_25 = arith.constant 1.000000e+00 : f32
    %50 = vector.broadcast %cst_25 : f32 to vector<8x128xf32>
    %51 = arith.addf %50, %49 : vector<8x128xf32>
    %52 = arith.divf %50, %51 : vector<8x128xf32>
    %53 = vector.extract_strided_slice %52 {offsets = [0, 0], sizes = [8, 64], strides = [1, 1]} : vector<8x128xf32> to vector<8x64xf32>
    %54 = vector.extract_strided_slice %52 {offsets = [0, 64], sizes = [8, 64], strides = [1, 1]} : vector<8x128xf32> to vector<8x64xf32>
    %55 = vector.extract_strided_slice %43 {offsets = [0, 128], sizes = [8, 64], strides = [1, 1]} : vector<8x192xf32> to vector<8x64xf32>
    %56 = vector.extract_strided_slice %44 {offsets = [0, 128], sizes = [8, 64], strides = [1, 1]} : vector<8x192xf32> to vector<8x64xf32>
    %57 = arith.addf %56, %15 : vector<8x64xf32>
    %58 = arith.mulf %53, %57 : vector<8x64xf32>
    %59 = arith.addf %55, %58 : vector<8x64xf32>
    %60 = math.tanh %59 : vector<8x64xf32>
    %61 = arith.subf %39, %60 : vector<8x64xf32>
    %62 = arith.mulf %54, %61 : vector<8x64xf32>
    %63 = arith.addf %60, %62 : vector<8x64xf32>
    %c8_26 = arith.constant 8 : index
    %c0_27 = arith.constant 0 : index
    %64 = vector.load %arg38[%c8_26, %c0_27] : memref<128x64xf32, #tpu.memory_space<vmem>>, vector<8x64xf32>
    tpu.vector_store %arg38[%c8_26, %c0_27], %63 {strides = array<i32>} : memref<128x64xf32, #tpu.memory_space<vmem>>, vector<8x64xf32>,
    %c16 = arith.constant 16 : index
    %c0_28 = arith.constant 0 : index
    %65 = vector.load %arg37[%c16, %c0_28] : memref<128x192xf32, #tpu.memory_space<vmem>>, vector<8x192xf32>
    %c104 = arith.constant 104 : index
    %c0_29 = arith.constant 0 : index
    %66 = vector.load %arg37[%c104, %c0_29] : memref<128x192xf32, #tpu.memory_space<vmem>>, vector<8x192xf32>
    %67 = arith.select %13, %66, %65 : vector<8x192xi1>, vector<8x192xf32>
    %cst_30 = arith.constant dense<0.000000e+00> : vector<8x192xf32>
    %68 = tpu.matmul %63, %8, %cst_30 {dimension_numbers = #tpu.dot_dimension_numbers<[1], [0], [0], [1], [0, 0, 1, 1], [], []>} : vector<8x64xf32>, vector<64x192xf32>, vector<8x192xf32> -> vector<8x192xf32>
    %69 = vector.extract_strided_slice %67 {offsets = [0, 0], sizes = [8, 128], strides = [1, 1]} : vector<8x192xf32> to vector<8x128xf32>
    %70 = vector.extract_strided_slice %68 {offsets = [0, 0], sizes = [8, 128], strides = [1, 1]} : vector<8x192xf32> to vector<8x128xf32>
    %71 = arith.addf %69, %70 : vector<8x128xf32>
    %72 = arith.negf %71 : vector<8x128xf32>
    %73 = math.exp %72 : vector<8x128xf32>
    %cst_31 = arith.constant 1.000000e+00 : f32
    %74 = vector.broadcast %cst_31 : f32 to vector<8x128xf32>
    %75 = arith.addf %74, %73 : vector<8x128xf32>
    %76 = arith.divf %74, %75 : vector<8x128xf32>
    %77 = vector.extract_strided_slice %76 {offsets = [0, 0], sizes = [8, 64], strides = [1, 1]} : vector<8x128xf32> to vector<8x64xf32>
    %78 = vector.extract_strided_slice %76 {offsets = [0, 64], sizes = [8, 64], strides = [1, 1]} : vector<8x128xf32> to vector<8x64xf32>
    %79 = vector.extract_strided_slice %67 {offsets = [0, 128], sizes = [8, 64], strides = [1, 1]} : vector<8x192xf32> to vector<8x64xf32>
    %80 = vector.extract_strided_slice %68 {offsets = [0, 128], sizes = [8, 64], strides = [1, 1]} : vector<8x192xf32> to vector<8x64xf32>
    %81 = arith.addf %80, %15 : vector<8x64xf32>
    %82 = arith.mulf %77, %81 : vector<8x64xf32>
    %83 = arith.addf %79, %82 : vector<8x64xf32>
    %84 = math.tanh %83 : vector<8x64xf32>
    %85 = arith.subf %63, %84 : vector<8x64xf32>
    %86 = arith.mulf %78, %85 : vector<8x64xf32>
    %87 = arith.addf %84, %86 : vector<8x64xf32>
    %c16_32 = arith.constant 16 : index
    %c0_33 = arith.constant 0 : index
    %88 = vector.load %arg38[%c16_32, %c0_33] : memref<128x64xf32, #tpu.memory_space<vmem>>, vector<8x64xf32>
    tpu.vector_store %arg38[%c16_32, %c0_33], %87 {strides = array<i32>} : memref<128x64xf32, #tpu.memory_space<vmem>>, vector<8x64xf32>,
    %c24 = arith.constant 24 : index
    %c0_34 = arith.constant 0 : index
    %89 = vector.load %arg37[%c24, %c0_34] : memref<128x192xf32, #tpu.memory_space<vmem>>, vector<8x192xf32>
    %c96 = arith.constant 96 : index
    %c0_35 = arith.constant 0 : index
    %90 = vector.load %arg37[%c96, %c0_35] : memref<128x192xf32, #tpu.memory_space<vmem>>, vector<8x192xf32>
    %91 = arith.select %13, %90, %89 : vector<8x192xi1>, vector<8x192xf32>
    %cst_36 = arith.constant dense<0.000000e+00> : vector<8x192xf32>
    %92 = tpu.matmul %87, %8, %cst_36 {dimension_numbers = #tpu.dot_dimension_numbers<[1], [0], [0], [1], [0, 0, 1, 1], [], []>} : vector<8x64xf32>, vector<64x192xf32>, vector<8x192xf32> -> vector<8x192xf32>
    %93 = vector.extract_strided_slice %91 {offsets = [0, 0], sizes = [8, 128], strides = [1, 1]} : vector<8x192xf32> to vector<8x128xf32>
    %94 = vector.extract_strided_slice %92 {offsets = [0, 0], sizes = [8, 128], strides = [1, 1]} : vector<8x192xf32> to vector<8x128xf32>
    %95 = arith.addf %93, %94 : vector<8x128xf32>
    %96 = arith.negf %95 : vector<8x128xf32>
    %97 = math.exp %96 : vector<8x128xf32>
    %cst_37 = arith.constant 1.000000e+00 : f32
    %98 = vector.broadcast %cst_37 : f32 to vector<8x128xf32>
    %99 = arith.addf %98, %97 : vector<8x128xf32>
    %100 = arith.divf %98, %99 : vector<8x128xf32>
    %101 = vector.extract_strided_slice %100 {offsets = [0, 0], sizes = [8, 64], strides = [1, 1]} : vector<8x128xf32> to vector<8x64xf32>
    %102 = vector.extract_strided_slice %100 {offsets = [0, 64], sizes = [8, 64], strides = [1, 1]} : vector<8x128xf32> to vector<8x64xf32>
    %103 = vector.extract_strided_slice %91 {offsets = [0, 128], sizes = [8, 64], strides = [1, 1]} : vector<8x192xf32> to vector<8x64xf32>
    %104 = vector.extract_strided_slice %92 {offsets = [0, 128], sizes = [8, 64], strides = [1, 1]} : vector<8x192xf32> to vector<8x64xf32>
    %105 = arith.addf %104, %15 : vector<8x64xf32>
    %106 = arith.mulf %101, %105 : vector<8x64xf32>
    %107 = arith.addf %103, %106 : vector<8x64xf32>
    %108 = math.tanh %107 : vector<8x64xf32>
    %109 = arith.subf %87, %108 : vector<8x64xf32>
    %110 = arith.mulf %102, %109 : vector<8x64xf32>
    %111 = arith.addf %108, %110 : vector<8x64xf32>
    %c24_38 = arith.constant 24 : index
    %c0_39 = arith.constant 0 : index
    %112 = vector.load %arg38[%c24_38, %c0_39] : memref<128x64xf32, #tpu.memory_space<vmem>>, vector<8x64xf32>
    tpu.vector_store %arg38[%c24_38, %c0_39], %111 {strides = array<i32>} : memref<128x64xf32, #tpu.memory_space<vmem>>, vector<8x64xf32>,
    %c32 = arith.constant 32 : index
    %c0_40 = arith.constant 0 : index
    %113 = vector.load %arg37[%c32, %c0_40] : memref<128x192xf32, #tpu.memory_space<vmem>>, vector<8x192xf32>
    %c88 = arith.constant 88 : index
    %c0_41 = arith.constant 0 : index
    %114 = vector.load %arg37[%c88, %c0_41] : memref<128x192xf32, #tpu.memory_space<vmem>>, vector<8x192xf32>
    %115 = arith.select %13, %114, %113 : vector<8x192xi1>, vector<8x192xf32>
    %cst_42 = arith.constant dense<0.000000e+00> : vector<8x192xf32>
    %116 = tpu.matmul %111, %8, %cst_42 {dimension_numbers = #tpu.dot_dimension_numbers<[1], [0], [0], [1], [0, 0, 1, 1], [], []>} : vector<8x64xf32>, vector<64x192xf32>, vector<8x192xf32> -> vector<8x192xf32>
    %117 = vector.extract_strided_slice %115 {offsets = [0, 0], sizes = [8, 128], strides = [1, 1]} : vector<8x192xf32> to vector<8x128xf32>
    %118 = vector.extract_strided_slice %116 {offsets = [0, 0], sizes = [8, 128], strides = [1, 1]} : vector<8x192xf32> to vector<8x128xf32>
    %119 = arith.addf %117, %118 : vector<8x128xf32>
    %120 = arith.negf %119 : vector<8x128xf32>
    %121 = math.exp %120 : vector<8x128xf32>
    %cst_43 = arith.constant 1.000000e+00 : f32
    %122 = vector.broadcast %cst_43 : f32 to vector<8x128xf32>
    %123 = arith.addf %122, %121 : vector<8x128xf32>
    %124 = arith.divf %122, %123 : vector<8x128xf32>
    %125 = vector.extract_strided_slice %124 {offsets = [0, 0], sizes = [8, 64], strides = [1, 1]} : vector<8x128xf32> to vector<8x64xf32>
    %126 = vector.extract_strided_slice %124 {offsets = [0, 64], sizes = [8, 64], strides = [1, 1]} : vector<8x128xf32> to vector<8x64xf32>
    %127 = vector.extract_strided_slice %115 {offsets = [0, 128], sizes = [8, 64], strides = [1, 1]} : vector<8x192xf32> to vector<8x64xf32>
    %128 = vector.extract_strided_slice %116 {offsets = [0, 128], sizes = [8, 64], strides = [1, 1]} : vector<8x192xf32> to vector<8x64xf32>
    %129 = arith.addf %128, %15 : vector<8x64xf32>
    %130 = arith.mulf %125, %129 : vector<8x64xf32>
    %131 = arith.addf %127, %130 : vector<8x64xf32>
    %132 = math.tanh %131 : vector<8x64xf32>
    %133 = arith.subf %111, %132 : vector<8x64xf32>
    %134 = arith.mulf %126, %133 : vector<8x64xf32>
    %135 = arith.addf %132, %134 : vector<8x64xf32>
    %c32_44 = arith.constant 32 : index
    %c0_45 = arith.constant 0 : index
    %136 = vector.load %arg38[%c32_44, %c0_45] : memref<128x64xf32, #tpu.memory_space<vmem>>, vector<8x64xf32>
    tpu.vector_store %arg38[%c32_44, %c0_45], %135 {strides = array<i32>} : memref<128x64xf32, #tpu.memory_space<vmem>>, vector<8x64xf32>,
    %c40 = arith.constant 40 : index
    %c0_46 = arith.constant 0 : index
    %137 = vector.load %arg37[%c40, %c0_46] : memref<128x192xf32, #tpu.memory_space<vmem>>, vector<8x192xf32>
    %c80 = arith.constant 80 : index
    %c0_47 = arith.constant 0 : index
    %138 = vector.load %arg37[%c80, %c0_47] : memref<128x192xf32, #tpu.memory_space<vmem>>, vector<8x192xf32>
    %139 = arith.select %13, %138, %137 : vector<8x192xi1>, vector<8x192xf32>
    %cst_48 = arith.constant dense<0.000000e+00> : vector<8x192xf32>
    %140 = tpu.matmul %135, %8, %cst_48 {dimension_numbers = #tpu.dot_dimension_numbers<[1], [0], [0], [1], [0, 0, 1, 1], [], []>} : vector<8x64xf32>, vector<64x192xf32>, vector<8x192xf32> -> vector<8x192xf32>
    %141 = vector.extract_strided_slice %139 {offsets = [0, 0], sizes = [8, 128], strides = [1, 1]} : vector<8x192xf32> to vector<8x128xf32>
    %142 = vector.extract_strided_slice %140 {offsets = [0, 0], sizes = [8, 128], strides = [1, 1]} : vector<8x192xf32> to vector<8x128xf32>
    %143 = arith.addf %141, %142 : vector<8x128xf32>
    %144 = arith.negf %143 : vector<8x128xf32>
    %145 = math.exp %144 : vector<8x128xf32>
    %cst_49 = arith.constant 1.000000e+00 : f32
    %146 = vector.broadcast %cst_49 : f32 to vector<8x128xf32>
    %147 = arith.addf %146, %145 : vector<8x128xf32>
    %148 = arith.divf %146, %147 : vector<8x128xf32>
    %149 = vector.extract_strided_slice %148 {offsets = [0, 0], sizes = [8, 64], strides = [1, 1]} : vector<8x128xf32> to vector<8x64xf32>
    %150 = vector.extract_strided_slice %148 {offsets = [0, 64], sizes = [8, 64], strides = [1, 1]} : vector<8x128xf32> to vector<8x64xf32>
    %151 = vector.extract_strided_slice %139 {offsets = [0, 128], sizes = [8, 64], strides = [1, 1]} : vector<8x192xf32> to vector<8x64xf32>
    %152 = vector.extract_strided_slice %140 {offsets = [0, 128], sizes = [8, 64], strides = [1, 1]} : vector<8x192xf32> to vector<8x64xf32>
    %153 = arith.addf %152, %15 : vector<8x64xf32>
    %154 = arith.mulf %149, %153 : vector<8x64xf32>
    %155 = arith.addf %151, %154 : vector<8x64xf32>
    %156 = math.tanh %155 : vector<8x64xf32>
    %157 = arith.subf %135, %156 : vector<8x64xf32>
    %158 = arith.mulf %150, %157 : vector<8x64xf32>
    %159 = arith.addf %156, %158 : vector<8x64xf32>
    %c40_50 = arith.constant 40 : index
    %c0_51 = arith.constant 0 : index
    %160 = vector.load %arg38[%c40_50, %c0_51] : memref<128x64xf32, #tpu.memory_space<vmem>>, vector<8x64xf32>
    tpu.vector_store %arg38[%c40_50, %c0_51], %159 {strides = array<i32>} : memref<128x64xf32, #tpu.memory_space<vmem>>, vector<8x64xf32>,
    %c48 = arith.constant 48 : index
    %c0_52 = arith.constant 0 : index
    %161 = vector.load %arg37[%c48, %c0_52] : memref<128x192xf32, #tpu.memory_space<vmem>>, vector<8x192xf32>
    %c72 = arith.constant 72 : index
    %c0_53 = arith.constant 0 : index
    %162 = vector.load %arg37[%c72, %c0_53] : memref<128x192xf32, #tpu.memory_space<vmem>>, vector<8x192xf32>
    %163 = arith.select %13, %162, %161 : vector<8x192xi1>, vector<8x192xf32>
    %cst_54 = arith.constant dense<0.000000e+00> : vector<8x192xf32>
    %164 = tpu.matmul %159, %8, %cst_54 {dimension_numbers = #tpu.dot_dimension_numbers<[1], [0], [0], [1], [0, 0, 1, 1], [], []>} : vector<8x64xf32>, vector<64x192xf32>, vector<8x192xf32> -> vector<8x192xf32>
    %165 = vector.extract_strided_slice %163 {offsets = [0, 0], sizes = [8, 128], strides = [1, 1]} : vector<8x192xf32> to vector<8x128xf32>
    %166 = vector.extract_strided_slice %164 {offsets = [0, 0], sizes = [8, 128], strides = [1, 1]} : vector<8x192xf32> to vector<8x128xf32>
    %167 = arith.addf %165, %166 : vector<8x128xf32>
    %168 = arith.negf %167 : vector<8x128xf32>
    %169 = math.exp %168 : vector<8x128xf32>
    %cst_55 = arith.constant 1.000000e+00 : f32
    %170 = vector.broadcast %cst_55 : f32 to vector<8x128xf32>
    %171 = arith.addf %170, %169 : vector<8x128xf32>
    %172 = arith.divf %170, %171 : vector<8x128xf32>
    %173 = vector.extract_strided_slice %172 {offsets = [0, 0], sizes = [8, 64], strides = [1, 1]} : vector<8x128xf32> to vector<8x64xf32>
    %174 = vector.extract_strided_slice %172 {offsets = [0, 64], sizes = [8, 64], strides = [1, 1]} : vector<8x128xf32> to vector<8x64xf32>
    %175 = vector.extract_strided_slice %163 {offsets = [0, 128], sizes = [8, 64], strides = [1, 1]} : vector<8x192xf32> to vector<8x64xf32>
    %176 = vector.extract_strided_slice %164 {offsets = [0, 128], sizes = [8, 64], strides = [1, 1]} : vector<8x192xf32> to vector<8x64xf32>
    %177 = arith.addf %176, %15 : vector<8x64xf32>
    %178 = arith.mulf %173, %177 : vector<8x64xf32>
    %179 = arith.addf %175, %178 : vector<8x64xf32>
    %180 = math.tanh %179 : vector<8x64xf32>
    %181 = arith.subf %159, %180 : vector<8x64xf32>
    %182 = arith.mulf %174, %181 : vector<8x64xf32>
    %183 = arith.addf %180, %182 : vector<8x64xf32>
    %c48_56 = arith.constant 48 : index
    %c0_57 = arith.constant 0 : index
    %184 = vector.load %arg38[%c48_56, %c0_57] : memref<128x64xf32, #tpu.memory_space<vmem>>, vector<8x64xf32>
    tpu.vector_store %arg38[%c48_56, %c0_57], %183 {strides = array<i32>} : memref<128x64xf32, #tpu.memory_space<vmem>>, vector<8x64xf32>,
    %c56 = arith.constant 56 : index
    %c0_58 = arith.constant 0 : index
    %185 = vector.load %arg37[%c56, %c0_58] : memref<128x192xf32, #tpu.memory_space<vmem>>, vector<8x192xf32>
    %c64 = arith.constant 64 : index
    %c0_59 = arith.constant 0 : index
    %186 = vector.load %arg37[%c64, %c0_59] : memref<128x192xf32, #tpu.memory_space<vmem>>, vector<8x192xf32>
    %187 = arith.select %13, %186, %185 : vector<8x192xi1>, vector<8x192xf32>
    %cst_60 = arith.constant dense<0.000000e+00> : vector<8x192xf32>
    %188 = tpu.matmul %183, %8, %cst_60 {dimension_numbers = #tpu.dot_dimension_numbers<[1], [0], [0], [1], [0, 0, 1, 1], [], []>} : vector<8x64xf32>, vector<64x192xf32>, vector<8x192xf32> -> vector<8x192xf32>
    %189 = vector.extract_strided_slice %187 {offsets = [0, 0], sizes = [8, 128], strides = [1, 1]} : vector<8x192xf32> to vector<8x128xf32>
    %190 = vector.extract_strided_slice %188 {offsets = [0, 0], sizes = [8, 128], strides = [1, 1]} : vector<8x192xf32> to vector<8x128xf32>
    %191 = arith.addf %189, %190 : vector<8x128xf32>
    %192 = arith.negf %191 : vector<8x128xf32>
    %193 = math.exp %192 : vector<8x128xf32>
    %cst_61 = arith.constant 1.000000e+00 : f32
    %194 = vector.broadcast %cst_61 : f32 to vector<8x128xf32>
    %195 = arith.addf %194, %193 : vector<8x128xf32>
    %196 = arith.divf %194, %195 : vector<8x128xf32>
    %197 = vector.extract_strided_slice %196 {offsets = [0, 0], sizes = [8, 64], strides = [1, 1]} : vector<8x128xf32> to vector<8x64xf32>
    %198 = vector.extract_strided_slice %196 {offsets = [0, 64], sizes = [8, 64], strides = [1, 1]} : vector<8x128xf32> to vector<8x64xf32>
    %199 = vector.extract_strided_slice %187 {offsets = [0, 128], sizes = [8, 64], strides = [1, 1]} : vector<8x192xf32> to vector<8x64xf32>
    %200 = vector.extract_strided_slice %188 {offsets = [0, 128], sizes = [8, 64], strides = [1, 1]} : vector<8x192xf32> to vector<8x64xf32>
    %201 = arith.addf %200, %15 : vector<8x64xf32>
    %202 = arith.mulf %197, %201 : vector<8x64xf32>
    %203 = arith.addf %199, %202 : vector<8x64xf32>
    %204 = math.tanh %203 : vector<8x64xf32>
    %205 = arith.subf %183, %204 : vector<8x64xf32>
    %206 = arith.mulf %198, %205 : vector<8x64xf32>
    %207 = arith.addf %204, %206 : vector<8x64xf32>
    %c56_62 = arith.constant 56 : index
    %c0_63 = arith.constant 0 : index
    %208 = vector.load %arg38[%c56_62, %c0_63] : memref<128x64xf32, #tpu.memory_space<vmem>>, vector<8x64xf32>
    tpu.vector_store %arg38[%c56_62, %c0_63], %207 {strides = array<i32>} : memref<128x64xf32, #tpu.memory_space<vmem>>, vector<8x64xf32>,
    %c64_64 = arith.constant 64 : index
    %c0_65 = arith.constant 0 : index
    %209 = vector.load %arg37[%c64_64, %c0_65] : memref<128x192xf32, #tpu.memory_space<vmem>>, vector<8x192xf32>
    %c56_66 = arith.constant 56 : index
    %c0_67 = arith.constant 0 : index
    %210 = vector.load %arg37[%c56_66, %c0_67] : memref<128x192xf32, #tpu.memory_space<vmem>>, vector<8x192xf32>
    %211 = arith.select %13, %210, %209 : vector<8x192xi1>, vector<8x192xf32>
    %cst_68 = arith.constant dense<0.000000e+00> : vector<8x192xf32>
    %212 = tpu.matmul %207, %8, %cst_68 {dimension_numbers = #tpu.dot_dimension_numbers<[1], [0], [0], [1], [0, 0, 1, 1], [], []>} : vector<8x64xf32>, vector<64x192xf32>, vector<8x192xf32> -> vector<8x192xf32>
    %213 = vector.extract_strided_slice %211 {offsets = [0, 0], sizes = [8, 128], strides = [1, 1]} : vector<8x192xf32> to vector<8x128xf32>
    %214 = vector.extract_strided_slice %212 {offsets = [0, 0], sizes = [8, 128], strides = [1, 1]} : vector<8x192xf32> to vector<8x128xf32>
    %215 = arith.addf %213, %214 : vector<8x128xf32>
    %216 = arith.negf %215 : vector<8x128xf32>
    %217 = math.exp %216 : vector<8x128xf32>
    %cst_69 = arith.constant 1.000000e+00 : f32
    %218 = vector.broadcast %cst_69 : f32 to vector<8x128xf32>
    %219 = arith.addf %218, %217 : vector<8x128xf32>
    %220 = arith.divf %218, %219 : vector<8x128xf32>
    %221 = vector.extract_strided_slice %220 {offsets = [0, 0], sizes = [8, 64], strides = [1, 1]} : vector<8x128xf32> to vector<8x64xf32>
    %222 = vector.extract_strided_slice %220 {offsets = [0, 64], sizes = [8, 64], strides = [1, 1]} : vector<8x128xf32> to vector<8x64xf32>
    %223 = vector.extract_strided_slice %211 {offsets = [0, 128], sizes = [8, 64], strides = [1, 1]} : vector<8x192xf32> to vector<8x64xf32>
    %224 = vector.extract_strided_slice %212 {offsets = [0, 128], sizes = [8, 64], strides = [1, 1]} : vector<8x192xf32> to vector<8x64xf32>
    %225 = arith.addf %224, %15 : vector<8x64xf32>
    %226 = arith.mulf %221, %225 : vector<8x64xf32>
    %227 = arith.addf %223, %226 : vector<8x64xf32>
    %228 = math.tanh %227 : vector<8x64xf32>
    %229 = arith.subf %207, %228 : vector<8x64xf32>
    %230 = arith.mulf %222, %229 : vector<8x64xf32>
    %231 = arith.addf %228, %230 : vector<8x64xf32>
    %c64_70 = arith.constant 64 : index
    %c0_71 = arith.constant 0 : index
    %232 = vector.load %arg38[%c64_70, %c0_71] : memref<128x64xf32, #tpu.memory_space<vmem>>, vector<8x64xf32>
    tpu.vector_store %arg38[%c64_70, %c0_71], %231 {strides = array<i32>} : memref<128x64xf32, #tpu.memory_space<vmem>>, vector<8x64xf32>,
    %c72_72 = arith.constant 72 : index
    %c0_73 = arith.constant 0 : index
    %233 = vector.load %arg37[%c72_72, %c0_73] : memref<128x192xf32, #tpu.memory_space<vmem>>, vector<8x192xf32>
    %c48_74 = arith.constant 48 : index
    %c0_75 = arith.constant 0 : index
    %234 = vector.load %arg37[%c48_74, %c0_75] : memref<128x192xf32, #tpu.memory_space<vmem>>, vector<8x192xf32>
    %235 = arith.select %13, %234, %233 : vector<8x192xi1>, vector<8x192xf32>
    %cst_76 = arith.constant dense<0.000000e+00> : vector<8x192xf32>
    %236 = tpu.matmul %231, %8, %cst_76 {dimension_numbers = #tpu.dot_dimension_numbers<[1], [0], [0], [1], [0, 0, 1, 1], [], []>} : vector<8x64xf32>, vector<64x192xf32>, vector<8x192xf32> -> vector<8x192xf32>
    %237 = vector.extract_strided_slice %235 {offsets = [0, 0], sizes = [8, 128], strides = [1, 1]} : vector<8x192xf32> to vector<8x128xf32>
    %238 = vector.extract_strided_slice %236 {offsets = [0, 0], sizes = [8, 128], strides = [1, 1]} : vector<8x192xf32> to vector<8x128xf32>
    %239 = arith.addf %237, %238 : vector<8x128xf32>
    %240 = arith.negf %239 : vector<8x128xf32>
    %241 = math.exp %240 : vector<8x128xf32>
    %cst_77 = arith.constant 1.000000e+00 : f32
    %242 = vector.broadcast %cst_77 : f32 to vector<8x128xf32>
    %243 = arith.addf %242, %241 : vector<8x128xf32>
    %244 = arith.divf %242, %243 : vector<8x128xf32>
    %245 = vector.extract_strided_slice %244 {offsets = [0, 0], sizes = [8, 64], strides = [1, 1]} : vector<8x128xf32> to vector<8x64xf32>
    %246 = vector.extract_strided_slice %244 {offsets = [0, 64], sizes = [8, 64], strides = [1, 1]} : vector<8x128xf32> to vector<8x64xf32>
    %247 = vector.extract_strided_slice %235 {offsets = [0, 128], sizes = [8, 64], strides = [1, 1]} : vector<8x192xf32> to vector<8x64xf32>
    %248 = vector.extract_strided_slice %236 {offsets = [0, 128], sizes = [8, 64], strides = [1, 1]} : vector<8x192xf32> to vector<8x64xf32>
    %249 = arith.addf %248, %15 : vector<8x64xf32>
    %250 = arith.mulf %245, %249 : vector<8x64xf32>
    %251 = arith.addf %247, %250 : vector<8x64xf32>
    %252 = math.tanh %251 : vector<8x64xf32>
    %253 = arith.subf %231, %252 : vector<8x64xf32>
    %254 = arith.mulf %246, %253 : vector<8x64xf32>
    %255 = arith.addf %252, %254 : vector<8x64xf32>
    %c72_78 = arith.constant 72 : index
    %c0_79 = arith.constant 0 : index
    %256 = vector.load %arg38[%c72_78, %c0_79] : memref<128x64xf32, #tpu.memory_space<vmem>>, vector<8x64xf32>
    tpu.vector_store %arg38[%c72_78, %c0_79], %255 {strides = array<i32>} : memref<128x64xf32, #tpu.memory_space<vmem>>, vector<8x64xf32>,
    %c80_80 = arith.constant 80 : index
    %c0_81 = arith.constant 0 : index
    %257 = vector.load %arg37[%c80_80, %c0_81] : memref<128x192xf32, #tpu.memory_space<vmem>>, vector<8x192xf32>
    %c40_82 = arith.constant 40 : index
    %c0_83 = arith.constant 0 : index
    %258 = vector.load %arg37[%c40_82, %c0_83] : memref<128x192xf32, #tpu.memory_space<vmem>>, vector<8x192xf32>
    %259 = arith.select %13, %258, %257 : vector<8x192xi1>, vector<8x192xf32>
    %cst_84 = arith.constant dense<0.000000e+00> : vector<8x192xf32>
    %260 = tpu.matmul %255, %8, %cst_84 {dimension_numbers = #tpu.dot_dimension_numbers<[1], [0], [0], [1], [0, 0, 1, 1], [], []>} : vector<8x64xf32>, vector<64x192xf32>, vector<8x192xf32> -> vector<8x192xf32>
    %261 = vector.extract_strided_slice %259 {offsets = [0, 0], sizes = [8, 128], strides = [1, 1]} : vector<8x192xf32> to vector<8x128xf32>
    %262 = vector.extract_strided_slice %260 {offsets = [0, 0], sizes = [8, 128], strides = [1, 1]} : vector<8x192xf32> to vector<8x128xf32>
    %263 = arith.addf %261, %262 : vector<8x128xf32>
    %264 = arith.negf %263 : vector<8x128xf32>
    %265 = math.exp %264 : vector<8x128xf32>
    %cst_85 = arith.constant 1.000000e+00 : f32
    %266 = vector.broadcast %cst_85 : f32 to vector<8x128xf32>
    %267 = arith.addf %266, %265 : vector<8x128xf32>
    %268 = arith.divf %266, %267 : vector<8x128xf32>
    %269 = vector.extract_strided_slice %268 {offsets = [0, 0], sizes = [8, 64], strides = [1, 1]} : vector<8x128xf32> to vector<8x64xf32>
    %270 = vector.extract_strided_slice %268 {offsets = [0, 64], sizes = [8, 64], strides = [1, 1]} : vector<8x128xf32> to vector<8x64xf32>
    %271 = vector.extract_strided_slice %259 {offsets = [0, 128], sizes = [8, 64], strides = [1, 1]} : vector<8x192xf32> to vector<8x64xf32>
    %272 = vector.extract_strided_slice %260 {offsets = [0, 128], sizes = [8, 64], strides = [1, 1]} : vector<8x192xf32> to vector<8x64xf32>
    %273 = arith.addf %272, %15 : vector<8x64xf32>
    %274 = arith.mulf %269, %273 : vector<8x64xf32>
    %275 = arith.addf %271, %274 : vector<8x64xf32>
    %276 = math.tanh %275 : vector<8x64xf32>
    %277 = arith.subf %255, %276 : vector<8x64xf32>
    %278 = arith.mulf %270, %277 : vector<8x64xf32>
    %279 = arith.addf %276, %278 : vector<8x64xf32>
    %c80_86 = arith.constant 80 : index
    %c0_87 = arith.constant 0 : index
    %280 = vector.load %arg38[%c80_86, %c0_87] : memref<128x64xf32, #tpu.memory_space<vmem>>, vector<8x64xf32>
    tpu.vector_store %arg38[%c80_86, %c0_87], %279 {strides = array<i32>} : memref<128x64xf32, #tpu.memory_space<vmem>>, vector<8x64xf32>,
    %c88_88 = arith.constant 88 : index
    %c0_89 = arith.constant 0 : index
    %281 = vector.load %arg37[%c88_88, %c0_89] : memref<128x192xf32, #tpu.memory_space<vmem>>, vector<8x192xf32>
    %c32_90 = arith.constant 32 : index
    %c0_91 = arith.constant 0 : index
    %282 = vector.load %arg37[%c32_90, %c0_91] : memref<128x192xf32, #tpu.memory_space<vmem>>, vector<8x192xf32>
    %283 = arith.select %13, %282, %281 : vector<8x192xi1>, vector<8x192xf32>
    %cst_92 = arith.constant dense<0.000000e+00> : vector<8x192xf32>
    %284 = tpu.matmul %279, %8, %cst_92 {dimension_numbers = #tpu.dot_dimension_numbers<[1], [0], [0], [1], [0, 0, 1, 1], [], []>} : vector<8x64xf32>, vector<64x192xf32>, vector<8x192xf32> -> vector<8x192xf32>
    %285 = vector.extract_strided_slice %283 {offsets = [0, 0], sizes = [8, 128], strides = [1, 1]} : vector<8x192xf32> to vector<8x128xf32>
    %286 = vector.extract_strided_slice %284 {offsets = [0, 0], sizes = [8, 128], strides = [1, 1]} : vector<8x192xf32> to vector<8x128xf32>
    %287 = arith.addf %285, %286 : vector<8x128xf32>
    %288 = arith.negf %287 : vector<8x128xf32>
    %289 = math.exp %288 : vector<8x128xf32>
    %cst_93 = arith.constant 1.000000e+00 : f32
    %290 = vector.broadcast %cst_93 : f32 to vector<8x128xf32>
    %291 = arith.addf %290, %289 : vector<8x128xf32>
    %292 = arith.divf %290, %291 : vector<8x128xf32>
    %293 = vector.extract_strided_slice %292 {offsets = [0, 0], sizes = [8, 64], strides = [1, 1]} : vector<8x128xf32> to vector<8x64xf32>
    %294 = vector.extract_strided_slice %292 {offsets = [0, 64], sizes = [8, 64], strides = [1, 1]} : vector<8x128xf32> to vector<8x64xf32>
    %295 = vector.extract_strided_slice %283 {offsets = [0, 128], sizes = [8, 64], strides = [1, 1]} : vector<8x192xf32> to vector<8x64xf32>
    %296 = vector.extract_strided_slice %284 {offsets = [0, 128], sizes = [8, 64], strides = [1, 1]} : vector<8x192xf32> to vector<8x64xf32>
    %297 = arith.addf %296, %15 : vector<8x64xf32>
    %298 = arith.mulf %293, %297 : vector<8x64xf32>
    %299 = arith.addf %295, %298 : vector<8x64xf32>
    %300 = math.tanh %299 : vector<8x64xf32>
    %301 = arith.subf %279, %300 : vector<8x64xf32>
    %302 = arith.mulf %294, %301 : vector<8x64xf32>
    %303 = arith.addf %300, %302 : vector<8x64xf32>
    %c88_94 = arith.constant 88 : index
    %c0_95 = arith.constant 0 : index
    %304 = vector.load %arg38[%c88_94, %c0_95] : memref<128x64xf32, #tpu.memory_space<vmem>>, vector<8x64xf32>
    tpu.vector_store %arg38[%c88_94, %c0_95], %303 {strides = array<i32>} : memref<128x64xf32, #tpu.memory_space<vmem>>, vector<8x64xf32>,
    %c96_96 = arith.constant 96 : index
    %c0_97 = arith.constant 0 : index
    %305 = vector.load %arg37[%c96_96, %c0_97] : memref<128x192xf32, #tpu.memory_space<vmem>>, vector<8x192xf32>
    %c24_98 = arith.constant 24 : index
    %c0_99 = arith.constant 0 : index
    %306 = vector.load %arg37[%c24_98, %c0_99] : memref<128x192xf32, #tpu.memory_space<vmem>>, vector<8x192xf32>
    %307 = arith.select %13, %306, %305 : vector<8x192xi1>, vector<8x192xf32>
    %cst_100 = arith.constant dense<0.000000e+00> : vector<8x192xf32>
    %308 = tpu.matmul %303, %8, %cst_100 {dimension_numbers = #tpu.dot_dimension_numbers<[1], [0], [0], [1], [0, 0, 1, 1], [], []>} : vector<8x64xf32>, vector<64x192xf32>, vector<8x192xf32> -> vector<8x192xf32>
    %309 = vector.extract_strided_slice %307 {offsets = [0, 0], sizes = [8, 128], strides = [1, 1]} : vector<8x192xf32> to vector<8x128xf32>
    %310 = vector.extract_strided_slice %308 {offsets = [0, 0], sizes = [8, 128], strides = [1, 1]} : vector<8x192xf32> to vector<8x128xf32>
    %311 = arith.addf %309, %310 : vector<8x128xf32>
    %312 = arith.negf %311 : vector<8x128xf32>
    %313 = math.exp %312 : vector<8x128xf32>
    %cst_101 = arith.constant 1.000000e+00 : f32
    %314 = vector.broadcast %cst_101 : f32 to vector<8x128xf32>
    %315 = arith.addf %314, %313 : vector<8x128xf32>
    %316 = arith.divf %314, %315 : vector<8x128xf32>
    %317 = vector.extract_strided_slice %316 {offsets = [0, 0], sizes = [8, 64], strides = [1, 1]} : vector<8x128xf32> to vector<8x64xf32>
    %318 = vector.extract_strided_slice %316 {offsets = [0, 64], sizes = [8, 64], strides = [1, 1]} : vector<8x128xf32> to vector<8x64xf32>
    %319 = vector.extract_strided_slice %307 {offsets = [0, 128], sizes = [8, 64], strides = [1, 1]} : vector<8x192xf32> to vector<8x64xf32>
    %320 = vector.extract_strided_slice %308 {offsets = [0, 128], sizes = [8, 64], strides = [1, 1]} : vector<8x192xf32> to vector<8x64xf32>
    %321 = arith.addf %320, %15 : vector<8x64xf32>
    %322 = arith.mulf %317, %321 : vector<8x64xf32>
    %323 = arith.addf %319, %322 : vector<8x64xf32>
    %324 = math.tanh %323 : vector<8x64xf32>
    %325 = arith.subf %303, %324 : vector<8x64xf32>
    %326 = arith.mulf %318, %325 : vector<8x64xf32>
    %327 = arith.addf %324, %326 : vector<8x64xf32>
    %c96_102 = arith.constant 96 : index
    %c0_103 = arith.constant 0 : index
    %328 = vector.load %arg38[%c96_102, %c0_103] : memref<128x64xf32, #tpu.memory_space<vmem>>, vector<8x64xf32>
    tpu.vector_store %arg38[%c96_102, %c0_103], %327 {strides = array<i32>} : memref<128x64xf32, #tpu.memory_space<vmem>>, vector<8x64xf32>,
    %c104_104 = arith.constant 104 : index
    %c0_105 = arith.constant 0 : index
    %329 = vector.load %arg37[%c104_104, %c0_105] : memref<128x192xf32, #tpu.memory_space<vmem>>, vector<8x192xf32>
    %c16_106 = arith.constant 16 : index
    %c0_107 = arith.constant 0 : index
    %330 = vector.load %arg37[%c16_106, %c0_107] : memref<128x192xf32, #tpu.memory_space<vmem>>, vector<8x192xf32>
    %331 = arith.select %13, %330, %329 : vector<8x192xi1>, vector<8x192xf32>
    %cst_108 = arith.constant dense<0.000000e+00> : vector<8x192xf32>
    %332 = tpu.matmul %327, %8, %cst_108 {dimension_numbers = #tpu.dot_dimension_numbers<[1], [0], [0], [1], [0, 0, 1, 1], [], []>} : vector<8x64xf32>, vector<64x192xf32>, vector<8x192xf32> -> vector<8x192xf32>
    %333 = vector.extract_strided_slice %331 {offsets = [0, 0], sizes = [8, 128], strides = [1, 1]} : vector<8x192xf32> to vector<8x128xf32>
    %334 = vector.extract_strided_slice %332 {offsets = [0, 0], sizes = [8, 128], strides = [1, 1]} : vector<8x192xf32> to vector<8x128xf32>
    %335 = arith.addf %333, %334 : vector<8x128xf32>
    %336 = arith.negf %335 : vector<8x128xf32>
    %337 = math.exp %336 : vector<8x128xf32>
    %cst_109 = arith.constant 1.000000e+00 : f32
    %338 = vector.broadcast %cst_109 : f32 to vector<8x128xf32>
    %339 = arith.addf %338, %337 : vector<8x128xf32>
    %340 = arith.divf %338, %339 : vector<8x128xf32>
    %341 = vector.extract_strided_slice %340 {offsets = [0, 0], sizes = [8, 64], strides = [1, 1]} : vector<8x128xf32> to vector<8x64xf32>
    %342 = vector.extract_strided_slice %340 {offsets = [0, 64], sizes = [8, 64], strides = [1, 1]} : vector<8x128xf32> to vector<8x64xf32>
    %343 = vector.extract_strided_slice %331 {offsets = [0, 128], sizes = [8, 64], strides = [1, 1]} : vector<8x192xf32> to vector<8x64xf32>
    %344 = vector.extract_strided_slice %332 {offsets = [0, 128], sizes = [8, 64], strides = [1, 1]} : vector<8x192xf32> to vector<8x64xf32>
    %345 = arith.addf %344, %15 : vector<8x64xf32>
    %346 = arith.mulf %341, %345 : vector<8x64xf32>
    %347 = arith.addf %343, %346 : vector<8x64xf32>
    %348 = math.tanh %347 : vector<8x64xf32>
    %349 = arith.subf %327, %348 : vector<8x64xf32>
    %350 = arith.mulf %342, %349 : vector<8x64xf32>
    %351 = arith.addf %348, %350 : vector<8x64xf32>
    %c104_110 = arith.constant 104 : index
    %c0_111 = arith.constant 0 : index
    %352 = vector.load %arg38[%c104_110, %c0_111] : memref<128x64xf32, #tpu.memory_space<vmem>>, vector<8x64xf32>
    tpu.vector_store %arg38[%c104_110, %c0_111], %351 {strides = array<i32>} : memref<128x64xf32, #tpu.memory_space<vmem>>, vector<8x64xf32>,
    %c112_112 = arith.constant 112 : index
    %c0_113 = arith.constant 0 : index
    %353 = vector.load %arg37[%c112_112, %c0_113] : memref<128x192xf32, #tpu.memory_space<vmem>>, vector<8x192xf32>
    %c8_114 = arith.constant 8 : index
    %c0_115 = arith.constant 0 : index
    %354 = vector.load %arg37[%c8_114, %c0_115] : memref<128x192xf32, #tpu.memory_space<vmem>>, vector<8x192xf32>
    %355 = arith.select %13, %354, %353 : vector<8x192xi1>, vector<8x192xf32>
    %cst_116 = arith.constant dense<0.000000e+00> : vector<8x192xf32>
    %356 = tpu.matmul %351, %8, %cst_116 {dimension_numbers = #tpu.dot_dimension_numbers<[1], [0], [0], [1], [0, 0, 1, 1], [], []>} : vector<8x64xf32>, vector<64x192xf32>, vector<8x192xf32> -> vector<8x192xf32>
    %357 = vector.extract_strided_slice %355 {offsets = [0, 0], sizes = [8, 128], strides = [1, 1]} : vector<8x192xf32> to vector<8x128xf32>
    %358 = vector.extract_strided_slice %356 {offsets = [0, 0], sizes = [8, 128], strides = [1, 1]} : vector<8x192xf32> to vector<8x128xf32>
    %359 = arith.addf %357, %358 : vector<8x128xf32>
    %360 = arith.negf %359 : vector<8x128xf32>
    %361 = math.exp %360 : vector<8x128xf32>
    %cst_117 = arith.constant 1.000000e+00 : f32
    %362 = vector.broadcast %cst_117 : f32 to vector<8x128xf32>
    %363 = arith.addf %362, %361 : vector<8x128xf32>
    %364 = arith.divf %362, %363 : vector<8x128xf32>
    %365 = vector.extract_strided_slice %364 {offsets = [0, 0], sizes = [8, 64], strides = [1, 1]} : vector<8x128xf32> to vector<8x64xf32>
    %366 = vector.extract_strided_slice %364 {offsets = [0, 64], sizes = [8, 64], strides = [1, 1]} : vector<8x128xf32> to vector<8x64xf32>
    %367 = vector.extract_strided_slice %355 {offsets = [0, 128], sizes = [8, 64], strides = [1, 1]} : vector<8x192xf32> to vector<8x64xf32>
    %368 = vector.extract_strided_slice %356 {offsets = [0, 128], sizes = [8, 64], strides = [1, 1]} : vector<8x192xf32> to vector<8x64xf32>
    %369 = arith.addf %368, %15 : vector<8x64xf32>
    %370 = arith.mulf %365, %369 : vector<8x64xf32>
    %371 = arith.addf %367, %370 : vector<8x64xf32>
    %372 = math.tanh %371 : vector<8x64xf32>
    %373 = arith.subf %351, %372 : vector<8x64xf32>
    %374 = arith.mulf %366, %373 : vector<8x64xf32>
    %375 = arith.addf %372, %374 : vector<8x64xf32>
    %c112_118 = arith.constant 112 : index
    %c0_119 = arith.constant 0 : index
    %376 = vector.load %arg38[%c112_118, %c0_119] : memref<128x64xf32, #tpu.memory_space<vmem>>, vector<8x64xf32>
    tpu.vector_store %arg38[%c112_118, %c0_119], %375 {strides = array<i32>} : memref<128x64xf32, #tpu.memory_space<vmem>>, vector<8x64xf32>,
    %c120_120 = arith.constant 120 : index
    %c0_121 = arith.constant 0 : index
    %377 = vector.load %arg37[%c120_120, %c0_121] : memref<128x192xf32, #tpu.memory_space<vmem>>, vector<8x192xf32>
    %c0_122 = arith.constant 0 : index
    %c0_123 = arith.constant 0 : index
    %378 = vector.load %arg37[%c0_122, %c0_123] : memref<128x192xf32, #tpu.memory_space<vmem>>, vector<8x192xf32>
    %379 = arith.select %13, %378, %377 : vector<8x192xi1>, vector<8x192xf32>
    %cst_124 = arith.constant dense<0.000000e+00> : vector<8x192xf32>
    %380 = tpu.matmul %375, %8, %cst_124 {dimension_numbers = #tpu.dot_dimension_numbers<[1], [0], [0], [1], [0, 0, 1, 1], [], []>} : vector<8x64xf32>, vector<64x192xf32>, vector<8x192xf32> -> vector<8x192xf32>
    %381 = vector.extract_strided_slice %379 {offsets = [0, 0], sizes = [8, 128], strides = [1, 1]} : vector<8x192xf32> to vector<8x128xf32>
    %382 = vector.extract_strided_slice %380 {offsets = [0, 0], sizes = [8, 128], strides = [1, 1]} : vector<8x192xf32> to vector<8x128xf32>
    %383 = arith.addf %381, %382 : vector<8x128xf32>
    %384 = arith.negf %383 : vector<8x128xf32>
    %385 = math.exp %384 : vector<8x128xf32>
    %cst_125 = arith.constant 1.000000e+00 : f32
    %386 = vector.broadcast %cst_125 : f32 to vector<8x128xf32>
    %387 = arith.addf %386, %385 : vector<8x128xf32>
    %388 = arith.divf %386, %387 : vector<8x128xf32>
    %389 = vector.extract_strided_slice %388 {offsets = [0, 0], sizes = [8, 64], strides = [1, 1]} : vector<8x128xf32> to vector<8x64xf32>
    %390 = vector.extract_strided_slice %388 {offsets = [0, 64], sizes = [8, 64], strides = [1, 1]} : vector<8x128xf32> to vector<8x64xf32>
    %391 = vector.extract_strided_slice %379 {offsets = [0, 128], sizes = [8, 64], strides = [1, 1]} : vector<8x192xf32> to vector<8x64xf32>
    %392 = vector.extract_strided_slice %380 {offsets = [0, 128], sizes = [8, 64], strides = [1, 1]} : vector<8x192xf32> to vector<8x64xf32>
    %393 = arith.addf %392, %15 : vector<8x64xf32>
    %394 = arith.mulf %389, %393 : vector<8x64xf32>
    %395 = arith.addf %391, %394 : vector<8x64xf32>
    %396 = math.tanh %395 : vector<8x64xf32>
    %397 = arith.subf %375, %396 : vector<8x64xf32>
    %398 = arith.mulf %390, %397 : vector<8x64xf32>
    %399 = arith.addf %396, %398 : vector<8x64xf32>
    %c120_126 = arith.constant 120 : index
    %c0_127 = arith.constant 0 : index
    %400 = vector.load %arg38[%c120_126, %c0_127] : memref<128x64xf32, #tpu.memory_space<vmem>>, vector<8x64xf32>
    tpu.vector_store %arg38[%c120_126, %c0_127], %399 {strides = array<i32>} : memref<128x64xf32, #tpu.memory_space<vmem>>, vector<8x64xf32>,
    %c0_128 = arith.constant 0 : index
    %c32_129 = arith.constant 32 : index
    %401 = vector.load %arg38[%c0_128, %c32_129] : memref<128x64xf32, #tpu.memory_space<vmem>>, vector<8x32xf32>
    %c120_130 = arith.constant 120 : index
    %c32_131 = arith.constant 32 : index
    %402 = vector.load %arg38[%c120_130, %c32_131] : memref<128x64xf32, #tpu.memory_space<vmem>>, vector<8x32xf32>
    %c0_132 = arith.constant 0 : index
    %c32_133 = arith.constant 32 : index
    %403 = vector.load %arg38[%c0_132, %c32_133] : memref<128x64xf32, #tpu.memory_space<vmem>>, vector<8x32xf32>
    tpu.vector_store %arg38[%c0_132, %c32_133], %402 {strides = array<i32>} : memref<128x64xf32, #tpu.memory_space<vmem>>, vector<8x32xf32>,
    %c120_134 = arith.constant 120 : index
    %c32_135 = arith.constant 32 : index
    %404 = vector.load %arg38[%c120_134, %c32_135] : memref<128x64xf32, #tpu.memory_space<vmem>>, vector<8x32xf32>
    tpu.vector_store %arg38[%c120_134, %c32_135], %401 {strides = array<i32>} : memref<128x64xf32, #tpu.memory_space<vmem>>, vector<8x32xf32>,
    %c8_136 = arith.constant 8 : index
    %c32_137 = arith.constant 32 : index
    %405 = vector.load %arg38[%c8_136, %c32_137] : memref<128x64xf32, #tpu.memory_space<vmem>>, vector<8x32xf32>
    %c112_138 = arith.constant 112 : index
    %c32_139 = arith.constant 32 : index
    %406 = vector.load %arg38[%c112_138, %c32_139] : memref<128x64xf32, #tpu.memory_space<vmem>>, vector<8x32xf32>
    %c8_140 = arith.constant 8 : index
    %c32_141 = arith.constant 32 : index
    %407 = vector.load %arg38[%c8_140, %c32_141] : memref<128x64xf32, #tpu.memory_space<vmem>>, vector<8x32xf32>
    tpu.vector_store %arg38[%c8_140, %c32_141], %406 {strides = array<i32>} : memref<128x64xf32, #tpu.memory_space<vmem>>, vector<8x32xf32>,
    %c112_142 = arith.constant 112 : index
    %c32_143 = arith.constant 32 : index
    %408 = vector.load %arg38[%c112_142, %c32_143] : memref<128x64xf32, #tpu.memory_space<vmem>>, vector<8x32xf32>
    tpu.vector_store %arg38[%c112_142, %c32_143], %405 {strides = array<i32>} : memref<128x64xf32, #tpu.memory_space<vmem>>, vector<8x32xf32>,
    %c16_144 = arith.constant 16 : index
    %c32_145 = arith.constant 32 : index
    %409 = vector.load %arg38[%c16_144, %c32_145] : memref<128x64xf32, #tpu.memory_space<vmem>>, vector<8x32xf32>
    %c104_146 = arith.constant 104 : index
    %c32_147 = arith.constant 32 : index
    %410 = vector.load %arg38[%c104_146, %c32_147] : memref<128x64xf32, #tpu.memory_space<vmem>>, vector<8x32xf32>
    %c16_148 = arith.constant 16 : index
    %c32_149 = arith.constant 32 : index
    %411 = vector.load %arg38[%c16_148, %c32_149] : memref<128x64xf32, #tpu.memory_space<vmem>>, vector<8x32xf32>
    tpu.vector_store %arg38[%c16_148, %c32_149], %410 {strides = array<i32>} : memref<128x64xf32, #tpu.memory_space<vmem>>, vector<8x32xf32>,
    %c104_150 = arith.constant 104 : index
    %c32_151 = arith.constant 32 : index
    %412 = vector.load %arg38[%c104_150, %c32_151] : memref<128x64xf32, #tpu.memory_space<vmem>>, vector<8x32xf32>
    tpu.vector_store %arg38[%c104_150, %c32_151], %409 {strides = array<i32>} : memref<128x64xf32, #tpu.memory_space<vmem>>, vector<8x32xf32>,
    %c24_152 = arith.constant 24 : index
    %c32_153 = arith.constant 32 : index
    %413 = vector.load %arg38[%c24_152, %c32_153] : memref<128x64xf32, #tpu.memory_space<vmem>>, vector<8x32xf32>
    %c96_154 = arith.constant 96 : index
    %c32_155 = arith.constant 32 : index
    %414 = vector.load %arg38[%c96_154, %c32_155] : memref<128x64xf32, #tpu.memory_space<vmem>>, vector<8x32xf32>
    %c24_156 = arith.constant 24 : index
    %c32_157 = arith.constant 32 : index
    %415 = vector.load %arg38[%c24_156, %c32_157] : memref<128x64xf32, #tpu.memory_space<vmem>>, vector<8x32xf32>
    tpu.vector_store %arg38[%c24_156, %c32_157], %414 {strides = array<i32>} : memref<128x64xf32, #tpu.memory_space<vmem>>, vector<8x32xf32>,
    %c96_158 = arith.constant 96 : index
    %c32_159 = arith.constant 32 : index
    %416 = vector.load %arg38[%c96_158, %c32_159] : memref<128x64xf32, #tpu.memory_space<vmem>>, vector<8x32xf32>
    tpu.vector_store %arg38[%c96_158, %c32_159], %413 {strides = array<i32>} : memref<128x64xf32, #tpu.memory_space<vmem>>, vector<8x32xf32>,
    %c32_160 = arith.constant 32 : index
    %c32_161 = arith.constant 32 : index
    %417 = vector.load %arg38[%c32_160, %c32_161] : memref<128x64xf32, #tpu.memory_space<vmem>>, vector<8x32xf32>
    %c88_162 = arith.constant 88 : index
    %c32_163 = arith.constant 32 : index
    %418 = vector.load %arg38[%c88_162, %c32_163] : memref<128x64xf32, #tpu.memory_space<vmem>>, vector<8x32xf32>
    %c32_164 = arith.constant 32 : index
    %c32_165 = arith.constant 32 : index
    %419 = vector.load %arg38[%c32_164, %c32_165] : memref<128x64xf32, #tpu.memory_space<vmem>>, vector<8x32xf32>
    tpu.vector_store %arg38[%c32_164, %c32_165], %418 {strides = array<i32>} : memref<128x64xf32, #tpu.memory_space<vmem>>, vector<8x32xf32>,
    %c88_166 = arith.constant 88 : index
    %c32_167 = arith.constant 32 : index
    %420 = vector.load %arg38[%c88_166, %c32_167] : memref<128x64xf32, #tpu.memory_space<vmem>>, vector<8x32xf32>
    tpu.vector_store %arg38[%c88_166, %c32_167], %417 {strides = array<i32>} : memref<128x64xf32, #tpu.memory_space<vmem>>, vector<8x32xf32>,
    %c40_168 = arith.constant 40 : index
    %c32_169 = arith.constant 32 : index
    %421 = vector.load %arg38[%c40_168, %c32_169] : memref<128x64xf32, #tpu.memory_space<vmem>>, vector<8x32xf32>
    %c80_170 = arith.constant 80 : index
    %c32_171 = arith.constant 32 : index
    %422 = vector.load %arg38[%c80_170, %c32_171] : memref<128x64xf32, #tpu.memory_space<vmem>>, vector<8x32xf32>
    %c40_172 = arith.constant 40 : index
    %c32_173 = arith.constant 32 : index
    %423 = vector.load %arg38[%c40_172, %c32_173] : memref<128x64xf32, #tpu.memory_space<vmem>>, vector<8x32xf32>
    tpu.vector_store %arg38[%c40_172, %c32_173], %422 {strides = array<i32>} : memref<128x64xf32, #tpu.memory_space<vmem>>, vector<8x32xf32>,
    %c80_174 = arith.constant 80 : index
    %c32_175 = arith.constant 32 : index
    %424 = vector.load %arg38[%c80_174, %c32_175] : memref<128x64xf32, #tpu.memory_space<vmem>>, vector<8x32xf32>
    tpu.vector_store %arg38[%c80_174, %c32_175], %421 {strides = array<i32>} : memref<128x64xf32, #tpu.memory_space<vmem>>, vector<8x32xf32>,
    %c48_176 = arith.constant 48 : index
    %c32_177 = arith.constant 32 : index
    %425 = vector.load %arg38[%c48_176, %c32_177] : memref<128x64xf32, #tpu.memory_space<vmem>>, vector<8x32xf32>
    %c72_178 = arith.constant 72 : index
    %c32_179 = arith.constant 32 : index
    %426 = vector.load %arg38[%c72_178, %c32_179] : memref<128x64xf32, #tpu.memory_space<vmem>>, vector<8x32xf32>
    %c48_180 = arith.constant 48 : index
    %c32_181 = arith.constant 32 : index
    %427 = vector.load %arg38[%c48_180, %c32_181] : memref<128x64xf32, #tpu.memory_space<vmem>>, vector<8x32xf32>
    tpu.vector_store %arg38[%c48_180, %c32_181], %426 {strides = array<i32>} : memref<128x64xf32, #tpu.memory_space<vmem>>, vector<8x32xf32>,
    %c72_182 = arith.constant 72 : index
    %c32_183 = arith.constant 32 : index
    %428 = vector.load %arg38[%c72_182, %c32_183] : memref<128x64xf32, #tpu.memory_space<vmem>>, vector<8x32xf32>
    tpu.vector_store %arg38[%c72_182, %c32_183], %425 {strides = array<i32>} : memref<128x64xf32, #tpu.memory_space<vmem>>, vector<8x32xf32>,
    %c56_184 = arith.constant 56 : index
    %c32_185 = arith.constant 32 : index
    %429 = vector.load %arg38[%c56_184, %c32_185] : memref<128x64xf32, #tpu.memory_space<vmem>>, vector<8x32xf32>
    %c64_186 = arith.constant 64 : index
    %c32_187 = arith.constant 32 : index
    %430 = vector.load %arg38[%c64_186, %c32_187] : memref<128x64xf32, #tpu.memory_space<vmem>>, vector<8x32xf32>
    %c56_188 = arith.constant 56 : index
    %c32_189 = arith.constant 32 : index
    %431 = vector.load %arg38[%c56_188, %c32_189] : memref<128x64xf32, #tpu.memory_space<vmem>>, vector<8x32xf32>
    tpu.vector_store %arg38[%c56_188, %c32_189], %430 {strides = array<i32>} : memref<128x64xf32, #tpu.memory_space<vmem>>, vector<8x32xf32>,
    %c64_190 = arith.constant 64 : index
    %c32_191 = arith.constant 32 : index
    %432 = vector.load %arg38[%c64_190, %c32_191] : memref<128x64xf32, #tpu.memory_space<vmem>>, vector<8x32xf32>
    tpu.vector_store %arg38[%c64_190, %c32_191], %429 {strides = array<i32>} : memref<128x64xf32, #tpu.memory_space<vmem>>, vector<8x32xf32>,
    %433 = vector.extract_strided_slice %399 {offsets = [0, 0], sizes = [8, 32], strides = [1, 1]} : vector<8x64xf32> to vector<8x32xf32>
    %434 = vector.extract_strided_slice %399 {offsets = [0, 32], sizes = [8, 32], strides = [1, 1]} : vector<8x64xf32> to vector<8x32xf32>
    %435 = arith.addf %433, %434 : vector<8x32xf32>
    %c0_192 = arith.constant 0 : index
    %c0_193 = arith.constant 0 : index
    %436 = vector.load %arg12[%c0_192, %c0_193] : memref<32x192xf32, #tpu.memory_space<vmem>>, vector<32x192xf32>
    %cst_194 = arith.constant dense<0.000000e+00> : vector<8x192xf32>
    %437 = tpu.matmul %435, %436, %cst_194 {dimension_numbers = #tpu.dot_dimension_numbers<[1], [0], [0], [1], [0, 0, 1, 1], [], []>} : vector<8x32xf32>, vector<32x192xf32>, vector<8x192xf32> -> vector<8x192xf32>
    %c0_195 = arith.constant 0 : index
    %c0_196 = arith.constant 0 : index
    %438 = vector.load %arg13[%c0_195, %c0_196] : memref<1x192xf32, #tpu.memory_space<vmem>>, vector<1x192xf32>
    %439 = vector.broadcast %438 : vector<1x192xf32> to vector<8x192xf32>
    %440 = arith.addf %437, %439 : vector<8x192xf32>
    %c0_197 = arith.constant 0 : index
    %c0_198 = arith.constant 0 : index
    %441 = vector.load %arg39[%c0_197, %c0_198] : memref<8x192xf32, #tpu.memory_space<vmem>>, vector<8x192xf32>
    tpu.vector_store %arg39[%c0_197, %c0_198], %440 {strides = array<i32>} : memref<8x192xf32, #tpu.memory_space<vmem>>, vector<8x192xf32>,
    %c0_199 = arith.constant 0 : index
    %c0_200 = arith.constant 0 : index
    %442 = vector.load %arg14[%c0_199, %c0_200] : memref<64x192xf32, #tpu.memory_space<vmem>>, vector<64x192xf32>
    %c0_201 = arith.constant 0 : index
    %c0_202 = arith.constant 0 : index
    %443 = vector.load %arg15[%c0_201, %c0_202] : memref<1x64xf32, #tpu.memory_space<vmem>>, vector<1x64xf32>
    %cst_203 = arith.constant 5.000000e-01 : f32
    %444 = vector.broadcast %cst_203 : f32 to vector<1x192xf32>
    %445 = arith.cmpf ogt, %0, %444 : vector<1x192xf32>
    %cst_204 = arith.constant 0.000000e+00 : f32
    %446 = vector.broadcast %cst_204 : f32 to vector<1x64xf32>
    %c0_205 = arith.constant 0 : index
    %c0_206 = arith.constant 0 : index
    %447 = vector.load %arg39[%c0_205, %c0_206] : memref<8x192xf32, #tpu.memory_space<vmem>>, vector<1x192xf32>
    %c7 = arith.constant 7 : index
    %c0_207 = arith.constant 0 : index
    %448 = vector.load %arg39[%c7, %c0_207] : memref<8x192xf32, #tpu.memory_space<vmem>>, vector<1x192xf32>
    %449 = arith.select %445, %448, %447 : vector<1x192xi1>, vector<1x192xf32>
    %cst_208 = arith.constant dense<0.000000e+00> : vector<1x192xf32>
    %450 = tpu.matmul %446, %442, %cst_208 {dimension_numbers = #tpu.dot_dimension_numbers<[1], [0], [0], [1], [0, 0, 1, 1], [], []>} : vector<1x64xf32>, vector<64x192xf32>, vector<1x192xf32> -> vector<1x192xf32>
    %451 = vector.extract_strided_slice %449 {offsets = [0, 0], sizes = [1, 128], strides = [1, 1]} : vector<1x192xf32> to vector<1x128xf32>
    %452 = vector.extract_strided_slice %450 {offsets = [0, 0], sizes = [1, 128], strides = [1, 1]} : vector<1x192xf32> to vector<1x128xf32>
    %453 = arith.addf %451, %452 : vector<1x128xf32>
    %454 = arith.negf %453 : vector<1x128xf32>
    %455 = math.exp %454 : vector<1x128xf32>
    %cst_209 = arith.constant 1.000000e+00 : f32
    %456 = vector.broadcast %cst_209 : f32 to vector<1x128xf32>
    %457 = arith.addf %456, %455 : vector<1x128xf32>
    %458 = arith.divf %456, %457 : vector<1x128xf32>
    %459 = vector.extract_strided_slice %458 {offsets = [0, 0], sizes = [1, 64], strides = [1, 1]} : vector<1x128xf32> to vector<1x64xf32>
    %460 = vector.extract_strided_slice %458 {offsets = [0, 64], sizes = [1, 64], strides = [1, 1]} : vector<1x128xf32> to vector<1x64xf32>
    %461 = vector.extract_strided_slice %449 {offsets = [0, 128], sizes = [1, 64], strides = [1, 1]} : vector<1x192xf32> to vector<1x64xf32>
    %462 = vector.extract_strided_slice %450 {offsets = [0, 128], sizes = [1, 64], strides = [1, 1]} : vector<1x192xf32> to vector<1x64xf32>
    %463 = arith.addf %462, %443 : vector<1x64xf32>
    %464 = arith.mulf %459, %463 : vector<1x64xf32>
    %465 = arith.addf %461, %464 : vector<1x64xf32>
    %466 = math.tanh %465 : vector<1x64xf32>
    %467 = arith.subf %446, %466 : vector<1x64xf32>
    %468 = arith.mulf %460, %467 : vector<1x64xf32>
    %469 = arith.addf %466, %468 : vector<1x64xf32>
    %c0_210 = arith.constant 0 : index
    %c0_211 = arith.constant 0 : index
    %470 = vector.load %arg40[%c0_210, %c0_211] : memref<8x64xf32, #tpu.memory_space<vmem>>, vector<1x64xf32>
    tpu.vector_store %arg40[%c0_210, %c0_211], %469 {strides = array<i32>} : memref<8x64xf32, #tpu.memory_space<vmem>>, vector<1x64xf32>,
    %c1 = arith.constant 1 : index
    %c0_212 = arith.constant 0 : index
    %471 = vector.load %arg39[%c1, %c0_212] : memref<8x192xf32, #tpu.memory_space<vmem>>, vector<1x192xf32>
    %c6 = arith.constant 6 : index
    %c0_213 = arith.constant 0 : index
    %472 = vector.load %arg39[%c6, %c0_213] : memref<8x192xf32, #tpu.memory_space<vmem>>, vector<1x192xf32>
    %473 = arith.select %445, %472, %471 : vector<1x192xi1>, vector<1x192xf32>
    %cst_214 = arith.constant dense<0.000000e+00> : vector<1x192xf32>
    %474 = tpu.matmul %469, %442, %cst_214 {dimension_numbers = #tpu.dot_dimension_numbers<[1], [0], [0], [1], [0, 0, 1, 1], [], []>} : vector<1x64xf32>, vector<64x192xf32>, vector<1x192xf32> -> vector<1x192xf32>
    %475 = vector.extract_strided_slice %473 {offsets = [0, 0], sizes = [1, 128], strides = [1, 1]} : vector<1x192xf32> to vector<1x128xf32>
    %476 = vector.extract_strided_slice %474 {offsets = [0, 0], sizes = [1, 128], strides = [1, 1]} : vector<1x192xf32> to vector<1x128xf32>
    %477 = arith.addf %475, %476 : vector<1x128xf32>
    %478 = arith.negf %477 : vector<1x128xf32>
    %479 = math.exp %478 : vector<1x128xf32>
    %cst_215 = arith.constant 1.000000e+00 : f32
    %480 = vector.broadcast %cst_215 : f32 to vector<1x128xf32>
    %481 = arith.addf %480, %479 : vector<1x128xf32>
    %482 = arith.divf %480, %481 : vector<1x128xf32>
    %483 = vector.extract_strided_slice %482 {offsets = [0, 0], sizes = [1, 64], strides = [1, 1]} : vector<1x128xf32> to vector<1x64xf32>
    %484 = vector.extract_strided_slice %482 {offsets = [0, 64], sizes = [1, 64], strides = [1, 1]} : vector<1x128xf32> to vector<1x64xf32>
    %485 = vector.extract_strided_slice %473 {offsets = [0, 128], sizes = [1, 64], strides = [1, 1]} : vector<1x192xf32> to vector<1x64xf32>
    %486 = vector.extract_strided_slice %474 {offsets = [0, 128], sizes = [1, 64], strides = [1, 1]} : vector<1x192xf32> to vector<1x64xf32>
    %487 = arith.addf %486, %443 : vector<1x64xf32>
    %488 = arith.mulf %483, %487 : vector<1x64xf32>
    %489 = arith.addf %485, %488 : vector<1x64xf32>
    %490 = math.tanh %489 : vector<1x64xf32>
    %491 = arith.subf %469, %490 : vector<1x64xf32>
    %492 = arith.mulf %484, %491 : vector<1x64xf32>
    %493 = arith.addf %490, %492 : vector<1x64xf32>
    %c1_216 = arith.constant 1 : index
    %c0_217 = arith.constant 0 : index
    %494 = vector.load %arg40[%c1_216, %c0_217] : memref<8x64xf32, #tpu.memory_space<vmem>>, vector<1x64xf32>
    tpu.vector_store %arg40[%c1_216, %c0_217], %493 {strides = array<i32>} : memref<8x64xf32, #tpu.memory_space<vmem>>, vector<1x64xf32>,
    %c2 = arith.constant 2 : index
    %c0_218 = arith.constant 0 : index
    %495 = vector.load %arg39[%c2, %c0_218] : memref<8x192xf32, #tpu.memory_space<vmem>>, vector<1x192xf32>
    %c5 = arith.constant 5 : index
    %c0_219 = arith.constant 0 : index
    %496 = vector.load %arg39[%c5, %c0_219] : memref<8x192xf32, #tpu.memory_space<vmem>>, vector<1x192xf32>
    %497 = arith.select %445, %496, %495 : vector<1x192xi1>, vector<1x192xf32>
    %cst_220 = arith.constant dense<0.000000e+00> : vector<1x192xf32>
    %498 = tpu.matmul %493, %442, %cst_220 {dimension_numbers = #tpu.dot_dimension_numbers<[1], [0], [0], [1], [0, 0, 1, 1], [], []>} : vector<1x64xf32>, vector<64x192xf32>, vector<1x192xf32> -> vector<1x192xf32>
    %499 = vector.extract_strided_slice %497 {offsets = [0, 0], sizes = [1, 128], strides = [1, 1]} : vector<1x192xf32> to vector<1x128xf32>
    %500 = vector.extract_strided_slice %498 {offsets = [0, 0], sizes = [1, 128], strides = [1, 1]} : vector<1x192xf32> to vector<1x128xf32>
    %501 = arith.addf %499, %500 : vector<1x128xf32>
    %502 = arith.negf %501 : vector<1x128xf32>
    %503 = math.exp %502 : vector<1x128xf32>
    %cst_221 = arith.constant 1.000000e+00 : f32
    %504 = vector.broadcast %cst_221 : f32 to vector<1x128xf32>
    %505 = arith.addf %504, %503 : vector<1x128xf32>
    %506 = arith.divf %504, %505 : vector<1x128xf32>
    %507 = vector.extract_strided_slice %506 {offsets = [0, 0], sizes = [1, 64], strides = [1, 1]} : vector<1x128xf32> to vector<1x64xf32>
    %508 = vector.extract_strided_slice %506 {offsets = [0, 64], sizes = [1, 64], strides = [1, 1]} : vector<1x128xf32> to vector<1x64xf32>
    %509 = vector.extract_strided_slice %497 {offsets = [0, 128], sizes = [1, 64], strides = [1, 1]} : vector<1x192xf32> to vector<1x64xf32>
    %510 = vector.extract_strided_slice %498 {offsets = [0, 128], sizes = [1, 64], strides = [1, 1]} : vector<1x192xf32> to vector<1x64xf32>
    %511 = arith.addf %510, %443 : vector<1x64xf32>
    %512 = arith.mulf %507, %511 : vector<1x64xf32>
    %513 = arith.addf %509, %512 : vector<1x64xf32>
    %514 = math.tanh %513 : vector<1x64xf32>
    %515 = arith.subf %493, %514 : vector<1x64xf32>
    %516 = arith.mulf %508, %515 : vector<1x64xf32>
    %517 = arith.addf %514, %516 : vector<1x64xf32>
    %c2_222 = arith.constant 2 : index
    %c0_223 = arith.constant 0 : index
    %518 = vector.load %arg40[%c2_222, %c0_223] : memref<8x64xf32, #tpu.memory_space<vmem>>, vector<1x64xf32>
    tpu.vector_store %arg40[%c2_222, %c0_223], %517 {strides = array<i32>} : memref<8x64xf32, #tpu.memory_space<vmem>>, vector<1x64xf32>,
    %c3 = arith.constant 3 : index
    %c0_224 = arith.constant 0 : index
    %519 = vector.load %arg39[%c3, %c0_224] : memref<8x192xf32, #tpu.memory_space<vmem>>, vector<1x192xf32>
    %c4 = arith.constant 4 : index
    %c0_225 = arith.constant 0 : index
    %520 = vector.load %arg39[%c4, %c0_225] : memref<8x192xf32, #tpu.memory_space<vmem>>, vector<1x192xf32>
    %521 = arith.select %445, %520, %519 : vector<1x192xi1>, vector<1x192xf32>
    %cst_226 = arith.constant dense<0.000000e+00> : vector<1x192xf32>
    %522 = tpu.matmul %517, %442, %cst_226 {dimension_numbers = #tpu.dot_dimension_numbers<[1], [0], [0], [1], [0, 0, 1, 1], [], []>} : vector<1x64xf32>, vector<64x192xf32>, vector<1x192xf32> -> vector<1x192xf32>
    %523 = vector.extract_strided_slice %521 {offsets = [0, 0], sizes = [1, 128], strides = [1, 1]} : vector<1x192xf32> to vector<1x128xf32>
    %524 = vector.extract_strided_slice %522 {offsets = [0, 0], sizes = [1, 128], strides = [1, 1]} : vector<1x192xf32> to vector<1x128xf32>
    %525 = arith.addf %523, %524 : vector<1x128xf32>
    %526 = arith.negf %525 : vector<1x128xf32>
    %527 = math.exp %526 : vector<1x128xf32>
    %cst_227 = arith.constant 1.000000e+00 : f32
    %528 = vector.broadcast %cst_227 : f32 to vector<1x128xf32>
    %529 = arith.addf %528, %527 : vector<1x128xf32>
    %530 = arith.divf %528, %529 : vector<1x128xf32>
    %531 = vector.extract_strided_slice %530 {offsets = [0, 0], sizes = [1, 64], strides = [1, 1]} : vector<1x128xf32> to vector<1x64xf32>
    %532 = vector.extract_strided_slice %530 {offsets = [0, 64], sizes = [1, 64], strides = [1, 1]} : vector<1x128xf32> to vector<1x64xf32>
    %533 = vector.extract_strided_slice %521 {offsets = [0, 128], sizes = [1, 64], strides = [1, 1]} : vector<1x192xf32> to vector<1x64xf32>
    %534 = vector.extract_strided_slice %522 {offsets = [0, 128], sizes = [1, 64], strides = [1, 1]} : vector<1x192xf32> to vector<1x64xf32>
    %535 = arith.addf %534, %443 : vector<1x64xf32>
    %536 = arith.mulf %531, %535 : vector<1x64xf32>
    %537 = arith.addf %533, %536 : vector<1x64xf32>
    %538 = math.tanh %537 : vector<1x64xf32>
    %539 = arith.subf %517, %538 : vector<1x64xf32>
    %540 = arith.mulf %532, %539 : vector<1x64xf32>
    %541 = arith.addf %538, %540 : vector<1x64xf32>
    %c3_228 = arith.constant 3 : index
    %c0_229 = arith.constant 0 : index
    %542 = vector.load %arg40[%c3_228, %c0_229] : memref<8x64xf32, #tpu.memory_space<vmem>>, vector<1x64xf32>
    tpu.vector_store %arg40[%c3_228, %c0_229], %541 {strides = array<i32>} : memref<8x64xf32, #tpu.memory_space<vmem>>, vector<1x64xf32>,
    %c4_230 = arith.constant 4 : index
    %c0_231 = arith.constant 0 : index
    %543 = vector.load %arg39[%c4_230, %c0_231] : memref<8x192xf32, #tpu.memory_space<vmem>>, vector<1x192xf32>
    %c3_232 = arith.constant 3 : index
    %c0_233 = arith.constant 0 : index
    %544 = vector.load %arg39[%c3_232, %c0_233] : memref<8x192xf32, #tpu.memory_space<vmem>>, vector<1x192xf32>
    %545 = arith.select %445, %544, %543 : vector<1x192xi1>, vector<1x192xf32>
    %cst_234 = arith.constant dense<0.000000e+00> : vector<1x192xf32>
    %546 = tpu.matmul %541, %442, %cst_234 {dimension_numbers = #tpu.dot_dimension_numbers<[1], [0], [0], [1], [0, 0, 1, 1], [], []>} : vector<1x64xf32>, vector<64x192xf32>, vector<1x192xf32> -> vector<1x192xf32>
    %547 = vector.extract_strided_slice %545 {offsets = [0, 0], sizes = [1, 128], strides = [1, 1]} : vector<1x192xf32> to vector<1x128xf32>
    %548 = vector.extract_strided_slice %546 {offsets = [0, 0], sizes = [1, 128], strides = [1, 1]} : vector<1x192xf32> to vector<1x128xf32>
    %549 = arith.addf %547, %548 : vector<1x128xf32>
    %550 = arith.negf %549 : vector<1x128xf32>
    %551 = math.exp %550 : vector<1x128xf32>
    %cst_235 = arith.constant 1.000000e+00 : f32
    %552 = vector.broadcast %cst_235 : f32 to vector<1x128xf32>
    %553 = arith.addf %552, %551 : vector<1x128xf32>
    %554 = arith.divf %552, %553 : vector<1x128xf32>
    %555 = vector.extract_strided_slice %554 {offsets = [0, 0], sizes = [1, 64], strides = [1, 1]} : vector<1x128xf32> to vector<1x64xf32>
    %556 = vector.extract_strided_slice %554 {offsets = [0, 64], sizes = [1, 64], strides = [1, 1]} : vector<1x128xf32> to vector<1x64xf32>
    %557 = vector.extract_strided_slice %545 {offsets = [0, 128], sizes = [1, 64], strides = [1, 1]} : vector<1x192xf32> to vector<1x64xf32>
    %558 = vector.extract_strided_slice %546 {offsets = [0, 128], sizes = [1, 64], strides = [1, 1]} : vector<1x192xf32> to vector<1x64xf32>
    %559 = arith.addf %558, %443 : vector<1x64xf32>
    %560 = arith.mulf %555, %559 : vector<1x64xf32>
    %561 = arith.addf %557, %560 : vector<1x64xf32>
    %562 = math.tanh %561 : vector<1x64xf32>
    %563 = arith.subf %541, %562 : vector<1x64xf32>
    %564 = arith.mulf %556, %563 : vector<1x64xf32>
    %565 = arith.addf %562, %564 : vector<1x64xf32>
    %c4_236 = arith.constant 4 : index
    %c0_237 = arith.constant 0 : index
    %566 = vector.load %arg40[%c4_236, %c0_237] : memref<8x64xf32, #tpu.memory_space<vmem>>, vector<1x64xf32>
    tpu.vector_store %arg40[%c4_236, %c0_237], %565 {strides = array<i32>} : memref<8x64xf32, #tpu.memory_space<vmem>>, vector<1x64xf32>,
    %c5_238 = arith.constant 5 : index
    %c0_239 = arith.constant 0 : index
    %567 = vector.load %arg39[%c5_238, %c0_239] : memref<8x192xf32, #tpu.memory_space<vmem>>, vector<1x192xf32>
    %c2_240 = arith.constant 2 : index
    %c0_241 = arith.constant 0 : index
    %568 = vector.load %arg39[%c2_240, %c0_241] : memref<8x192xf32, #tpu.memory_space<vmem>>, vector<1x192xf32>
    %569 = arith.select %445, %568, %567 : vector<1x192xi1>, vector<1x192xf32>
    %cst_242 = arith.constant dense<0.000000e+00> : vector<1x192xf32>
    %570 = tpu.matmul %565, %442, %cst_242 {dimension_numbers = #tpu.dot_dimension_numbers<[1], [0], [0], [1], [0, 0, 1, 1], [], []>} : vector<1x64xf32>, vector<64x192xf32>, vector<1x192xf32> -> vector<1x192xf32>
    %571 = vector.extract_strided_slice %569 {offsets = [0, 0], sizes = [1, 128], strides = [1, 1]} : vector<1x192xf32> to vector<1x128xf32>
    %572 = vector.extract_strided_slice %570 {offsets = [0, 0], sizes = [1, 128], strides = [1, 1]} : vector<1x192xf32> to vector<1x128xf32>
    %573 = arith.addf %571, %572 : vector<1x128xf32>
    %574 = arith.negf %573 : vector<1x128xf32>
    %575 = math.exp %574 : vector<1x128xf32>
    %cst_243 = arith.constant 1.000000e+00 : f32
    %576 = vector.broadcast %cst_243 : f32 to vector<1x128xf32>
    %577 = arith.addf %576, %575 : vector<1x128xf32>
    %578 = arith.divf %576, %577 : vector<1x128xf32>
    %579 = vector.extract_strided_slice %578 {offsets = [0, 0], sizes = [1, 64], strides = [1, 1]} : vector<1x128xf32> to vector<1x64xf32>
    %580 = vector.extract_strided_slice %578 {offsets = [0, 64], sizes = [1, 64], strides = [1, 1]} : vector<1x128xf32> to vector<1x64xf32>
    %581 = vector.extract_strided_slice %569 {offsets = [0, 128], sizes = [1, 64], strides = [1, 1]} : vector<1x192xf32> to vector<1x64xf32>
    %582 = vector.extract_strided_slice %570 {offsets = [0, 128], sizes = [1, 64], strides = [1, 1]} : vector<1x192xf32> to vector<1x64xf32>
    %583 = arith.addf %582, %443 : vector<1x64xf32>
    %584 = arith.mulf %579, %583 : vector<1x64xf32>
    %585 = arith.addf %581, %584 : vector<1x64xf32>
    %586 = math.tanh %585 : vector<1x64xf32>
    %587 = arith.subf %565, %586 : vector<1x64xf32>
    %588 = arith.mulf %580, %587 : vector<1x64xf32>
    %589 = arith.addf %586, %588 : vector<1x64xf32>
    %c5_244 = arith.constant 5 : index
    %c0_245 = arith.constant 0 : index
    %590 = vector.load %arg40[%c5_244, %c0_245] : memref<8x64xf32, #tpu.memory_space<vmem>>, vector<1x64xf32>
    tpu.vector_store %arg40[%c5_244, %c0_245], %589 {strides = array<i32>} : memref<8x64xf32, #tpu.memory_space<vmem>>, vector<1x64xf32>,
    %c6_246 = arith.constant 6 : index
    %c0_247 = arith.constant 0 : index
    %591 = vector.load %arg39[%c6_246, %c0_247] : memref<8x192xf32, #tpu.memory_space<vmem>>, vector<1x192xf32>
    %c1_248 = arith.constant 1 : index
    %c0_249 = arith.constant 0 : index
    %592 = vector.load %arg39[%c1_248, %c0_249] : memref<8x192xf32, #tpu.memory_space<vmem>>, vector<1x192xf32>
    %593 = arith.select %445, %592, %591 : vector<1x192xi1>, vector<1x192xf32>
    %cst_250 = arith.constant dense<0.000000e+00> : vector<1x192xf32>
    %594 = tpu.matmul %589, %442, %cst_250 {dimension_numbers = #tpu.dot_dimension_numbers<[1], [0], [0], [1], [0, 0, 1, 1], [], []>} : vector<1x64xf32>, vector<64x192xf32>, vector<1x192xf32> -> vector<1x192xf32>
    %595 = vector.extract_strided_slice %593 {offsets = [0, 0], sizes = [1, 128], strides = [1, 1]} : vector<1x192xf32> to vector<1x128xf32>
    %596 = vector.extract_strided_slice %594 {offsets = [0, 0], sizes = [1, 128], strides = [1, 1]} : vector<1x192xf32> to vector<1x128xf32>
    %597 = arith.addf %595, %596 : vector<1x128xf32>
    %598 = arith.negf %597 : vector<1x128xf32>
    %599 = math.exp %598 : vector<1x128xf32>
    %cst_251 = arith.constant 1.000000e+00 : f32
    %600 = vector.broadcast %cst_251 : f32 to vector<1x128xf32>
    %601 = arith.addf %600, %599 : vector<1x128xf32>
    %602 = arith.divf %600, %601 : vector<1x128xf32>
    %603 = vector.extract_strided_slice %602 {offsets = [0, 0], sizes = [1, 64], strides = [1, 1]} : vector<1x128xf32> to vector<1x64xf32>
    %604 = vector.extract_strided_slice %602 {offsets = [0, 64], sizes = [1, 64], strides = [1, 1]} : vector<1x128xf32> to vector<1x64xf32>
    %605 = vector.extract_strided_slice %593 {offsets = [0, 128], sizes = [1, 64], strides = [1, 1]} : vector<1x192xf32> to vector<1x64xf32>
    %606 = vector.extract_strided_slice %594 {offsets = [0, 128], sizes = [1, 64], strides = [1, 1]} : vector<1x192xf32> to vector<1x64xf32>
    %607 = arith.addf %606, %443 : vector<1x64xf32>
    %608 = arith.mulf %603, %607 : vector<1x64xf32>
    %609 = arith.addf %605, %608 : vector<1x64xf32>
    %610 = math.tanh %609 : vector<1x64xf32>
    %611 = arith.subf %589, %610 : vector<1x64xf32>
    %612 = arith.mulf %604, %611 : vector<1x64xf32>
    %613 = arith.addf %610, %612 : vector<1x64xf32>
    %c6_252 = arith.constant 6 : index
    %c0_253 = arith.constant 0 : index
    %614 = vector.load %arg40[%c6_252, %c0_253] : memref<8x64xf32, #tpu.memory_space<vmem>>, vector<1x64xf32>
    tpu.vector_store %arg40[%c6_252, %c0_253], %613 {strides = array<i32>} : memref<8x64xf32, #tpu.memory_space<vmem>>, vector<1x64xf32>,
    %c7_254 = arith.constant 7 : index
    %c0_255 = arith.constant 0 : index
    %615 = vector.load %arg39[%c7_254, %c0_255] : memref<8x192xf32, #tpu.memory_space<vmem>>, vector<1x192xf32>
    %c0_256 = arith.constant 0 : index
    %c0_257 = arith.constant 0 : index
    %616 = vector.load %arg39[%c0_256, %c0_257] : memref<8x192xf32, #tpu.memory_space<vmem>>, vector<1x192xf32>
    %617 = arith.select %445, %616, %615 : vector<1x192xi1>, vector<1x192xf32>
    %cst_258 = arith.constant dense<0.000000e+00> : vector<1x192xf32>
    %618 = tpu.matmul %613, %442, %cst_258 {dimension_numbers = #tpu.dot_dimension_numbers<[1], [0], [0], [1], [0, 0, 1, 1], [], []>} : vector<1x64xf32>, vector<64x192xf32>, vector<1x192xf32> -> vector<1x192xf32>
    %619 = vector.extract_strided_slice %617 {offsets = [0, 0], sizes = [1, 128], strides = [1, 1]} : vector<1x192xf32> to vector<1x128xf32>
    %620 = vector.extract_strided_slice %618 {offsets = [0, 0], sizes = [1, 128], strides = [1, 1]} : vector<1x192xf32> to vector<1x128xf32>
    %621 = arith.addf %619, %620 : vector<1x128xf32>
    %622 = arith.negf %621 : vector<1x128xf32>
    %623 = math.exp %622 : vector<1x128xf32>
    %cst_259 = arith.constant 1.000000e+00 : f32
    %624 = vector.broadcast %cst_259 : f32 to vector<1x128xf32>
    %625 = arith.addf %624, %623 : vector<1x128xf32>
    %626 = arith.divf %624, %625 : vector<1x128xf32>
    %627 = vector.extract_strided_slice %626 {offsets = [0, 0], sizes = [1, 64], strides = [1, 1]} : vector<1x128xf32> to vector<1x64xf32>
    %628 = vector.extract_strided_slice %626 {offsets = [0, 64], sizes = [1, 64], strides = [1, 1]} : vector<1x128xf32> to vector<1x64xf32>
    %629 = vector.extract_strided_slice %617 {offsets = [0, 128], sizes = [1, 64], strides = [1, 1]} : vector<1x192xf32> to vector<1x64xf32>
    %630 = vector.extract_strided_slice %618 {offsets = [0, 128], sizes = [1, 64], strides = [1, 1]} : vector<1x192xf32> to vector<1x64xf32>
    %631 = arith.addf %630, %443 : vector<1x64xf32>
    %632 = arith.mulf %627, %631 : vector<1x64xf32>
    %633 = arith.addf %629, %632 : vector<1x64xf32>
    %634 = math.tanh %633 : vector<1x64xf32>
    %635 = arith.subf %613, %634 : vector<1x64xf32>
    %636 = arith.mulf %628, %635 : vector<1x64xf32>
    %637 = arith.addf %634, %636 : vector<1x64xf32>
    %c7_260 = arith.constant 7 : index
    %c0_261 = arith.constant 0 : index
    %638 = vector.load %arg40[%c7_260, %c0_261] : memref<8x64xf32, #tpu.memory_space<vmem>>, vector<1x64xf32>
    tpu.vector_store %arg40[%c7_260, %c0_261], %637 {strides = array<i32>} : memref<8x64xf32, #tpu.memory_space<vmem>>, vector<1x64xf32>,
    %c0_262 = arith.constant 0 : index
    %c32_263 = arith.constant 32 : index
    %639 = vector.load %arg40[%c0_262, %c32_263] : memref<8x64xf32, #tpu.memory_space<vmem>>, vector<1x32xf32>
    %c7_264 = arith.constant 7 : index
    %c32_265 = arith.constant 32 : index
    %640 = vector.load %arg40[%c7_264, %c32_265] : memref<8x64xf32, #tpu.memory_space<vmem>>, vector<1x32xf32>
    %c0_266 = arith.constant 0 : index
    %c32_267 = arith.constant 32 : index
    %641 = vector.load %arg40[%c0_266, %c32_267] : memref<8x64xf32, #tpu.memory_space<vmem>>, vector<1x32xf32>
    tpu.vector_store %arg40[%c0_266, %c32_267], %640 {strides = array<i32>} : memref<8x64xf32, #tpu.memory_space<vmem>>, vector<1x32xf32>,
    %c7_268 = arith.constant 7 : index
    %c32_269 = arith.constant 32 : index
    %642 = vector.load %arg40[%c7_268, %c32_269] : memref<8x64xf32, #tpu.memory_space<vmem>>, vector<1x32xf32>
    tpu.vector_store %arg40[%c7_268, %c32_269], %639 {strides = array<i32>} : memref<8x64xf32, #tpu.memory_space<vmem>>, vector<1x32xf32>,
    %c1_270 = arith.constant 1 : index
    %c32_271 = arith.constant 32 : index
    %643 = vector.load %arg40[%c1_270, %c32_271] : memref<8x64xf32, #tpu.memory_space<vmem>>, vector<1x32xf32>
    %c6_272 = arith.constant 6 : index
    %c32_273 = arith.constant 32 : index
    %644 = vector.load %arg40[%c6_272, %c32_273] : memref<8x64xf32, #tpu.memory_space<vmem>>, vector<1x32xf32>
    %c1_274 = arith.constant 1 : index
    %c32_275 = arith.constant 32 : index
    %645 = vector.load %arg40[%c1_274, %c32_275] : memref<8x64xf32, #tpu.memory_space<vmem>>, vector<1x32xf32>
    tpu.vector_store %arg40[%c1_274, %c32_275], %644 {strides = array<i32>} : memref<8x64xf32, #tpu.memory_space<vmem>>, vector<1x32xf32>,
    %c6_276 = arith.constant 6 : index
    %c32_277 = arith.constant 32 : index
    %646 = vector.load %arg40[%c6_276, %c32_277] : memref<8x64xf32, #tpu.memory_space<vmem>>, vector<1x32xf32>
    tpu.vector_store %arg40[%c6_276, %c32_277], %643 {strides = array<i32>} : memref<8x64xf32, #tpu.memory_space<vmem>>, vector<1x32xf32>,
    %c2_278 = arith.constant 2 : index
    %c32_279 = arith.constant 32 : index
    %647 = vector.load %arg40[%c2_278, %c32_279] : memref<8x64xf32, #tpu.memory_space<vmem>>, vector<1x32xf32>
    %c5_280 = arith.constant 5 : index
    %c32_281 = arith.constant 32 : index
    %648 = vector.load %arg40[%c5_280, %c32_281] : memref<8x64xf32, #tpu.memory_space<vmem>>, vector<1x32xf32>
    %c2_282 = arith.constant 2 : index
    %c32_283 = arith.constant 32 : index
    %649 = vector.load %arg40[%c2_282, %c32_283] : memref<8x64xf32, #tpu.memory_space<vmem>>, vector<1x32xf32>
    tpu.vector_store %arg40[%c2_282, %c32_283], %648 {strides = array<i32>} : memref<8x64xf32, #tpu.memory_space<vmem>>, vector<1x32xf32>,
    %c5_284 = arith.constant 5 : index
    %c32_285 = arith.constant 32 : index
    %650 = vector.load %arg40[%c5_284, %c32_285] : memref<8x64xf32, #tpu.memory_space<vmem>>, vector<1x32xf32>
    tpu.vector_store %arg40[%c5_284, %c32_285], %647 {strides = array<i32>} : memref<8x64xf32, #tpu.memory_space<vmem>>, vector<1x32xf32>,
    %c3_286 = arith.constant 3 : index
    %c32_287 = arith.constant 32 : index
    %651 = vector.load %arg40[%c3_286, %c32_287] : memref<8x64xf32, #tpu.memory_space<vmem>>, vector<1x32xf32>
    %c4_288 = arith.constant 4 : index
    %c32_289 = arith.constant 32 : index
    %652 = vector.load %arg40[%c4_288, %c32_289] : memref<8x64xf32, #tpu.memory_space<vmem>>, vector<1x32xf32>
    %c3_290 = arith.constant 3 : index
    %c32_291 = arith.constant 32 : index
    %653 = vector.load %arg40[%c3_290, %c32_291] : memref<8x64xf32, #tpu.memory_space<vmem>>, vector<1x32xf32>
    tpu.vector_store %arg40[%c3_290, %c32_291], %652 {strides = array<i32>} : memref<8x64xf32, #tpu.memory_space<vmem>>, vector<1x32xf32>,
    %c4_292 = arith.constant 4 : index
    %c32_293 = arith.constant 32 : index
    %654 = vector.load %arg40[%c4_292, %c32_293] : memref<8x64xf32, #tpu.memory_space<vmem>>, vector<1x32xf32>
    tpu.vector_store %arg40[%c4_292, %c32_293], %651 {strides = array<i32>} : memref<8x64xf32, #tpu.memory_space<vmem>>, vector<1x32xf32>,
    %c0_294 = arith.constant 0 : index
    %c0_295 = arith.constant 0 : index
    %655 = vector.load %arg38[%c0_294, %c0_295] : memref<128x64xf32, #tpu.memory_space<vmem>>, vector<128x64xf32>
    %c0_296 = arith.constant 0 : index
    %c0_297 = arith.constant 0 : index
    %656 = vector.load %arg6[%c0_296, %c0_297] : memref<64x256xf32, #tpu.memory_space<vmem>>, vector<64x256xf32>
    %c0_298 = arith.constant 0 : index
    %c0_299 = arith.constant 0 : index
    %657 = vector.load %arg7[%c0_298, %c0_299] : memref<1x256xf32, #tpu.memory_space<vmem>>, vector<1x256xf32>
    %c0_300 = arith.constant 0 : index
    %c0_301 = arith.constant 0 : index
    %658 = vector.load %arg8[%c0_300, %c0_301] : memref<256x64xf32, #tpu.memory_space<vmem>>, vector<256x64xf32>
    %c0_302 = arith.constant 0 : index
    %c0_303 = arith.constant 0 : index
    %659 = vector.load %arg9[%c0_302, %c0_303] : memref<1x64xf32, #tpu.memory_space<vmem>>, vector<1x64xf32>
    %cst_304 = arith.constant dense<0.000000e+00> : vector<128x256xf32>
    %660 = tpu.matmul %655, %656, %cst_304 {dimension_numbers = #tpu.dot_dimension_numbers<[1], [0], [0], [1], [0, 0, 1, 1], [], []>} : vector<128x64xf32>, vector<64x256xf32>, vector<128x256xf32> -> vector<128x256xf32>
    %661 = vector.broadcast %657 : vector<1x256xf32> to vector<128x256xf32>
    %662 = arith.addf %660, %661 : vector<128x256xf32>
    %cst_305 = arith.constant 5.000000e-01 : f32
    %663 = vector.broadcast %cst_305 : f32 to vector<128x256xf32>
    %664 = arith.mulf %663, %662 : vector<128x256xf32>
    %cst_306 = arith.constant 1.41421354 : f32
    %665 = vector.broadcast %cst_306 : f32 to vector<128x256xf32>
    %666 = arith.divf %662, %665 : vector<128x256xf32>
    %667 = math.absf %666 : vector<128x256xf32>
    %cst_307 = arith.constant 0.327591091 : f32
    %668 = vector.broadcast %cst_307 : f32 to vector<128x256xf32>
    %669 = arith.mulf %668, %667 : vector<128x256xf32>
    %cst_308 = arith.constant 1.000000e+00 : f32
    %670 = vector.broadcast %cst_308 : f32 to vector<128x256xf32>
    %671 = arith.addf %670, %669 : vector<128x256xf32>
    %cst_309 = arith.constant 1.000000e+00 : f32
    %672 = vector.broadcast %cst_309 : f32 to vector<128x256xf32>
    %673 = arith.divf %672, %671 : vector<128x256xf32>
    %cst_310 = arith.constant 1.06140542 : f32
    %674 = vector.broadcast %cst_310 : f32 to vector<128x256xf32>
    %675 = arith.mulf %674, %673 : vector<128x256xf32>
    %cst_311 = arith.constant -1.45315206 : f32
    %676 = vector.broadcast %cst_311 : f32 to vector<128x256xf32>
    %677 = arith.addf %675, %676 : vector<128x256xf32>
    %678 = arith.mulf %677, %673 : vector<128x256xf32>
    %cst_312 = arith.constant 1.42141378 : f32
    %679 = vector.broadcast %cst_312 : f32 to vector<128x256xf32>
    %680 = arith.addf %678, %679 : vector<128x256xf32>
    %681 = arith.mulf %680, %673 : vector<128x256xf32>
    %cst_313 = arith.constant -0.284496725 : f32
    %682 = vector.broadcast %cst_313 : f32 to vector<128x256xf32>
    %683 = arith.addf %681, %682 : vector<128x256xf32>
    %684 = arith.mulf %683, %673 : vector<128x256xf32>
    %cst_314 = arith.constant 0.254829586 : f32
    %685 = vector.broadcast %cst_314 : f32 to vector<128x256xf32>
    %686 = arith.addf %684, %685 : vector<128x256xf32>
    %687 = arith.mulf %686, %673 : vector<128x256xf32>
    %cst_315 = arith.constant 0.000000e+00 : f32
    %688 = vector.broadcast %cst_315 : f32 to vector<128x256xf32>
    %689 = arith.subf %688, %667 : vector<128x256xf32>
    %690 = arith.mulf %689, %667 : vector<128x256xf32>
    %691 = math.exp %690 : vector<128x256xf32>
    %692 = arith.mulf %687, %691 : vector<128x256xf32>
    %cst_316 = arith.constant 1.000000e+00 : f32
    %693 = vector.broadcast %cst_316 : f32 to vector<128x256xf32>
    %694 = arith.subf %693, %692 : vector<128x256xf32>
    %cst_317 = arith.constant 0.000000e+00 : f32
    %695 = vector.broadcast %cst_317 : f32 to vector<128x256xf32>
    %696 = arith.cmpf oge, %666, %695 : vector<128x256xf32>
    %cst_318 = arith.constant 0.000000e+00 : f32
    %697 = vector.broadcast %cst_318 : f32 to vector<128x256xf32>
    %698 = arith.subf %697, %694 : vector<128x256xf32>
    %699 = arith.select %696, %694, %698 : vector<128x256xi1>, vector<128x256xf32>
    %cst_319 = arith.constant 1.000000e+00 : f32
    %700 = vector.broadcast %cst_319 : f32 to vector<128x256xf32>
    %701 = arith.addf %700, %699 : vector<128x256xf32>
    %702 = arith.mulf %664, %701 : vector<128x256xf32>
    %cst_320 = arith.constant dense<0.000000e+00> : vector<128x64xf32>
    %703 = tpu.matmul %702, %658, %cst_320 {dimension_numbers = #tpu.dot_dimension_numbers<[1], [0], [0], [1], [0, 0, 1, 1], [], []>} : vector<128x256xf32>, vector<256x64xf32>, vector<128x64xf32> -> vector<128x64xf32>
    %704 = vector.broadcast %659 : vector<1x64xf32> to vector<128x64xf32>
    %705 = arith.addf %703, %704 : vector<128x64xf32>
    %c0_321 = arith.constant 0 : index
    %c0_322 = arith.constant 0 : index
    %706 = vector.load %arg10[%c0_321, %c0_322] : memref<64x128xf32, #tpu.memory_space<vmem>>, vector<64x128xf32>
    %cst_323 = arith.constant dense<0.000000e+00> : vector<128x128xf32>
    %707 = tpu.matmul %705, %706, %cst_323 {dimension_numbers = #tpu.dot_dimension_numbers<[1], [0], [0], [1], [0, 0, 1, 1], [], []>} : vector<128x64xf32>, vector<64x128xf32>, vector<128x128xf32> -> vector<128x128xf32>
    %c0_324 = arith.constant 0 : index
    %c0_325 = arith.constant 0 : index
    %708 = vector.load %arg11[%c0_324, %c0_325] : memref<1x128xf32, #tpu.memory_space<vmem>>, vector<1x128xf32>
    %709 = vector.broadcast %708 : vector<1x128xf32> to vector<128x128xf32>
    %710 = arith.addf %707, %709 : vector<128x128xf32>
    %c0_326 = arith.constant 0 : index
    %c0_327 = arith.constant 0 : index
    %711 = vector.load %arg33[%c0_326, %c0_327] : memref<128x128xf32, #tpu.memory_space<vmem>>, vector<128x128xf32>
    tpu.vector_store %arg33[%c0_326, %c0_327], %710 {strides = array<i32>} : memref<128x128xf32, #tpu.memory_space<vmem>>, vector<128x128xf32>,
    %c0_328 = arith.constant 0 : index
    %c0_329 = arith.constant 0 : index
    %712 = vector.load %arg40[%c0_328, %c0_329] : memref<8x64xf32, #tpu.memory_space<vmem>>, vector<8x64xf32>
    %c0_330 = arith.constant 0 : index
    %c0_331 = arith.constant 0 : index
    %713 = vector.load %arg16[%c0_330, %c0_331] : memref<64x256xf32, #tpu.memory_space<vmem>>, vector<64x256xf32>
    %c0_332 = arith.constant 0 : index
    %c0_333 = arith.constant 0 : index
    %714 = vector.load %arg17[%c0_332, %c0_333] : memref<1x256xf32, #tpu.memory_space<vmem>>, vector<1x256xf32>
    %c0_334 = arith.constant 0 : index
    %c0_335 = arith.constant 0 : index
    %715 = vector.load %arg18[%c0_334, %c0_335] : memref<256x64xf32, #tpu.memory_space<vmem>>, vector<256x64xf32>
    %c0_336 = arith.constant 0 : index
    %c0_337 = arith.constant 0 : index
    %716 = vector.load %arg19[%c0_336, %c0_337] : memref<1x64xf32, #tpu.memory_space<vmem>>, vector<1x64xf32>
    %cst_338 = arith.constant dense<0.000000e+00> : vector<8x256xf32>
    %717 = tpu.matmul %712, %713, %cst_338 {dimension_numbers = #tpu.dot_dimension_numbers<[1], [0], [0], [1], [0, 0, 1, 1], [], []>} : vector<8x64xf32>, vector<64x256xf32>, vector<8x256xf32> -> vector<8x256xf32>
    %718 = vector.broadcast %714 : vector<1x256xf32> to vector<8x256xf32>
    %719 = arith.addf %717, %718 : vector<8x256xf32>
    %cst_339 = arith.constant 5.000000e-01 : f32
    %720 = vector.broadcast %cst_339 : f32 to vector<8x256xf32>
    %721 = arith.mulf %720, %719 : vector<8x256xf32>
    %cst_340 = arith.constant 1.41421354 : f32
    %722 = vector.broadcast %cst_340 : f32 to vector<8x256xf32>
    %723 = arith.divf %719, %722 : vector<8x256xf32>
    %724 = math.absf %723 : vector<8x256xf32>
    %cst_341 = arith.constant 0.327591091 : f32
    %725 = vector.broadcast %cst_341 : f32 to vector<8x256xf32>
    %726 = arith.mulf %725, %724 : vector<8x256xf32>
    %cst_342 = arith.constant 1.000000e+00 : f32
    %727 = vector.broadcast %cst_342 : f32 to vector<8x256xf32>
    %728 = arith.addf %727, %726 : vector<8x256xf32>
    %cst_343 = arith.constant 1.000000e+00 : f32
    %729 = vector.broadcast %cst_343 : f32 to vector<8x256xf32>
    %730 = arith.divf %729, %728 : vector<8x256xf32>
    %cst_344 = arith.constant 1.06140542 : f32
    %731 = vector.broadcast %cst_344 : f32 to vector<8x256xf32>
    %732 = arith.mulf %731, %730 : vector<8x256xf32>
    %cst_345 = arith.constant -1.45315206 : f32
    %733 = vector.broadcast %cst_345 : f32 to vector<8x256xf32>
    %734 = arith.addf %732, %733 : vector<8x256xf32>
    %735 = arith.mulf %734, %730 : vector<8x256xf32>
    %cst_346 = arith.constant 1.42141378 : f32
    %736 = vector.broadcast %cst_346 : f32 to vector<8x256xf32>
    %737 = arith.addf %735, %736 : vector<8x256xf32>
    %738 = arith.mulf %737, %730 : vector<8x256xf32>
    %cst_347 = arith.constant -0.284496725 : f32
    %739 = vector.broadcast %cst_347 : f32 to vector<8x256xf32>
    %740 = arith.addf %738, %739 : vector<8x256xf32>
    %741 = arith.mulf %740, %730 : vector<8x256xf32>
    %cst_348 = arith.constant 0.254829586 : f32
    %742 = vector.broadcast %cst_348 : f32 to vector<8x256xf32>
    %743 = arith.addf %741, %742 : vector<8x256xf32>
    %744 = arith.mulf %743, %730 : vector<8x256xf32>
    %cst_349 = arith.constant 0.000000e+00 : f32
    %745 = vector.broadcast %cst_349 : f32 to vector<8x256xf32>
    %746 = arith.subf %745, %724 : vector<8x256xf32>
    %747 = arith.mulf %746, %724 : vector<8x256xf32>
    %748 = math.exp %747 : vector<8x256xf32>
    %749 = arith.mulf %744, %748 : vector<8x256xf32>
    %cst_350 = arith.constant 1.000000e+00 : f32
    %750 = vector.broadcast %cst_350 : f32 to vector<8x256xf32>
    %751 = arith.subf %750, %749 : vector<8x256xf32>
    %cst_351 = arith.constant 0.000000e+00 : f32
    %752 = vector.broadcast %cst_351 : f32 to vector<8x256xf32>
    %753 = arith.cmpf oge, %723, %752 : vector<8x256xf32>
    %cst_352 = arith.constant 0.000000e+00 : f32
    %754 = vector.broadcast %cst_352 : f32 to vector<8x256xf32>
    %755 = arith.subf %754, %751 : vector<8x256xf32>
    %756 = arith.select %753, %751, %755 : vector<8x256xi1>, vector<8x256xf32>
    %cst_353 = arith.constant 1.000000e+00 : f32
    %757 = vector.broadcast %cst_353 : f32 to vector<8x256xf32>
    %758 = arith.addf %757, %756 : vector<8x256xf32>
    %759 = arith.mulf %721, %758 : vector<8x256xf32>
    %cst_354 = arith.constant dense<0.000000e+00> : vector<8x64xf32>
    %760 = tpu.matmul %759, %715, %cst_354 {dimension_numbers = #tpu.dot_dimension_numbers<[1], [0], [0], [1], [0, 0, 1, 1], [], []>} : vector<8x256xf32>, vector<256x64xf32>, vector<8x64xf32> -> vector<8x64xf32>
    %761 = vector.broadcast %716 : vector<1x64xf32> to vector<8x64xf32>
    %762 = arith.addf %760, %761 : vector<8x64xf32>
    %c0_355 = arith.constant 0 : index
    %c0_356 = arith.constant 0 : index
    %763 = vector.load %arg20[%c0_355, %c0_356] : memref<64x1xf32, #tpu.memory_space<vmem>>, vector<64x1xf32>
    %cst_357 = arith.constant dense<0.000000e+00> : vector<8x1xf32>
    %764 = tpu.matmul %762, %763, %cst_357 {dimension_numbers = #tpu.dot_dimension_numbers<[1], [0], [0], [1], [0, 0, 1, 1], [], []>} : vector<8x64xf32>, vector<64x1xf32>, vector<8x1xf32> -> vector<8x1xf32>
    %c0_358 = arith.constant 0 : index
    %c0_359 = arith.constant 0 : index
    %765 = vector.load %arg21[%c0_358, %c0_359] : memref<1x1xf32, #tpu.memory_space<vmem>>, vector<1x1xf32>
    %766 = vector.broadcast %765 : vector<1x1xf32> to vector<8x1xf32>
    %767 = arith.addf %764, %766 : vector<8x1xf32>
    %c0_360 = arith.constant 0 : index
    %c0_361 = arith.constant 0 : index
    %768 = vector.load %arg34[%c0_360, %c0_361] : memref<8x1xf32, #tpu.memory_space<vmem>>, vector<8x1xf32>
    tpu.vector_store %arg34[%c0_360, %c0_361], %767 {strides = array<i32>} : memref<8x1xf32, #tpu.memory_space<vmem>>, vector<8x1xf32>,
    %c0_362 = arith.constant 0 : index
    %c0_363 = arith.constant 0 : index
    %769 = vector.load %arg22[%c0_362, %c0_363] : memref<64x256xf32, #tpu.memory_space<vmem>>, vector<64x256xf32>
    %c0_364 = arith.constant 0 : index
    %c0_365 = arith.constant 0 : index
    %770 = vector.load %arg23[%c0_364, %c0_365] : memref<1x256xf32, #tpu.memory_space<vmem>>, vector<1x256xf32>
    %c0_366 = arith.constant 0 : index
    %c0_367 = arith.constant 0 : index
    %771 = vector.load %arg24[%c0_366, %c0_367] : memref<256x64xf32, #tpu.memory_space<vmem>>, vector<256x64xf32>
    %c0_368 = arith.constant 0 : index
    %c0_369 = arith.constant 0 : index
    %772 = vector.load %arg25[%c0_368, %c0_369] : memref<1x64xf32, #tpu.memory_space<vmem>>, vector<1x64xf32>
    %cst_370 = arith.constant dense<0.000000e+00> : vector<8x256xf32>
    %773 = tpu.matmul %712, %769, %cst_370 {dimension_numbers = #tpu.dot_dimension_numbers<[1], [0], [0], [1], [0, 0, 1, 1], [], []>} : vector<8x64xf32>, vector<64x256xf32>, vector<8x256xf32> -> vector<8x256xf32>
    %774 = vector.broadcast %770 : vector<1x256xf32> to vector<8x256xf32>
    %775 = arith.addf %773, %774 : vector<8x256xf32>
    %cst_371 = arith.constant 5.000000e-01 : f32
    %776 = vector.broadcast %cst_371 : f32 to vector<8x256xf32>
    %777 = arith.mulf %776, %775 : vector<8x256xf32>
    %cst_372 = arith.constant 1.41421354 : f32
    %778 = vector.broadcast %cst_372 : f32 to vector<8x256xf32>
    %779 = arith.divf %775, %778 : vector<8x256xf32>
    %780 = math.absf %779 : vector<8x256xf32>
    %cst_373 = arith.constant 0.327591091 : f32
    %781 = vector.broadcast %cst_373 : f32 to vector<8x256xf32>
    %782 = arith.mulf %781, %780 : vector<8x256xf32>
    %cst_374 = arith.constant 1.000000e+00 : f32
    %783 = vector.broadcast %cst_374 : f32 to vector<8x256xf32>
    %784 = arith.addf %783, %782 : vector<8x256xf32>
    %cst_375 = arith.constant 1.000000e+00 : f32
    %785 = vector.broadcast %cst_375 : f32 to vector<8x256xf32>
    %786 = arith.divf %785, %784 : vector<8x256xf32>
    %cst_376 = arith.constant 1.06140542 : f32
    %787 = vector.broadcast %cst_376 : f32 to vector<8x256xf32>
    %788 = arith.mulf %787, %786 : vector<8x256xf32>
    %cst_377 = arith.constant -1.45315206 : f32
    %789 = vector.broadcast %cst_377 : f32 to vector<8x256xf32>
    %790 = arith.addf %788, %789 : vector<8x256xf32>
    %791 = arith.mulf %790, %786 : vector<8x256xf32>
    %cst_378 = arith.constant 1.42141378 : f32
    %792 = vector.broadcast %cst_378 : f32 to vector<8x256xf32>
    %793 = arith.addf %791, %792 : vector<8x256xf32>
    %794 = arith.mulf %793, %786 : vector<8x256xf32>
    %cst_379 = arith.constant -0.284496725 : f32
    %795 = vector.broadcast %cst_379 : f32 to vector<8x256xf32>
    %796 = arith.addf %794, %795 : vector<8x256xf32>
    %797 = arith.mulf %796, %786 : vector<8x256xf32>
    %cst_380 = arith.constant 0.254829586 : f32
    %798 = vector.broadcast %cst_380 : f32 to vector<8x256xf32>
    %799 = arith.addf %797, %798 : vector<8x256xf32>
    %800 = arith.mulf %799, %786 : vector<8x256xf32>
    %cst_381 = arith.constant 0.000000e+00 : f32
    %801 = vector.broadcast %cst_381 : f32 to vector<8x256xf32>
    %802 = arith.subf %801, %780 : vector<8x256xf32>
    %803 = arith.mulf %802, %780 : vector<8x256xf32>
    %804 = math.exp %803 : vector<8x256xf32>
    %805 = arith.mulf %800, %804 : vector<8x256xf32>
    %cst_382 = arith.constant 1.000000e+00 : f32
    %806 = vector.broadcast %cst_382 : f32 to vector<8x256xf32>
    %807 = arith.subf %806, %805 : vector<8x256xf32>
    %cst_383 = arith.constant 0.000000e+00 : f32
    %808 = vector.broadcast %cst_383 : f32 to vector<8x256xf32>
    %809 = arith.cmpf oge, %779, %808 : vector<8x256xf32>
    %cst_384 = arith.constant 0.000000e+00 : f32
    %810 = vector.broadcast %cst_384 : f32 to vector<8x256xf32>
    %811 = arith.subf %810, %807 : vector<8x256xf32>
    %812 = arith.select %809, %807, %811 : vector<8x256xi1>, vector<8x256xf32>
    %cst_385 = arith.constant 1.000000e+00 : f32
    %813 = vector.broadcast %cst_385 : f32 to vector<8x256xf32>
    %814 = arith.addf %813, %812 : vector<8x256xf32>
    %815 = arith.mulf %777, %814 : vector<8x256xf32>
    %cst_386 = arith.constant dense<0.000000e+00> : vector<8x64xf32>
    %816 = tpu.matmul %815, %771, %cst_386 {dimension_numbers = #tpu.dot_dimension_numbers<[1], [0], [0], [1], [0, 0, 1, 1], [], []>} : vector<8x256xf32>, vector<256x64xf32>, vector<8x64xf32> -> vector<8x64xf32>
    %817 = vector.broadcast %772 : vector<1x64xf32> to vector<8x64xf32>
    %818 = arith.addf %816, %817 : vector<8x64xf32>
    %c0_387 = arith.constant 0 : index
    %c0_388 = arith.constant 0 : index
    %819 = vector.load %arg26[%c0_387, %c0_388] : memref<64x64xf32, #tpu.memory_space<vmem>>, vector<64x64xf32>
    %cst_389 = arith.constant dense<0.000000e+00> : vector<8x64xf32>
    %820 = tpu.matmul %818, %819, %cst_389 {dimension_numbers = #tpu.dot_dimension_numbers<[1], [0], [0], [1], [0, 0, 1, 1], [], []>} : vector<8x64xf32>, vector<64x64xf32>, vector<8x64xf32> -> vector<8x64xf32>
    %cst_390 = arith.constant dense<0.000000e+00> : vector<8x8xf32>
    %821 = tpu.matmul %820, %818, %cst_390 {dimension_numbers = #tpu.dot_dimension_numbers<[1], [1], [0], [0], [0, 0, 1, 0], [], []>} : vector<8x64xf32>, vector<8x64xf32>, vector<8x8xf32> -> vector<8x8xf32>
    %c0_391 = arith.constant 0 : index
    %c0_392 = arith.constant 0 : index
    %822 = vector.load %arg36[%c0_391, %c0_392] : memref<8x8xf32, #tpu.memory_space<vmem>>, vector<8x8xf32>
    tpu.vector_store %arg36[%c0_391, %c0_392], %821 {strides = array<i32>} : memref<8x8xf32, #tpu.memory_space<vmem>>, vector<8x8xf32>,
    %823 = vector.extract_strided_slice %637 {offsets = [0, 0], sizes = [1, 32], strides = [1, 1]} : vector<1x64xf32> to vector<1x32xf32>
    %824 = vector.extract_strided_slice %637 {offsets = [0, 32], sizes = [1, 32], strides = [1, 1]} : vector<1x64xf32> to vector<1x32xf32>
    %825 = arith.addf %823, %824 : vector<1x32xf32>
    %c0_393 = arith.constant 0 : index
    %c0_394 = arith.constant 0 : index
    %826 = vector.load %arg27[%c0_393, %c0_394] : memref<32x128xf32, #tpu.memory_space<vmem>>, vector<32x128xf32>
    %c0_395 = arith.constant 0 : index
    %c0_396 = arith.constant 0 : index
    %827 = vector.load %arg28[%c0_395, %c0_396] : memref<1x128xf32, #tpu.memory_space<vmem>>, vector<1x128xf32>
    %c0_397 = arith.constant 0 : index
    %c0_398 = arith.constant 0 : index
    %828 = vector.load %arg29[%c0_397, %c0_398] : memref<128x32xf32, #tpu.memory_space<vmem>>, vector<128x32xf32>
    %c0_399 = arith.constant 0 : index
    %c0_400 = arith.constant 0 : index
    %829 = vector.load %arg30[%c0_399, %c0_400] : memref<1x32xf32, #tpu.memory_space<vmem>>, vector<1x32xf32>
    %cst_401 = arith.constant dense<0.000000e+00> : vector<1x128xf32>
    %830 = tpu.matmul %825, %826, %cst_401 {dimension_numbers = #tpu.dot_dimension_numbers<[1], [0], [0], [1], [0, 0, 1, 1], [], []>} : vector<1x32xf32>, vector<32x128xf32>, vector<1x128xf32> -> vector<1x128xf32>
    %831 = arith.addf %830, %827 : vector<1x128xf32>
    %cst_402 = arith.constant 5.000000e-01 : f32
    %832 = vector.broadcast %cst_402 : f32 to vector<1x128xf32>
    %833 = arith.mulf %832, %831 : vector<1x128xf32>
    %cst_403 = arith.constant 1.41421354 : f32
    %834 = vector.broadcast %cst_403 : f32 to vector<1x128xf32>
    %835 = arith.divf %831, %834 : vector<1x128xf32>
    %836 = math.absf %835 : vector<1x128xf32>
    %cst_404 = arith.constant 0.327591091 : f32
    %837 = vector.broadcast %cst_404 : f32 to vector<1x128xf32>
    %838 = arith.mulf %837, %836 : vector<1x128xf32>
    %cst_405 = arith.constant 1.000000e+00 : f32
    %839 = vector.broadcast %cst_405 : f32 to vector<1x128xf32>
    %840 = arith.addf %839, %838 : vector<1x128xf32>
    %cst_406 = arith.constant 1.000000e+00 : f32
    %841 = vector.broadcast %cst_406 : f32 to vector<1x128xf32>
    %842 = arith.divf %841, %840 : vector<1x128xf32>
    %cst_407 = arith.constant 1.06140542 : f32
    %843 = vector.broadcast %cst_407 : f32 to vector<1x128xf32>
    %844 = arith.mulf %843, %842 : vector<1x128xf32>
    %cst_408 = arith.constant -1.45315206 : f32
    %845 = vector.broadcast %cst_408 : f32 to vector<1x128xf32>
    %846 = arith.addf %844, %845 : vector<1x128xf32>
    %847 = arith.mulf %846, %842 : vector<1x128xf32>
    %cst_409 = arith.constant 1.42141378 : f32
    %848 = vector.broadcast %cst_409 : f32 to vector<1x128xf32>
    %849 = arith.addf %847, %848 : vector<1x128xf32>
    %850 = arith.mulf %849, %842 : vector<1x128xf32>
    %cst_410 = arith.constant -0.284496725 : f32
    %851 = vector.broadcast %cst_410 : f32 to vector<1x128xf32>
    %852 = arith.addf %850, %851 : vector<1x128xf32>
    %853 = arith.mulf %852, %842 : vector<1x128xf32>
    %cst_411 = arith.constant 0.254829586 : f32
    %854 = vector.broadcast %cst_411 : f32 to vector<1x128xf32>
    %855 = arith.addf %853, %854 : vector<1x128xf32>
    %856 = arith.mulf %855, %842 : vector<1x128xf32>
    %cst_412 = arith.constant 0.000000e+00 : f32
    %857 = vector.broadcast %cst_412 : f32 to vector<1x128xf32>
    %858 = arith.subf %857, %836 : vector<1x128xf32>
    %859 = arith.mulf %858, %836 : vector<1x128xf32>
    %860 = math.exp %859 : vector<1x128xf32>
    %861 = arith.mulf %856, %860 : vector<1x128xf32>
    %cst_413 = arith.constant 1.000000e+00 : f32
    %862 = vector.broadcast %cst_413 : f32 to vector<1x128xf32>
    %863 = arith.subf %862, %861 : vector<1x128xf32>
    %cst_414 = arith.constant 0.000000e+00 : f32
    %864 = vector.broadcast %cst_414 : f32 to vector<1x128xf32>
    %865 = arith.cmpf oge, %835, %864 : vector<1x128xf32>
    %cst_415 = arith.constant 0.000000e+00 : f32
    %866 = vector.broadcast %cst_415 : f32 to vector<1x128xf32>
    %867 = arith.subf %866, %863 : vector<1x128xf32>
    %868 = arith.select %865, %863, %867 : vector<1x128xi1>, vector<1x128xf32>
    %cst_416 = arith.constant 1.000000e+00 : f32
    %869 = vector.broadcast %cst_416 : f32 to vector<1x128xf32>
    %870 = arith.addf %869, %868 : vector<1x128xf32>
    %871 = arith.mulf %833, %870 : vector<1x128xf32>
    %cst_417 = arith.constant dense<0.000000e+00> : vector<1x32xf32>
    %872 = tpu.matmul %871, %828, %cst_417 {dimension_numbers = #tpu.dot_dimension_numbers<[1], [0], [0], [1], [0, 0, 1, 1], [], []>} : vector<1x128xf32>, vector<128x32xf32>, vector<1x32xf32> -> vector<1x32xf32>
    %873 = arith.addf %872, %829 : vector<1x32xf32>
    %c0_418 = arith.constant 0 : index
    %c0_419 = arith.constant 0 : index
    %874 = vector.load %arg31[%c0_418, %c0_419] : memref<32x1xf32, #tpu.memory_space<vmem>>, vector<32x1xf32>
    %cst_420 = arith.constant dense<0.000000e+00> : vector<1x1xf32>
    %875 = tpu.matmul %873, %874, %cst_420 {dimension_numbers = #tpu.dot_dimension_numbers<[1], [0], [0], [1], [0, 0, 1, 1], [], []>} : vector<1x32xf32>, vector<32x1xf32>, vector<1x1xf32> -> vector<1x1xf32>
    %c0_421 = arith.constant 0 : index
    %c0_422 = arith.constant 0 : index
    %876 = vector.load %arg32[%c0_421, %c0_422] : memref<1x1xf32, #tpu.memory_space<vmem>>, vector<1x1xf32>
    %877 = arith.addf %875, %876 : vector<1x1xf32>
    %c0_423 = arith.constant 0 : index
    %c0_424 = arith.constant 0 : index
    %878 = vector.load %arg35[%c0_423, %c0_424] : memref<1x1xf32, #tpu.memory_space<vmem>>, vector<1x1xf32>
    tpu.vector_store %arg35[%c0_423, %c0_424], %877 {strides = array<i32>} : memref<1x1xf32, #tpu.memory_space<vmem>>, vector<1x1xf32>,
    return
  }
}

</mosaic_0001>

<llo_original>
// kernel: scopeit_forward.1
$region0: #{scopeit_forward.1}
  #allocation0 [shape = 'u32[]', space=smem, size = 0x4, offset = 0x4, fixed_abs, tag = 'smem constant byte address 0x4 - core index']
  #allocation1 [shape = 'u32[72,128]{1,0:T(1,128)}', space=vmem, size = 0x9000, scoped, tag = 'internal scratch']
  #allocation2 [shape = 'f32[128,192]{1,0:T(8,128)}', space=vmem, size = 0x20000, scoped, tag = 'scratch operand']
  #allocation3 [shape = 'f32[128,64]{1,0:T(8,128)}', space=vmem, size = 0x10000, scoped, tag = 'scratch operand']
  #allocation4 [shape = 'f32[8,192]{1,0:T(8,128)}', space=vmem, size = 0x2000, scoped, tag = 'scratch operand']
  #allocation5 [shape = 'f32[8,64]{1,0:T(8,128)}', space=vmem, size = 0x1000, scoped, tag = 'scratch operand']
  #allocation6 [shape = 'f32[1,1]{1,0:T(1,128)S(1)}', space=vmem, size = 0x200, scoped, tag = 'scoped memory for scopeit_forward.1']
  #allocation7 [shape = 'f32[1,1]{1,0:T(1,128)S(1)}', space=vmem, size = 0x200, scoped, tag = 'scoped memory for scopeit_forward.1']
  %s0 = inlined_call_operand.smem [shape: u32[37], index: -1, kind: input, shape index: {}]
  %s1 = sld [smem:[%s0]]
  %s2 = scalar_lea.smem %s0, 1
  %s3 = sld [smem:[%s2]]
  %s4 = scalar_lea.smem %s0, 2
  %s5 = sld [smem:[%s4]]
  %s6 = scalar_lea.smem %s0, 3
  %s7 = sld [smem:[%s6]]
  %s8 = scalar_lea.smem %s0, 4
  %s9 = sld [smem:[%s8]]
  %s10 = scalar_lea.smem %s0, 5
  %s11 = sld [smem:[%s10]]
  %s12 = scalar_lea.smem %s0, 6
  %s13 = sld [smem:[%s12]]
  %s14 = scalar_lea.smem %s0, 7
  %s15 = sld [smem:[%s14]]
  %s16 = scalar_lea.smem %s0, 8
  %s17 = sld [smem:[%s16]]
  %s18 = scalar_lea.smem %s0, 9
  %s19 = sld [smem:[%s18]]
  %s20 = scalar_lea.smem %s0, 10
  %s21 = sld [smem:[%s20]]
  %s22 = scalar_lea.smem %s0, 11
  %s23 = sld [smem:[%s22]]
  %s24 = scalar_lea.smem %s0, 12
  %s25 = sld [smem:[%s24]]
  %s26 = scalar_lea.smem %s0, 13
  %s27 = sld [smem:[%s26]]
  %s28 = scalar_lea.smem %s0, 14
  %s29 = sld [smem:[%s28]]
  %s30 = scalar_lea.smem %s0, 15
  %s31 = sld [smem:[%s30]]
  %s32 = scalar_lea.smem %s0, 16
  %s33 = sld [smem:[%s32]]
  %s34 = scalar_lea.smem %s0, 17
  %s35 = sld [smem:[%s34]]
  %s36 = scalar_lea.smem %s0, 18
  %s37 = sld [smem:[%s36]]
  %s38 = scalar_lea.smem %s0, 19
  %s39 = sld [smem:[%s38]]
  %s40 = scalar_lea.smem %s0, 20
  %s41 = sld [smem:[%s40]]
  %s42 = scalar_lea.smem %s0, 21
  %s43 = sld [smem:[%s42]]
  %s44 = scalar_lea.smem %s0, 22
  %s45 = sld [smem:[%s44]]
  %s46 = scalar_lea.smem %s0, 23
  %s47 = sld [smem:[%s46]]
  %s48 = scalar_lea.smem %s0, 24
  %s49 = sld [smem:[%s48]]
  %s50 = scalar_lea.smem %s0, 25
  %s51 = sld [smem:[%s50]]
  %s52 = scalar_lea.smem %s0, 26
  %s53 = sld [smem:[%s52]]
  %s54 = scalar_lea.smem %s0, 27
  %s55 = sld [smem:[%s54]]
  %s56 = scalar_lea.smem %s0, 28
  %s57 = sld [smem:[%s56]]
  %s58 = scalar_lea.smem %s0, 29
  %s59 = sld [smem:[%s58]]
  %s60 = scalar_lea.smem %s0, 30
  %s61 = sld [smem:[%s60]]
  %s62 = scalar_lea.smem %s0, 31
  %s63 = sld [smem:[%s62]]
  %s64 = scalar_lea.smem %s0, 32
  %s65 = sld [smem:[%s64]]
  %s66 = scalar_lea.smem %s0, 33
  %s67 = sld [smem:[%s66]]
  %s68 = scalar_lea.smem %s0, 34
  %s69 = sld [smem:[%s68]]
  %s70 = scalar_lea.smem %s0, 35
  %s71 = sld [smem:[%s70]]
  %s72 = scalar_lea.smem %s0, 36
  %s73 = sld [smem:[%s72]]
  %74 = xla_tuple %s67, %s69, %s71, %s73
  %s75 = sld [smem:[#allocation0]]
  $region166: #{scopeit_forward.1} parent=0
    _
  %s77 = ssub.s32 1, %s75
  %s78 = scalar_select 0, %s77, %s75
  %v79 = vstv %s43
  %80 = vst [vmem:[#allocation6] sm:$0x1] %v79
  %v81 = vstv %s65
  %82 = vst [vmem:[#allocation7] sm:$0x1] %v81
  $region1: #{scopeit_forward.1} parent=0
    #allocation8 [shape = 'u8[512]{0}', space=vmem, size = 0x400, scoped, tag = 'output window, operand 2, single buffered']
    #allocation9 [shape = 's32[1]{0}', space=sflag, size = 0x4, scoped, tag = 'scoped memory for scopeit_forward.1']
    #allocation10 [shape = 'u8[4096]{0}', space=vmem, size = 0x1000, scoped, tag = 'output window, operand 3, single buffered']
    #allocation11 [shape = 's32[1]{0}', space=sflag, size = 0x4, scoped, tag = 'scoped memory for scopeit_forward.1']
    %83 = vsyncpa [#allocation9], 0
    %84 = vsyncpa [#allocation11], 0
    // Predicated region
    $region2: #{scopeit_forward.1} parent=1 // pred_check
      _
    $region3: #{scopeit_forward.1} parent=1 // pred_check_branch
      %86 = sbr.rel (0) target = $region5
    $region4: #{scopeit_forward.1} parent=1 // pred_region
      _
    $region5: #{scopeit_forward.1} parent=1 // pred_fallthru
      _
    // Predicated region
    $region6: #{scopeit_forward.1} parent=1 // pred_check
      _
    $region7: #{scopeit_forward.1} parent=1 // pred_check_branch
      %88 = sbr.rel (0) target = $region9
    $region8: #{scopeit_forward.1} parent=1 // pred_region
      _
    $region9: #{scopeit_forward.1} parent=1 // pred_fallthru
      _
    // Predicated region
    $region10: #{scopeit_forward.1} parent=1 // pred_check
      _
    $region11: #{scopeit_forward.1} parent=1 // pred_check_branch
      %90 = sbr.rel (0) target = $region13
    $region12: #{scopeit_forward.1} parent=1 // pred_region
      _
    $region13: #{scopeit_forward.1} parent=1 // pred_fallthru
      _
    // Predicated region
    $region14: #{scopeit_forward.1} parent=1 // pred_check
      _
    $region15: #{scopeit_forward.1} parent=1 // pred_check_branch
      %92 = sbr.rel (0) target = $region17
    $region16: #{scopeit_forward.1} parent=1 // pred_region
      _
    $region17: #{scopeit_forward.1} parent=1 // pred_fallthru
      _
    // Predicated region
    $region18: #{scopeit_forward.1} parent=1 // pred_check
      _
    $region19: #{scopeit_forward.1} parent=1 // pred_check_branch
      %94 = sbr.rel (0) target = $region21
    $region20: #{scopeit_forward.1} parent=1 // pred_region
      _
    $region21: #{scopeit_forward.1} parent=1 // pred_fallthru
      _
    // Predicated region
    $region22: #{scopeit_forward.1} parent=1 // pred_check
      _
    $region23: #{scopeit_forward.1} parent=1 // pred_check_branch
      %96 = sbr.rel (0) target = $region25
    $region24: #{scopeit_forward.1} parent=1 // pred_region
      _
    $region25: #{scopeit_forward.1} parent=1 // pred_fallthru
      _
    // Predicated region
    $region26: #{scopeit_forward.1} parent=1 // pred_check
      _
    $region27: #{scopeit_forward.1} parent=1 // pred_check_branch
      %98 = sbr.rel (0) target = $region29
    $region28: #{scopeit_forward.1} parent=1 // pred_region
      _
    $region29: #{scopeit_forward.1} parent=1 // pred_fallthru
      _
    // Predicated region
    $region30: #{scopeit_forward.1} parent=1 // pred_check
      _
    $region31: #{scopeit_forward.1} parent=1 // pred_check_branch
      %100 = sbr.rel (0) target = $region33
    $region32: #{scopeit_forward.1} parent=1 // pred_region
      _
    $region33: #{scopeit_forward.1} parent=1 // pred_fallthru
      _
    // Predicated region
    $region34: #{scopeit_forward.1} parent=1 // pred_check
      _
    $region35: #{scopeit_forward.1} parent=1 // pred_check_branch
      %102 = sbr.rel (0) target = $region37
    $region36: #{scopeit_forward.1} parent=1 // pred_region
      _
    $region37: #{scopeit_forward.1} parent=1 // pred_fallthru
      _
    // Predicated region
    $region38: #{scopeit_forward.1} parent=1 // pred_check
      _
    $region39: #{scopeit_forward.1} parent=1 // pred_check_branch
      %104 = sbr.rel (0) target = $region41
    $region40: #{scopeit_forward.1} parent=1 // pred_region
      _
    $region41: #{scopeit_forward.1} parent=1 // pred_fallthru
      _
    // Predicated region
    $region42: #{scopeit_forward.1} parent=1 // pred_check
      _
    $region43: #{scopeit_forward.1} parent=1 // pred_check_branch
      %106 = sbr.rel (0) target = $region45
    $region44: #{scopeit_forward.1} parent=1 // pred_region
      _
    $region45: #{scopeit_forward.1} parent=1 // pred_fallthru
      _
    // Predicated region
    $region46: #{scopeit_forward.1} parent=1 // pred_check
      _
    $region47: #{scopeit_forward.1} parent=1 // pred_check_branch
      %108 = sbr.rel (0) target = $region49
    $region48: #{scopeit_forward.1} parent=1 // pred_region
      _
    $region49: #{scopeit_forward.1} parent=1 // pred_fallthru
      _
    // Predicated region
    $region50: #{scopeit_forward.1} parent=1 // pred_check
      _
    $region51: #{scopeit_forward.1} parent=1 // pred_check_branch
      %110 = sbr.rel (0) target = $region53
    $region52: #{scopeit_forward.1} parent=1 // pred_region
      _
    $region53: #{scopeit_forward.1} parent=1 // pred_fallthru
      _
    // Predicated region
    $region54: #{scopeit_forward.1} parent=1 // pred_check
      _
    $region55: #{scopeit_forward.1} parent=1 // pred_check_branch
      %112 = sbr.rel (0) target = $region57
    $region56: #{scopeit_forward.1} parent=1 // pred_region
      _
    $region57: #{scopeit_forward.1} parent=1 // pred_fallthru
      _
    // Predicated region
    $region58: #{scopeit_forward.1} parent=1 // pred_check
      _
    $region59: #{scopeit_forward.1} parent=1 // pred_check_branch
      %114 = sbr.rel (0) target = $region61
    $region60: #{scopeit_forward.1} parent=1 // pred_region
      _
    $region61: #{scopeit_forward.1} parent=1 // pred_fallthru
      _
    // Predicated region
    $region62: #{scopeit_forward.1} parent=1 // pred_check
      _
    $region63: #{scopeit_forward.1} parent=1 // pred_check_branch
      %116 = sbr.rel (0) target = $region65
    $region64: #{scopeit_forward.1} parent=1 // pred_region
      _
    $region65: #{scopeit_forward.1} parent=1 // pred_fallthru
      _
    // Predicated region
    $region66: #{scopeit_forward.1} parent=1 // pred_check
      _
    $region67: #{scopeit_forward.1} parent=1 // pred_check_branch
      %118 = sbr.rel (0) target = $region69
    $region68: #{scopeit_forward.1} parent=1 // pred_region
      _
    $region69: #{scopeit_forward.1} parent=1 // pred_fallthru
      _
    // Predicated region
    $region70: #{scopeit_forward.1} parent=1 // pred_check
      _
    $region71: #{scopeit_forward.1} parent=1 // pred_check_branch
      %120 = sbr.rel (0) target = $region73
    $region72: #{scopeit_forward.1} parent=1 // pred_region
      _
    $region73: #{scopeit_forward.1} parent=1 // pred_fallthru
      _
    // Predicated region
    $region74: #{scopeit_forward.1} parent=1 // pred_check
      _
    $region75: #{scopeit_forward.1} parent=1 // pred_check_branch
      %122 = sbr.rel (0) target = $region77
    $region76: #{scopeit_forward.1} parent=1 // pred_region
      _
    $region77: #{scopeit_forward.1} parent=1 // pred_fallthru
      _
    // Predicated region
    $region78: #{scopeit_forward.1} parent=1 // pred_check
      _
    $region79: #{scopeit_forward.1} parent=1 // pred_check_branch
      %124 = sbr.rel (0) target = $region81
    $region80: #{scopeit_forward.1} parent=1 // pred_region
      _
    $region81: #{scopeit_forward.1} parent=1 // pred_fallthru
      _
    // Predicated region
    $region82: #{scopeit_forward.1} parent=1 // pred_check
      _
    $region83: #{scopeit_forward.1} parent=1 // pred_check_branch
      %126 = sbr.rel (0) target = $region85
    $region84: #{scopeit_forward.1} parent=1 // pred_region
      _
    $region85: #{scopeit_forward.1} parent=1 // pred_fallthru
      _
    // Predicated region
    $region86: #{scopeit_forward.1} parent=1 // pred_check
      _
    $region87: #{scopeit_forward.1} parent=1 // pred_check_branch
      %128 = sbr.rel (0) target = $region89
    $region88: #{scopeit_forward.1} parent=1 // pred_region
      _
    $region89: #{scopeit_forward.1} parent=1 // pred_fallthru
      _
    // Predicated region
    $region90: #{scopeit_forward.1} parent=1 // pred_check
      _
    $region91: #{scopeit_forward.1} parent=1 // pred_check_branch
      %130 = sbr.rel (0) target = $region93
    $region92: #{scopeit_forward.1} parent=1 // pred_region
      _
    $region93: #{scopeit_forward.1} parent=1 // pred_fallthru
      _
    // Predicated region
    $region94: #{scopeit_forward.1} parent=1 // pred_check
      _
    $region95: #{scopeit_forward.1} parent=1 // pred_check_branch
      %132 = sbr.rel (0) target = $region97
    $region96: #{scopeit_forward.1} parent=1 // pred_region
      _
    $region97: #{scopeit_forward.1} parent=1 // pred_fallthru
      _
    // Predicated region
    $region98: #{scopeit_forward.1} parent=1 // pred_check
      _
    $region99: #{scopeit_forward.1} parent=1 // pred_check_branch
      %134 = sbr.rel (0) target = $region101
    $region100: #{scopeit_forward.1} parent=1 // pred_region
      _
    $region101: #{scopeit_forward.1} parent=1 // pred_fallthru
      _
    // Predicated region
    $region102: #{scopeit_forward.1} parent=1 // pred_check
      _
    $region103: #{scopeit_forward.1} parent=1 // pred_check_branch
      %136 = sbr.rel (0) target = $region105
    $region104: #{scopeit_forward.1} parent=1 // pred_region
      _
    $region105: #{scopeit_forward.1} parent=1 // pred_fallthru
      _
    // Predicated region
    $region106: #{scopeit_forward.1} parent=1 // pred_check
      _
    $region107: #{scopeit_forward.1} parent=1 // pred_check_branch
      %138 = sbr.rel (0) target = $region109
    $region108: #{scopeit_forward.1} parent=1 // pred_region
      _
    $region109: #{scopeit_forward.1} parent=1 // pred_fallthru
      _
    // Predicated region
    $region110: #{scopeit_forward.1} parent=1 // pred_check
      _
    $region111: #{scopeit_forward.1} parent=1 // pred_check_branch
      %140 = sbr.rel (0) target = $region113
    $region112: #{scopeit_forward.1} parent=1 // pred_region
      _
    $region113: #{scopeit_forward.1} parent=1 // pred_fallthru
      _
    // Predicated region
    $region114: #{scopeit_forward.1} parent=1 // pred_check
      _
    $region115: #{scopeit_forward.1} parent=1 // pred_check_branch
      %142 = sbr.rel (0) target = $region117
    $region116: #{scopeit_forward.1} parent=1 // pred_region
      _
    $region117: #{scopeit_forward.1} parent=1 // pred_fallthru
      _
    // Predicated region
    $region118: #{scopeit_forward.1} parent=1 // pred_check
      _
    $region119: #{scopeit_forward.1} parent=1 // pred_check_branch
      %144 = sbr.rel (0) target = $region121
    $region120: #{scopeit_forward.1} parent=1 // pred_region
      _
    $region121: #{scopeit_forward.1} parent=1 // pred_fallthru
      _
    // Predicated region
    $region122: #{scopeit_forward.1} parent=1 // pred_check
      _
    $region123: #{scopeit_forward.1} parent=1 // pred_check_branch
      %146 = sbr.rel (0) target = $region125
    $region124: #{scopeit_forward.1} parent=1 // pred_region
      _
    $region125: #{scopeit_forward.1} parent=1 // pred_fallthru
      _
    // Predicated region
    $region126: #{scopeit_forward.1} parent=1 // pred_check
      _
    $region127: #{scopeit_forward.1} parent=1 // pred_check_branch
      %148 = sbr.rel (0) target = $region129
    $region128: #{scopeit_forward.1} parent=1 // pred_region
      _
    $region129: #{scopeit_forward.1} parent=1 // pred_fallthru
      _
    // Predicated region
    $region130: #{scopeit_forward.1} parent=1 // pred_check
      _
    $region131: #{scopeit_forward.1} parent=1 // pred_check_branch
      %150 = sbr.rel (0) target = $region133
    $region132: #{scopeit_forward.1} parent=1 // pred_region
      _
    $region133: #{scopeit_forward.1} parent=1 // pred_fallthru
      _
    %v151 = vld [vmem:[%s3] sm:$0x3]
    %v152 = vld [vmem:[%s1] sm:$0xff]
    %v153 = vld [vmem:[%s1 + $0x8] sm:$0xff]
    %v154 = vld [vmem:[%s1 + $0x10] sm:$0xff]
    %v155 = vld [vmem:[%s1 + $0x18] sm:$0xff]
    %v156 = vld [vmem:[%s1 + $0x20] sm:$0xff]
    %v157 = vld [vmem:[%s1 + $0x28] sm:$0xff]
    %v158 = vld [vmem:[%s1 + $0x30] sm:$0xff]
    %v159 = vld [vmem:[%s1 + $0x38] sm:$0xff]
    %v160 = vld [vmem:[%s1 + $0x40] sm:$0xff]
    %v161 = vld [vmem:[%s1 + $0x48] sm:$0xff]
    %v162 = vld [vmem:[%s1 + $0x50] sm:$0xff]
    %v163 = vld [vmem:[%s1 + $0x58] sm:$0xff]
    %v164 = vld [vmem:[%s1 + $0x60] sm:$0xff]
    %v165 = vld [vmem:[%s1 + $0x68] sm:$0xff]
    %v166 = vld [vmem:[%s1 + $0x70] sm:$0xff]
    %v167 = vld [vmem:[%s1 + $0x78] sm:$0xff]
    %v168 = vld [vmem:[%s5] sm:$0xff]
    %v169 = vld [vmem:[%s5 + $0x8] sm:$0xff]
    %v170 = vld [vmem:[%s5 + $0x10] sm:$0xff]
    %v171 = vld [vmem:[%s5 + $0x18] sm:$0xff]
    %v172 = vld [vmem:[%s5 + $0x20] sm:$0xff]
    %v173 = vld [vmem:[%s5 + $0x28] sm:$0xff]
    %v174 = vld [vmem:[%s5 + $0x30] sm:$0xff]
    %v175 = vld [vmem:[%s5 + $0x38] sm:$0xff]
    %v176 = vld [vmem:[%s5 + $0x40] sm:$0xff]
    %v177 = vld [vmem:[%s5 + $0x48] sm:$0xff]
    %v178 = vld [vmem:[%s5 + $0x50] sm:$0xff]
    %v179 = vld [vmem:[%s5 + $0x58] sm:$0xff]
    %v180 = vld [vmem:[%s7] sm:$0x3]
    %v182 = vperm.slane %v180, 0
    %v183 = vperm.slane %v180, 1
    %vm186 = vcmask 392192
    %v188 = vsel %vm186, %v152, 0
    %v191 = vsel %vm186, %v153, 0
    %v194 = vsel %vm186, %v154, 0
    %v197 = vsel %vm186, %v155, 0
    %v200 = vsel %vm186, %v156, 0
    %v203 = vsel %vm186, %v157, 0
    %v206 = vsel %vm186, %v158, 0
    %v209 = vsel %vm186, %v159, 0
    %v212 = vsel %vm186, %v160, 0
    %v215 = vsel %vm186, %v161, 0
    %v218 = vsel %vm186, %v162, 0
    %v221 = vsel %vm186, %v163, 0
    %v224 = vsel %vm186, %v164, 0
    %v227 = vsel %vm186, %v165, 0
    %v230 = vsel %vm186, %v166, 0
    %v233 = vsel %vm186, %v167, 0
    %235 = vmatpush.msra.mxu0 0.0
    %236 = vmatpush.msra.mxu0 0.0
    %237 = vmatpush.msra.mxu0 0.0
    %238 = vmatpush.msra.mxu0 0.0
    %239 = vmatpush.msra.mxu0 0.0
    %240 = vmatpush.msra.mxu0 0.0
    %241 = vmatpush.msra.mxu0 0.0
    %242 = vmatpush.msra.mxu0 0.0
    %243 = vmatpush.msra.mxu0 0.0
    %244 = vmatpush.msra.mxu0 0.0
    %245 = vmatpush.msra.mxu0 %v178
    %246 = vmatpush.msra.mxu0 %v176
    %247 = vmatpush.msra.mxu0 %v174
    %248 = vmatpush.msra.mxu0 %v172
    %249 = vmatpush.msra.mxu0 %v170
    %250 = vmatpush.msra.mxu0 %v168
    %251 = vmatmul.f32.gmra.mxu0 %v188
    %v252 = vpop.f32.mrf.mxu0
    %v253 = vadd.f32 %v182, %v252
    %254 = vmatmul.f32.gmra.mxu0 %v191
    %v255 = vpop.f32.mrf.mxu0
    %v256 = vadd.f32 %v182, %v255
    %257 = vmatmul.f32.gmra.mxu0 %v194
    %v258 = vpop.f32.mrf.mxu0
    %v259 = vadd.f32 %v182, %v258
    %260 = vmatmul.f32.gmra.mxu0 %v197
    %v261 = vpop.f32.mrf.mxu0
    %v262 = vadd.f32 %v182, %v261
    %263 = vmatmul.f32.gmra.mxu0 %v200
    %v264 = vpop.f32.mrf.mxu0
    %v265 = vadd.f32 %v182, %v264
    %266 = vmatmul.f32.gmra.mxu0 %v203
    %v267 = vpop.f32.mrf.mxu0
    %v268 = vadd.f32 %v182, %v267
    %269 = vmatmul.f32.gmra.mxu0 %v206
    %v270 = vpop.f32.mrf.mxu0
    %v271 = vadd.f32 %v182, %v270
    %272 = vmatmul.f32.gmra.mxu0 %v209
    %v273 = vpop.f32.mrf.mxu0
    %v274 = vadd.f32 %v182, %v273
    %275 = vmatmul.f32.gmra.mxu0 %v212
    %v276 = vpop.f32.mrf.mxu0
    %v277 = vadd.f32 %v182, %v276
    %278 = vmatmul.f32.gmra.mxu0 %v215
    %v279 = vpop.f32.mrf.mxu0
    %v280 = vadd.f32 %v182, %v279
    %281 = vmatmul.f32.gmra.mxu0 %v218
    %v282 = vpop.f32.mrf.mxu0
    %v283 = vadd.f32 %v182, %v282
    %284 = vmatmul.f32.gmra.mxu0 %v221
    %v285 = vpop.f32.mrf.mxu0
    %v286 = vadd.f32 %v182, %v285
    %287 = vmatmul.f32.gmra.mxu0 %v224
    %v288 = vpop.f32.mrf.mxu0
    %v289 = vadd.f32 %v182, %v288
    %290 = vmatmul.f32.gmra.mxu0 %v227
    %v291 = vpop.f32.mrf.mxu0
    %v292 = vadd.f32 %v182, %v291
    %293 = vmatmul.f32.gmra.mxu0 %v230
    %v294 = vpop.f32.mrf.mxu0
    %v295 = vadd.f32 %v182, %v294
    %296 = vmatmul.f32.gmra.mxu0 %v233
    %v297 = vpop.f32.mrf.mxu0
    %v298 = vadd.f32 %v182, %v297
    %299 = vdwg.mxu0
    %300 = vmatpush.msra.mxu0 0.0
    %301 = vmatpush.msra.mxu0 0.0
    %302 = vmatpush.msra.mxu0 0.0
    %303 = vmatpush.msra.mxu0 0.0
    %304 = vmatpush.msra.mxu0 0.0
    %305 = vmatpush.msra.mxu0 0.0
    %306 = vmatpush.msra.mxu0 0.0
    %307 = vmatpush.msra.mxu0 0.0
    %308 = vmatpush.msra.mxu0 0.0
    %309 = vmatpush.msra.mxu0 0.0
    %310 = vmatpush.msra.mxu0 %v179
    %311 = vmatpush.msra.mxu0 %v177
    %312 = vmatpush.msra.mxu0 %v175
    %313 = vmatpush.msra.mxu0 %v173
    %314 = vmatpush.msra.mxu0 %v171
    %315 = vmatpush.msra.mxu0 %v169
    %316 = vmatmul.f32.gmra.mxu0 %v188
    %v317 = vpop.f32.mrf.mxu0
    %v318 = vadd.f32 %v183, %v317
    %319 = vmatmul.f32.gmra.mxu0 %v191
    %v320 = vpop.f32.mrf.mxu0
    %v321 = vadd.f32 %v183, %v320
    %322 = vmatmul.f32.gmra.mxu0 %v194
    %v323 = vpop.f32.mrf.mxu0
    %v324 = vadd.f32 %v183, %v323
    %325 = vmatmul.f32.gmra.mxu0 %v197
    %v326 = vpop.f32.mrf.mxu0
    %v327 = vadd.f32 %v183, %v326
    %328 = vmatmul.f32.gmra.mxu0 %v200
    %v329 = vpop.f32.mrf.mxu0
    %v330 = vadd.f32 %v183, %v329
    %331 = vmatmul.f32.gmra.mxu0 %v203
    %v332 = vpop.f32.mrf.mxu0
    %v333 = vadd.f32 %v183, %v332
    %334 = vmatmul.f32.gmra.mxu0 %v206
    %v335 = vpop.f32.mrf.mxu0
    %v336 = vadd.f32 %v183, %v335
    %337 = vmatmul.f32.gmra.mxu0 %v209
    %v338 = vpop.f32.mrf.mxu0
    %v339 = vadd.f32 %v183, %v338
    %340 = vmatmul.f32.gmra.mxu0 %v212
    %v341 = vpop.f32.mrf.mxu0
    %v342 = vadd.f32 %v183, %v341
    %343 = vmatmul.f32.gmra.mxu0 %v215
    %v344 = vpop.f32.mrf.mxu0
    %v345 = vadd.f32 %v183, %v344
    %346 = vmatmul.f32.gmra.mxu0 %v218
    %v347 = vpop.f32.mrf.mxu0
    %v348 = vadd.f32 %v183, %v347
    %349 = vmatmul.f32.gmra.mxu0 %v221
    %v350 = vpop.f32.mrf.mxu0
    %v351 = vadd.f32 %v183, %v350
    %352 = vmatmul.f32.gmra.mxu0 %v224
    %v353 = vpop.f32.mrf.mxu0
    %v354 = vadd.f32 %v183, %v353
    %355 = vmatmul.f32.gmra.mxu0 %v227
    %v356 = vpop.f32.mrf.mxu0
    %v357 = vadd.f32 %v183, %v356
    %358 = vmatmul.f32.gmra.mxu0 %v230
    %v359 = vpop.f32.mrf.mxu0
    %v360 = vadd.f32 %v183, %v359
    %361 = vmatmul.f32.gmra.mxu0 %v233
    %v362 = vpop.f32.mrf.mxu0
    %v363 = vadd.f32 %v183, %v362
    %364 = vdwg.mxu0
    %365 = vst [vmem:[#allocation2] sm:$0xff] %v253
    %vm366 = vcmask 523264
    %367 = vst.msk [vmem:[#allocation2 + $0x8] sm:$0xff] %vm366, %v318
    %368 = vst [vmem:[#allocation2 + $0x10] sm:$0xff] %v256
    %369 = vst.msk [vmem:[#allocation2 + $0x18] sm:$0xff] %vm366, %v321
    %370 = vst [vmem:[#allocation2 + $0x20] sm:$0xff] %v259
    %371 = vst.msk [vmem:[#allocation2 + $0x28] sm:$0xff] %vm366, %v324
    %372 = vst [vmem:[#allocation2 + $0x30] sm:$0xff] %v262
    %373 = vst.msk [vmem:[#allocation2 + $0x38] sm:$0xff] %vm366, %v327
    %374 = vst [vmem:[#allocation2 + $0x40] sm:$0xff] %v265
    %375 = vst.msk [vmem:[#allocation2 + $0x48] sm:$0xff] %vm366, %v330
    %376 = vst [vmem:[#allocation2 + $0x50] sm:$0xff] %v268
    %377 = vst.msk [vmem:[#allocation2 + $0x58] sm:$0xff] %vm366, %v333
    %378 = vst [vmem:[#allocation2 + $0x60] sm:$0xff] %v271
    %379 = vst.msk [vmem:[#allocation2 + $0x68] sm:$0xff] %vm366, %v336
    %380 = vst [vmem:[#allocation2 + $0x70] sm:$0xff] %v274
    %381 = vst.msk [vmem:[#allocation2 + $0x78] sm:$0xff] %vm366, %v339
    %382 = vst [vmem:[#allocation2 + $0x80] sm:$0xff] %v277
    %383 = vst.msk [vmem:[#allocation2 + $0x88] sm:$0xff] %vm366, %v342
    %384 = vst [vmem:[#allocation2 + $0x90] sm:$0xff] %v280
    %385 = vst.msk [vmem:[#allocation2 + $0x98] sm:$0xff] %vm366, %v345
    %386 = vst [vmem:[#allocation2 + $0xa0] sm:$0xff] %v283
    %387 = vst.msk [vmem:[#allocation2 + $0xa8] sm:$0xff] %vm366, %v348
    %388 = vst [vmem:[#allocation2 + $0xb0] sm:$0xff] %v286
    %389 = vst.msk [vmem:[#allocation2 + $0xb8] sm:$0xff] %vm366, %v351
    %390 = vst [vmem:[#allocation2 + $0xc0] sm:$0xff] %v289
    %391 = vst.msk [vmem:[#allocation2 + $0xc8] sm:$0xff] %vm366, %v354
    %392 = vst [vmem:[#allocation2 + $0xd0] sm:$0xff] %v292
    %393 = vst.msk [vmem:[#allocation2 + $0xd8] sm:$0xff] %vm366, %v357
    %394 = vst [vmem:[#allocation2 + $0xe0] sm:$0xff] %v295
    %395 = vst.msk [vmem:[#allocation2 + $0xe8] sm:$0xff] %vm366, %v360
    %396 = vst [vmem:[#allocation2 + $0xf0] sm:$0xff] %v298
    %397 = vst.msk [vmem:[#allocation2 + $0xf8] sm:$0xff] %vm366, %v363
    %v398 = vld [vmem:[%s9] sm:$0xff]
    %v399 = vld [vmem:[%s9 + $0x8] sm:$0xff]
    %v400 = vld [vmem:[%s9 + $0x10] sm:$0xff]
    %v401 = vld [vmem:[%s9 + $0x18] sm:$0xff]
    %v402 = vld [vmem:[%s9 + $0x20] sm:$0xff]
    %v403 = vld [vmem:[%s9 + $0x28] sm:$0xff]
    %v404 = vld [vmem:[%s9 + $0x30] sm:$0xff]
    %v405 = vld [vmem:[%s9 + $0x38] sm:$0xff]
    %v406 = vld [vmem:[%s9 + $0x40] sm:$0xff]
    %v407 = vld [vmem:[%s9 + $0x48] sm:$0xff]
    %v408 = vld [vmem:[%s9 + $0x50] sm:$0xff]
    %v409 = vld [vmem:[%s9 + $0x58] sm:$0xff]
    %v410 = vld [vmem:[%s9 + $0x60] sm:$0xff]
    %v411 = vld [vmem:[%s9 + $0x68] sm:$0xff]
    %v412 = vld [vmem:[%s9 + $0x70] sm:$0xff]
    %v413 = vld [vmem:[%s9 + $0x78] sm:$0xff]
    %v414 = vld [vmem:[%s11] sm:$0x1]
    %v416 = vperm.slane %v151, 0
    %v417 = vperm.slane %v151, 1
    %vm420 = vcmp.gt.f32.partialorder %v416, 0.5
    %vm421 = vcmp.gt.f32.partialorder %v417, 0.5
    %v423 = vperm.slane %v414, 0
    %v425 = vld [vmem:[#allocation2] sm:$0xff]
    %v426 = vld [vmem:[#allocation2 + $0x8] sm:$0xff]
    %v427 = vld [vmem:[#allocation2 + $0xf0] sm:$0xff]
    %v428 = vld [vmem:[#allocation2 + $0xf8] sm:$0xff]
    %v429 = vsel %vm420, %v427, %v425
    %v430 = vsel %vm421, %v428, %v426
    %v432 = vsel %vm366, 0.0, 0
    %434 = vmatpush.msra.mxu0 0.0
    %435 = vmatpush.msra.mxu0 0.0
    %436 = vmatpush.msra.mxu0 0.0
    %437 = vmatpush.msra.mxu0 0.0
    %438 = vmatpush.msra.mxu0 0.0
    %439 = vmatpush.msra.mxu0 0.0
    %440 = vmatpush.msra.mxu0 0.0
    %441 = vmatpush.msra.mxu0 0.0
    %442 = vmatpush.msra.mxu0 %v412
    %443 = vmatpush.msra.mxu0 %v410
    %444 = vmatpush.msra.mxu0 %v408
    %445 = vmatpush.msra.mxu0 %v406
    %446 = vmatpush.msra.mxu0 %v404
    %447 = vmatpush.msra.mxu0 %v402
    %448 = vmatpush.msra.mxu0 %v400
    %449 = vmatpush.msra.mxu0 %v398
    %450 = vmatmul.f32.gmra.mxu0 %v432
    %v451 = vpop.f32.mrf.mxu0
    %v452 = vadd.f32 0.0, %v451
    %453 = vdwg.mxu0
    %454 = vmatpush.msra.mxu0 0.0
    %455 = vmatpush.msra.mxu0 0.0
    %456 = vmatpush.msra.mxu0 0.0
    %457 = vmatpush.msra.mxu0 0.0
    %458 = vmatpush.msra.mxu0 0.0
    %459 = vmatpush.msra.mxu0 0.0
    %460 = vmatpush.msra.mxu0 0.0
    %461 = vmatpush.msra.mxu0 0.0
    %462 = vmatpush.msra.mxu0 %v413
    %463 = vmatpush.msra.mxu0 %v411
    %464 = vmatpush.msra.mxu0 %v409
    %465 = vmatpush.msra.mxu0 %v407
    %466 = vmatpush.msra.mxu0 %v405
    %467 = vmatpush.msra.mxu0 %v403
    %468 = vmatpush.msra.mxu0 %v401
    %469 = vmatpush.msra.mxu0 %v399
    %470 = vmatmul.f32.gmra.mxu0 %v432
    %v471 = vpop.f32.mrf.mxu0
    %v472 = vadd.f32 0.0, %v471
    %473 = vdwg.mxu0
    %v474 = vadd.f32 %v429, %v452
    %v475 = vxor.u32 %v474, 2147483648
    %v476 = vmul.f32 %v475, 1.442695
    %v477 = vpow.pop %v476
    %v478 = vadd.f32 %v477, 1.0
    %v479 = vrcp.pop %v478
    %v480 = vmul.f32 %v478, %v479
    %v481 = vsub.f32 1.0, %v480
    %v482 = vmul.f32 %v479, %v481
    %v483 = vadd.f32 %v479, %v482
    %vm484 = vweird.f32 %v478
    %vm485 = vweird.f32 %v479
    %vm486 = vmor %vm484, %vm485
    %v487 = vsel %vm486, %v479, %v483
    %v488 = vand.u32 2147483647, %v478
    %vm489 = vcmp.eq.f32.partialorder %v488, 8.507059e+37
    %v490 = vand.u32 %v478, 2147483648
    %v491 = vor.u32 1.1754944e-38, %v490
    %v492 = vsel %vm489, %v491, %v487
    %v493 = vmul.f32 1.0, %v492
    %v494 = vadd.f32 %v472, %v423
    %v495 = vmul.f32 %v493, %v494
    %v496 = vadd.f32 %v430, %v495
    %v497 = vtanh.pop %v496
    %v498 = vsub.f32 0.0, %v497
    %500 = vrot.lane.b32.xlu0 %v498, 64
    %v501 = vpop.permute.xlu0 %500
    %v503 = vmul.f32 %v493, %v501
    %505 = vrot.lane.b32.xlu0 %v503, 64
    %v506 = vpop.permute.xlu0 %505
    %v508 = vadd.f32 %v497, %v506
    %509 = vst.msk [vmem:[#allocation3] sm:$0xff] %vm366, %v508
    %v510 = vld [vmem:[#allocation2 + $0x10] sm:$0xff]
    %v511 = vld [vmem:[#allocation2 + $0x18] sm:$0xff]
    %v512 = vld [vmem:[#allocation2 + $0xe0] sm:$0xff]
    %v513 = vld [vmem:[#allocation2 + $0xe8] sm:$0xff]
    %v514 = vsel %vm420, %v512, %v510
    %v515 = vsel %vm421, %v513, %v511
    %v517 = vsel %vm366, %v508, 0
    %519 = vmatpush.msra.mxu0 0.0
    %520 = vmatpush.msra.mxu0 0.0
    %521 = vmatpush.msra.mxu0 0.0
    %522 = vmatpush.msra.mxu0 0.0
    %523 = vmatpush.msra.mxu0 0.0
    %524 = vmatpush.msra.mxu0 0.0
    %525 = vmatpush.msra.mxu0 0.0
    %526 = vmatpush.msra.mxu0 0.0
    %527 = vmatpush.msra.mxu0 %v412
    %528 = vmatpush.msra.mxu0 %v410
    %529 = vmatpush.msra.mxu0 %v408
    %530 = vmatpush.msra.mxu0 %v406
    %531 = vmatpush.msra.mxu0 %v404
    %532 = vmatpush.msra.mxu0 %v402
    %533 = vmatpush.msra.mxu0 %v400
    %534 = vmatpush.msra.mxu0 %v398
    %535 = vmatmul.f32.gmra.mxu0 %v517
    %v536 = vpop.f32.mrf.mxu0
    %v537 = vadd.f32 0.0, %v536
    %538 = vdwg.mxu0
    %539 = vmatpush.msra.mxu0 0.0
    %540 = vmatpush.msra.mxu0 0.0
    %541 = vmatpush.msra.mxu0 0.0
    %542 = vmatpush.msra.mxu0 0.0
    %543 = vmatpush.msra.mxu0 0.0
    %544 = vmatpush.msra.mxu0 0.0
    %545 = vmatpush.msra.mxu0 0.0
    %546 = vmatpush.msra.mxu0 0.0
    %547 = vmatpush.msra.mxu0 %v413
    %548 = vmatpush.msra.mxu0 %v411
    %549 = vmatpush.msra.mxu0 %v409
    %550 = vmatpush.msra.mxu0 %v407
    %551 = vmatpush.msra.mxu0 %v405
    %552 = vmatpush.msra.mxu0 %v403
    %553 = vmatpush.msra.mxu0 %v401
    %554 = vmatpush.msra.mxu0 %v399
    %555 = vmatmul.f32.gmra.mxu0 %v517
    %v556 = vpop.f32.mrf.mxu0
    %v557 = vadd.f32 0.0, %v556
    %558 = vdwg.mxu0
    %v559 = vadd.f32 %v514, %v537
    %v560 = vxor.u32 %v559, 2147483648
    %v561 = vmul.f32 %v560, 1.442695
    %v562 = vpow.pop %v561
    %v563 = vadd.f32 %v562, 1.0
    %v564 = vrcp.pop %v563
    %v565 = vmul.f32 %v563, %v564
    %v566 = vsub.f32 1.0, %v565
    %v567 = vmul.f32 %v564, %v566
    %v568 = vadd.f32 %v564, %v567
    %vm569 = vweird.f32 %v563
    %vm570 = vweird.f32 %v564
    %vm571 = vmor %vm569, %vm570
    %v572 = vsel %vm571, %v564, %v568
    %v573 = vand.u32 2147483647, %v563
    %vm574 = vcmp.eq.f32.partialorder %v573, 8.507059e+37
    %v575 = vand.u32 %v563, 2147483648
    %v576 = vor.u32 1.1754944e-38, %v575
    %v577 = vsel %vm574, %v576, %v572
    %v578 = vmul.f32 1.0, %v577
    %v579 = vadd.f32 %v557, %v423
    %v580 = vmul.f32 %v578, %v579
    %v581 = vadd.f32 %v515, %v580
    %v582 = vtanh.pop %v581
    %v583 = vsub.f32 %v508, %v582
    %585 = vrot.lane.b32.xlu0 %v583, 64
    %v586 = vpop.permute.xlu0 %585
    %v588 = vmul.f32 %v578, %v586
    %590 = vrot.lane.b32.xlu0 %v588, 64
    %v591 = vpop.permute.xlu0 %590
    %v593 = vadd.f32 %v582, %v591
    %594 = vst.msk [vmem:[#allocation3 + $0x8] sm:$0xff] %vm366, %v593
    %v595 = vld [vmem:[#allocation2 + $0x20] sm:$0xff]
    %v596 = vld [vmem:[#allocation2 + $0x28] sm:$0xff]
    %v597 = vld [vmem:[#allocation2 + $0xd0] sm:$0xff]
    %v598 = vld [vmem:[#allocation2 + $0xd8] sm:$0xff]
    %v599 = vsel %vm420, %v597, %v595
    %v600 = vsel %vm421, %v598, %v596
    %v602 = vsel %vm366, %v593, 0
    %604 = vmatpush.msra.mxu0 0.0
    %605 = vmatpush.msra.mxu0 0.0
    %606 = vmatpush.msra.mxu0 0.0
    %607 = vmatpush.msra.mxu0 0.0
    %608 = vmatpush.msra.mxu0 0.0
    %609 = vmatpush.msra.mxu0 0.0
    %610 = vmatpush.msra.mxu0 0.0
    %611 = vmatpush.msra.mxu0 0.0
    %612 = vmatpush.msra.mxu0 %v412
    %613 = vmatpush.msra.mxu0 %v410
    %614 = vmatpush.msra.mxu0 %v408
    %615 = vmatpush.msra.mxu0 %v406
    %616 = vmatpush.msra.mxu0 %v404
    %617 = vmatpush.msra.mxu0 %v402
    %618 = vmatpush.msra.mxu0 %v400
    %619 = vmatpush.msra.mxu0 %v398
    %620 = vmatmul.f32.gmra.mxu0 %v602
    %v621 = vpop.f32.mrf.mxu0
    %v622 = vadd.f32 0.0, %v621
    %623 = vdwg.mxu0
    %624 = vmatpush.msra.mxu0 0.0
    %625 = vmatpush.msra.mxu0 0.0
    %626 = vmatpush.msra.mxu0 0.0
    %627 = vmatpush.msra.mxu0 0.0
    %628 = vmatpush.msra.mxu0 0.0
    %629 = vmatpush.msra.mxu0 0.0
    %630 = vmatpush.msra.mxu0 0.0
    %631 = vmatpush.msra.mxu0 0.0
    %632 = vmatpush.msra.mxu0 %v413
    %633 = vmatpush.msra.mxu0 %v411
    %634 = vmatpush.msra.mxu0 %v409
    %635 = vmatpush.msra.mxu0 %v407
    %636 = vmatpush.msra.mxu0 %v405
    %637 = vmatpush.msra.mxu0 %v403
    %638 = vmatpush.msra.mxu0 %v401
    %639 = vmatpush.msra.mxu0 %v399
    %640 = vmatmul.f32.gmra.mxu0 %v602
    %v641 = vpop.f32.mrf.mxu0
    %v642 = vadd.f32 0.0, %v641
    %643 = vdwg.mxu0
    %v644 = vadd.f32 %v599, %v622
    %v645 = vxor.u32 %v644, 2147483648
    %v646 = vmul.f32 %v645, 1.442695
    %v647 = vpow.pop %v646
    %v648 = vadd.f32 %v647, 1.0
    %v649 = vrcp.pop %v648
    %v650 = vmul.f32 %v648, %v649
    %v651 = vsub.f32 1.0, %v650
    %v652 = vmul.f32 %v649, %v651
    %v653 = vadd.f32 %v649, %v652
    %vm654 = vweird.f32 %v648
    %vm655 = vweird.f32 %v649
    %vm656 = vmor %vm654, %vm655
    %v657 = vsel %vm656, %v649, %v653
    %v658 = vand.u32 2147483647, %v648
    %vm659 = vcmp.eq.f32.partialorder %v658, 8.507059e+37
    %v660 = vand.u32 %v648, 2147483648
    %v661 = vor.u32 1.1754944e-38, %v660
    %v662 = vsel %vm659, %v661, %v657
    %v663 = vmul.f32 1.0, %v662
    %v664 = vadd.f32 %v642, %v423
    %v665 = vmul.f32 %v663, %v664
    %v666 = vadd.f32 %v600, %v665
    %v667 = vtanh.pop %v666
    %v668 = vsub.f32 %v593, %v667
    %670 = vrot.lane.b32.xlu0 %v668, 64
    %v671 = vpop.permute.xlu0 %670
    %v673 = vmul.f32 %v663, %v671
    %675 = vrot.lane.b32.xlu0 %v673, 64
    %v676 = vpop.permute.xlu0 %675
    %v678 = vadd.f32 %v667, %v676
    %679 = vst.msk [vmem:[#allocation3 + $0x10] sm:$0xff] %vm366, %v678
    %v680 = vld [vmem:[#allocation2 + $0x30] sm:$0xff]
    %v681 = vld [vmem:[#allocation2 + $0x38] sm:$0xff]
    %v682 = vld [vmem:[#allocation2 + $0xc0] sm:$0xff]
    %v683 = vld [vmem:[#allocation2 + $0xc8] sm:$0xff]
    %v684 = vsel %vm420, %v682, %v680
    %v685 = vsel %vm421, %v683, %v681
    %v687 = vsel %vm366, %v678, 0
    %689 = vmatpush.msra.mxu0 0.0
    %690 = vmatpush.msra.mxu0 0.0
    %691 = vmatpush.msra.mxu0 0.0
    %692 = vmatpush.msra.mxu0 0.0
    %693 = vmatpush.msra.mxu0 0.0
    %694 = vmatpush.msra.mxu0 0.0
    %695 = vmatpush.msra.mxu0 0.0
    %696 = vmatpush.msra.mxu0 0.0
    %697 = vmatpush.msra.mxu0 %v412
    %698 = vmatpush.msra.mxu0 %v410
    %699 = vmatpush.msra.mxu0 %v408
    %700 = vmatpush.msra.mxu0 %v406
    %701 = vmatpush.msra.mxu0 %v404
    %702 = vmatpush.msra.mxu0 %v402
    %703 = vmatpush.msra.mxu0 %v400
    %704 = vmatpush.msra.mxu0 %v398
    %705 = vmatmul.f32.gmra.mxu0 %v687
    %v706 = vpop.f32.mrf.mxu0
    %v707 = vadd.f32 0.0, %v706
    %708 = vdwg.mxu0
    %709 = vmatpush.msra.mxu0 0.0
    %710 = vmatpush.msra.mxu0 0.0
    %711 = vmatpush.msra.mxu0 0.0
    %712 = vmatpush.msra.mxu0 0.0
    %713 = vmatpush.msra.mxu0 0.0
    %714 = vmatpush.msra.mxu0 0.0
    %715 = vmatpush.msra.mxu0 0.0
    %716 = vmatpush.msra.mxu0 0.0
    %717 = vmatpush.msra.mxu0 %v413
    %718 = vmatpush.msra.mxu0 %v411
    %719 = vmatpush.msra.mxu0 %v409
    %720 = vmatpush.msra.mxu0 %v407
    %721 = vmatpush.msra.mxu0 %v405
    %722 = vmatpush.msra.mxu0 %v403
    %723 = vmatpush.msra.mxu0 %v401
    %724 = vmatpush.msra.mxu0 %v399
    %725 = vmatmul.f32.gmra.mxu0 %v687
    %v726 = vpop.f32.mrf.mxu0
    %v727 = vadd.f32 0.0, %v726
    %728 = vdwg.mxu0
    %v729 = vadd.f32 %v684, %v707
    %v730 = vxor.u32 %v729, 2147483648
    %v731 = vmul.f32 %v730, 1.442695
    %v732 = vpow.pop %v731
    %v733 = vadd.f32 %v732, 1.0
    %v734 = vrcp.pop %v733
    %v735 = vmul.f32 %v733, %v734
    %v736 = vsub.f32 1.0, %v735
    %v737 = vmul.f32 %v734, %v736
    %v738 = vadd.f32 %v734, %v737
    %vm739 = vweird.f32 %v733
    %vm740 = vweird.f32 %v734
    %vm741 = vmor %vm739, %vm740
    %v742 = vsel %vm741, %v734, %v738
    %v743 = vand.u32 2147483647, %v733
    %vm744 = vcmp.eq.f32.partialorder %v743, 8.507059e+37
    %v745 = vand.u32 %v733, 2147483648
    %v746 = vor.u32 1.1754944e-38, %v745
    %v747 = vsel %vm744, %v746, %v742
    %v748 = vmul.f32 1.0, %v747
    %v749 = vadd.f32 %v727, %v423
    %v750 = vmul.f32 %v748, %v749
    %v751 = vadd.f32 %v685, %v750
    %v752 = vtanh.pop %v751
    %v753 = vsub.f32 %v678, %v752
    %755 = vrot.lane.b32.xlu0 %v753, 64
    %v756 = vpop.permute.xlu0 %755
    %v758 = vmul.f32 %v748, %v756
    %760 = vrot.lane.b32.xlu0 %v758, 64
    %v761 = vpop.permute.xlu0 %760
    %v763 = vadd.f32 %v752, %v761
    %764 = vst.msk [vmem:[#allocation3 + $0x18] sm:$0xff] %vm366, %v763
    %v765 = vld [vmem:[#allocation2 + $0x40] sm:$0xff]
    %v766 = vld [vmem:[#allocation2 + $0x48] sm:$0xff]
    %v767 = vld [vmem:[#allocation2 + $0xb0] sm:$0xff]
    %v768 = vld [vmem:[#allocation2 + $0xb8] sm:$0xff]
    %v769 = vsel %vm420, %v767, %v765
    %v770 = vsel %vm421, %v768, %v766
    %v772 = vsel %vm366, %v763, 0
    %774 = vmatpush.msra.mxu0 0.0
    %775 = vmatpush.msra.mxu0 0.0
    %776 = vmatpush.msra.mxu0 0.0
    %777 = vmatpush.msra.mxu0 0.0
    %778 = vmatpush.msra.mxu0 0.0
    %779 = vmatpush.msra.mxu0 0.0
    %780 = vmatpush.msra.mxu0 0.0
    %781 = vmatpush.msra.mxu0 0.0
    %782 = vmatpush.msra.mxu0 %v412
    %783 = vmatpush.msra.mxu0 %v410
    %784 = vmatpush.msra.mxu0 %v408
    %785 = vmatpush.msra.mxu0 %v406
    %786 = vmatpush.msra.mxu0 %v404
    %787 = vmatpush.msra.mxu0 %v402
    %788 = vmatpush.msra.mxu0 %v400
    %789 = vmatpush.msra.mxu0 %v398
    %790 = vmatmul.f32.gmra.mxu0 %v772
    %v791 = vpop.f32.mrf.mxu0
    %v792 = vadd.f32 0.0, %v791
    %793 = vdwg.mxu0
    %794 = vmatpush.msra.mxu0 0.0
    %795 = vmatpush.msra.mxu0 0.0
    %796 = vmatpush.msra.mxu0 0.0
    %797 = vmatpush.msra.mxu0 0.0
    %798 = vmatpush.msra.mxu0 0.0
    %799 = vmatpush.msra.mxu0 0.0
    %800 = vmatpush.msra.mxu0 0.0
    %801 = vmatpush.msra.mxu0 0.0
    %802 = vmatpush.msra.mxu0 %v413
    %803 = vmatpush.msra.mxu0 %v411
    %804 = vmatpush.msra.mxu0 %v409
    %805 = vmatpush.msra.mxu0 %v407
    %806 = vmatpush.msra.mxu0 %v405
    %807 = vmatpush.msra.mxu0 %v403
    %808 = vmatpush.msra.mxu0 %v401
    %809 = vmatpush.msra.mxu0 %v399
    %810 = vmatmul.f32.gmra.mxu0 %v772
    %v811 = vpop.f32.mrf.mxu0
    %v812 = vadd.f32 0.0, %v811
    %813 = vdwg.mxu0
    %v814 = vadd.f32 %v769, %v792
    %v815 = vxor.u32 %v814, 2147483648
    %v816 = vmul.f32 %v815, 1.442695
    %v817 = vpow.pop %v816
    %v818 = vadd.f32 %v817, 1.0
    %v819 = vrcp.pop %v818
    %v820 = vmul.f32 %v818, %v819
    %v821 = vsub.f32 1.0, %v820
    %v822 = vmul.f32 %v819, %v821
    %v823 = vadd.f32 %v819, %v822
    %vm824 = vweird.f32 %v818
    %vm825 = vweird.f32 %v819
    %vm826 = vmor %vm824, %vm825
    %v827 = vsel %vm826, %v819, %v823
    %v828 = vand.u32 2147483647, %v818
    %vm829 = vcmp.eq.f32.partialorder %v828, 8.507059e+37
    %v830 = vand.u32 %v818, 2147483648
    %v831 = vor.u32 1.1754944e-38, %v830
    %v832 = vsel %vm829, %v831, %v827
    %v833 = vmul.f32 1.0, %v832
    %v834 = vadd.f32 %v812, %v423
    %v835 = vmul.f32 %v833, %v834
    %v836 = vadd.f32 %v770, %v835
    %v837 = vtanh.pop %v836
    %v838 = vsub.f32 %v763, %v837
    %840 = vrot.lane.b32.xlu0 %v838, 64
    %v841 = vpop.permute.xlu0 %840
    %v843 = vmul.f32 %v833, %v841
    %845 = vrot.lane.b32.xlu0 %v843, 64
    %v846 = vpop.permute.xlu0 %845
    %v848 = vadd.f32 %v837, %v846
    %849 = vst.msk [vmem:[#allocation3 + $0x20] sm:$0xff] %vm366, %v848
    %v850 = vld [vmem:[#allocation2 + $0x50] sm:$0xff]
    %v851 = vld [vmem:[#allocation2 + $0x58] sm:$0xff]
    %v852 = vld [vmem:[#allocation2 + $0xa0] sm:$0xff]
    %v853 = vld [vmem:[#allocation2 + $0xa8] sm:$0xff]
    %v854 = vsel %vm420, %v852, %v850
    %v855 = vsel %vm421, %v853, %v851
    %v857 = vsel %vm366, %v848, 0
    %859 = vmatpush.msra.mxu0 0.0
    %860 = vmatpush.msra.mxu0 0.0
    %861 = vmatpush.msra.mxu0 0.0
    %862 = vmatpush.msra.mxu0 0.0
    %863 = vmatpush.msra.mxu0 0.0
    %864 = vmatpush.msra.mxu0 0.0
    %865 = vmatpush.msra.mxu0 0.0
    %866 = vmatpush.msra.mxu0 0.0
    %867 = vmatpush.msra.mxu0 %v412
    %868 = vmatpush.msra.mxu0 %v410
    %869 = vmatpush.msra.mxu0 %v408
    %870 = vmatpush.msra.mxu0 %v406
    %871 = vmatpush.msra.mxu0 %v404
    %872 = vmatpush.msra.mxu0 %v402
    %873 = vmatpush.msra.mxu0 %v400
    %874 = vmatpush.msra.mxu0 %v398
    %875 = vmatmul.f32.gmra.mxu0 %v857
    %v876 = vpop.f32.mrf.mxu0
    %v877 = vadd.f32 0.0, %v876
    %878 = vdwg.mxu0
    %879 = vmatpush.msra.mxu0 0.0
    %880 = vmatpush.msra.mxu0 0.0
    %881 = vmatpush.msra.mxu0 0.0
    %882 = vmatpush.msra.mxu0 0.0
    %883 = vmatpush.msra.mxu0 0.0
    %884 = vmatpush.msra.mxu0 0.0
    %885 = vmatpush.msra.mxu0 0.0
    %886 = vmatpush.msra.mxu0 0.0
    %887 = vmatpush.msra.mxu0 %v413
    %888 = vmatpush.msra.mxu0 %v411
    %889 = vmatpush.msra.mxu0 %v409
    %890 = vmatpush.msra.mxu0 %v407
    %891 = vmatpush.msra.mxu0 %v405
    %892 = vmatpush.msra.mxu0 %v403
    %893 = vmatpush.msra.mxu0 %v401
    %894 = vmatpush.msra.mxu0 %v399
    %895 = vmatmul.f32.gmra.mxu0 %v857
    %v896 = vpop.f32.mrf.mxu0
    %v897 = vadd.f32 0.0, %v896
    %898 = vdwg.mxu0
    %v899 = vadd.f32 %v854, %v877
    %v900 = vxor.u32 %v899, 2147483648
    %v901 = vmul.f32 %v900, 1.442695
    %v902 = vpow.pop %v901
    %v903 = vadd.f32 %v902, 1.0
    %v904 = vrcp.pop %v903
    %v905 = vmul.f32 %v903, %v904
    %v906 = vsub.f32 1.0, %v905
    %v907 = vmul.f32 %v904, %v906
    %v908 = vadd.f32 %v904, %v907
    %vm909 = vweird.f32 %v903
    %vm910 = vweird.f32 %v904
    %vm911 = vmor %vm909, %vm910
    %v912 = vsel %vm911, %v904, %v908
    %v913 = vand.u32 2147483647, %v903
    %vm914 = vcmp.eq.f32.partialorder %v913, 8.507059e+37
    %v915 = vand.u32 %v903, 2147483648
    %v916 = vor.u32 1.1754944e-38, %v915
    %v917 = vsel %vm914, %v916, %v912
    %v918 = vmul.f32 1.0, %v917
    %v919 = vadd.f32 %v897, %v423
    %v920 = vmul.f32 %v918, %v919
    %v921 = vadd.f32 %v855, %v920
    %v922 = vtanh.pop %v921
    %v923 = vsub.f32 %v848, %v922
    %925 = vrot.lane.b32.xlu0 %v923, 64
    %v926 = vpop.permute.xlu0 %925
    %v928 = vmul.f32 %v918, %v926
    %930 = vrot.lane.b32.xlu0 %v928, 64
    %v931 = vpop.permute.xlu0 %930
    %v933 = vadd.f32 %v922, %v931
    %934 = vst.msk [vmem:[#allocation3 + $0x28] sm:$0xff] %vm366, %v933
    %v935 = vld [vmem:[#allocation2 + $0x60] sm:$0xff]
    %v936 = vld [vmem:[#allocation2 + $0x68] sm:$0xff]
    %v937 = vld [vmem:[#allocation2 + $0x90] sm:$0xff]
    %v938 = vld [vmem:[#allocation2 + $0x98] sm:$0xff]
    %v939 = vsel %vm420, %v937, %v935
    %v940 = vsel %vm421, %v938, %v936
    %v942 = vsel %vm366, %v933, 0
    %944 = vmatpush.msra.mxu0 0.0
    %945 = vmatpush.msra.mxu0 0.0
    %946 = vmatpush.msra.mxu0 0.0
    %947 = vmatpush.msra.mxu0 0.0
    %948 = vmatpush.msra.mxu0 0.0
    %949 = vmatpush.msra.mxu0 0.0
    %950 = vmatpush.msra.mxu0 0.0
    %951 = vmatpush.msra.mxu0 0.0
    %952 = vmatpush.msra.mxu0 %v412
    %953 = vmatpush.msra.mxu0 %v410
    %954 = vmatpush.msra.mxu0 %v408
    %955 = vmatpush.msra.mxu0 %v406
    %956 = vmatpush.msra.mxu0 %v404
    %957 = vmatpush.msra.mxu0 %v402
    %958 = vmatpush.msra.mxu0 %v400
    %959 = vmatpush.msra.mxu0 %v398
    %960 = vmatmul.f32.gmra.mxu0 %v942
    %v961 = vpop.f32.mrf.mxu0
    %v962 = vadd.f32 0.0, %v961
    %963 = vdwg.mxu0
    %964 = vmatpush.msra.mxu0 0.0
    %965 = vmatpush.msra.mxu0 0.0
    %966 = vmatpush.msra.mxu0 0.0
    %967 = vmatpush.msra.mxu0 0.0
    %968 = vmatpush.msra.mxu0 0.0
    %969 = vmatpush.msra.mxu0 0.0
    %970 = vmatpush.msra.mxu0 0.0
    %971 = vmatpush.msra.mxu0 0.0
    %972 = vmatpush.msra.mxu0 %v413
    %973 = vmatpush.msra.mxu0 %v411
    %974 = vmatpush.msra.mxu0 %v409
    %975 = vmatpush.msra.mxu0 %v407
    %976 = vmatpush.msra.mxu0 %v405
    %977 = vmatpush.msra.mxu0 %v403
    %978 = vmatpush.msra.mxu0 %v401
    %979 = vmatpush.msra.mxu0 %v399
    %980 = vmatmul.f32.gmra.mxu0 %v942
    %v981 = vpop.f32.mrf.mxu0
    %v982 = vadd.f32 0.0, %v981
    %983 = vdwg.mxu0
    %v984 = vadd.f32 %v939, %v962
    %v985 = vxor.u32 %v984, 2147483648
    %v986 = vmul.f32 %v985, 1.442695
    %v987 = vpow.pop %v986
    %v988 = vadd.f32 %v987, 1.0
    %v989 = vrcp.pop %v988
    %v990 = vmul.f32 %v988, %v989
    %v991 = vsub.f32 1.0, %v990
    %v992 = vmul.f32 %v989, %v991
    %v993 = vadd.f32 %v989, %v992
    %vm994 = vweird.f32 %v988
    %vm995 = vweird.f32 %v989
    %vm996 = vmor %vm994, %vm995
    %v997 = vsel %vm996, %v989, %v993
    %v998 = vand.u32 2147483647, %v988
    %vm999 = vcmp.eq.f32.partialorder %v998, 8.507059e+37
    %v1000 = vand.u32 %v988, 2147483648
    %v1001 = vor.u32 1.1754944e-38, %v1000
    %v1002 = vsel %vm999, %v1001, %v997
    %v1003 = vmul.f32 1.0, %v1002
    %v1004 = vadd.f32 %v982, %v423
    %v1005 = vmul.f32 %v1003, %v1004
    %v1006 = vadd.f32 %v940, %v1005
    %v1007 = vtanh.pop %v1006
    %v1008 = vsub.f32 %v933, %v1007
    %1010 = vrot.lane.b32.xlu0 %v1008, 64
    %v1011 = vpop.permute.xlu0 %1010
    %v1013 = vmul.f32 %v1003, %v1011
    %1015 = vrot.lane.b32.xlu0 %v1013, 64
    %v1016 = vpop.permute.xlu0 %1015
    %v1018 = vadd.f32 %v1007, %v1016
    %1019 = vst.msk [vmem:[#allocation3 + $0x30] sm:$0xff] %vm366, %v1018
    %v1020 = vld [vmem:[#allocation2 + $0x70] sm:$0xff]
    %v1021 = vld [vmem:[#allocation2 + $0x78] sm:$0xff]
    %v1022 = vld [vmem:[#allocation2 + $0x80] sm:$0xff]
    %v1023 = vld [vmem:[#allocation2 + $0x88] sm:$0xff]
    %v1024 = vsel %vm420, %v1022, %v1020
    %v1025 = vsel %vm421, %v1023, %v1021
    %v1027 = vsel %vm366, %v1018, 0
    %1029 = vmatpush.msra.mxu0 0.0
    %1030 = vmatpush.msra.mxu0 0.0
    %1031 = vmatpush.msra.mxu0 0.0
    %1032 = vmatpush.msra.mxu0 0.0
    %1033 = vmatpush.msra.mxu0 0.0
    %1034 = vmatpush.msra.mxu0 0.0
    %1035 = vmatpush.msra.mxu0 0.0
    %1036 = vmatpush.msra.mxu0 0.0
    %1037 = vmatpush.msra.mxu0 %v412
    %1038 = vmatpush.msra.mxu0 %v410
    %1039 = vmatpush.msra.mxu0 %v408
    %1040 = vmatpush.msra.mxu0 %v406
    %1041 = vmatpush.msra.mxu0 %v404
    %1042 = vmatpush.msra.mxu0 %v402
    %1043 = vmatpush.msra.mxu0 %v400
    %1044 = vmatpush.msra.mxu0 %v398
    %1045 = vmatmul.f32.gmra.mxu0 %v1027
    %v1046 = vpop.f32.mrf.mxu0
    %v1047 = vadd.f32 0.0, %v1046
    %1048 = vdwg.mxu0
    %1049 = vmatpush.msra.mxu0 0.0
    %1050 = vmatpush.msra.mxu0 0.0
    %1051 = vmatpush.msra.mxu0 0.0
    %1052 = vmatpush.msra.mxu0 0.0
    %1053 = vmatpush.msra.mxu0 0.0
    %1054 = vmatpush.msra.mxu0 0.0
    %1055 = vmatpush.msra.mxu0 0.0
    %1056 = vmatpush.msra.mxu0 0.0
    %1057 = vmatpush.msra.mxu0 %v413
    %1058 = vmatpush.msra.mxu0 %v411
    %1059 = vmatpush.msra.mxu0 %v409
    %1060 = vmatpush.msra.mxu0 %v407
    %1061 = vmatpush.msra.mxu0 %v405
    %1062 = vmatpush.msra.mxu0 %v403
    %1063 = vmatpush.msra.mxu0 %v401
    %1064 = vmatpush.msra.mxu0 %v399
    %1065 = vmatmul.f32.gmra.mxu0 %v1027
    %v1066 = vpop.f32.mrf.mxu0
    %v1067 = vadd.f32 0.0, %v1066
    %1068 = vdwg.mxu0
    %v1069 = vadd.f32 %v1024, %v1047
    %v1070 = vxor.u32 %v1069, 2147483648
    %v1071 = vmul.f32 %v1070, 1.442695
    %v1072 = vpow.pop %v1071
    %v1073 = vadd.f32 %v1072, 1.0
    %v1074 = vrcp.pop %v1073
    %v1075 = vmul.f32 %v1073, %v1074
    %v1076 = vsub.f32 1.0, %v1075
    %v1077 = vmul.f32 %v1074, %v1076
    %v1078 = vadd.f32 %v1074, %v1077
    %vm1079 = vweird.f32 %v1073
    %vm1080 = vweird.f32 %v1074
    %vm1081 = vmor %vm1079, %vm1080
    %v1082 = vsel %vm1081, %v1074, %v1078
    %v1083 = vand.u32 2147483647, %v1073
    %vm1084 = vcmp.eq.f32.partialorder %v1083, 8.507059e+37
    %v1085 = vand.u32 %v1073, 2147483648
    %v1086 = vor.u32 1.1754944e-38, %v1085
    %v1087 = vsel %vm1084, %v1086, %v1082
    %v1088 = vmul.f32 1.0, %v1087
    %v1089 = vadd.f32 %v1067, %v423
    %v1090 = vmul.f32 %v1088, %v1089
    %v1091 = vadd.f32 %v1025, %v1090
    %v1092 = vtanh.pop %v1091
    %v1093 = vsub.f32 %v1018, %v1092
    %1095 = vrot.lane.b32.xlu0 %v1093, 64
    %v1096 = vpop.permute.xlu0 %1095
    %v1098 = vmul.f32 %v1088, %v1096
    %1100 = vrot.lane.b32.xlu0 %v1098, 64
    %v1101 = vpop.permute.xlu0 %1100
    %v1103 = vadd.f32 %v1092, %v1101
    %1104 = vst.msk [vmem:[#allocation3 + $0x38] sm:$0xff] %vm366, %v1103
    %v1105 = vld [vmem:[#allocation2 + $0x80] sm:$0xff]
    %v1106 = vld [vmem:[#allocation2 + $0x88] sm:$0xff]
    %v1107 = vld [vmem:[#allocation2 + $0x70] sm:$0xff]
    %v1108 = vld [vmem:[#allocation2 + $0x78] sm:$0xff]
    %v1109 = vsel %vm420, %v1107, %v1105
    %v1110 = vsel %vm421, %v1108, %v1106
    %v1112 = vsel %vm366, %v1103, 0
    %1114 = vmatpush.msra.mxu0 0.0
    %1115 = vmatpush.msra.mxu0 0.0
    %1116 = vmatpush.msra.mxu0 0.0
    %1117 = vmatpush.msra.mxu0 0.0
    %1118 = vmatpush.msra.mxu0 0.0
    %1119 = vmatpush.msra.mxu0 0.0
    %1120 = vmatpush.msra.mxu0 0.0
    %1121 = vmatpush.msra.mxu0 0.0
    %1122 = vmatpush.msra.mxu0 %v412
    %1123 = vmatpush.msra.mxu0 %v410
    %1124 = vmatpush.msra.mxu0 %v408
    %1125 = vmatpush.msra.mxu0 %v406
    %1126 = vmatpush.msra.mxu0 %v404
    %1127 = vmatpush.msra.mxu0 %v402
    %1128 = vmatpush.msra.mxu0 %v400
    %1129 = vmatpush.msra.mxu0 %v398
    %1130 = vmatmul.f32.gmra.mxu0 %v1112
    %v1131 = vpop.f32.mrf.mxu0
    %v1132 = vadd.f32 0.0, %v1131
    %1133 = vdwg.mxu0
    %1134 = vmatpush.msra.mxu0 0.0
    %1135 = vmatpush.msra.mxu0 0.0
    %1136 = vmatpush.msra.mxu0 0.0
    %1137 = vmatpush.msra.mxu0 0.0
    %1138 = vmatpush.msra.mxu0 0.0
    %1139 = vmatpush.msra.mxu0 0.0
    %1140 = vmatpush.msra.mxu0 0.0
    %1141 = vmatpush.msra.mxu0 0.0
    %1142 = vmatpush.msra.mxu0 %v413
    %1143 = vmatpush.msra.mxu0 %v411
    %1144 = vmatpush.msra.mxu0 %v409
    %1145 = vmatpush.msra.mxu0 %v407
    %1146 = vmatpush.msra.mxu0 %v405
    %1147 = vmatpush.msra.mxu0 %v403
    %1148 = vmatpush.msra.mxu0 %v401
    %1149 = vmatpush.msra.mxu0 %v399
    %1150 = vmatmul.f32.gmra.mxu0 %v1112
    %v1151 = vpop.f32.mrf.mxu0
    %v1152 = vadd.f32 0.0, %v1151
    %1153 = vdwg.mxu0
    %v1154 = vadd.f32 %v1109, %v1132
    %v1155 = vxor.u32 %v1154, 2147483648
    %v1156 = vmul.f32 %v1155, 1.442695
    %v1157 = vpow.pop %v1156
    %v1158 = vadd.f32 %v1157, 1.0
    %v1159 = vrcp.pop %v1158
    %v1160 = vmul.f32 %v1158, %v1159
    %v1161 = vsub.f32 1.0, %v1160
    %v1162 = vmul.f32 %v1159, %v1161
    %v1163 = vadd.f32 %v1159, %v1162
    %vm1164 = vweird.f32 %v1158
    %vm1165 = vweird.f32 %v1159
    %vm1166 = vmor %vm1164, %vm1165
    %v1167 = vsel %vm1166, %v1159, %v1163
    %v1168 = vand.u32 2147483647, %v1158
    %vm1169 = vcmp.eq.f32.partialorder %v1168, 8.507059e+37
    %v1170 = vand.u32 %v1158, 2147483648
    %v1171 = vor.u32 1.1754944e-38, %v1170
    %v1172 = vsel %vm1169, %v1171, %v1167
    %v1173 = vmul.f32 1.0, %v1172
    %v1174 = vadd.f32 %v1152, %v423
    %v1175 = vmul.f32 %v1173, %v1174
    %v1176 = vadd.f32 %v1110, %v1175
    %v1177 = vtanh.pop %v1176
    %v1178 = vsub.f32 %v1103, %v1177
    %1180 = vrot.lane.b32.xlu0 %v1178, 64
    %v1181 = vpop.permute.xlu0 %1180
    %v1183 = vmul.f32 %v1173, %v1181
    %1185 = vrot.lane.b32.xlu0 %v1183, 64
    %v1186 = vpop.permute.xlu0 %1185
    %v1188 = vadd.f32 %v1177, %v1186
    %1189 = vst.msk [vmem:[#allocation3 + $0x40] sm:$0xff] %vm366, %v1188
    %v1190 = vld [vmem:[#allocation2 + $0x90] sm:$0xff]
    %v1191 = vld [vmem:[#allocation2 + $0x98] sm:$0xff]
    %v1192 = vld [vmem:[#allocation2 + $0x60] sm:$0xff]
    %v1193 = vld [vmem:[#allocation2 + $0x68] sm:$0xff]
    %v1194 = vsel %vm420, %v1192, %v1190
    %v1195 = vsel %vm421, %v1193, %v1191
    %v1197 = vsel %vm366, %v1188, 0
    %1199 = vmatpush.msra.mxu0 0.0
    %1200 = vmatpush.msra.mxu0 0.0
    %1201 = vmatpush.msra.mxu0 0.0
    %1202 = vmatpush.msra.mxu0 0.0
    %1203 = vmatpush.msra.mxu0 0.0
    %1204 = vmatpush.msra.mxu0 0.0
    %1205 = vmatpush.msra.mxu0 0.0
    %1206 = vmatpush.msra.mxu0 0.0
    %1207 = vmatpush.msra.mxu0 %v412
    %1208 = vmatpush.msra.mxu0 %v410
    %1209 = vmatpush.msra.mxu0 %v408
    %1210 = vmatpush.msra.mxu0 %v406
    %1211 = vmatpush.msra.mxu0 %v404
    %1212 = vmatpush.msra.mxu0 %v402
    %1213 = vmatpush.msra.mxu0 %v400
    %1214 = vmatpush.msra.mxu0 %v398
    %1215 = vmatmul.f32.gmra.mxu0 %v1197
    %v1216 = vpop.f32.mrf.mxu0
    %v1217 = vadd.f32 0.0, %v1216
    %1218 = vdwg.mxu0
    %1219 = vmatpush.msra.mxu0 0.0
    %1220 = vmatpush.msra.mxu0 0.0
    %1221 = vmatpush.msra.mxu0 0.0
    %1222 = vmatpush.msra.mxu0 0.0
    %1223 = vmatpush.msra.mxu0 0.0
    %1224 = vmatpush.msra.mxu0 0.0
    %1225 = vmatpush.msra.mxu0 0.0
    %1226 = vmatpush.msra.mxu0 0.0
    %1227 = vmatpush.msra.mxu0 %v413
    %1228 = vmatpush.msra.mxu0 %v411
    %1229 = vmatpush.msra.mxu0 %v409
    %1230 = vmatpush.msra.mxu0 %v407
    %1231 = vmatpush.msra.mxu0 %v405
    %1232 = vmatpush.msra.mxu0 %v403
    %1233 = vmatpush.msra.mxu0 %v401
    %1234 = vmatpush.msra.mxu0 %v399
    %1235 = vmatmul.f32.gmra.mxu0 %v1197
    %v1236 = vpop.f32.mrf.mxu0
    %v1237 = vadd.f32 0.0, %v1236
    %1238 = vdwg.mxu0
    %v1239 = vadd.f32 %v1194, %v1217
    %v1240 = vxor.u32 %v1239, 2147483648
    %v1241 = vmul.f32 %v1240, 1.442695
    %v1242 = vpow.pop %v1241
    %v1243 = vadd.f32 %v1242, 1.0
    %v1244 = vrcp.pop %v1243
    %v1245 = vmul.f32 %v1243, %v1244
    %v1246 = vsub.f32 1.0, %v1245
    %v1247 = vmul.f32 %v1244, %v1246
    %v1248 = vadd.f32 %v1244, %v1247
    %vm1249 = vweird.f32 %v1243
    %vm1250 = vweird.f32 %v1244
    %vm1251 = vmor %vm1249, %vm1250
    %v1252 = vsel %vm1251, %v1244, %v1248
    %v1253 = vand.u32 2147483647, %v1243
    %vm1254 = vcmp.eq.f32.partialorder %v1253, 8.507059e+37
    %v1255 = vand.u32 %v1243, 2147483648
    %v1256 = vor.u32 1.1754944e-38, %v1255
    %v1257 = vsel %vm1254, %v1256, %v1252
    %v1258 = vmul.f32 1.0, %v1257
    %v1259 = vadd.f32 %v1237, %v423
    %v1260 = vmul.f32 %v1258, %v1259
    %v1261 = vadd.f32 %v1195, %v1260
    %v1262 = vtanh.pop %v1261
    %v1263 = vsub.f32 %v1188, %v1262
    %1265 = vrot.lane.b32.xlu0 %v1263, 64
    %v1266 = vpop.permute.xlu0 %1265
    %v1268 = vmul.f32 %v1258, %v1266
    %1270 = vrot.lane.b32.xlu0 %v1268, 64
    %v1271 = vpop.permute.xlu0 %1270
    %v1273 = vadd.f32 %v1262, %v1271
    %1274 = vst.msk [vmem:[#allocation3 + $0x48] sm:$0xff] %vm366, %v1273
    %v1275 = vld [vmem:[#allocation2 + $0xa0] sm:$0xff]
    %v1276 = vld [vmem:[#allocation2 + $0xa8] sm:$0xff]
    %v1277 = vld [vmem:[#allocation2 + $0x50] sm:$0xff]
    %v1278 = vld [vmem:[#allocation2 + $0x58] sm:$0xff]
    %v1279 = vsel %vm420, %v1277, %v1275
    %v1280 = vsel %vm421, %v1278, %v1276
    %v1282 = vsel %vm366, %v1273, 0
    %1284 = vmatpush.msra.mxu0 0.0
    %1285 = vmatpush.msra.mxu0 0.0
    %1286 = vmatpush.msra.mxu0 0.0
    %1287 = vmatpush.msra.mxu0 0.0
    %1288 = vmatpush.msra.mxu0 0.0
    %1289 = vmatpush.msra.mxu0 0.0
    %1290 = vmatpush.msra.mxu0 0.0
    %1291 = vmatpush.msra.mxu0 0.0
    %1292 = vmatpush.msra.mxu0 %v412
    %1293 = vmatpush.msra.mxu0 %v410
    %1294 = vmatpush.msra.mxu0 %v408
    %1295 = vmatpush.msra.mxu0 %v406
    %1296 = vmatpush.msra.mxu0 %v404
    %1297 = vmatpush.msra.mxu0 %v402
    %1298 = vmatpush.msra.mxu0 %v400
    %1299 = vmatpush.msra.mxu0 %v398
    %1300 = vmatmul.f32.gmra.mxu0 %v1282
    %v1301 = vpop.f32.mrf.mxu0
    %v1302 = vadd.f32 0.0, %v1301
    %1303 = vdwg.mxu0
    %1304 = vmatpush.msra.mxu0 0.0
    %1305 = vmatpush.msra.mxu0 0.0
    %1306 = vmatpush.msra.mxu0 0.0
    %1307 = vmatpush.msra.mxu0 0.0
    %1308 = vmatpush.msra.mxu0 0.0
    %1309 = vmatpush.msra.mxu0 0.0
    %1310 = vmatpush.msra.mxu0 0.0
    %1311 = vmatpush.msra.mxu0 0.0
    %1312 = vmatpush.msra.mxu0 %v413
    %1313 = vmatpush.msra.mxu0 %v411
    %1314 = vmatpush.msra.mxu0 %v409
    %1315 = vmatpush.msra.mxu0 %v407
    %1316 = vmatpush.msra.mxu0 %v405
    %1317 = vmatpush.msra.mxu0 %v403
    %1318 = vmatpush.msra.mxu0 %v401
    %1319 = vmatpush.msra.mxu0 %v399
    %1320 = vmatmul.f32.gmra.mxu0 %v1282
    %v1321 = vpop.f32.mrf.mxu0
    %v1322 = vadd.f32 0.0, %v1321
    %1323 = vdwg.mxu0
    %v1324 = vadd.f32 %v1279, %v1302
    %v1325 = vxor.u32 %v1324, 2147483648
    %v1326 = vmul.f32 %v1325, 1.442695
    %v1327 = vpow.pop %v1326
    %v1328 = vadd.f32 %v1327, 1.0
    %v1329 = vrcp.pop %v1328
    %v1330 = vmul.f32 %v1328, %v1329
    %v1331 = vsub.f32 1.0, %v1330
    %v1332 = vmul.f32 %v1329, %v1331
    %v1333 = vadd.f32 %v1329, %v1332
    %vm1334 = vweird.f32 %v1328
    %vm1335 = vweird.f32 %v1329
    %vm1336 = vmor %vm1334, %vm1335
    %v1337 = vsel %vm1336, %v1329, %v1333
    %v1338 = vand.u32 2147483647, %v1328
    %vm1339 = vcmp.eq.f32.partialorder %v1338, 8.507059e+37
    %v1340 = vand.u32 %v1328, 2147483648
    %v1341 = vor.u32 1.1754944e-38, %v1340
    %v1342 = vsel %vm1339, %v1341, %v1337
    %v1343 = vmul.f32 1.0, %v1342
    %v1344 = vadd.f32 %v1322, %v423
    %v1345 = vmul.f32 %v1343, %v1344
    %v1346 = vadd.f32 %v1280, %v1345
    %v1347 = vtanh.pop %v1346
    %v1348 = vsub.f32 %v1273, %v1347
    %1350 = vrot.lane.b32.xlu0 %v1348, 64
    %v1351 = vpop.permute.xlu0 %1350
    %v1353 = vmul.f32 %v1343, %v1351
    %1355 = vrot.lane.b32.xlu0 %v1353, 64
    %v1356 = vpop.permute.xlu0 %1355
    %v1358 = vadd.f32 %v1347, %v1356
    %1359 = vst.msk [vmem:[#allocation3 + $0x50] sm:$0xff] %vm366, %v1358
    %v1360 = vld [vmem:[#allocation2 + $0xb0] sm:$0xff]
    %v1361 = vld [vmem:[#allocation2 + $0xb8] sm:$0xff]
    %v1362 = vld [vmem:[#allocation2 + $0x40] sm:$0xff]
    %v1363 = vld [vmem:[#allocation2 + $0x48] sm:$0xff]
    %v1364 = vsel %vm420, %v1362, %v1360
    %v1365 = vsel %vm421, %v1363, %v1361
    %v1367 = vsel %vm366, %v1358, 0
    %1369 = vmatpush.msra.mxu0 0.0
    %1370 = vmatpush.msra.mxu0 0.0
    %1371 = vmatpush.msra.mxu0 0.0
    %1372 = vmatpush.msra.mxu0 0.0
    %1373 = vmatpush.msra.mxu0 0.0
    %1374 = vmatpush.msra.mxu0 0.0
    %1375 = vmatpush.msra.mxu0 0.0
    %1376 = vmatpush.msra.mxu0 0.0
    %1377 = vmatpush.msra.mxu0 %v412
    %1378 = vmatpush.msra.mxu0 %v410
    %1379 = vmatpush.msra.mxu0 %v408
    %1380 = vmatpush.msra.mxu0 %v406
    %1381 = vmatpush.msra.mxu0 %v404
    %1382 = vmatpush.msra.mxu0 %v402
    %1383 = vmatpush.msra.mxu0 %v400
    %1384 = vmatpush.msra.mxu0 %v398
    %1385 = vmatmul.f32.gmra.mxu0 %v1367
    %v1386 = vpop.f32.mrf.mxu0
    %v1387 = vadd.f32 0.0, %v1386
    %1388 = vdwg.mxu0
    %1389 = vmatpush.msra.mxu0 0.0
    %1390 = vmatpush.msra.mxu0 0.0
    %1391 = vmatpush.msra.mxu0 0.0
    %1392 = vmatpush.msra.mxu0 0.0
    %1393 = vmatpush.msra.mxu0 0.0
    %1394 = vmatpush.msra.mxu0 0.0
    %1395 = vmatpush.msra.mxu0 0.0
    %1396 = vmatpush.msra.mxu0 0.0
    %1397 = vmatpush.msra.mxu0 %v413
    %1398 = vmatpush.msra.mxu0 %v411
    %1399 = vmatpush.msra.mxu0 %v409
    %1400 = vmatpush.msra.mxu0 %v407
    %1401 = vmatpush.msra.mxu0 %v405
    %1402 = vmatpush.msra.mxu0 %v403
    %1403 = vmatpush.msra.mxu0 %v401
    %1404 = vmatpush.msra.mxu0 %v399
    %1405 = vmatmul.f32.gmra.mxu0 %v1367
    %v1406 = vpop.f32.mrf.mxu0
    %v1407 = vadd.f32 0.0, %v1406
    %1408 = vdwg.mxu0
    %v1409 = vadd.f32 %v1364, %v1387
    %v1410 = vxor.u32 %v1409, 2147483648
    %v1411 = vmul.f32 %v1410, 1.442695
    %v1412 = vpow.pop %v1411
    %v1413 = vadd.f32 %v1412, 1.0
    %v1414 = vrcp.pop %v1413
    %v1415 = vmul.f32 %v1413, %v1414
    %v1416 = vsub.f32 1.0, %v1415
    %v1417 = vmul.f32 %v1414, %v1416
    %v1418 = vadd.f32 %v1414, %v1417
    %vm1419 = vweird.f32 %v1413
    %vm1420 = vweird.f32 %v1414
    %vm1421 = vmor %vm1419, %vm1420
    %v1422 = vsel %vm1421, %v1414, %v1418
    %v1423 = vand.u32 2147483647, %v1413
    %vm1424 = vcmp.eq.f32.partialorder %v1423, 8.507059e+37
    %v1425 = vand.u32 %v1413, 2147483648
    %v1426 = vor.u32 1.1754944e-38, %v1425
    %v1427 = vsel %vm1424, %v1426, %v1422
    %v1428 = vmul.f32 1.0, %v1427
    %v1429 = vadd.f32 %v1407, %v423
    %v1430 = vmul.f32 %v1428, %v1429
    %v1431 = vadd.f32 %v1365, %v1430
    %v1432 = vtanh.pop %v1431
    %v1433 = vsub.f32 %v1358, %v1432
    %1435 = vrot.lane.b32.xlu0 %v1433, 64
    %v1436 = vpop.permute.xlu0 %1435
    %v1438 = vmul.f32 %v1428, %v1436
    %1440 = vrot.lane.b32.xlu0 %v1438, 64
    %v1441 = vpop.permute.xlu0 %1440
    %v1443 = vadd.f32 %v1432, %v1441
    %1444 = vst.msk [vmem:[#allocation3 + $0x58] sm:$0xff] %vm366, %v1443
    %v1445 = vld [vmem:[#allocation2 + $0xc0] sm:$0xff]
    %v1446 = vld [vmem:[#allocation2 + $0xc8] sm:$0xff]
    %v1447 = vld [vmem:[#allocation2 + $0x30] sm:$0xff]
    %v1448 = vld [vmem:[#allocation2 + $0x38] sm:$0xff]
    %v1449 = vsel %vm420, %v1447, %v1445
    %v1450 = vsel %vm421, %v1448, %v1446
    %v1452 = vsel %vm366, %v1443, 0
    %1454 = vmatpush.msra.mxu0 0.0
    %1455 = vmatpush.msra.mxu0 0.0
    %1456 = vmatpush.msra.mxu0 0.0
    %1457 = vmatpush.msra.mxu0 0.0
    %1458 = vmatpush.msra.mxu0 0.0
    %1459 = vmatpush.msra.mxu0 0.0
    %1460 = vmatpush.msra.mxu0 0.0
    %1461 = vmatpush.msra.mxu0 0.0
    %1462 = vmatpush.msra.mxu0 %v412
    %1463 = vmatpush.msra.mxu0 %v410
    %1464 = vmatpush.msra.mxu0 %v408
    %1465 = vmatpush.msra.mxu0 %v406
    %1466 = vmatpush.msra.mxu0 %v404
    %1467 = vmatpush.msra.mxu0 %v402
    %1468 = vmatpush.msra.mxu0 %v400
    %1469 = vmatpush.msra.mxu0 %v398
    %1470 = vmatmul.f32.gmra.mxu0 %v1452
    %v1471 = vpop.f32.mrf.mxu0
    %v1472 = vadd.f32 0.0, %v1471
    %1473 = vdwg.mxu0
    %1474 = vmatpush.msra.mxu0 0.0
    %1475 = vmatpush.msra.mxu0 0.0
    %1476 = vmatpush.msra.mxu0 0.0
    %1477 = vmatpush.msra.mxu0 0.0
    %1478 = vmatpush.msra.mxu0 0.0
    %1479 = vmatpush.msra.mxu0 0.0
    %1480 = vmatpush.msra.mxu0 0.0
    %1481 = vmatpush.msra.mxu0 0.0
    %1482 = vmatpush.msra.mxu0 %v413
    %1483 = vmatpush.msra.mxu0 %v411
    %1484 = vmatpush.msra.mxu0 %v409
    %1485 = vmatpush.msra.mxu0 %v407
    %1486 = vmatpush.msra.mxu0 %v405
    %1487 = vmatpush.msra.mxu0 %v403
    %1488 = vmatpush.msra.mxu0 %v401
    %1489 = vmatpush.msra.mxu0 %v399
    %1490 = vmatmul.f32.gmra.mxu0 %v1452
    %v1491 = vpop.f32.mrf.mxu0
    %v1492 = vadd.f32 0.0, %v1491
    %1493 = vdwg.mxu0
    %v1494 = vadd.f32 %v1449, %v1472
    %v1495 = vxor.u32 %v1494, 2147483648
    %v1496 = vmul.f32 %v1495, 1.442695
    %v1497 = vpow.pop %v1496
    %v1498 = vadd.f32 %v1497, 1.0
    %v1499 = vrcp.pop %v1498
    %v1500 = vmul.f32 %v1498, %v1499
    %v1501 = vsub.f32 1.0, %v1500
    %v1502 = vmul.f32 %v1499, %v1501
    %v1503 = vadd.f32 %v1499, %v1502
    %vm1504 = vweird.f32 %v1498
    %vm1505 = vweird.f32 %v1499
    %vm1506 = vmor %vm1504, %vm1505
    %v1507 = vsel %vm1506, %v1499, %v1503
    %v1508 = vand.u32 2147483647, %v1498
    %vm1509 = vcmp.eq.f32.partialorder %v1508, 8.507059e+37
    %v1510 = vand.u32 %v1498, 2147483648
    %v1511 = vor.u32 1.1754944e-38, %v1510
    %v1512 = vsel %vm1509, %v1511, %v1507
    %v1513 = vmul.f32 1.0, %v1512
    %v1514 = vadd.f32 %v1492, %v423
    %v1515 = vmul.f32 %v1513, %v1514
    %v1516 = vadd.f32 %v1450, %v1515
    %v1517 = vtanh.pop %v1516
    %v1518 = vsub.f32 %v1443, %v1517
    %1520 = vrot.lane.b32.xlu0 %v1518, 64
    %v1521 = vpop.permute.xlu0 %1520
    %v1523 = vmul.f32 %v1513, %v1521
    %1525 = vrot.lane.b32.xlu0 %v1523, 64
    %v1526 = vpop.permute.xlu0 %1525
    %v1528 = vadd.f32 %v1517, %v1526
    %1529 = vst.msk [vmem:[#allocation3 + $0x60] sm:$0xff] %vm366, %v1528
    %v1530 = vld [vmem:[#allocation2 + $0xd0] sm:$0xff]
    %v1531 = vld [vmem:[#allocation2 + $0xd8] sm:$0xff]
    %v1532 = vld [vmem:[#allocation2 + $0x20] sm:$0xff]
    %v1533 = vld [vmem:[#allocation2 + $0x28] sm:$0xff]
    %v1534 = vsel %vm420, %v1532, %v1530
    %v1535 = vsel %vm421, %v1533, %v1531
    %v1537 = vsel %vm366, %v1528, 0
    %1539 = vmatpush.msra.mxu0 0.0
    %1540 = vmatpush.msra.mxu0 0.0
    %1541 = vmatpush.msra.mxu0 0.0
    %1542 = vmatpush.msra.mxu0 0.0
    %1543 = vmatpush.msra.mxu0 0.0
    %1544 = vmatpush.msra.mxu0 0.0
    %1545 = vmatpush.msra.mxu0 0.0
    %1546 = vmatpush.msra.mxu0 0.0
    %1547 = vmatpush.msra.mxu0 %v412
    %1548 = vmatpush.msra.mxu0 %v410
    %1549 = vmatpush.msra.mxu0 %v408
    %1550 = vmatpush.msra.mxu0 %v406
    %1551 = vmatpush.msra.mxu0 %v404
    %1552 = vmatpush.msra.mxu0 %v402
    %1553 = vmatpush.msra.mxu0 %v400
    %1554 = vmatpush.msra.mxu0 %v398
    %1555 = vmatmul.f32.gmra.mxu0 %v1537
    %v1556 = vpop.f32.mrf.mxu0
    %v1557 = vadd.f32 0.0, %v1556
    %1558 = vdwg.mxu0
    %1559 = vmatpush.msra.mxu0 0.0
    %1560 = vmatpush.msra.mxu0 0.0
    %1561 = vmatpush.msra.mxu0 0.0
    %1562 = vmatpush.msra.mxu0 0.0
    %1563 = vmatpush.msra.mxu0 0.0
    %1564 = vmatpush.msra.mxu0 0.0
    %1565 = vmatpush.msra.mxu0 0.0
    %1566 = vmatpush.msra.mxu0 0.0
    %1567 = vmatpush.msra.mxu0 %v413
    %1568 = vmatpush.msra.mxu0 %v411
    %1569 = vmatpush.msra.mxu0 %v409
    %1570 = vmatpush.msra.mxu0 %v407
    %1571 = vmatpush.msra.mxu0 %v405
    %1572 = vmatpush.msra.mxu0 %v403
    %1573 = vmatpush.msra.mxu0 %v401
    %1574 = vmatpush.msra.mxu0 %v399
    %1575 = vmatmul.f32.gmra.mxu0 %v1537
    %v1576 = vpop.f32.mrf.mxu0
    %v1577 = vadd.f32 0.0, %v1576
    %1578 = vdwg.mxu0
    %v1579 = vadd.f32 %v1534, %v1557
    %v1580 = vxor.u32 %v1579, 2147483648
    %v1581 = vmul.f32 %v1580, 1.442695
    %v1582 = vpow.pop %v1581
    %v1583 = vadd.f32 %v1582, 1.0
    %v1584 = vrcp.pop %v1583
    %v1585 = vmul.f32 %v1583, %v1584
    %v1586 = vsub.f32 1.0, %v1585
    %v1587 = vmul.f32 %v1584, %v1586
    %v1588 = vadd.f32 %v1584, %v1587
    %vm1589 = vweird.f32 %v1583
    %vm1590 = vweird.f32 %v1584
    %vm1591 = vmor %vm1589, %vm1590
    %v1592 = vsel %vm1591, %v1584, %v1588
    %v1593 = vand.u32 2147483647, %v1583
    %vm1594 = vcmp.eq.f32.partialorder %v1593, 8.507059e+37
    %v1595 = vand.u32 %v1583, 2147483648
    %v1596 = vor.u32 1.1754944e-38, %v1595
    %v1597 = vsel %vm1594, %v1596, %v1592
    %v1598 = vmul.f32 1.0, %v1597
    %v1599 = vadd.f32 %v1577, %v423
    %v1600 = vmul.f32 %v1598, %v1599
    %v1601 = vadd.f32 %v1535, %v1600
    %v1602 = vtanh.pop %v1601
    %v1603 = vsub.f32 %v1528, %v1602
    %1605 = vrot.lane.b32.xlu0 %v1603, 64
    %v1606 = vpop.permute.xlu0 %1605
    %v1608 = vmul.f32 %v1598, %v1606
    %1610 = vrot.lane.b32.xlu0 %v1608, 64
    %v1611 = vpop.permute.xlu0 %1610
    %v1613 = vadd.f32 %v1602, %v1611
    %1614 = vst.msk [vmem:[#allocation3 + $0x68] sm:$0xff] %vm366, %v1613
    %v1615 = vld [vmem:[#allocation2 + $0xe0] sm:$0xff]
    %v1616 = vld [vmem:[#allocation2 + $0xe8] sm:$0xff]
    %v1617 = vld [vmem:[#allocation2 + $0x10] sm:$0xff]
    %v1618 = vld [vmem:[#allocation2 + $0x18] sm:$0xff]
    %v1619 = vsel %vm420, %v1617, %v1615
    %v1620 = vsel %vm421, %v1618, %v1616
    %v1622 = vsel %vm366, %v1613, 0
    %1624 = vmatpush.msra.mxu0 0.0
    %1625 = vmatpush.msra.mxu0 0.0
    %1626 = vmatpush.msra.mxu0 0.0
    %1627 = vmatpush.msra.mxu0 0.0
    %1628 = vmatpush.msra.mxu0 0.0
    %1629 = vmatpush.msra.mxu0 0.0
    %1630 = vmatpush.msra.mxu0 0.0
    %1631 = vmatpush.msra.mxu0 0.0
    %1632 = vmatpush.msra.mxu0 %v412
    %1633 = vmatpush.msra.mxu0 %v410
    %1634 = vmatpush.msra.mxu0 %v408
    %1635 = vmatpush.msra.mxu0 %v406
    %1636 = vmatpush.msra.mxu0 %v404
    %1637 = vmatpush.msra.mxu0 %v402
    %1638 = vmatpush.msra.mxu0 %v400
    %1639 = vmatpush.msra.mxu0 %v398
    %1640 = vmatmul.f32.gmra.mxu0 %v1622
    %v1641 = vpop.f32.mrf.mxu0
    %v1642 = vadd.f32 0.0, %v1641
    %1643 = vdwg.mxu0
    %1644 = vmatpush.msra.mxu0 0.0
    %1645 = vmatpush.msra.mxu0 0.0
    %1646 = vmatpush.msra.mxu0 0.0
    %1647 = vmatpush.msra.mxu0 0.0
    %1648 = vmatpush.msra.mxu0 0.0
    %1649 = vmatpush.msra.mxu0 0.0
    %1650 = vmatpush.msra.mxu0 0.0
    %1651 = vmatpush.msra.mxu0 0.0
    %1652 = vmatpush.msra.mxu0 %v413
    %1653 = vmatpush.msra.mxu0 %v411
    %1654 = vmatpush.msra.mxu0 %v409
    %1655 = vmatpush.msra.mxu0 %v407
    %1656 = vmatpush.msra.mxu0 %v405
    %1657 = vmatpush.msra.mxu0 %v403
    %1658 = vmatpush.msra.mxu0 %v401
    %1659 = vmatpush.msra.mxu0 %v399
    %1660 = vmatmul.f32.gmra.mxu0 %v1622
    %v1661 = vpop.f32.mrf.mxu0
    %v1662 = vadd.f32 0.0, %v1661
    %1663 = vdwg.mxu0
    %v1664 = vadd.f32 %v1619, %v1642
    %v1665 = vxor.u32 %v1664, 2147483648
    %v1666 = vmul.f32 %v1665, 1.442695
    %v1667 = vpow.pop %v1666
    %v1668 = vadd.f32 %v1667, 1.0
    %v1669 = vrcp.pop %v1668
    %v1670 = vmul.f32 %v1668, %v1669
    %v1671 = vsub.f32 1.0, %v1670
    %v1672 = vmul.f32 %v1669, %v1671
    %v1673 = vadd.f32 %v1669, %v1672
    %vm1674 = vweird.f32 %v1668
    %vm1675 = vweird.f32 %v1669
    %vm1676 = vmor %vm1674, %vm1675
    %v1677 = vsel %vm1676, %v1669, %v1673
    %v1678 = vand.u32 2147483647, %v1668
    %vm1679 = vcmp.eq.f32.partialorder %v1678, 8.507059e+37
    %v1680 = vand.u32 %v1668, 2147483648
    %v1681 = vor.u32 1.1754944e-38, %v1680
    %v1682 = vsel %vm1679, %v1681, %v1677
    %v1683 = vmul.f32 1.0, %v1682
    %v1684 = vadd.f32 %v1662, %v423
    %v1685 = vmul.f32 %v1683, %v1684
    %v1686 = vadd.f32 %v1620, %v1685
    %v1687 = vtanh.pop %v1686
    %v1688 = vsub.f32 %v1613, %v1687
    %1690 = vrot.lane.b32.xlu0 %v1688, 64
    %v1691 = vpop.permute.xlu0 %1690
    %v1693 = vmul.f32 %v1683, %v1691
    %1695 = vrot.lane.b32.xlu0 %v1693, 64
    %v1696 = vpop.permute.xlu0 %1695
    %v1698 = vadd.f32 %v1687, %v1696
    %1699 = vst.msk [vmem:[#allocation3 + $0x70] sm:$0xff] %vm366, %v1698
    %v1700 = vld [vmem:[#allocation2 + $0xf0] sm:$0xff]
    %v1701 = vld [vmem:[#allocation2 + $0xf8] sm:$0xff]
    %v1702 = vld [vmem:[#allocation2] sm:$0xff]
    %v1703 = vld [vmem:[#allocation2 + $0x8] sm:$0xff]
    %v1704 = vsel %vm420, %v1702, %v1700
    %v1705 = vsel %vm421, %v1703, %v1701
    %v1707 = vsel %vm366, %v1698, 0
    %1709 = vmatpush.msra.mxu0 0.0
    %1710 = vmatpush.msra.mxu0 0.0
    %1711 = vmatpush.msra.mxu0 0.0
    %1712 = vmatpush.msra.mxu0 0.0
    %1713 = vmatpush.msra.mxu0 0.0
    %1714 = vmatpush.msra.mxu0 0.0
    %1715 = vmatpush.msra.mxu0 0.0
    %1716 = vmatpush.msra.mxu0 0.0
    %1717 = vmatpush.msra.mxu0 %v412
    %1718 = vmatpush.msra.mxu0 %v410
    %1719 = vmatpush.msra.mxu0 %v408
    %1720 = vmatpush.msra.mxu0 %v406
    %1721 = vmatpush.msra.mxu0 %v404
    %1722 = vmatpush.msra.mxu0 %v402
    %1723 = vmatpush.msra.mxu0 %v400
    %1724 = vmatpush.msra.mxu0 %v398
    %1725 = vmatmul.f32.gmra.mxu0 %v1707
    %v1726 = vpop.f32.mrf.mxu0
    %v1727 = vadd.f32 0.0, %v1726
    %1728 = vdwg.mxu0
    %1729 = vmatpush.msra.mxu0 0.0
    %1730 = vmatpush.msra.mxu0 0.0
    %1731 = vmatpush.msra.mxu0 0.0
    %1732 = vmatpush.msra.mxu0 0.0
    %1733 = vmatpush.msra.mxu0 0.0
    %1734 = vmatpush.msra.mxu0 0.0
    %1735 = vmatpush.msra.mxu0 0.0
    %1736 = vmatpush.msra.mxu0 0.0
    %1737 = vmatpush.msra.mxu0 %v413
    %1738 = vmatpush.msra.mxu0 %v411
    %1739 = vmatpush.msra.mxu0 %v409
    %1740 = vmatpush.msra.mxu0 %v407
    %1741 = vmatpush.msra.mxu0 %v405
    %1742 = vmatpush.msra.mxu0 %v403
    %1743 = vmatpush.msra.mxu0 %v401
    %1744 = vmatpush.msra.mxu0 %v399
    %1745 = vmatmul.f32.gmra.mxu0 %v1707
    %v1746 = vpop.f32.mrf.mxu0
    %v1747 = vadd.f32 0.0, %v1746
    %1748 = vdwg.mxu0
    %v1749 = vadd.f32 %v1704, %v1727
    %v1750 = vxor.u32 %v1749, 2147483648
    %v1751 = vmul.f32 %v1750, 1.442695
    %v1752 = vpow.pop %v1751
    %v1753 = vadd.f32 %v1752, 1.0
    %v1754 = vrcp.pop %v1753
    %v1755 = vmul.f32 %v1753, %v1754
    %v1756 = vsub.f32 1.0, %v1755
    %v1757 = vmul.f32 %v1754, %v1756
    %v1758 = vadd.f32 %v1754, %v1757
    %vm1759 = vweird.f32 %v1753
    %vm1760 = vweird.f32 %v1754
    %vm1761 = vmor %vm1759, %vm1760
    %v1762 = vsel %vm1761, %v1754, %v1758
    %v1763 = vand.u32 2147483647, %v1753
    %vm1764 = vcmp.eq.f32.partialorder %v1763, 8.507059e+37
    %v1765 = vand.u32 %v1753, 2147483648
    %v1766 = vor.u32 1.1754944e-38, %v1765
    %v1767 = vsel %vm1764, %v1766, %v1762
    %v1768 = vmul.f32 1.0, %v1767
    %v1769 = vadd.f32 %v1747, %v423
    %v1770 = vmul.f32 %v1768, %v1769
    %v1771 = vadd.f32 %v1705, %v1770
    %v1772 = vtanh.pop %v1771
    %v1773 = vsub.f32 %v1698, %v1772
    %1775 = vrot.lane.b32.xlu0 %v1773, 64
    %v1776 = vpop.permute.xlu0 %1775
    %v1778 = vmul.f32 %v1768, %v1776
    %1780 = vrot.lane.b32.xlu0 %v1778, 64
    %v1781 = vpop.permute.xlu0 %1780
    %v1783 = vadd.f32 %v1772, %v1781
    %1784 = vst.msk [vmem:[#allocation3 + $0x78] sm:$0xff] %vm366, %v1783
    %v1785 = vld [vmem:[#allocation3] sm:$0xff]
    %v1786 = vld [vmem:[#allocation3 + $0x78] sm:$0xff]
    %vm1787 = vcmask 523520
    %1788 = vst.msk [vmem:[#allocation3] sm:$0xff] %vm1787, %v1786
    %1789 = vst.msk [vmem:[#allocation3 + $0x78] sm:$0xff] %vm1787, %v1785
    %v1790 = vld [vmem:[#allocation3 + $0x8] sm:$0xff]
    %v1791 = vld [vmem:[#allocation3 + $0x70] sm:$0xff]
    %1792 = vst.msk [vmem:[#allocation3 + $0x8] sm:$0xff] %vm1787, %v1791
    %1793 = vst.msk [vmem:[#allocation3 + $0x70] sm:$0xff] %vm1787, %v1790
    %v1794 = vld [vmem:[#allocation3 + $0x10] sm:$0xff]
    %v1795 = vld [vmem:[#allocation3 + $0x68] sm:$0xff]
    %1796 = vst.msk [vmem:[#allocation3 + $0x10] sm:$0xff] %vm1787, %v1795
    %1797 = vst.msk [vmem:[#allocation3 + $0x68] sm:$0xff] %vm1787, %v1794
    %v1798 = vld [vmem:[#allocation3 + $0x18] sm:$0xff]
    %v1799 = vld [vmem:[#allocation3 + $0x60] sm:$0xff]
    %1800 = vst.msk [vmem:[#allocation3 + $0x18] sm:$0xff] %vm1787, %v1799
    %1801 = vst.msk [vmem:[#allocation3 + $0x60] sm:$0xff] %vm1787, %v1798
    %v1802 = vld [vmem:[#allocation3 + $0x20] sm:$0xff]
    %v1803 = vld [vmem:[#allocation3 + $0x58] sm:$0xff]
    %1804 = vst.msk [vmem:[#allocation3 + $0x20] sm:$0xff] %vm1787, %v1803
    %1805 = vst.msk [vmem:[#allocation3 + $0x58] sm:$0xff] %vm1787, %v1802
    %v1806 = vld [vmem:[#allocation3 + $0x28] sm:$0xff]
    %v1807 = vld [vmem:[#allocation3 + $0x50] sm:$0xff]
    %1808 = vst.msk [vmem:[#allocation3 + $0x28] sm:$0xff] %vm1787, %v1807
    %1809 = vst.msk [vmem:[#allocation3 + $0x50] sm:$0xff] %vm1787, %v1806
    %v1810 = vld [vmem:[#allocation3 + $0x30] sm:$0xff]
    %v1811 = vld [vmem:[#allocation3 + $0x48] sm:$0xff]
    %1812 = vst.msk [vmem:[#allocation3 + $0x30] sm:$0xff] %vm1787, %v1811
    %1813 = vst.msk [vmem:[#allocation3 + $0x48] sm:$0xff] %vm1787, %v1810
    %v1814 = vld [vmem:[#allocation3 + $0x38] sm:$0xff]
    %v1815 = vld [vmem:[#allocation3 + $0x40] sm:$0xff]
    %1816 = vst.msk [vmem:[#allocation3 + $0x38] sm:$0xff] %vm1787, %v1815
    %1817 = vst.msk [vmem:[#allocation3 + $0x40] sm:$0xff] %vm1787, %v1814
    %1819 = vrot.lane.b32.xlu0 %v1783, 96
    %v1820 = vpop.permute.xlu0 %1819
    %v1822 = vadd.f32 %v1783, %v1820
    %v1823 = vld [vmem:[%s25] sm:$0xff]
    %v1824 = vld [vmem:[%s25 + $0x8] sm:$0xff]
    %v1825 = vld [vmem:[%s25 + $0x10] sm:$0xff]
    %v1826 = vld [vmem:[%s25 + $0x18] sm:$0xff]
    %v1827 = vld [vmem:[%s25 + $0x20] sm:$0xff]
    %v1828 = vld [vmem:[%s25 + $0x28] sm:$0xff]
    %v1829 = vld [vmem:[%s25 + $0x30] sm:$0xff]
    %v1830 = vld [vmem:[%s25 + $0x38] sm:$0xff]
    %v1831 = vld [vmem:[%s27] sm:$0x3]
    %v1833 = vperm.slane %v1831, 0
    %v1834 = vperm.slane %v1831, 1
    %vm1837 = vcmask 261120
    %v1839 = vsel %vm1837, %v1822, 0
    %1841 = vmatpush.msra.mxu0 0.0
    %1842 = vmatpush.msra.mxu0 0.0
    %1843 = vmatpush.msra.mxu0 0.0
    %1844 = vmatpush.msra.mxu0 0.0
    %1845 = vmatpush.msra.mxu0 0.0
    %1846 = vmatpush.msra.mxu0 0.0
    %1847 = vmatpush.msra.mxu0 0.0
    %1848 = vmatpush.msra.mxu0 0.0
    %1849 = vmatpush.msra.mxu0 0.0
    %1850 = vmatpush.msra.mxu0 0.0
    %1851 = vmatpush.msra.mxu0 0.0
    %1852 = vmatpush.msra.mxu0 0.0
    %1853 = vmatpush.msra.mxu0 %v1829
    %1854 = vmatpush.msra.mxu0 %v1827
    %1855 = vmatpush.msra.mxu0 %v1825
    %1856 = vmatpush.msra.mxu0 %v1823
    %1857 = vmatmul.f32.gmra.mxu0 %v1839
    %v1858 = vpop.f32.mrf.mxu0
    %v1859 = vadd.f32 %v1833, %v1858
    %1860 = vdwg.mxu0
    %1861 = vmatpush.msra.mxu0 0.0
    %1862 = vmatpush.msra.mxu0 0.0
    %1863 = vmatpush.msra.mxu0 0.0
    %1864 = vmatpush.msra.mxu0 0.0
    %1865 = vmatpush.msra.mxu0 0.0
    %1866 = vmatpush.msra.mxu0 0.0
    %1867 = vmatpush.msra.mxu0 0.0
    %1868 = vmatpush.msra.mxu0 0.0
    %1869 = vmatpush.msra.mxu0 0.0
    %1870 = vmatpush.msra.mxu0 0.0
    %1871 = vmatpush.msra.mxu0 0.0
    %1872 = vmatpush.msra.mxu0 0.0
    %1873 = vmatpush.msra.mxu0 %v1830
    %1874 = vmatpush.msra.mxu0 %v1828
    %1875 = vmatpush.msra.mxu0 %v1826
    %1876 = vmatpush.msra.mxu0 %v1824
    %1877 = vmatmul.f32.gmra.mxu0 %v1839
    %v1878 = vpop.f32.mrf.mxu0
    %v1879 = vadd.f32 %v1834, %v1878
    %1880 = vdwg.mxu0
    %1881 = vst [vmem:[#allocation4] sm:$0xff] %v1859
    %1882 = vst.msk [vmem:[#allocation4 + $0x8] sm:$0xff] %vm366, %v1879
    %v1883 = vld [vmem:[%s29] sm:$0xff]
    %v1884 = vld [vmem:[%s29 + $0x8] sm:$0xff]
    %v1885 = vld [vmem:[%s29 + $0x10] sm:$0xff]
    %v1886 = vld [vmem:[%s29 + $0x18] sm:$0xff]
    %v1887 = vld [vmem:[%s29 + $0x20] sm:$0xff]
    %v1888 = vld [vmem:[%s29 + $0x28] sm:$0xff]
    %v1889 = vld [vmem:[%s29 + $0x30] sm:$0xff]
    %v1890 = vld [vmem:[%s29 + $0x38] sm:$0xff]
    %v1891 = vld [vmem:[%s29 + $0x40] sm:$0xff]
    %v1892 = vld [vmem:[%s29 + $0x48] sm:$0xff]
    %v1893 = vld [vmem:[%s29 + $0x50] sm:$0xff]
    %v1894 = vld [vmem:[%s29 + $0x58] sm:$0xff]
    %v1895 = vld [vmem:[%s29 + $0x60] sm:$0xff]
    %v1896 = vld [vmem:[%s29 + $0x68] sm:$0xff]
    %v1897 = vld [vmem:[%s29 + $0x70] sm:$0xff]
    %v1898 = vld [vmem:[%s29 + $0x78] sm:$0xff]
    %v1899 = vld [vmem:[%s31] sm:$0x1]
    %vm1900 = vcmp.gt.f32.partialorder %v151, 0.5
    %v1901 = vld [vmem:[#allocation4] ss:$8 sm:$0x3]
    %s1902 = scalar_lea.vmem [#allocation4], 7
    %v1903 = vld [vmem:[%s1902] ss:$8 sm:$0x3]
    %v1904 = vsel %vm1900, %v1903, %v1901
    %1905 = vmatpush.msra.mxu0 0.0
    %1906 = vmatpush.msra.mxu0 0.0
    %1907 = vmatpush.msra.mxu0 0.0
    %1908 = vmatpush.msra.mxu0 0.0
    %1909 = vmatpush.msra.mxu0 0.0
    %1910 = vmatpush.msra.mxu0 0.0
    %1911 = vmatpush.msra.mxu0 0.0
    %1912 = vmatpush.msra.mxu0 0.0
    %1913 = vmatpush.msra.mxu0 %v1897
    %1914 = vmatpush.msra.mxu0 %v1895
    %1915 = vmatpush.msra.mxu0 %v1893
    %1916 = vmatpush.msra.mxu0 %v1891
    %1917 = vmatpush.msra.mxu0 %v1889
    %1918 = vmatpush.msra.mxu0 %v1887
    %1919 = vmatpush.msra.mxu0 %v1885
    %1920 = vmatpush.msra.mxu0 %v1883
    %1921 = vmatmul.f32.gmra.mxu0 %v432
    %v1922 = vpop.f32.mrf.mxu0
    %v1923 = vadd.f32 0.0, %v1922
    %1924 = vdwg.mxu0
    %1925 = vmatpush.msra.mxu0 0.0
    %1926 = vmatpush.msra.mxu0 0.0
    %1927 = vmatpush.msra.mxu0 0.0
    %1928 = vmatpush.msra.mxu0 0.0
    %1929 = vmatpush.msra.mxu0 0.0
    %1930 = vmatpush.msra.mxu0 0.0
    %1931 = vmatpush.msra.mxu0 0.0
    %1932 = vmatpush.msra.mxu0 0.0
    %1933 = vmatpush.msra.mxu0 %v1898
    %1934 = vmatpush.msra.mxu0 %v1896
    %1935 = vmatpush.msra.mxu0 %v1894
    %1936 = vmatpush.msra.mxu0 %v1892
    %1937 = vmatpush.msra.mxu0 %v1890
    %1938 = vmatpush.msra.mxu0 %v1888
    %1939 = vmatpush.msra.mxu0 %v1886
    %1940 = vmatpush.msra.mxu0 %v1884
    %1941 = vmatmul.f32.gmra.mxu0 %v432
    %v1942 = vpop.f32.mrf.mxu0
    %v1943 = vadd.f32 0.0, %v1942
    %1944 = vdwg.mxu0
    %v1945 = vadd.f32 %v1904, %v1923
    %v1946 = vxor.u32 %v1945, 2147483648
    %v1947 = vmul.f32 %v1946, 1.442695
    %v1948 = vpow.pop %v1947
    %v1949 = vadd.f32 %v1948, 1.0
    %v1950 = vrcp.pop %v1949
    %v1951 = vmul.f32 %v1949, %v1950
    %v1952 = vsub.f32 1.0, %v1951
    %v1953 = vmul.f32 %v1950, %v1952
    %v1954 = vadd.f32 %v1950, %v1953
    %vm1955 = vweird.f32 %v1949
    %vm1956 = vweird.f32 %v1950
    %vm1957 = vmor %vm1955, %vm1956
    %v1958 = vsel %vm1957, %v1950, %v1954
    %v1959 = vand.u32 2147483647, %v1949
    %vm1960 = vcmp.eq.f32.partialorder %v1959, 8.507059e+37
    %v1961 = vand.u32 %v1949, 2147483648
    %v1962 = vor.u32 1.1754944e-38, %v1961
    %v1963 = vsel %vm1960, %v1962, %v1958
    %v1964 = vmul.f32 1.0, %v1963
    %v1965 = vadd.f32 %v1943, %v1899
    %v1966 = vmul.f32 %v1964, %v1965
    %v1968 = vrot.slane %v1904, 1
    %v1970 = vadd.f32 %v1968, %v1966
    %v1971 = vtanh.pop %v1970
    %v1972 = vsub.f32 0.0, %v1971
    %1974 = vrot.lane.b32.xlu0 %v1972, 64
    %v1975 = vpop.permute.xlu0 %1974
    %v1977 = vmul.f32 %v1964, %v1975
    %1979 = vrot.lane.b32.xlu0 %v1977, 64
    %v1980 = vpop.permute.xlu0 %1979
    %v1982 = vadd.f32 %v1971, %v1980
    %vm1983 = vcmask 516096
    %1984 = vst.msk [vmem:[#allocation5] sm:$0x1] %vm1983, %v1982
    %s1985 = scalar_lea.vmem [#allocation4], 1
    %v1986 = vld [vmem:[%s1985] ss:$8 sm:$0x3]
    %s1987 = scalar_lea.vmem [#allocation4], 6
    %v1988 = vld [vmem:[%s1987] ss:$8 sm:$0x3]
    %v1989 = vsel %vm1900, %v1988, %v1986
    %v1991 = vsel %vm366, %v1982, 0
    %1993 = vmatpush.msra.mxu0 0.0
    %1994 = vmatpush.msra.mxu0 0.0
    %1995 = vmatpush.msra.mxu0 0.0
    %1996 = vmatpush.msra.mxu0 0.0
    %1997 = vmatpush.msra.mxu0 0.0
    %1998 = vmatpush.msra.mxu0 0.0
    %1999 = vmatpush.msra.mxu0 0.0
    %2000 = vmatpush.msra.mxu0 0.0
    %2001 = vmatpush.msra.mxu0 %v1897
    %2002 = vmatpush.msra.mxu0 %v1895
    %2003 = vmatpush.msra.mxu0 %v1893
    %2004 = vmatpush.msra.mxu0 %v1891
    %2005 = vmatpush.msra.mxu0 %v1889
    %2006 = vmatpush.msra.mxu0 %v1887
    %2007 = vmatpush.msra.mxu0 %v1885
    %2008 = vmatpush.msra.mxu0 %v1883
    %2009 = vmatmul.f32.gmra.mxu0 %v1991
    %v2010 = vpop.f32.mrf.mxu0
    %v2011 = vadd.f32 0.0, %v2010
    %2012 = vdwg.mxu0
    %2013 = vmatpush.msra.mxu0 0.0
    %2014 = vmatpush.msra.mxu0 0.0
    %2015 = vmatpush.msra.mxu0 0.0
    %2016 = vmatpush.msra.mxu0 0.0
    %2017 = vmatpush.msra.mxu0 0.0
    %2018 = vmatpush.msra.mxu0 0.0
    %2019 = vmatpush.msra.mxu0 0.0
    %2020 = vmatpush.msra.mxu0 0.0
    %2021 = vmatpush.msra.mxu0 %v1898
    %2022 = vmatpush.msra.mxu0 %v1896
    %2023 = vmatpush.msra.mxu0 %v1894
    %2024 = vmatpush.msra.mxu0 %v1892
    %2025 = vmatpush.msra.mxu0 %v1890
    %2026 = vmatpush.msra.mxu0 %v1888
    %2027 = vmatpush.msra.mxu0 %v1886
    %2028 = vmatpush.msra.mxu0 %v1884
    %2029 = vmatmul.f32.gmra.mxu0 %v1991
    %v2030 = vpop.f32.mrf.mxu0
    %v2031 = vadd.f32 0.0, %v2030
    %2032 = vdwg.mxu0
    %v2033 = vadd.f32 %v1989, %v2011
    %v2034 = vxor.u32 %v2033, 2147483648
    %v2035 = vmul.f32 %v2034, 1.442695
    %v2036 = vpow.pop %v2035
    %v2037 = vadd.f32 %v2036, 1.0
    %v2038 = vrcp.pop %v2037
    %v2039 = vmul.f32 %v2037, %v2038
    %v2040 = vsub.f32 1.0, %v2039
    %v2041 = vmul.f32 %v2038, %v2040
    %v2042 = vadd.f32 %v2038, %v2041
    %vm2043 = vweird.f32 %v2037
    %vm2044 = vweird.f32 %v2038
    %vm2045 = vmor %vm2043, %vm2044
    %v2046 = vsel %vm2045, %v2038, %v2042
    %v2047 = vand.u32 2147483647, %v2037
    %vm2048 = vcmp.eq.f32.partialorder %v2047, 8.507059e+37
    %v2049 = vand.u32 %v2037, 2147483648
    %v2050 = vor.u32 1.1754944e-38, %v2049
    %v2051 = vsel %vm2048, %v2050, %v2046
    %v2052 = vmul.f32 1.0, %v2051
    %v2053 = vadd.f32 %v2031, %v1899
    %v2054 = vmul.f32 %v2052, %v2053
    %v2056 = vrot.slane %v1989, 1
    %v2058 = vadd.f32 %v2056, %v2054
    %v2059 = vtanh.pop %v2058
    %v2060 = vsub.f32 %v1982, %v2059
    %2062 = vrot.lane.b32.xlu0 %v2060, 64
    %v2063 = vpop.permute.xlu0 %2062
    %v2065 = vmul.f32 %v2052, %v2063
    %2067 = vrot.lane.b32.xlu0 %v2065, 64
    %v2068 = vpop.permute.xlu0 %2067
    %v2070 = vadd.f32 %v2059, %v2068
    %2071 = vst.msk [vmem:[#allocation5 + $0x1] sm:$0x1] %vm1983, %v2070
    %s2072 = scalar_lea.vmem [#allocation4], 2
    %v2073 = vld [vmem:[%s2072] ss:$8 sm:$0x3]
    %s2074 = scalar_lea.vmem [#allocation4], 5
    %v2075 = vld [vmem:[%s2074] ss:$8 sm:$0x3]
    %v2076 = vsel %vm1900, %v2075, %v2073
    %v2078 = vsel %vm366, %v2070, 0
    %2080 = vmatpush.msra.mxu0 0.0
    %2081 = vmatpush.msra.mxu0 0.0
    %2082 = vmatpush.msra.mxu0 0.0
    %2083 = vmatpush.msra.mxu0 0.0
    %2084 = vmatpush.msra.mxu0 0.0
    %2085 = vmatpush.msra.mxu0 0.0
    %2086 = vmatpush.msra.mxu0 0.0
    %2087 = vmatpush.msra.mxu0 0.0
    %2088 = vmatpush.msra.mxu0 %v1897
    %2089 = vmatpush.msra.mxu0 %v1895
    %2090 = vmatpush.msra.mxu0 %v1893
    %2091 = vmatpush.msra.mxu0 %v1891
    %2092 = vmatpush.msra.mxu0 %v1889
    %2093 = vmatpush.msra.mxu0 %v1887
    %2094 = vmatpush.msra.mxu0 %v1885
    %2095 = vmatpush.msra.mxu0 %v1883
    %2096 = vmatmul.f32.gmra.mxu0 %v2078
    %v2097 = vpop.f32.mrf.mxu0
    %v2098 = vadd.f32 0.0, %v2097
    %2099 = vdwg.mxu0
    %2100 = vmatpush.msra.mxu0 0.0
    %2101 = vmatpush.msra.mxu0 0.0
    %2102 = vmatpush.msra.mxu0 0.0
    %2103 = vmatpush.msra.mxu0 0.0
    %2104 = vmatpush.msra.mxu0 0.0
    %2105 = vmatpush.msra.mxu0 0.0
    %2106 = vmatpush.msra.mxu0 0.0
    %2107 = vmatpush.msra.mxu0 0.0
    %2108 = vmatpush.msra.mxu0 %v1898
    %2109 = vmatpush.msra.mxu0 %v1896
    %2110 = vmatpush.msra.mxu0 %v1894
    %2111 = vmatpush.msra.mxu0 %v1892
    %2112 = vmatpush.msra.mxu0 %v1890
    %2113 = vmatpush.msra.mxu0 %v1888
    %2114 = vmatpush.msra.mxu0 %v1886
    %2115 = vmatpush.msra.mxu0 %v1884
    %2116 = vmatmul.f32.gmra.mxu0 %v2078
    %v2117 = vpop.f32.mrf.mxu0
    %v2118 = vadd.f32 0.0, %v2117
    %2119 = vdwg.mxu0
    %v2120 = vadd.f32 %v2076, %v2098
    %v2121 = vxor.u32 %v2120, 2147483648
    %v2122 = vmul.f32 %v2121, 1.442695
    %v2123 = vpow.pop %v2122
    %v2124 = vadd.f32 %v2123, 1.0
    %v2125 = vrcp.pop %v2124
    %v2126 = vmul.f32 %v2124, %v2125
    %v2127 = vsub.f32 1.0, %v2126
    %v2128 = vmul.f32 %v2125, %v2127
    %v2129 = vadd.f32 %v2125, %v2128
    %vm2130 = vweird.f32 %v2124
    %vm2131 = vweird.f32 %v2125
    %vm2132 = vmor %vm2130, %vm2131
    %v2133 = vsel %vm2132, %v2125, %v2129
    %v2134 = vand.u32 2147483647, %v2124
    %vm2135 = vcmp.eq.f32.partialorder %v2134, 8.507059e+37
    %v2136 = vand.u32 %v2124, 2147483648
    %v2137 = vor.u32 1.1754944e-38, %v2136
    %v2138 = vsel %vm2135, %v2137, %v2133
    %v2139 = vmul.f32 1.0, %v2138
    %v2140 = vadd.f32 %v2118, %v1899
    %v2141 = vmul.f32 %v2139, %v2140
    %v2143 = vrot.slane %v2076, 1
    %v2145 = vadd.f32 %v2143, %v2141
    %v2146 = vtanh.pop %v2145
    %v2147 = vsub.f32 %v2070, %v2146
    %2149 = vrot.lane.b32.xlu0 %v2147, 64
    %v2150 = vpop.permute.xlu0 %2149
    %v2152 = vmul.f32 %v2139, %v2150
    %2154 = vrot.lane.b32.xlu0 %v2152, 64
    %v2155 = vpop.permute.xlu0 %2154
    %v2157 = vadd.f32 %v2146, %v2155
    %2158 = vst.msk [vmem:[#allocation5 + $0x2] sm:$0x1] %vm1983, %v2157
    %s2159 = scalar_lea.vmem [#allocation4], 3
    %v2160 = vld [vmem:[%s2159] ss:$8 sm:$0x3]
    %s2161 = scalar_lea.vmem [#allocation4], 4
    %v2162 = vld [vmem:[%s2161] ss:$8 sm:$0x3]
    %v2163 = vsel %vm1900, %v2162, %v2160
    %v2165 = vsel %vm366, %v2157, 0
    %2167 = vmatpush.msra.mxu0 0.0
    %2168 = vmatpush.msra.mxu0 0.0
    %2169 = vmatpush.msra.mxu0 0.0
    %2170 = vmatpush.msra.mxu0 0.0
    %2171 = vmatpush.msra.mxu0 0.0
    %2172 = vmatpush.msra.mxu0 0.0
    %2173 = vmatpush.msra.mxu0 0.0
    %2174 = vmatpush.msra.mxu0 0.0
    %2175 = vmatpush.msra.mxu0 %v1897
    %2176 = vmatpush.msra.mxu0 %v1895
    %2177 = vmatpush.msra.mxu0 %v1893
    %2178 = vmatpush.msra.mxu0 %v1891
    %2179 = vmatpush.msra.mxu0 %v1889
    %2180 = vmatpush.msra.mxu0 %v1887
    %2181 = vmatpush.msra.mxu0 %v1885
    %2182 = vmatpush.msra.mxu0 %v1883
    %2183 = vmatmul.f32.gmra.mxu0 %v2165
    %v2184 = vpop.f32.mrf.mxu0
    %v2185 = vadd.f32 0.0, %v2184
    %2186 = vdwg.mxu0
    %2187 = vmatpush.msra.mxu0 0.0
    %2188 = vmatpush.msra.mxu0 0.0
    %2189 = vmatpush.msra.mxu0 0.0
    %2190 = vmatpush.msra.mxu0 0.0
    %2191 = vmatpush.msra.mxu0 0.0
    %2192 = vmatpush.msra.mxu0 0.0
    %2193 = vmatpush.msra.mxu0 0.0
    %2194 = vmatpush.msra.mxu0 0.0
    %2195 = vmatpush.msra.mxu0 %v1898
    %2196 = vmatpush.msra.mxu0 %v1896
    %2197 = vmatpush.msra.mxu0 %v1894
    %2198 = vmatpush.msra.mxu0 %v1892
    %2199 = vmatpush.msra.mxu0 %v1890
    %2200 = vmatpush.msra.mxu0 %v1888
    %2201 = vmatpush.msra.mxu0 %v1886
    %2202 = vmatpush.msra.mxu0 %v1884
    %2203 = vmatmul.f32.gmra.mxu0 %v2165
    %v2204 = vpop.f32.mrf.mxu0
    %v2205 = vadd.f32 0.0, %v2204
    %2206 = vdwg.mxu0
    %v2207 = vadd.f32 %v2163, %v2185
    %v2208 = vxor.u32 %v2207, 2147483648
    %v2209 = vmul.f32 %v2208, 1.442695
    %v2210 = vpow.pop %v2209
    %v2211 = vadd.f32 %v2210, 1.0
    %v2212 = vrcp.pop %v2211
    %v2213 = vmul.f32 %v2211, %v2212
    %v2214 = vsub.f32 1.0, %v2213
    %v2215 = vmul.f32 %v2212, %v2214
    %v2216 = vadd.f32 %v2212, %v2215
    %vm2217 = vweird.f32 %v2211
    %vm2218 = vweird.f32 %v2212
    %vm2219 = vmor %vm2217, %vm2218
    %v2220 = vsel %vm2219, %v2212, %v2216
    %v2221 = vand.u32 2147483647, %v2211
    %vm2222 = vcmp.eq.f32.partialorder %v2221, 8.507059e+37
    %v2223 = vand.u32 %v2211, 2147483648
    %v2224 = vor.u32 1.1754944e-38, %v2223
    %v2225 = vsel %vm2222, %v2224, %v2220
    %v2226 = vmul.f32 1.0, %v2225
    %v2227 = vadd.f32 %v2205, %v1899
    %v2228 = vmul.f32 %v2226, %v2227
    %v2230 = vrot.slane %v2163, 1
    %v2232 = vadd.f32 %v2230, %v2228
    %v2233 = vtanh.pop %v2232
    %v2234 = vsub.f32 %v2157, %v2233
    %2236 = vrot.lane.b32.xlu0 %v2234, 64
    %v2237 = vpop.permute.xlu0 %2236
    %v2239 = vmul.f32 %v2226, %v2237
    %2241 = vrot.lane.b32.xlu0 %v2239, 64
    %v2242 = vpop.permute.xlu0 %2241
    %v2244 = vadd.f32 %v2233, %v2242
    %2245 = vst.msk [vmem:[#allocation5 + $0x3] sm:$0x1] %vm1983, %v2244
    %v2246 = vld [vmem:[%s2161] ss:$8 sm:$0x3]
    %v2247 = vld [vmem:[%s2159] ss:$8 sm:$0x3]
    %v2248 = vsel %vm1900, %v2247, %v2246
    %v2250 = vsel %vm366, %v2244, 0
    %2252 = vmatpush.msra.mxu0 0.0
    %2253 = vmatpush.msra.mxu0 0.0
    %2254 = vmatpush.msra.mxu0 0.0
    %2255 = vmatpush.msra.mxu0 0.0
    %2256 = vmatpush.msra.mxu0 0.0
    %2257 = vmatpush.msra.mxu0 0.0
    %2258 = vmatpush.msra.mxu0 0.0
    %2259 = vmatpush.msra.mxu0 0.0
    %2260 = vmatpush.msra.mxu0 %v1897
    %2261 = vmatpush.msra.mxu0 %v1895
    %2262 = vmatpush.msra.mxu0 %v1893
    %2263 = vmatpush.msra.mxu0 %v1891
    %2264 = vmatpush.msra.mxu0 %v1889
    %2265 = vmatpush.msra.mxu0 %v1887
    %2266 = vmatpush.msra.mxu0 %v1885
    %2267 = vmatpush.msra.mxu0 %v1883
    %2268 = vmatmul.f32.gmra.mxu0 %v2250
    %v2269 = vpop.f32.mrf.mxu0
    %v2270 = vadd.f32 0.0, %v2269
    %2271 = vdwg.mxu0
    %2272 = vmatpush.msra.mxu0 0.0
    %2273 = vmatpush.msra.mxu0 0.0
    %2274 = vmatpush.msra.mxu0 0.0
    %2275 = vmatpush.msra.mxu0 0.0
    %2276 = vmatpush.msra.mxu0 0.0
    %2277 = vmatpush.msra.mxu0 0.0
    %2278 = vmatpush.msra.mxu0 0.0
    %2279 = vmatpush.msra.mxu0 0.0
    %2280 = vmatpush.msra.mxu0 %v1898
    %2281 = vmatpush.msra.mxu0 %v1896
    %2282 = vmatpush.msra.mxu0 %v1894
    %2283 = vmatpush.msra.mxu0 %v1892
    %2284 = vmatpush.msra.mxu0 %v1890
    %2285 = vmatpush.msra.mxu0 %v1888
    %2286 = vmatpush.msra.mxu0 %v1886
    %2287 = vmatpush.msra.mxu0 %v1884
    %2288 = vmatmul.f32.gmra.mxu0 %v2250
    %v2289 = vpop.f32.mrf.mxu0
    %v2290 = vadd.f32 0.0, %v2289
    %2291 = vdwg.mxu0
    %v2292 = vadd.f32 %v2248, %v2270
    %v2293 = vxor.u32 %v2292, 2147483648
    %v2294 = vmul.f32 %v2293, 1.442695
    %v2295 = vpow.pop %v2294
    %v2296 = vadd.f32 %v2295, 1.0
    %v2297 = vrcp.pop %v2296
    %v2298 = vmul.f32 %v2296, %v2297
    %v2299 = vsub.f32 1.0, %v2298
    %v2300 = vmul.f32 %v2297, %v2299
    %v2301 = vadd.f32 %v2297, %v2300
    %vm2302 = vweird.f32 %v2296
    %vm2303 = vweird.f32 %v2297
    %vm2304 = vmor %vm2302, %vm2303
    %v2305 = vsel %vm2304, %v2297, %v2301
    %v2306 = vand.u32 2147483647, %v2296
    %vm2307 = vcmp.eq.f32.partialorder %v2306, 8.507059e+37
    %v2308 = vand.u32 %v2296, 2147483648
    %v2309 = vor.u32 1.1754944e-38, %v2308
    %v2310 = vsel %vm2307, %v2309, %v2305
    %v2311 = vmul.f32 1.0, %v2310
    %v2312 = vadd.f32 %v2290, %v1899
    %v2313 = vmul.f32 %v2311, %v2312
    %v2315 = vrot.slane %v2248, 1
    %v2317 = vadd.f32 %v2315, %v2313
    %v2318 = vtanh.pop %v2317
    %v2319 = vsub.f32 %v2244, %v2318
    %2321 = vrot.lane.b32.xlu0 %v2319, 64
    %v2322 = vpop.permute.xlu0 %2321
    %v2324 = vmul.f32 %v2311, %v2322
    %2326 = vrot.lane.b32.xlu0 %v2324, 64
    %v2327 = vpop.permute.xlu0 %2326
    %v2329 = vadd.f32 %v2318, %v2327
    %2330 = vst.msk [vmem:[#allocation5 + $0x4] sm:$0x1] %vm1983, %v2329
    %v2331 = vld [vmem:[%s2074] ss:$8 sm:$0x3]
    %v2332 = vld [vmem:[%s2072] ss:$8 sm:$0x3]
    %v2333 = vsel %vm1900, %v2332, %v2331
    %v2335 = vsel %vm366, %v2329, 0
    %2337 = vmatpush.msra.mxu0 0.0
    %2338 = vmatpush.msra.mxu0 0.0
    %2339 = vmatpush.msra.mxu0 0.0
    %2340 = vmatpush.msra.mxu0 0.0
    %2341 = vmatpush.msra.mxu0 0.0
    %2342 = vmatpush.msra.mxu0 0.0
    %2343 = vmatpush.msra.mxu0 0.0
    %2344 = vmatpush.msra.mxu0 0.0
    %2345 = vmatpush.msra.mxu0 %v1897
    %2346 = vmatpush.msra.mxu0 %v1895
    %2347 = vmatpush.msra.mxu0 %v1893
    %2348 = vmatpush.msra.mxu0 %v1891
    %2349 = vmatpush.msra.mxu0 %v1889
    %2350 = vmatpush.msra.mxu0 %v1887
    %2351 = vmatpush.msra.mxu0 %v1885
    %2352 = vmatpush.msra.mxu0 %v1883
    %2353 = vmatmul.f32.gmra.mxu0 %v2335
    %v2354 = vpop.f32.mrf.mxu0
    %v2355 = vadd.f32 0.0, %v2354
    %2356 = vdwg.mxu0
    %2357 = vmatpush.msra.mxu0 0.0
    %2358 = vmatpush.msra.mxu0 0.0
    %2359 = vmatpush.msra.mxu0 0.0
    %2360 = vmatpush.msra.mxu0 0.0
    %2361 = vmatpush.msra.mxu0 0.0
    %2362 = vmatpush.msra.mxu0 0.0
    %2363 = vmatpush.msra.mxu0 0.0
    %2364 = vmatpush.msra.mxu0 0.0
    %2365 = vmatpush.msra.mxu0 %v1898
    %2366 = vmatpush.msra.mxu0 %v1896
    %2367 = vmatpush.msra.mxu0 %v1894
    %2368 = vmatpush.msra.mxu0 %v1892
    %2369 = vmatpush.msra.mxu0 %v1890
    %2370 = vmatpush.msra.mxu0 %v1888
    %2371 = vmatpush.msra.mxu0 %v1886
    %2372 = vmatpush.msra.mxu0 %v1884
    %2373 = vmatmul.f32.gmra.mxu0 %v2335
    %v2374 = vpop.f32.mrf.mxu0
    %v2375 = vadd.f32 0.0, %v2374
    %2376 = vdwg.mxu0
    %v2377 = vadd.f32 %v2333, %v2355
    %v2378 = vxor.u32 %v2377, 2147483648
    %v2379 = vmul.f32 %v2378, 1.442695
    %v2380 = vpow.pop %v2379
    %v2381 = vadd.f32 %v2380, 1.0
    %v2382 = vrcp.pop %v2381
    %v2383 = vmul.f32 %v2381, %v2382
    %v2384 = vsub.f32 1.0, %v2383
    %v2385 = vmul.f32 %v2382, %v2384
    %v2386 = vadd.f32 %v2382, %v2385
    %vm2387 = vweird.f32 %v2381
    %vm2388 = vweird.f32 %v2382
    %vm2389 = vmor %vm2387, %vm2388
    %v2390 = vsel %vm2389, %v2382, %v2386
    %v2391 = vand.u32 2147483647, %v2381
    %vm2392 = vcmp.eq.f32.partialorder %v2391, 8.507059e+37
    %v2393 = vand.u32 %v2381, 2147483648
    %v2394 = vor.u32 1.1754944e-38, %v2393
    %v2395 = vsel %vm2392, %v2394, %v2390
    %v2396 = vmul.f32 1.0, %v2395
    %v2397 = vadd.f32 %v2375, %v1899
    %v2398 = vmul.f32 %v2396, %v2397
    %v2400 = vrot.slane %v2333, 1
    %v2402 = vadd.f32 %v2400, %v2398
    %v2403 = vtanh.pop %v2402
    %v2404 = vsub.f32 %v2329, %v2403
    %2406 = vrot.lane.b32.xlu0 %v2404, 64
    %v2407 = vpop.permute.xlu0 %2406
    %v2409 = vmul.f32 %v2396, %v2407
    %2411 = vrot.lane.b32.xlu0 %v2409, 64
    %v2412 = vpop.permute.xlu0 %2411
    %v2414 = vadd.f32 %v2403, %v2412
    %2415 = vst.msk [vmem:[#allocation5 + $0x5] sm:$0x1] %vm1983, %v2414
    %v2416 = vld [vmem:[%s1987] ss:$8 sm:$0x3]
    %v2417 = vld [vmem:[%s1985] ss:$8 sm:$0x3]
    %v2418 = vsel %vm1900, %v2417, %v2416
    %v2420 = vsel %vm366, %v2414, 0
    %2422 = vmatpush.msra.mxu0 0.0
    %2423 = vmatpush.msra.mxu0 0.0
    %2424 = vmatpush.msra.mxu0 0.0
    %2425 = vmatpush.msra.mxu0 0.0
    %2426 = vmatpush.msra.mxu0 0.0
    %2427 = vmatpush.msra.mxu0 0.0
    %2428 = vmatpush.msra.mxu0 0.0
    %2429 = vmatpush.msra.mxu0 0.0
    %2430 = vmatpush.msra.mxu0 %v1897
    %2431 = vmatpush.msra.mxu0 %v1895
    %2432 = vmatpush.msra.mxu0 %v1893
    %2433 = vmatpush.msra.mxu0 %v1891
    %2434 = vmatpush.msra.mxu0 %v1889
    %2435 = vmatpush.msra.mxu0 %v1887
    %2436 = vmatpush.msra.mxu0 %v1885
    %2437 = vmatpush.msra.mxu0 %v1883
    %2438 = vmatmul.f32.gmra.mxu0 %v2420
    %v2439 = vpop.f32.mrf.mxu0
    %v2440 = vadd.f32 0.0, %v2439
    %2441 = vdwg.mxu0
    %2442 = vmatpush.msra.mxu0 0.0
    %2443 = vmatpush.msra.mxu0 0.0
    %2444 = vmatpush.msra.mxu0 0.0
    %2445 = vmatpush.msra.mxu0 0.0
    %2446 = vmatpush.msra.mxu0 0.0
    %2447 = vmatpush.msra.mxu0 0.0
    %2448 = vmatpush.msra.mxu0 0.0
    %2449 = vmatpush.msra.mxu0 0.0
    %2450 = vmatpush.msra.mxu0 %v1898
    %2451 = vmatpush.msra.mxu0 %v1896
    %2452 = vmatpush.msra.mxu0 %v1894
    %2453 = vmatpush.msra.mxu0 %v1892
    %2454 = vmatpush.msra.mxu0 %v1890
    %2455 = vmatpush.msra.mxu0 %v1888
    %2456 = vmatpush.msra.mxu0 %v1886
    %2457 = vmatpush.msra.mxu0 %v1884
    %2458 = vmatmul.f32.gmra.mxu0 %v2420
    %v2459 = vpop.f32.mrf.mxu0
    %v2460 = vadd.f32 0.0, %v2459
    %2461 = vdwg.mxu0
    %v2462 = vadd.f32 %v2418, %v2440
    %v2463 = vxor.u32 %v2462, 2147483648
    %v2464 = vmul.f32 %v2463, 1.442695
    %v2465 = vpow.pop %v2464
    %v2466 = vadd.f32 %v2465, 1.0
    %v2467 = vrcp.pop %v2466
    %v2468 = vmul.f32 %v2466, %v2467
    %v2469 = vsub.f32 1.0, %v2468
    %v2470 = vmul.f32 %v2467, %v2469
    %v2471 = vadd.f32 %v2467, %v2470
    %vm2472 = vweird.f32 %v2466
    %vm2473 = vweird.f32 %v2467
    %vm2474 = vmor %vm2472, %vm2473
    %v2475 = vsel %vm2474, %v2467, %v2471
    %v2476 = vand.u32 2147483647, %v2466
    %vm2477 = vcmp.eq.f32.partialorder %v2476, 8.507059e+37
    %v2478 = vand.u32 %v2466, 2147483648
    %v2479 = vor.u32 1.1754944e-38, %v2478
    %v2480 = vsel %vm2477, %v2479, %v2475
    %v2481 = vmul.f32 1.0, %v2480
    %v2482 = vadd.f32 %v2460, %v1899
    %v2483 = vmul.f32 %v2481, %v2482
    %v2485 = vrot.slane %v2418, 1
    %v2487 = vadd.f32 %v2485, %v2483
    %v2488 = vtanh.pop %v2487
    %v2489 = vsub.f32 %v2414, %v2488
    %2491 = vrot.lane.b32.xlu0 %v2489, 64
    %v2492 = vpop.permute.xlu0 %2491
    %v2494 = vmul.f32 %v2481, %v2492
    %2496 = vrot.lane.b32.xlu0 %v2494, 64
    %v2497 = vpop.permute.xlu0 %2496
    %v2499 = vadd.f32 %v2488, %v2497
    %2500 = vst.msk [vmem:[#allocation5 + $0x6] sm:$0x1] %vm1983, %v2499
    %v2501 = vld [vmem:[%s1902] ss:$8 sm:$0x3]
    %v2502 = vld [vmem:[#allocation4] ss:$8 sm:$0x3]
    %v2503 = vsel %vm1900, %v2502, %v2501
    %v2505 = vsel %vm366, %v2499, 0
    %2507 = vmatpush.msra.mxu0 0.0
    %2508 = vmatpush.msra.mxu0 0.0
    %2509 = vmatpush.msra.mxu0 0.0
    %2510 = vmatpush.msra.mxu0 0.0
    %2511 = vmatpush.msra.mxu0 0.0
    %2512 = vmatpush.msra.mxu0 0.0
    %2513 = vmatpush.msra.mxu0 0.0
    %2514 = vmatpush.msra.mxu0 0.0
    %2515 = vmatpush.msra.mxu0 %v1897
    %2516 = vmatpush.msra.mxu0 %v1895
    %2517 = vmatpush.msra.mxu0 %v1893
    %2518 = vmatpush.msra.mxu0 %v1891
    %2519 = vmatpush.msra.mxu0 %v1889
    %2520 = vmatpush.msra.mxu0 %v1887
    %2521 = vmatpush.msra.mxu0 %v1885
    %2522 = vmatpush.msra.mxu0 %v1883
    %2523 = vmatmul.f32.gmra.mxu0 %v2505
    %v2524 = vpop.f32.mrf.mxu0
    %v2525 = vadd.f32 0.0, %v2524
    %2526 = vdwg.mxu0
    %2527 = vmatpush.msra.mxu0 0.0
    %2528 = vmatpush.msra.mxu0 0.0
    %2529 = vmatpush.msra.mxu0 0.0
    %2530 = vmatpush.msra.mxu0 0.0
    %2531 = vmatpush.msra.mxu0 0.0
    %2532 = vmatpush.msra.mxu0 0.0
    %2533 = vmatpush.msra.mxu0 0.0
    %2534 = vmatpush.msra.mxu0 0.0
    %2535 = vmatpush.msra.mxu0 %v1898
    %2536 = vmatpush.msra.mxu0 %v1896
    %2537 = vmatpush.msra.mxu0 %v1894
    %2538 = vmatpush.msra.mxu0 %v1892
    %2539 = vmatpush.msra.mxu0 %v1890
    %2540 = vmatpush.msra.mxu0 %v1888
    %2541 = vmatpush.msra.mxu0 %v1886
    %2542 = vmatpush.msra.mxu0 %v1884
    %2543 = vmatmul.f32.gmra.mxu0 %v2505
    %v2544 = vpop.f32.mrf.mxu0
    %v2545 = vadd.f32 0.0, %v2544
    %2546 = vdwg.mxu0
    %v2547 = vadd.f32 %v2503, %v2525
    %v2548 = vxor.u32 %v2547, 2147483648
    %v2549 = vmul.f32 %v2548, 1.442695
    %v2550 = vpow.pop %v2549
    %v2551 = vadd.f32 %v2550, 1.0
    %v2552 = vrcp.pop %v2551
    %v2553 = vmul.f32 %v2551, %v2552
    %v2554 = vsub.f32 1.0, %v2553
    %v2555 = vmul.f32 %v2552, %v2554
    %v2556 = vadd.f32 %v2552, %v2555
    %vm2557 = vweird.f32 %v2551
    %vm2558 = vweird.f32 %v2552
    %vm2559 = vmor %vm2557, %vm2558
    %v2560 = vsel %vm2559, %v2552, %v2556
    %v2561 = vand.u32 2147483647, %v2551
    %vm2562 = vcmp.eq.f32.partialorder %v2561, 8.507059e+37
    %v2563 = vand.u32 %v2551, 2147483648
    %v2564 = vor.u32 1.1754944e-38, %v2563
    %v2565 = vsel %vm2562, %v2564, %v2560
    %v2566 = vmul.f32 1.0, %v2565
    %v2567 = vadd.f32 %v2545, %v1899
    %v2568 = vmul.f32 %v2566, %v2567
    %v2570 = vrot.slane %v2503, 1
    %v2572 = vadd.f32 %v2570, %v2568
    %v2573 = vtanh.pop %v2572
    %v2574 = vsub.f32 %v2499, %v2573
    %2576 = vrot.lane.b32.xlu0 %v2574, 64
    %v2577 = vpop.permute.xlu0 %2576
    %v2579 = vmul.f32 %v2566, %v2577
    %2581 = vrot.lane.b32.xlu0 %v2579, 64
    %v2582 = vpop.permute.xlu0 %2581
    %v2584 = vadd.f32 %v2573, %v2582
    %2585 = vst.msk [vmem:[#allocation5 + $0x7] sm:$0x1] %vm1983, %v2584
    %v2586 = vld [vmem:[#allocation5] sm:$0x1]
    %v2587 = vld [vmem:[#allocation5 + $0x7] sm:$0x1]
    %vm2588 = vcmask 516352
    %2589 = vst.msk [vmem:[#allocation5] sm:$0x1] %vm2588, %v2587
    %2590 = vst.msk [vmem:[#allocation5 + $0x7] sm:$0x1] %vm2588, %v2586
    %v2591 = vld [vmem:[#allocation5 + $0x1] sm:$0x1]
    %v2592 = vld [vmem:[#allocation5 + $0x6] sm:$0x1]
    %2593 = vst.msk [vmem:[#allocation5 + $0x1] sm:$0x1] %vm2588, %v2592
    %2594 = vst.msk [vmem:[#allocation5 + $0x6] sm:$0x1] %vm2588, %v2591
    %v2595 = vld [vmem:[#allocation5 + $0x2] sm:$0x1]
    %v2596 = vld [vmem:[#allocation5 + $0x5] sm:$0x1]
    %2597 = vst.msk [vmem:[#allocation5 + $0x2] sm:$0x1] %vm2588, %v2596
    %2598 = vst.msk [vmem:[#allocation5 + $0x5] sm:$0x1] %vm2588, %v2595
    %v2599 = vld [vmem:[#allocation5 + $0x3] sm:$0x1]
    %v2600 = vld [vmem:[#allocation5 + $0x4] sm:$0x1]
    %2601 = vst.msk [vmem:[#allocation5 + $0x3] sm:$0x1] %vm2588, %v2600
    %2602 = vst.msk [vmem:[#allocation5 + $0x4] sm:$0x1] %vm2588, %v2599
    %v2603 = vld [vmem:[#allocation3] sm:$0xff]
    %v2604 = vld [vmem:[#allocation3 + $0x8] sm:$0xff]
    %v2605 = vld [vmem:[#allocation3 + $0x10] sm:$0xff]
    %v2606 = vld [vmem:[#allocation3 + $0x18] sm:$0xff]
    %v2607 = vld [vmem:[#allocation3 + $0x20] sm:$0xff]
    %v2608 = vld [vmem:[#allocation3 + $0x28] sm:$0xff]
    %v2609 = vld [vmem:[#allocation3 + $0x30] sm:$0xff]
    %v2610 = vld [vmem:[#allocation3 + $0x38] sm:$0xff]
    %v2611 = vld [vmem:[#allocation3 + $0x40] sm:$0xff]
    %v2612 = vld [vmem:[#allocation3 + $0x48] sm:$0xff]
    %v2613 = vld [vmem:[#allocation3 + $0x50] sm:$0xff]
    %v2614 = vld [vmem:[#allocation3 + $0x58] sm:$0xff]
    %v2615 = vld [vmem:[#allocation3 + $0x60] sm:$0xff]
    %v2616 = vld [vmem:[#allocation3 + $0x68] sm:$0xff]
    %v2617 = vld [vmem:[#allocation3 + $0x70] sm:$0xff]
    %v2618 = vld [vmem:[#allocation3 + $0x78] sm:$0xff]
    %v2619 = vld [vmem:[%s13] sm:$0xff]
    %v2620 = vld [vmem:[%s13 + $0x8] sm:$0xff]
    %v2621 = vld [vmem:[%s13 + $0x10] sm:$0xff]
    %v2622 = vld [vmem:[%s13 + $0x18] sm:$0xff]
    %v2623 = vld [vmem:[%s13 + $0x20] sm:$0xff]
    %v2624 = vld [vmem:[%s13 + $0x28] sm:$0xff]
    %v2625 = vld [vmem:[%s13 + $0x30] sm:$0xff]
    %v2626 = vld [vmem:[%s13 + $0x38] sm:$0xff]
    %v2627 = vld [vmem:[%s13 + $0x40] sm:$0xff]
    %v2628 = vld [vmem:[%s13 + $0x48] sm:$0xff]
    %v2629 = vld [vmem:[%s13 + $0x50] sm:$0xff]
    %v2630 = vld [vmem:[%s13 + $0x58] sm:$0xff]
    %v2631 = vld [vmem:[%s13 + $0x60] sm:$0xff]
    %v2632 = vld [vmem:[%s13 + $0x68] sm:$0xff]
    %v2633 = vld [vmem:[%s13 + $0x70] sm:$0xff]
    %v2634 = vld [vmem:[%s13 + $0x78] sm:$0xff]
    %v2635 = vld [vmem:[%s15] sm:$0x3]
    %v2636 = vld [vmem:[%s17] sm:$0xff]
    %v2637 = vld [vmem:[%s17 + $0x8] sm:$0xff]
    %v2638 = vld [vmem:[%s17 + $0x10] sm:$0xff]
    %v2639 = vld [vmem:[%s17 + $0x18] sm:$0xff]
    %v2640 = vld [vmem:[%s17 + $0x20] sm:$0xff]
    %v2641 = vld [vmem:[%s17 + $0x28] sm:$0xff]
    %v2642 = vld [vmem:[%s17 + $0x30] sm:$0xff]
    %v2643 = vld [vmem:[%s17 + $0x38] sm:$0xff]
    %v2644 = vld [vmem:[%s17 + $0x40] sm:$0xff]
    %v2645 = vld [vmem:[%s17 + $0x48] sm:$0xff]
    %v2646 = vld [vmem:[%s17 + $0x50] sm:$0xff]
    %v2647 = vld [vmem:[%s17 + $0x58] sm:$0xff]
    %v2648 = vld [vmem:[%s17 + $0x60] sm:$0xff]
    %v2649 = vld [vmem:[%s17 + $0x68] sm:$0xff]
    %v2650 = vld [vmem:[%s17 + $0x70] sm:$0xff]
    %v2651 = vld [vmem:[%s17 + $0x78] sm:$0xff]
    %v2652 = vld [vmem:[%s17 + $0x80] sm:$0xff]
    %v2653 = vld [vmem:[%s17 + $0x88] sm:$0xff]
    %v2654 = vld [vmem:[%s17 + $0x90] sm:$0xff]
    %v2655 = vld [vmem:[%s17 + $0x98] sm:$0xff]
    %v2656 = vld [vmem:[%s17 + $0xa0] sm:$0xff]
    %v2657 = vld [vmem:[%s17 + $0xa8] sm:$0xff]
    %v2658 = vld [vmem:[%s17 + $0xb0] sm:$0xff]
    %v2659 = vld [vmem:[%s17 + $0xb8] sm:$0xff]
    %v2660 = vld [vmem:[%s17 + $0xc0] sm:$0xff]
    %v2661 = vld [vmem:[%s17 + $0xc8] sm:$0xff]
    %v2662 = vld [vmem:[%s17 + $0xd0] sm:$0xff]
    %v2663 = vld [vmem:[%s17 + $0xd8] sm:$0xff]
    %v2664 = vld [vmem:[%s17 + $0xe0] sm:$0xff]
    %v2665 = vld [vmem:[%s17 + $0xe8] sm:$0xff]
    %v2666 = vld [vmem:[%s17 + $0xf0] sm:$0xff]
    %v2667 = vld [vmem:[%s17 + $0xf8] sm:$0xff]
    %v2668 = vld [vmem:[%s19] sm:$0x1]
    %v2670 = vperm.slane %v2635, 0
    %v2671 = vperm.slane %v2635, 1
    %v2675 = vsel %vm366, %v2603, 0
    %v2678 = vsel %vm366, %v2604, 0
    %v2681 = vsel %vm366, %v2605, 0
    %v2684 = vsel %vm366, %v2606, 0
    %v2687 = vsel %vm366, %v2607, 0
    %v2690 = vsel %vm366, %v2608, 0
    %v2693 = vsel %vm366, %v2609, 0
    %v2696 = vsel %vm366, %v2610, 0
    %v2699 = vsel %vm366, %v2611, 0
    %v2702 = vsel %vm366, %v2612, 0
    %v2705 = vsel %vm366, %v2613, 0
    %v2708 = vsel %vm366, %v2614, 0
    %v2711 = vsel %vm366, %v2615, 0
    %v2714 = vsel %vm366, %v2616, 0
    %v2717 = vsel %vm366, %v2617, 0
    %v2720 = vsel %vm366, %v2618, 0
    %2722 = vmatpush.msra.mxu0 0.0
    %2723 = vmatpush.msra.mxu0 0.0
    %2724 = vmatpush.msra.mxu0 0.0
    %2725 = vmatpush.msra.mxu0 0.0
    %2726 = vmatpush.msra.mxu0 0.0
    %2727 = vmatpush.msra.mxu0 0.0
    %2728 = vmatpush.msra.mxu0 0.0
    %2729 = vmatpush.msra.mxu0 0.0
    %2730 = vmatpush.msra.mxu0 %v2633
    %2731 = vmatpush.msra.mxu0 %v2631
    %2732 = vmatpush.msra.mxu0 %v2629
    %2733 = vmatpush.msra.mxu0 %v2627
    %2734 = vmatpush.msra.mxu0 %v2625
    %2735 = vmatpush.msra.mxu0 %v2623
    %2736 = vmatpush.msra.mxu0 %v2621
    %2737 = vmatpush.msra.mxu0 %v2619
    %2738 = vmatmul.f32.gmra.mxu0 %v2675
    %v2739 = vpop.f32.mrf.mxu0
    %v2740 = vadd.f32 %v2670, %v2739
    %2741 = vmatmul.f32.gmra.mxu0 %v2678
    %v2742 = vpop.f32.mrf.mxu0
    %v2743 = vadd.f32 %v2670, %v2742
    %2744 = vmatmul.f32.gmra.mxu0 %v2681
    %v2745 = vpop.f32.mrf.mxu0
    %v2746 = vadd.f32 %v2670, %v2745
    %2747 = vmatmul.f32.gmra.mxu0 %v2684
    %v2748 = vpop.f32.mrf.mxu0
    %v2749 = vadd.f32 %v2670, %v2748
    %2750 = vmatmul.f32.gmra.mxu0 %v2687
    %v2751 = vpop.f32.mrf.mxu0
    %v2752 = vadd.f32 %v2670, %v2751
    %2753 = vmatmul.f32.gmra.mxu0 %v2690
    %v2754 = vpop.f32.mrf.mxu0
    %v2755 = vadd.f32 %v2670, %v2754
    %2756 = vmatmul.f32.gmra.mxu0 %v2693
    %v2757 = vpop.f32.mrf.mxu0
    %v2758 = vadd.f32 %v2670, %v2757
    %2759 = vmatmul.f32.gmra.mxu0 %v2696
    %v2760 = vpop.f32.mrf.mxu0
    %v2761 = vadd.f32 %v2670, %v2760
    %2762 = vmatmul.f32.gmra.mxu0 %v2699
    %v2763 = vpop.f32.mrf.mxu0
    %v2764 = vadd.f32 %v2670, %v2763
    %2765 = vmatmul.f32.gmra.mxu0 %v2702
    %v2766 = vpop.f32.mrf.mxu0
    %v2767 = vadd.f32 %v2670, %v2766
    %2768 = vmatmul.f32.gmra.mxu0 %v2705
    %v2769 = vpop.f32.mrf.mxu0
    %v2770 = vadd.f32 %v2670, %v2769
    %2771 = vmatmul.f32.gmra.mxu0 %v2708
    %v2772 = vpop.f32.mrf.mxu0
    %v2773 = vadd.f32 %v2670, %v2772
    %2774 = vmatmul.f32.gmra.mxu0 %v2711
    %v2775 = vpop.f32.mrf.mxu0
    %v2776 = vadd.f32 %v2670, %v2775
    %2777 = vmatmul.f32.gmra.mxu0 %v2714
    %v2778 = vpop.f32.mrf.mxu0
    %v2779 = vadd.f32 %v2670, %v2778
    %2780 = vmatmul.f32.gmra.mxu0 %v2717
    %v2781 = vpop.f32.mrf.mxu0
    %v2782 = vadd.f32 %v2670, %v2781
    %2783 = vmatmul.f32.gmra.mxu0 %v2720
    %v2784 = vpop.f32.mrf.mxu0
    %v2785 = vadd.f32 %v2670, %v2784
    %2786 = vdwg.mxu0
    %2787 = vmatpush.msra.mxu0 0.0
    %2788 = vmatpush.msra.mxu0 0.0
    %2789 = vmatpush.msra.mxu0 0.0
    %2790 = vmatpush.msra.mxu0 0.0
    %2791 = vmatpush.msra.mxu0 0.0
    %2792 = vmatpush.msra.mxu0 0.0
    %2793 = vmatpush.msra.mxu0 0.0
    %2794 = vmatpush.msra.mxu0 0.0
    %2795 = vmatpush.msra.mxu0 %v2634
    %2796 = vmatpush.msra.mxu0 %v2632
    %2797 = vmatpush.msra.mxu0 %v2630
    %2798 = vmatpush.msra.mxu0 %v2628
    %2799 = vmatpush.msra.mxu0 %v2626
    %2800 = vmatpush.msra.mxu0 %v2624
    %2801 = vmatpush.msra.mxu0 %v2622
    %2802 = vmatpush.msra.mxu0 %v2620
    %2803 = vmatmul.f32.gmra.mxu0 %v2675
    %v2804 = vpop.f32.mrf.mxu0
    %v2805 = vadd.f32 %v2671, %v2804
    %2806 = vmatmul.f32.gmra.mxu0 %v2678
    %v2807 = vpop.f32.mrf.mxu0
    %v2808 = vadd.f32 %v2671, %v2807
    %2809 = vmatmul.f32.gmra.mxu0 %v2681
    %v2810 = vpop.f32.mrf.mxu0
    %v2811 = vadd.f32 %v2671, %v2810
    %2812 = vmatmul.f32.gmra.mxu0 %v2684
    %v2813 = vpop.f32.mrf.mxu0
    %v2814 = vadd.f32 %v2671, %v2813
    %2815 = vmatmul.f32.gmra.mxu0 %v2687
    %v2816 = vpop.f32.mrf.mxu0
    %v2817 = vadd.f32 %v2671, %v2816
    %2818 = vmatmul.f32.gmra.mxu0 %v2690
    %v2819 = vpop.f32.mrf.mxu0
    %v2820 = vadd.f32 %v2671, %v2819
    %2821 = vmatmul.f32.gmra.mxu0 %v2693
    %v2822 = vpop.f32.mrf.mxu0
    %v2823 = vadd.f32 %v2671, %v2822
    %2824 = vmatmul.f32.gmra.mxu0 %v2696
    %v2825 = vpop.f32.mrf.mxu0
    %v2826 = vadd.f32 %v2671, %v2825
    %2827 = vmatmul.f32.gmra.mxu0 %v2699
    %v2828 = vpop.f32.mrf.mxu0
    %v2829 = vadd.f32 %v2671, %v2828
    %2830 = vmatmul.f32.gmra.mxu0 %v2702
    %v2831 = vpop.f32.mrf.mxu0
    %v2832 = vadd.f32 %v2671, %v2831
    %2833 = vmatmul.f32.gmra.mxu0 %v2705
    %v2834 = vpop.f32.mrf.mxu0
    %v2835 = vadd.f32 %v2671, %v2834
    %2836 = vmatmul.f32.gmra.mxu0 %v2708
    %v2837 = vpop.f32.mrf.mxu0
    %v2838 = vadd.f32 %v2671, %v2837
    %2839 = vmatmul.f32.gmra.mxu0 %v2711
    %v2840 = vpop.f32.mrf.mxu0
    %v2841 = vadd.f32 %v2671, %v2840
    %2842 = vmatmul.f32.gmra.mxu0 %v2714
    %v2843 = vpop.f32.mrf.mxu0
    %v2844 = vadd.f32 %v2671, %v2843
    %2845 = vmatmul.f32.gmra.mxu0 %v2717
    %v2846 = vpop.f32.mrf.mxu0
    %v2847 = vadd.f32 %v2671, %v2846
    %2848 = vmatmul.f32.gmra.mxu0 %v2720
    %v2849 = vpop.f32.mrf.mxu0
    %v2850 = vadd.f32 %v2671, %v2849
    %2851 = vdwg.mxu0
    %v2852 = vmul.f32 %v2740, 0.5
    %v2853 = vmul.f32 %v2805, 0.5
    %v2854 = vmul.f32 %v2743, 0.5
    %v2855 = vmul.f32 %v2808, 0.5
    %v2856 = vmul.f32 %v2746, 0.5
    %v2857 = vmul.f32 %v2811, 0.5
    %v2858 = vmul.f32 %v2749, 0.5
    %v2859 = vmul.f32 %v2814, 0.5
    %v2860 = vmul.f32 %v2752, 0.5
    %v2861 = vmul.f32 %v2817, 0.5
    %v2862 = vmul.f32 %v2755, 0.5
    %v2863 = vmul.f32 %v2820, 0.5
    %v2864 = vmul.f32 %v2758, 0.5
    %v2865 = vmul.f32 %v2823, 0.5
    %v2866 = vmul.f32 %v2761, 0.5
    %v2867 = vmul.f32 %v2826, 0.5
    %v2868 = vmul.f32 %v2764, 0.5
    %v2869 = vmul.f32 %v2829, 0.5
    %v2870 = vmul.f32 %v2767, 0.5
    %v2871 = vmul.f32 %v2832, 0.5
    %v2872 = vmul.f32 %v2770, 0.5
    %v2873 = vmul.f32 %v2835, 0.5
    %v2874 = vmul.f32 %v2773, 0.5
    %v2875 = vmul.f32 %v2838, 0.5
    %v2876 = vmul.f32 %v2776, 0.5
    %v2877 = vmul.f32 %v2841, 0.5
    %v2878 = vmul.f32 %v2779, 0.5
    %v2879 = vmul.f32 %v2844, 0.5
    %v2880 = vmul.f32 %v2782, 0.5
    %v2881 = vmul.f32 %v2847, 0.5
    %v2882 = vmul.f32 %v2785, 0.5
    %v2883 = vmul.f32 %v2850, 0.5
    %v2884 = vrcp.pop 1.4142135
    %v2885 = vmul.f32 1.4142135, %v2884
    %v2886 = vsub.f32 1.0, %v2885
    %v2887 = vmul.f32 %v2884, %v2886
    %v2888 = vadd.f32 %v2884, %v2887
    %vm2889 = vweird.f32 %v2884
    %v2890 = vsel %vm2889, %v2884, %v2888
    %v2891 = vmul.f32 %v2740, %v2890
    %v2892 = vmul.f32 %v2805, %v2890
    %v2893 = vmul.f32 %v2743, %v2890
    %v2894 = vmul.f32 %v2808, %v2890
    %v2895 = vmul.f32 %v2746, %v2890
    %v2896 = vmul.f32 %v2811, %v2890
    %v2897 = vmul.f32 %v2749, %v2890
    %v2898 = vmul.f32 %v2814, %v2890
    %v2899 = vmul.f32 %v2752, %v2890
    %v2900 = vmul.f32 %v2817, %v2890
    %v2901 = vmul.f32 %v2755, %v2890
    %v2902 = vmul.f32 %v2820, %v2890
    %v2903 = vmul.f32 %v2758, %v2890
    %v2904 = vmul.f32 %v2823, %v2890
    %v2905 = vmul.f32 %v2761, %v2890
    %v2906 = vmul.f32 %v2826, %v2890
    %v2907 = vmul.f32 %v2764, %v2890
    %v2908 = vmul.f32 %v2829, %v2890
    %v2909 = vmul.f32 %v2767, %v2890
    %v2910 = vmul.f32 %v2832, %v2890
    %v2911 = vmul.f32 %v2770, %v2890
    %v2912 = vmul.f32 %v2835, %v2890
    %v2913 = vmul.f32 %v2773, %v2890
    %v2914 = vmul.f32 %v2838, %v2890
    %v2915 = vmul.f32 %v2776, %v2890
    %v2916 = vmul.f32 %v2841, %v2890
    %v2917 = vmul.f32 %v2779, %v2890
    %v2918 = vmul.f32 %v2844, %v2890
    %v2919 = vmul.f32 %v2782, %v2890
    %v2920 = vmul.f32 %v2847, %v2890
    %v2921 = vmul.f32 %v2785, %v2890
    %v2922 = vmul.f32 %v2850, %v2890
    %v2923 = vand.u32 2147483647, %v2891
    %v2924 = vand.u32 2147483647, %v2892
    %v2925 = vand.u32 2147483647, %v2893
    %v2926 = vand.u32 2147483647, %v2894
    %v2927 = vand.u32 2147483647, %v2895
    %v2928 = vand.u32 2147483647, %v2896
    %v2929 = vand.u32 2147483647, %v2897
    %v2930 = vand.u32 2147483647, %v2898
    %v2931 = vand.u32 2147483647, %v2899
    %v2932 = vand.u32 2147483647, %v2900
    %v2933 = vand.u32 2147483647, %v2901
    %v2934 = vand.u32 2147483647, %v2902
    %v2935 = vand.u32 2147483647, %v2903
    %v2936 = vand.u32 2147483647, %v2904
    %v2937 = vand.u32 2147483647, %v2905
    %v2938 = vand.u32 2147483647, %v2906
    %v2939 = vand.u32 2147483647, %v2907
    %v2940 = vand.u32 2147483647, %v2908
    %v2941 = vand.u32 2147483647, %v2909
    %v2942 = vand.u32 2147483647, %v2910
    %v2943 = vand.u32 2147483647, %v2911
    %v2944 = vand.u32 2147483647, %v2912
    %v2945 = vand.u32 2147483647, %v2913
    %v2946 = vand.u32 2147483647, %v2914
    %v2947 = vand.u32 2147483647, %v2915
    %v2948 = vand.u32 2147483647, %v2916
    %v2949 = vand.u32 2147483647, %v2917
    %v2950 = vand.u32 2147483647, %v2918
    %v2951 = vand.u32 2147483647, %v2919
    %v2952 = vand.u32 2147483647, %v2920
    %v2953 = vand.u32 2147483647, %v2921
    %v2954 = vand.u32 2147483647, %v2922
    %v2955 = vmul.f32 %v2923, 0.3275911
    %v2956 = vmul.f32 %v2924, 0.3275911
    %v2957 = vmul.f32 %v2925, 0.3275911
    %v2958 = vmul.f32 %v2926, 0.3275911
    %v2959 = vmul.f32 %v2927, 0.3275911
    %v2960 = vmul.f32 %v2928, 0.3275911
    %v2961 = vmul.f32 %v2929, 0.3275911
    %v2962 = vmul.f32 %v2930, 0.3275911
    %v2963 = vmul.f32 %v2931, 0.3275911
    %v2964 = vmul.f32 %v2932, 0.3275911
    %v2965 = vmul.f32 %v2933, 0.3275911
    %v2966 = vmul.f32 %v2934, 0.3275911
    %v2967 = vmul.f32 %v2935, 0.3275911
    %v2968 = vmul.f32 %v2936, 0.3275911
    %v2969 = vmul.f32 %v2937, 0.3275911
    %v2970 = vmul.f32 %v2938, 0.3275911
    %v2971 = vmul.f32 %v2939, 0.3275911
    %v2972 = vmul.f32 %v2940, 0.3275911
    %v2973 = vmul.f32 %v2941, 0.3275911
    %v2974 = vmul.f32 %v2942, 0.3275911
    %v2975 = vmul.f32 %v2943, 0.3275911
    %v2976 = vmul.f32 %v2944, 0.3275911
    %v2977 = vmul.f32 %v2945, 0.3275911
    %v2978 = vmul.f32 %v2946, 0.3275911
    %v2979 = vmul.f32 %v2947, 0.3275911
    %v2980 = vmul.f32 %v2948, 0.3275911
    %v2981 = vmul.f32 %v2949, 0.3275911
    %v2982 = vmul.f32 %v2950, 0.3275911
    %v2983 = vmul.f32 %v2951, 0.3275911
    %v2984 = vmul.f32 %v2952, 0.3275911
    %v2985 = vmul.f32 %v2953, 0.3275911
    %v2986 = vmul.f32 %v2954, 0.3275911
    %v2987 = vadd.f32 %v2955, 1.0
    %v2988 = vadd.f32 %v2956, 1.0
    %v2989 = vadd.f32 %v2957, 1.0
    %v2990 = vadd.f32 %v2958, 1.0
    %v2991 = vadd.f32 %v2959, 1.0
    %v2992 = vadd.f32 %v2960, 1.0
    %v2993 = vadd.f32 %v2961, 1.0
    %v2994 = vadd.f32 %v2962, 1.0
    %v2995 = vadd.f32 %v2963, 1.0
    %v2996 = vadd.f32 %v2964, 1.0
    %v2997 = vadd.f32 %v2965, 1.0
    %v2998 = vadd.f32 %v2966, 1.0
    %v2999 = vadd.f32 %v2967, 1.0
    %v3000 = vadd.f32 %v2968, 1.0
    %v3001 = vadd.f32 %v2969, 1.0
    %v3002 = vadd.f32 %v2970, 1.0
    %v3003 = vadd.f32 %v2971, 1.0
    %v3004 = vadd.f32 %v2972, 1.0
    %v3005 = vadd.f32 %v2973, 1.0
    %v3006 = vadd.f32 %v2974, 1.0
    %v3007 = vadd.f32 %v2975, 1.0
    %v3008 = vadd.f32 %v2976, 1.0
    %v3009 = vadd.f32 %v2977, 1.0
    %v3010 = vadd.f32 %v2978, 1.0
    %v3011 = vadd.f32 %v2979, 1.0
    %v3012 = vadd.f32 %v2980, 1.0
    %v3013 = vadd.f32 %v2981, 1.0
    %v3014 = vadd.f32 %v2982, 1.0
    %v3015 = vadd.f32 %v2983, 1.0
    %v3016 = vadd.f32 %v2984, 1.0
    %v3017 = vadd.f32 %v2985, 1.0
    %v3018 = vadd.f32 %v2986, 1.0
    %v3019 = vrcp.pop %v2987
    %v3020 = vmul.f32 %v2987, %v3019
    %v3021 = vsub.f32 1.0, %v3020
    %v3022 = vmul.f32 %v3019, %v3021
    %v3023 = vadd.f32 %v3019, %v3022
    %vm3024 = vweird.f32 %v2987
    %vm3025 = vweird.f32 %v3019
    %vm3026 = vmor %vm3024, %vm3025
    %v3027 = vsel %vm3026, %v3019, %v3023
    %v3028 = vand.u32 2147483647, %v2987
    %vm3029 = vcmp.eq.f32.partialorder %v3028, 8.507059e+37
    %v3030 = vand.u32 %v2987, 2147483648
    %v3031 = vor.u32 1.1754944e-38, %v3030
    %v3032 = vsel %vm3029, %v3031, %v3027
    %v3033 = vmul.f32 1.0, %v3032
    %v3034 = vrcp.pop %v2988
    %v3035 = vmul.f32 %v2988, %v3034
    %v3036 = vsub.f32 1.0, %v3035
    %v3037 = vmul.f32 %v3034, %v3036
    %v3038 = vadd.f32 %v3034, %v3037
    %vm3039 = vweird.f32 %v2988
    %vm3040 = vweird.f32 %v3034
    %vm3041 = vmor %vm3039, %vm3040
    %v3042 = vsel %vm3041, %v3034, %v3038
    %v3043 = vand.u32 2147483647, %v2988
    %vm3044 = vcmp.eq.f32.partialorder %v3043, 8.507059e+37
    %v3045 = vand.u32 %v2988, 2147483648
    %v3046 = vor.u32 1.1754944e-38, %v3045
    %v3047 = vsel %vm3044, %v3046, %v3042
    %v3048 = vmul.f32 1.0, %v3047
    %v3049 = vrcp.pop %v2989
    %v3050 = vmul.f32 %v2989, %v3049
    %v3051 = vsub.f32 1.0, %v3050
    %v3052 = vmul.f32 %v3049, %v3051
    %v3053 = vadd.f32 %v3049, %v3052
    %vm3054 = vweird.f32 %v2989
    %vm3055 = vweird.f32 %v3049
    %vm3056 = vmor %vm3054, %vm3055
    %v3057 = vsel %vm3056, %v3049, %v3053
    %v3058 = vand.u32 2147483647, %v2989
    %vm3059 = vcmp.eq.f32.partialorder %v3058, 8.507059e+37
    %v3060 = vand.u32 %v2989, 2147483648
    %v3061 = vor.u32 1.1754944e-38, %v3060
    %v3062 = vsel %vm3059, %v3061, %v3057
    %v3063 = vmul.f32 1.0, %v3062
    %v3064 = vrcp.pop %v2990
    %v3065 = vmul.f32 %v2990, %v3064
    %v3066 = vsub.f32 1.0, %v3065
    %v3067 = vmul.f32 %v3064, %v3066
    %v3068 = vadd.f32 %v3064, %v3067
    %vm3069 = vweird.f32 %v2990
    %vm3070 = vweird.f32 %v3064
    %vm3071 = vmor %vm3069, %vm3070
    %v3072 = vsel %vm3071, %v3064, %v3068
    %v3073 = vand.u32 2147483647, %v2990
    %vm3074 = vcmp.eq.f32.partialorder %v3073, 8.507059e+37
    %v3075 = vand.u32 %v2990, 2147483648
    %v3076 = vor.u32 1.1754944e-38, %v3075
    %v3077 = vsel %vm3074, %v3076, %v3072
    %v3078 = vmul.f32 1.0, %v3077
    %v3079 = vrcp.pop %v2991
    %v3080 = vmul.f32 %v2991, %v3079
    %v3081 = vsub.f32 1.0, %v3080
    %v3082 = vmul.f32 %v3079, %v3081
    %v3083 = vadd.f32 %v3079, %v3082
    %vm3084 = vweird.f32 %v2991
    %vm3085 = vweird.f32 %v3079
    %vm3086 = vmor %vm3084, %vm3085
    %v3087 = vsel %vm3086, %v3079, %v3083
    %v3088 = vand.u32 2147483647, %v2991
    %vm3089 = vcmp.eq.f32.partialorder %v3088, 8.507059e+37
    %v3090 = vand.u32 %v2991, 2147483648
    %v3091 = vor.u32 1.1754944e-38, %v3090
    %v3092 = vsel %vm3089, %v3091, %v3087
    %v3093 = vmul.f32 1.0, %v3092
    %v3094 = vrcp.pop %v2992
    %v3095 = vmul.f32 %v2992, %v3094
    %v3096 = vsub.f32 1.0, %v3095
    %v3097 = vmul.f32 %v3094, %v3096
    %v3098 = vadd.f32 %v3094, %v3097
    %vm3099 = vweird.f32 %v2992
    %vm3100 = vweird.f32 %v3094
    %vm3101 = vmor %vm3099, %vm3100
    %v3102 = vsel %vm3101, %v3094, %v3098
    %v3103 = vand.u32 2147483647, %v2992
    %vm3104 = vcmp.eq.f32.partialorder %v3103, 8.507059e+37
    %v3105 = vand.u32 %v2992, 2147483648
    %v3106 = vor.u32 1.1754944e-38, %v3105
    %v3107 = vsel %vm3104, %v3106, %v3102
    %v3108 = vmul.f32 1.0, %v3107
    %v3109 = vrcp.pop %v2993
    %v3110 = vmul.f32 %v2993, %v3109
    %v3111 = vsub.f32 1.0, %v3110
    %v3112 = vmul.f32 %v3109, %v3111
    %v3113 = vadd.f32 %v3109, %v3112
    %vm3114 = vweird.f32 %v2993
    %vm3115 = vweird.f32 %v3109
    %vm3116 = vmor %vm3114, %vm3115
    %v3117 = vsel %vm3116, %v3109, %v3113
    %v3118 = vand.u32 2147483647, %v2993
    %vm3119 = vcmp.eq.f32.partialorder %v3118, 8.507059e+37
    %v3120 = vand.u32 %v2993, 2147483648
    %v3121 = vor.u32 1.1754944e-38, %v3120
    %v3122 = vsel %vm3119, %v3121, %v3117
    %v3123 = vmul.f32 1.0, %v3122
    %v3124 = vrcp.pop %v2994
    %v3125 = vmul.f32 %v2994, %v3124
    %v3126 = vsub.f32 1.0, %v3125
    %v3127 = vmul.f32 %v3124, %v3126
    %v3128 = vadd.f32 %v3124, %v3127
    %vm3129 = vweird.f32 %v2994
    %vm3130 = vweird.f32 %v3124
    %vm3131 = vmor %vm3129, %vm3130
    %v3132 = vsel %vm3131, %v3124, %v3128
    %v3133 = vand.u32 2147483647, %v2994
    %vm3134 = vcmp.eq.f32.partialorder %v3133, 8.507059e+37
    %v3135 = vand.u32 %v2994, 2147483648
    %v3136 = vor.u32 1.1754944e-38, %v3135
    %v3137 = vsel %vm3134, %v3136, %v3132
    %v3138 = vmul.f32 1.0, %v3137
    %v3139 = vrcp.pop %v2995
    %v3140 = vmul.f32 %v2995, %v3139
    %v3141 = vsub.f32 1.0, %v3140
    %v3142 = vmul.f32 %v3139, %v3141
    %v3143 = vadd.f32 %v3139, %v3142
    %vm3144 = vweird.f32 %v2995
    %vm3145 = vweird.f32 %v3139
    %vm3146 = vmor %vm3144, %vm3145
    %v3147 = vsel %vm3146, %v3139, %v3143
    %v3148 = vand.u32 2147483647, %v2995
    %vm3149 = vcmp.eq.f32.partialorder %v3148, 8.507059e+37
    %v3150 = vand.u32 %v2995, 2147483648
    %v3151 = vor.u32 1.1754944e-38, %v3150
    %v3152 = vsel %vm3149, %v3151, %v3147
    %v3153 = vmul.f32 1.0, %v3152
    %v3154 = vrcp.pop %v2996
    %v3155 = vmul.f32 %v2996, %v3154
    %v3156 = vsub.f32 1.0, %v3155
    %v3157 = vmul.f32 %v3154, %v3156
    %v3158 = vadd.f32 %v3154, %v3157
    %vm3159 = vweird.f32 %v2996
    %vm3160 = vweird.f32 %v3154
    %vm3161 = vmor %vm3159, %vm3160
    %v3162 = vsel %vm3161, %v3154, %v3158
    %v3163 = vand.u32 2147483647, %v2996
    %vm3164 = vcmp.eq.f32.partialorder %v3163, 8.507059e+37
    %v3165 = vand.u32 %v2996, 2147483648
    %v3166 = vor.u32 1.1754944e-38, %v3165
    %v3167 = vsel %vm3164, %v3166, %v3162
    %v3168 = vmul.f32 1.0, %v3167
    %v3169 = vrcp.pop %v2997
    %v3170 = vmul.f32 %v2997, %v3169
    %v3171 = vsub.f32 1.0, %v3170
    %v3172 = vmul.f32 %v3169, %v3171
    %v3173 = vadd.f32 %v3169, %v3172
    %vm3174 = vweird.f32 %v2997
    %vm3175 = vweird.f32 %v3169
    %vm3176 = vmor %vm3174, %vm3175
    %v3177 = vsel %vm3176, %v3169, %v3173
    %v3178 = vand.u32 2147483647, %v2997
    %vm3179 = vcmp.eq.f32.partialorder %v3178, 8.507059e+37
    %v3180 = vand.u32 %v2997, 2147483648
    %v3181 = vor.u32 1.1754944e-38, %v3180
    %v3182 = vsel %vm3179, %v3181, %v3177
    %v3183 = vmul.f32 1.0, %v3182
    %v3184 = vrcp.pop %v2998
    %v3185 = vmul.f32 %v2998, %v3184
    %v3186 = vsub.f32 1.0, %v3185
    %v3187 = vmul.f32 %v3184, %v3186
    %v3188 = vadd.f32 %v3184, %v3187
    %vm3189 = vweird.f32 %v2998
    %vm3190 = vweird.f32 %v3184
    %vm3191 = vmor %vm3189, %vm3190
    %v3192 = vsel %vm3191, %v3184, %v3188
    %v3193 = vand.u32 2147483647, %v2998
    %vm3194 = vcmp.eq.f32.partialorder %v3193, 8.507059e+37
    %v3195 = vand.u32 %v2998, 2147483648
    %v3196 = vor.u32 1.1754944e-38, %v3195
    %v3197 = vsel %vm3194, %v3196, %v3192
    %v3198 = vmul.f32 1.0, %v3197
    %v3199 = vrcp.pop %v2999
    %v3200 = vmul.f32 %v2999, %v3199
    %v3201 = vsub.f32 1.0, %v3200
    %v3202 = vmul.f32 %v3199, %v3201
    %v3203 = vadd.f32 %v3199, %v3202
    %vm3204 = vweird.f32 %v2999
    %vm3205 = vweird.f32 %v3199
    %vm3206 = vmor %vm3204, %vm3205
    %v3207 = vsel %vm3206, %v3199, %v3203
    %v3208 = vand.u32 2147483647, %v2999
    %vm3209 = vcmp.eq.f32.partialorder %v3208, 8.507059e+37
    %v3210 = vand.u32 %v2999, 2147483648
    %v3211 = vor.u32 1.1754944e-38, %v3210
    %v3212 = vsel %vm3209, %v3211, %v3207
    %v3213 = vmul.f32 1.0, %v3212
    %v3214 = vrcp.pop %v3000
    %v3215 = vmul.f32 %v3000, %v3214
    %v3216 = vsub.f32 1.0, %v3215
    %v3217 = vmul.f32 %v3214, %v3216
    %v3218 = vadd.f32 %v3214, %v3217
    %vm3219 = vweird.f32 %v3000
    %vm3220 = vweird.f32 %v3214
    %vm3221 = vmor %vm3219, %vm3220
    %v3222 = vsel %vm3221, %v3214, %v3218
    %v3223 = vand.u32 2147483647, %v3000
    %vm3224 = vcmp.eq.f32.partialorder %v3223, 8.507059e+37
    %v3225 = vand.u32 %v3000, 2147483648
    %v3226 = vor.u32 1.1754944e-38, %v3225
    %v3227 = vsel %vm3224, %v3226, %v3222
    %v3228 = vmul.f32 1.0, %v3227
    %v3229 = vrcp.pop %v3001
    %v3230 = vmul.f32 %v3001, %v3229
    %v3231 = vsub.f32 1.0, %v3230
    %v3232 = vmul.f32 %v3229, %v3231
    %v3233 = vadd.f32 %v3229, %v3232
    %vm3234 = vweird.f32 %v3001
    %vm3235 = vweird.f32 %v3229
    %vm3236 = vmor %vm3234, %vm3235
    %v3237 = vsel %vm3236, %v3229, %v3233
    %v3238 = vand.u32 2147483647, %v3001
    %vm3239 = vcmp.eq.f32.partialorder %v3238, 8.507059e+37
    %v3240 = vand.u32 %v3001, 2147483648
    %v3241 = vor.u32 1.1754944e-38, %v3240
    %v3242 = vsel %vm3239, %v3241, %v3237
    %v3243 = vmul.f32 1.0, %v3242
    %v3244 = vrcp.pop %v3002
    %v3245 = vmul.f32 %v3002, %v3244
    %v3246 = vsub.f32 1.0, %v3245
    %v3247 = vmul.f32 %v3244, %v3246
    %v3248 = vadd.f32 %v3244, %v3247
    %vm3249 = vweird.f32 %v3002
    %vm3250 = vweird.f32 %v3244
    %vm3251 = vmor %vm3249, %vm3250
    %v3252 = vsel %vm3251, %v3244, %v3248
    %v3253 = vand.u32 2147483647, %v3002
    %vm3254 = vcmp.eq.f32.partialorder %v3253, 8.507059e+37
    %v3255 = vand.u32 %v3002, 2147483648
    %v3256 = vor.u32 1.1754944e-38, %v3255
    %v3257 = vsel %vm3254, %v3256, %v3252
    %v3258 = vmul.f32 1.0, %v3257
    %v3259 = vrcp.pop %v3003
    %v3260 = vmul.f32 %v3003, %v3259
    %v3261 = vsub.f32 1.0, %v3260
    %v3262 = vmul.f32 %v3259, %v3261
    %v3263 = vadd.f32 %v3259, %v3262
    %vm3264 = vweird.f32 %v3003
    %vm3265 = vweird.f32 %v3259
    %vm3266 = vmor %vm3264, %vm3265
    %v3267 = vsel %vm3266, %v3259, %v3263
    %v3268 = vand.u32 2147483647, %v3003
    %vm3269 = vcmp.eq.f32.partialorder %v3268, 8.507059e+37
    %v3270 = vand.u32 %v3003, 2147483648
    %v3271 = vor.u32 1.1754944e-38, %v3270
    %v3272 = vsel %vm3269, %v3271, %v3267
    %v3273 = vmul.f32 1.0, %v3272
    %v3274 = vrcp.pop %v3004
    %v3275 = vmul.f32 %v3004, %v3274
    %v3276 = vsub.f32 1.0, %v3275
    %v3277 = vmul.f32 %v3274, %v3276
    %v3278 = vadd.f32 %v3274, %v3277
    %vm3279 = vweird.f32 %v3004
    %vm3280 = vweird.f32 %v3274
    %vm3281 = vmor %vm3279, %vm3280
    %v3282 = vsel %vm3281, %v3274, %v3278
    %v3283 = vand.u32 2147483647, %v3004
    %vm3284 = vcmp.eq.f32.partialorder %v3283, 8.507059e+37
    %v3285 = vand.u32 %v3004, 2147483648
    %v3286 = vor.u32 1.1754944e-38, %v3285
    %v3287 = vsel %vm3284, %v3286, %v3282
    %v3288 = vmul.f32 1.0, %v3287
    %v3289 = vrcp.pop %v3005
    %v3290 = vmul.f32 %v3005, %v3289
    %v3291 = vsub.f32 1.0, %v3290
    %v3292 = vmul.f32 %v3289, %v3291
    %v3293 = vadd.f32 %v3289, %v3292
    %vm3294 = vweird.f32 %v3005
    %vm3295 = vweird.f32 %v3289
    %vm3296 = vmor %vm3294, %vm3295
    %v3297 = vsel %vm3296, %v3289, %v3293
    %v3298 = vand.u32 2147483647, %v3005
    %vm3299 = vcmp.eq.f32.partialorder %v3298, 8.507059e+37
    %v3300 = vand.u32 %v3005, 2147483648
    %v3301 = vor.u32 1.1754944e-38, %v3300
    %v3302 = vsel %vm3299, %v3301, %v3297
    %v3303 = vmul.f32 1.0, %v3302
    %v3304 = vrcp.pop %v3006
    %v3305 = vmul.f32 %v3006, %v3304
    %v3306 = vsub.f32 1.0, %v3305
    %v3307 = vmul.f32 %v3304, %v3306
    %v3308 = vadd.f32 %v3304, %v3307
    %vm3309 = vweird.f32 %v3006
    %vm3310 = vweird.f32 %v3304
    %vm3311 = vmor %vm3309, %vm3310
    %v3312 = vsel %vm3311, %v3304, %v3308
    %v3313 = vand.u32 2147483647, %v3006
    %vm3314 = vcmp.eq.f32.partialorder %v3313, 8.507059e+37
    %v3315 = vand.u32 %v3006, 2147483648
    %v3316 = vor.u32 1.1754944e-38, %v3315
    %v3317 = vsel %vm3314, %v3316, %v3312
    %v3318 = vmul.f32 1.0, %v3317
    %v3319 = vrcp.pop %v3007
    %v3320 = vmul.f32 %v3007, %v3319
    %v3321 = vsub.f32 1.0, %v3320
    %v3322 = vmul.f32 %v3319, %v3321
    %v3323 = vadd.f32 %v3319, %v3322
    %vm3324 = vweird.f32 %v3007
    %vm3325 = vweird.f32 %v3319
    %vm3326 = vmor %vm3324, %vm3325
    %v3327 = vsel %vm3326, %v3319, %v3323
    %v3328 = vand.u32 2147483647, %v3007
    %vm3329 = vcmp.eq.f32.partialorder %v3328, 8.507059e+37
    %v3330 = vand.u32 %v3007, 2147483648
    %v3331 = vor.u32 1.1754944e-38, %v3330
    %v3332 = vsel %vm3329, %v3331, %v3327
    %v3333 = vmul.f32 1.0, %v3332
    %v3334 = vrcp.pop %v3008
    %v3335 = vmul.f32 %v3008, %v3334
    %v3336 = vsub.f32 1.0, %v3335
    %v3337 = vmul.f32 %v3334, %v3336
    %v3338 = vadd.f32 %v3334, %v3337
    %vm3339 = vweird.f32 %v3008
    %vm3340 = vweird.f32 %v3334
    %vm3341 = vmor %vm3339, %vm3340
    %v3342 = vsel %vm3341, %v3334, %v3338
    %v3343 = vand.u32 2147483647, %v3008
    %vm3344 = vcmp.eq.f32.partialorder %v3343, 8.507059e+37
    %v3345 = vand.u32 %v3008, 2147483648
    %v3346 = vor.u32 1.1754944e-38, %v3345
    %v3347 = vsel %vm3344, %v3346, %v3342
    %v3348 = vmul.f32 1.0, %v3347
    %v3349 = vrcp.pop %v3009
    %v3350 = vmul.f32 %v3009, %v3349
    %v3351 = vsub.f32 1.0, %v3350
    %v3352 = vmul.f32 %v3349, %v3351
    %v3353 = vadd.f32 %v3349, %v3352
    %vm3354 = vweird.f32 %v3009
    %vm3355 = vweird.f32 %v3349
    %vm3356 = vmor %vm3354, %vm3355
    %v3357 = vsel %vm3356, %v3349, %v3353
    %v3358 = vand.u32 2147483647, %v3009
    %vm3359 = vcmp.eq.f32.partialorder %v3358, 8.507059e+37
    %v3360 = vand.u32 %v3009, 2147483648
    %v3361 = vor.u32 1.1754944e-38, %v3360
    %v3362 = vsel %vm3359, %v3361, %v3357
    %v3363 = vmul.f32 1.0, %v3362
    %v3364 = vrcp.pop %v3010
    %v3365 = vmul.f32 %v3010, %v3364
    %v3366 = vsub.f32 1.0, %v3365
    %v3367 = vmul.f32 %v3364, %v3366
    %v3368 = vadd.f32 %v3364, %v3367
    %vm3369 = vweird.f32 %v3010
    %vm3370 = vweird.f32 %v3364
    %vm3371 = vmor %vm3369, %vm3370
    %v3372 = vsel %vm3371, %v3364, %v3368
    %v3373 = vand.u32 2147483647, %v3010
    %vm3374 = vcmp.eq.f32.partialorder %v3373, 8.507059e+37
    %v3375 = vand.u32 %v3010, 2147483648
    %v3376 = vor.u32 1.1754944e-38, %v3375
    %v3377 = vsel %vm3374, %v3376, %v3372
    %v3378 = vmul.f32 1.0, %v3377
    %v3379 = vrcp.pop %v3011
    %v3380 = vmul.f32 %v3011, %v3379
    %v3381 = vsub.f32 1.0, %v3380
    %v3382 = vmul.f32 %v3379, %v3381
    %v3383 = vadd.f32 %v3379, %v3382
    %vm3384 = vweird.f32 %v3011
    %vm3385 = vweird.f32 %v3379
    %vm3386 = vmor %vm3384, %vm3385
    %v3387 = vsel %vm3386, %v3379, %v3383
    %v3388 = vand.u32 2147483647, %v3011
    %vm3389 = vcmp.eq.f32.partialorder %v3388, 8.507059e+37
    %v3390 = vand.u32 %v3011, 2147483648
    %v3391 = vor.u32 1.1754944e-38, %v3390
    %v3392 = vsel %vm3389, %v3391, %v3387
    %v3393 = vmul.f32 1.0, %v3392
    %v3394 = vrcp.pop %v3012
    %v3395 = vmul.f32 %v3012, %v3394
    %v3396 = vsub.f32 1.0, %v3395
    %v3397 = vmul.f32 %v3394, %v3396
    %v3398 = vadd.f32 %v3394, %v3397
    %vm3399 = vweird.f32 %v3012
    %vm3400 = vweird.f32 %v3394
    %vm3401 = vmor %vm3399, %vm3400
    %v3402 = vsel %vm3401, %v3394, %v3398
    %v3403 = vand.u32 2147483647, %v3012
    %vm3404 = vcmp.eq.f32.partialorder %v3403, 8.507059e+37
    %v3405 = vand.u32 %v3012, 2147483648
    %v3406 = vor.u32 1.1754944e-38, %v3405
    %v3407 = vsel %vm3404, %v3406, %v3402
    %v3408 = vmul.f32 1.0, %v3407
    %v3409 = vrcp.pop %v3013
    %v3410 = vmul.f32 %v3013, %v3409
    %v3411 = vsub.f32 1.0, %v3410
    %v3412 = vmul.f32 %v3409, %v3411
    %v3413 = vadd.f32 %v3409, %v3412
    %vm3414 = vweird.f32 %v3013
    %vm3415 = vweird.f32 %v3409
    %vm3416 = vmor %vm3414, %vm3415
    %v3417 = vsel %vm3416, %v3409, %v3413
    %v3418 = vand.u32 2147483647, %v3013
    %vm3419 = vcmp.eq.f32.partialorder %v3418, 8.507059e+37
    %v3420 = vand.u32 %v3013, 2147483648
    %v3421 = vor.u32 1.1754944e-38, %v3420
    %v3422 = vsel %vm3419, %v3421, %v3417
    %v3423 = vmul.f32 1.0, %v3422
    %v3424 = vrcp.pop %v3014
    %v3425 = vmul.f32 %v3014, %v3424
    %v3426 = vsub.f32 1.0, %v3425
    %v3427 = vmul.f32 %v3424, %v3426
    %v3428 = vadd.f32 %v3424, %v3427
    %vm3429 = vweird.f32 %v3014
    %vm3430 = vweird.f32 %v3424
    %vm3431 = vmor %vm3429, %vm3430
    %v3432 = vsel %vm3431, %v3424, %v3428
    %v3433 = vand.u32 2147483647, %v3014
    %vm3434 = vcmp.eq.f32.partialorder %v3433, 8.507059e+37
    %v3435 = vand.u32 %v3014, 2147483648
    %v3436 = vor.u32 1.1754944e-38, %v3435
    %v3437 = vsel %vm3434, %v3436, %v3432
    %v3438 = vmul.f32 1.0, %v3437
    %v3439 = vrcp.pop %v3015
    %v3440 = vmul.f32 %v3015, %v3439
    %v3441 = vsub.f32 1.0, %v3440
    %v3442 = vmul.f32 %v3439, %v3441
    %v3443 = vadd.f32 %v3439, %v3442
    %vm3444 = vweird.f32 %v3015
    %vm3445 = vweird.f32 %v3439
    %vm3446 = vmor %vm3444, %vm3445
    %v3447 = vsel %vm3446, %v3439, %v3443
    %v3448 = vand.u32 2147483647, %v3015
    %vm3449 = vcmp.eq.f32.partialorder %v3448, 8.507059e+37
    %v3450 = vand.u32 %v3015, 2147483648
    %v3451 = vor.u32 1.1754944e-38, %v3450
    %v3452 = vsel %vm3449, %v3451, %v3447
    %v3453 = vmul.f32 1.0, %v3452
    %v3454 = vrcp.pop %v3016
    %v3455 = vmul.f32 %v3016, %v3454
    %v3456 = vsub.f32 1.0, %v3455
    %v3457 = vmul.f32 %v3454, %v3456
    %v3458 = vadd.f32 %v3454, %v3457
    %vm3459 = vweird.f32 %v3016
    %vm3460 = vweird.f32 %v3454
    %vm3461 = vmor %vm3459, %vm3460
    %v3462 = vsel %vm3461, %v3454, %v3458
    %v3463 = vand.u32 2147483647, %v3016
    %vm3464 = vcmp.eq.f32.partialorder %v3463, 8.507059e+37
    %v3465 = vand.u32 %v3016, 2147483648
    %v3466 = vor.u32 1.1754944e-38, %v3465
    %v3467 = vsel %vm3464, %v3466, %v3462
    %v3468 = vmul.f32 1.0, %v3467
    %v3469 = vrcp.pop %v3017
    %v3470 = vmul.f32 %v3017, %v3469
    %v3471 = vsub.f32 1.0, %v3470
    %v3472 = vmul.f32 %v3469, %v3471
    %v3473 = vadd.f32 %v3469, %v3472
    %vm3474 = vweird.f32 %v3017
    %vm3475 = vweird.f32 %v3469
    %vm3476 = vmor %vm3474, %vm3475
    %v3477 = vsel %vm3476, %v3469, %v3473
    %v3478 = vand.u32 2147483647, %v3017
    %vm3479 = vcmp.eq.f32.partialorder %v3478, 8.507059e+37
    %v3480 = vand.u32 %v3017, 2147483648
    %v3481 = vor.u32 1.1754944e-38, %v3480
    %v3482 = vsel %vm3479, %v3481, %v3477
    %v3483 = vmul.f32 1.0, %v3482
    %v3484 = vrcp.pop %v3018
    %v3485 = vmul.f32 %v3018, %v3484
    %v3486 = vsub.f32 1.0, %v3485
    %v3487 = vmul.f32 %v3484, %v3486
    %v3488 = vadd.f32 %v3484, %v3487
    %vm3489 = vweird.f32 %v3018
    %vm3490 = vweird.f32 %v3484
    %vm3491 = vmor %vm3489, %vm3490
    %v3492 = vsel %vm3491, %v3484, %v3488
    %v3493 = vand.u32 2147483647, %v3018
    %vm3494 = vcmp.eq.f32.partialorder %v3493, 8.507059e+37
    %v3495 = vand.u32 %v3018, 2147483648
    %v3496 = vor.u32 1.1754944e-38, %v3495
    %v3497 = vsel %vm3494, %v3496, %v3492
    %v3498 = vmul.f32 1.0, %v3497
    %v3499 = vmul.f32 %v3033, 1.0614054
    %v3500 = vmul.f32 %v3048, 1.0614054
    %v3501 = vmul.f32 %v3063, 1.0614054
    %v3502 = vmul.f32 %v3078, 1.0614054
    %v3503 = vmul.f32 %v3093, 1.0614054
    %v3504 = vmul.f32 %v3108, 1.0614054
    %v3505 = vmul.f32 %v3123, 1.0614054
    %v3506 = vmul.f32 %v3138, 1.0614054
    %v3507 = vmul.f32 %v3153, 1.0614054
    %v3508 = vmul.f32 %v3168, 1.0614054
    %v3509 = vmul.f32 %v3183, 1.0614054
    %v3510 = vmul.f32 %v3198, 1.0614054
    %v3511 = vmul.f32 %v3213, 1.0614054
    %v3512 = vmul.f32 %v3228, 1.0614054
    %v3513 = vmul.f32 %v3243, 1.0614054
    %v3514 = vmul.f32 %v3258, 1.0614054
    %v3515 = vmul.f32 %v3273, 1.0614054
    %v3516 = vmul.f32 %v3288, 1.0614054
    %v3517 = vmul.f32 %v3303, 1.0614054
    %v3518 = vmul.f32 %v3318, 1.0614054
    %v3519 = vmul.f32 %v3333, 1.0614054
    %v3520 = vmul.f32 %v3348, 1.0614054
    %v3521 = vmul.f32 %v3363, 1.0614054
    %v3522 = vmul.f32 %v3378, 1.0614054
    %v3523 = vmul.f32 %v3393, 1.0614054
    %v3524 = vmul.f32 %v3408, 1.0614054
    %v3525 = vmul.f32 %v3423, 1.0614054
    %v3526 = vmul.f32 %v3438, 1.0614054
    %v3527 = vmul.f32 %v3453, 1.0614054
    %v3528 = vmul.f32 %v3468, 1.0614054
    %v3529 = vmul.f32 %v3483, 1.0614054
    %v3530 = vmul.f32 %v3498, 1.0614054
    %v3531 = vadd.f32 %v3499, -1.4531521
    %v3532 = vadd.f32 %v3500, -1.4531521
    %v3533 = vadd.f32 %v3501, -1.4531521
    %v3534 = vadd.f32 %v3502, -1.4531521
    %v3535 = vadd.f32 %v3503, -1.4531521
    %v3536 = vadd.f32 %v3504, -1.4531521
    %v3537 = vadd.f32 %v3505, -1.4531521
    %v3538 = vadd.f32 %v3506, -1.4531521
    %v3539 = vadd.f32 %v3507, -1.4531521
    %v3540 = vadd.f32 %v3508, -1.4531521
    %v3541 = vadd.f32 %v3509, -1.4531521
    %v3542 = vadd.f32 %v3510, -1.4531521
    %v3543 = vadd.f32 %v3511, -1.4531521
    %v3544 = vadd.f32 %v3512, -1.4531521
    %v3545 = vadd.f32 %v3513, -1.4531521
    %v3546 = vadd.f32 %v3514, -1.4531521
    %v3547 = vadd.f32 %v3515, -1.4531521
    %v3548 = vadd.f32 %v3516, -1.4531521
    %v3549 = vadd.f32 %v3517, -1.4531521
    %v3550 = vadd.f32 %v3518, -1.4531521
    %v3551 = vadd.f32 %v3519, -1.4531521
    %v3552 = vadd.f32 %v3520, -1.4531521
    %v3553 = vadd.f32 %v3521, -1.4531521
    %v3554 = vadd.f32 %v3522, -1.4531521
    %v3555 = vadd.f32 %v3523, -1.4531521
    %v3556 = vadd.f32 %v3524, -1.4531521
    %v3557 = vadd.f32 %v3525, -1.4531521
    %v3558 = vadd.f32 %v3526, -1.4531521
    %v3559 = vadd.f32 %v3527, -1.4531521
    %v3560 = vadd.f32 %v3528, -1.4531521
    %v3561 = vadd.f32 %v3529, -1.4531521
    %v3562 = vadd.f32 %v3530, -1.4531521
    %v3563 = vmul.f32 %v3531, %v3033
    %v3564 = vmul.f32 %v3532, %v3048
    %v3565 = vmul.f32 %v3533, %v3063
    %v3566 = vmul.f32 %v3534, %v3078
    %v3567 = vmul.f32 %v3535, %v3093
    %v3568 = vmul.f32 %v3536, %v3108
    %v3569 = vmul.f32 %v3537, %v3123
    %v3570 = vmul.f32 %v3538, %v3138
    %v3571 = vmul.f32 %v3539, %v3153
    %v3572 = vmul.f32 %v3540, %v3168
    %v3573 = vmul.f32 %v3541, %v3183
    %v3574 = vmul.f32 %v3542, %v3198
    %v3575 = vmul.f32 %v3543, %v3213
    %v3576 = vmul.f32 %v3544, %v3228
    %v3577 = vmul.f32 %v3545, %v3243
    %v3578 = vmul.f32 %v3546, %v3258
    %v3579 = vmul.f32 %v3547, %v3273
    %v3580 = vmul.f32 %v3548, %v3288
    %v3581 = vmul.f32 %v3549, %v3303
    %v3582 = vmul.f32 %v3550, %v3318
    %v3583 = vmul.f32 %v3551, %v3333
    %v3584 = vmul.f32 %v3552, %v3348
    %v3585 = vmul.f32 %v3553, %v3363
    %v3586 = vmul.f32 %v3554, %v3378
    %v3587 = vmul.f32 %v3555, %v3393
    %v3588 = vmul.f32 %v3556, %v3408
    %v3589 = vmul.f32 %v3557, %v3423
    %v3590 = vmul.f32 %v3558, %v3438
    %v3591 = vmul.f32 %v3559, %v3453
    %v3592 = vmul.f32 %v3560, %v3468
    %v3593 = vmul.f32 %v3561, %v3483
    %v3594 = vmul.f32 %v3562, %v3498
    %v3595 = vadd.f32 %v3563, 1.4214138
    %v3596 = vadd.f32 %v3564, 1.4214138
    %v3597 = vadd.f32 %v3565, 1.4214138
    %v3598 = vadd.f32 %v3566, 1.4214138
    %v3599 = vadd.f32 %v3567, 1.4214138
    %v3600 = vadd.f32 %v3568, 1.4214138
    %v3601 = vadd.f32 %v3569, 1.4214138
    %v3602 = vadd.f32 %v3570, 1.4214138
    %v3603 = vadd.f32 %v3571, 1.4214138
    %v3604 = vadd.f32 %v3572, 1.4214138
    %v3605 = vadd.f32 %v3573, 1.4214138
    %v3606 = vadd.f32 %v3574, 1.4214138
    %v3607 = vadd.f32 %v3575, 1.4214138
    %v3608 = vadd.f32 %v3576, 1.4214138
    %v3609 = vadd.f32 %v3577, 1.4214138
    %v3610 = vadd.f32 %v3578, 1.4214138
    %v3611 = vadd.f32 %v3579, 1.4214138
    %v3612 = vadd.f32 %v3580, 1.4214138
    %v3613 = vadd.f32 %v3581, 1.4214138
    %v3614 = vadd.f32 %v3582, 1.4214138
    %v3615 = vadd.f32 %v3583, 1.4214138
    %v3616 = vadd.f32 %v3584, 1.4214138
    %v3617 = vadd.f32 %v3585, 1.4214138
    %v3618 = vadd.f32 %v3586, 1.4214138
    %v3619 = vadd.f32 %v3587, 1.4214138
    %v3620 = vadd.f32 %v3588, 1.4214138
    %v3621 = vadd.f32 %v3589, 1.4214138
    %v3622 = vadd.f32 %v3590, 1.4214138
    %v3623 = vadd.f32 %v3591, 1.4214138
    %v3624 = vadd.f32 %v3592, 1.4214138
    %v3625 = vadd.f32 %v3593, 1.4214138
    %v3626 = vadd.f32 %v3594, 1.4214138
    %v3627 = vmul.f32 %v3595, %v3033
    %v3628 = vmul.f32 %v3596, %v3048
    %v3629 = vmul.f32 %v3597, %v3063
    %v3630 = vmul.f32 %v3598, %v3078
    %v3631 = vmul.f32 %v3599, %v3093
    %v3632 = vmul.f32 %v3600, %v3108
    %v3633 = vmul.f32 %v3601, %v3123
    %v3634 = vmul.f32 %v3602, %v3138
    %v3635 = vmul.f32 %v3603, %v3153
    %v3636 = vmul.f32 %v3604, %v3168
    %v3637 = vmul.f32 %v3605, %v3183
    %v3638 = vmul.f32 %v3606, %v3198
    %v3639 = vmul.f32 %v3607, %v3213
    %v3640 = vmul.f32 %v3608, %v3228
    %v3641 = vmul.f32 %v3609, %v3243
    %v3642 = vmul.f32 %v3610, %v3258
    %v3643 = vmul.f32 %v3611, %v3273
    %v3644 = vmul.f32 %v3612, %v3288
    %v3645 = vmul.f32 %v3613, %v3303
    %v3646 = vmul.f32 %v3614, %v3318
    %v3647 = vmul.f32 %v3615, %v3333
    %v3648 = vmul.f32 %v3616, %v3348
    %v3649 = vmul.f32 %v3617, %v3363
    %v3650 = vmul.f32 %v3618, %v3378
    %v3651 = vmul.f32 %v3619, %v3393
    %v3652 = vmul.f32 %v3620, %v3408
    %v3653 = vmul.f32 %v3621, %v3423
    %v3654 = vmul.f32 %v3622, %v3438
    %v3655 = vmul.f32 %v3623, %v3453
    %v3656 = vmul.f32 %v3624, %v3468
    %v3657 = vmul.f32 %v3625, %v3483
    %v3658 = vmul.f32 %v3626, %v3498
    %v3659 = vadd.f32 %v3627, -0.28449672
    %v3660 = vadd.f32 %v3628, -0.28449672
    %v3661 = vadd.f32 %v3629, -0.28449672
    %v3662 = vadd.f32 %v3630, -0.28449672
    %v3663 = vadd.f32 %v3631, -0.28449672
    %v3664 = vadd.f32 %v3632, -0.28449672
    %v3665 = vadd.f32 %v3633, -0.28449672
    %v3666 = vadd.f32 %v3634, -0.28449672
    %v3667 = vadd.f32 %v3635, -0.28449672
    %v3668 = vadd.f32 %v3636, -0.28449672
    %v3669 = vadd.f32 %v3637, -0.28449672
    %v3670 = vadd.f32 %v3638, -0.28449672
    %v3671 = vadd.f32 %v3639, -0.28449672
    %v3672 = vadd.f32 %v3640, -0.28449672
    %v3673 = vadd.f32 %v3641, -0.28449672
    %v3674 = vadd.f32 %v3642, -0.28449672
    %v3675 = vadd.f32 %v3643, -0.28449672
    %v3676 = vadd.f32 %v3644, -0.28449672
    %v3677 = vadd.f32 %v3645, -0.28449672
    %v3678 = vadd.f32 %v3646, -0.28449672
    %v3679 = vadd.f32 %v3647, -0.28449672
    %v3680 = vadd.f32 %v3648, -0.28449672
    %v3681 = vadd.f32 %v3649, -0.28449672
    %v3682 = vadd.f32 %v3650, -0.28449672
    %v3683 = vadd.f32 %v3651, -0.28449672
    %v3684 = vadd.f32 %v3652, -0.28449672
    %v3685 = vadd.f32 %v3653, -0.28449672
    %v3686 = vadd.f32 %v3654, -0.28449672
    %v3687 = vadd.f32 %v3655, -0.28449672
    %v3688 = vadd.f32 %v3656, -0.28449672
    %v3689 = vadd.f32 %v3657, -0.28449672
    %v3690 = vadd.f32 %v3658, -0.28449672
    %v3691 = vmul.f32 %v3659, %v3033
    %v3692 = vmul.f32 %v3660, %v3048
    %v3693 = vmul.f32 %v3661, %v3063
    %v3694 = vmul.f32 %v3662, %v3078
    %v3695 = vmul.f32 %v3663, %v3093
    %v3696 = vmul.f32 %v3664, %v3108
    %v3697 = vmul.f32 %v3665, %v3123
    %v3698 = vmul.f32 %v3666, %v3138
    %v3699 = vmul.f32 %v3667, %v3153
    %v3700 = vmul.f32 %v3668, %v3168
    %v3701 = vmul.f32 %v3669, %v3183
    %v3702 = vmul.f32 %v3670, %v3198
    %v3703 = vmul.f32 %v3671, %v3213
    %v3704 = vmul.f32 %v3672, %v3228
    %v3705 = vmul.f32 %v3673, %v3243
    %v3706 = vmul.f32 %v3674, %v3258
    %v3707 = vmul.f32 %v3675, %v3273
    %v3708 = vmul.f32 %v3676, %v3288
    %v3709 = vmul.f32 %v3677, %v3303
    %v3710 = vmul.f32 %v3678, %v3318
    %v3711 = vmul.f32 %v3679, %v3333
    %v3712 = vmul.f32 %v3680, %v3348
    %v3713 = vmul.f32 %v3681, %v3363
    %v3714 = vmul.f32 %v3682, %v3378
    %v3715 = vmul.f32 %v3683, %v3393
    %v3716 = vmul.f32 %v3684, %v3408
    %v3717 = vmul.f32 %v3685, %v3423
    %v3718 = vmul.f32 %v3686, %v3438
    %v3719 = vmul.f32 %v3687, %v3453
    %v3720 = vmul.f32 %v3688, %v3468
    %v3721 = vmul.f32 %v3689, %v3483
    %v3722 = vmul.f32 %v3690, %v3498
    %v3723 = vadd.f32 %v3691, 0.2548296
    %v3724 = vadd.f32 %v3692, 0.2548296
    %v3725 = vadd.f32 %v3693, 0.2548296
    %v3726 = vadd.f32 %v3694, 0.2548296
    %v3727 = vadd.f32 %v3695, 0.2548296
    %v3728 = vadd.f32 %v3696, 0.2548296
    %v3729 = vadd.f32 %v3697, 0.2548296
    %v3730 = vadd.f32 %v3698, 0.2548296
    %v3731 = vadd.f32 %v3699, 0.2548296
    %v3732 = vadd.f32 %v3700, 0.2548296
    %v3733 = vadd.f32 %v3701, 0.2548296
    %v3734 = vadd.f32 %v3702, 0.2548296
    %v3735 = vadd.f32 %v3703, 0.2548296
    %v3736 = vadd.f32 %v3704, 0.2548296
    %v3737 = vadd.f32 %v3705, 0.2548296
    %v3738 = vadd.f32 %v3706, 0.2548296
    %v3739 = vadd.f32 %v3707, 0.2548296
    %v3740 = vadd.f32 %v3708, 0.2548296
    %v3741 = vadd.f32 %v3709, 0.2548296
    %v3742 = vadd.f32 %v3710, 0.2548296
    %v3743 = vadd.f32 %v3711, 0.2548296
    %v3744 = vadd.f32 %v3712, 0.2548296
    %v3745 = vadd.f32 %v3713, 0.2548296
    %v3746 = vadd.f32 %v3714, 0.2548296
    %v3747 = vadd.f32 %v3715, 0.2548296
    %v3748 = vadd.f32 %v3716, 0.2548296
    %v3749 = vadd.f32 %v3717, 0.2548296
    %v3750 = vadd.f32 %v3718, 0.2548296
    %v3751 = vadd.f32 %v3719, 0.2548296
    %v3752 = vadd.f32 %v3720, 0.2548296
    %v3753 = vadd.f32 %v3721, 0.2548296
    %v3754 = vadd.f32 %v3722, 0.2548296
    %v3755 = vmul.f32 %v3723, %v3033
    %v3756 = vmul.f32 %v3724, %v3048
    %v3757 = vmul.f32 %v3725, %v3063
    %v3758 = vmul.f32 %v3726, %v3078
    %v3759 = vmul.f32 %v3727, %v3093
    %v3760 = vmul.f32 %v3728, %v3108
    %v3761 = vmul.f32 %v3729, %v3123
    %v3762 = vmul.f32 %v3730, %v3138
    %v3763 = vmul.f32 %v3731, %v3153
    %v3764 = vmul.f32 %v3732, %v3168
    %v3765 = vmul.f32 %v3733, %v3183
    %v3766 = vmul.f32 %v3734, %v3198
    %v3767 = vmul.f32 %v3735, %v3213
    %v3768 = vmul.f32 %v3736, %v3228
    %v3769 = vmul.f32 %v3737, %v3243
    %v3770 = vmul.f32 %v3738, %v3258
    %v3771 = vmul.f32 %v3739, %v3273
    %v3772 = vmul.f32 %v3740, %v3288
    %v3773 = vmul.f32 %v3741, %v3303
    %v3774 = vmul.f32 %v3742, %v3318
    %v3775 = vmul.f32 %v3743, %v3333
    %v3776 = vmul.f32 %v3744, %v3348
    %v3777 = vmul.f32 %v3745, %v3363
    %v3778 = vmul.f32 %v3746, %v3378
    %v3779 = vmul.f32 %v3747, %v3393
    %v3780 = vmul.f32 %v3748, %v3408
    %v3781 = vmul.f32 %v3749, %v3423
    %v3782 = vmul.f32 %v3750, %v3438
    %v3783 = vmul.f32 %v3751, %v3453
    %v3784 = vmul.f32 %v3752, %v3468
    %v3785 = vmul.f32 %v3753, %v3483
    %v3786 = vmul.f32 %v3754, %v3498
    %v3787 = vsub.f32 0.0, %v2923
    %v3788 = vsub.f32 0.0, %v2924
    %v3789 = vsub.f32 0.0, %v2925
    %v3790 = vsub.f32 0.0, %v2926
    %v3791 = vsub.f32 0.0, %v2927
    %v3792 = vsub.f32 0.0, %v2928
    %v3793 = vsub.f32 0.0, %v2929
    %v3794 = vsub.f32 0.0, %v2930
    %v3795 = vsub.f32 0.0, %v2931
    %v3796 = vsub.f32 0.0, %v2932
    %v3797 = vsub.f32 0.0, %v2933
    %v3798 = vsub.f32 0.0, %v2934
    %v3799 = vsub.f32 0.0, %v2935
    %v3800 = vsub.f32 0.0, %v2936
    %v3801 = vsub.f32 0.0, %v2937
    %v3802 = vsub.f32 0.0, %v2938
    %v3803 = vsub.f32 0.0, %v2939
    %v3804 = vsub.f32 0.0, %v2940
    %v3805 = vsub.f32 0.0, %v2941
    %v3806 = vsub.f32 0.0, %v2942
    %v3807 = vsub.f32 0.0, %v2943
    %v3808 = vsub.f32 0.0, %v2944
    %v3809 = vsub.f32 0.0, %v2945
    %v3810 = vsub.f32 0.0, %v2946
    %v3811 = vsub.f32 0.0, %v2947
    %v3812 = vsub.f32 0.0, %v2948
    %v3813 = vsub.f32 0.0, %v2949
    %v3814 = vsub.f32 0.0, %v2950
    %v3815 = vsub.f32 0.0, %v2951
    %v3816 = vsub.f32 0.0, %v2952
    %v3817 = vsub.f32 0.0, %v2953
    %v3818 = vsub.f32 0.0, %v2954
    %v3819 = vmul.f32 %v3787, %v2923
    %v3820 = vmul.f32 %v3788, %v2924
    %v3821 = vmul.f32 %v3789, %v2925
    %v3822 = vmul.f32 %v3790, %v2926
    %v3823 = vmul.f32 %v3791, %v2927
    %v3824 = vmul.f32 %v3792, %v2928
    %v3825 = vmul.f32 %v3793, %v2929
    %v3826 = vmul.f32 %v3794, %v2930
    %v3827 = vmul.f32 %v3795, %v2931
    %v3828 = vmul.f32 %v3796, %v2932
    %v3829 = vmul.f32 %v3797, %v2933
    %v3830 = vmul.f32 %v3798, %v2934
    %v3831 = vmul.f32 %v3799, %v2935
    %v3832 = vmul.f32 %v3800, %v2936
    %v3833 = vmul.f32 %v3801, %v2937
    %v3834 = vmul.f32 %v3802, %v2938
    %v3835 = vmul.f32 %v3803, %v2939
    %v3836 = vmul.f32 %v3804, %v2940
    %v3837 = vmul.f32 %v3805, %v2941
    %v3838 = vmul.f32 %v3806, %v2942
    %v3839 = vmul.f32 %v3807, %v2943
    %v3840 = vmul.f32 %v3808, %v2944
    %v3841 = vmul.f32 %v3809, %v2945
    %v3842 = vmul.f32 %v3810, %v2946
    %v3843 = vmul.f32 %v3811, %v2947
    %v3844 = vmul.f32 %v3812, %v2948
    %v3845 = vmul.f32 %v3813, %v2949
    %v3846 = vmul.f32 %v3814, %v2950
    %v3847 = vmul.f32 %v3815, %v2951
    %v3848 = vmul.f32 %v3816, %v2952
    %v3849 = vmul.f32 %v3817, %v2953
    %v3850 = vmul.f32 %v3818, %v2954
    %v3851 = vmul.f32 %v3819, 1.442695
    %v3852 = vpow.pop %v3851
    %v3853 = vmul.f32 %v3820, 1.442695
    %v3854 = vpow.pop %v3853
    %v3855 = vmul.f32 %v3821, 1.442695
    %v3856 = vpow.pop %v3855
    %v3857 = vmul.f32 %v3822, 1.442695
    %v3858 = vpow.pop %v3857
    %v3859 = vmul.f32 %v3823, 1.442695
    %v3860 = vpow.pop %v3859
    %v3861 = vmul.f32 %v3824, 1.442695
    %v3862 = vpow.pop %v3861
    %v3863 = vmul.f32 %v3825, 1.442695
    %v3864 = vpow.pop %v3863
    %v3865 = vmul.f32 %v3826, 1.442695
    %v3866 = vpow.pop %v3865
    %v3867 = vmul.f32 %v3827, 1.442695
    %v3868 = vpow.pop %v3867
    %v3869 = vmul.f32 %v3828, 1.442695
    %v3870 = vpow.pop %v3869
    %v3871 = vmul.f32 %v3829, 1.442695
    %v3872 = vpow.pop %v3871
    %v3873 = vmul.f32 %v3830, 1.442695
    %v3874 = vpow.pop %v3873
    %v3875 = vmul.f32 %v3831, 1.442695
    %v3876 = vpow.pop %v3875
    %v3877 = vmul.f32 %v3832, 1.442695
    %v3878 = vpow.pop %v3877
    %v3879 = vmul.f32 %v3833, 1.442695
    %v3880 = vpow.pop %v3879
    %v3881 = vmul.f32 %v3834, 1.442695
    %v3882 = vpow.pop %v3881
    %v3883 = vmul.f32 %v3835, 1.442695
    %v3884 = vpow.pop %v3883
    %v3885 = vmul.f32 %v3836, 1.442695
    %v3886 = vpow.pop %v3885
    %v3887 = vmul.f32 %v3837, 1.442695
    %v3888 = vpow.pop %v3887
    %v3889 = vmul.f32 %v3838, 1.442695
    %v3890 = vpow.pop %v3889
    %v3891 = vmul.f32 %v3839, 1.442695
    %v3892 = vpow.pop %v3891
    %v3893 = vmul.f32 %v3840, 1.442695
    %v3894 = vpow.pop %v3893
    %v3895 = vmul.f32 %v3841, 1.442695
    %v3896 = vpow.pop %v3895
    %v3897 = vmul.f32 %v3842, 1.442695
    %v3898 = vpow.pop %v3897
    %v3899 = vmul.f32 %v3843, 1.442695
    %v3900 = vpow.pop %v3899
    %v3901 = vmul.f32 %v3844, 1.442695
    %v3902 = vpow.pop %v3901
    %v3903 = vmul.f32 %v3845, 1.442695
    %v3904 = vpow.pop %v3903
    %v3905 = vmul.f32 %v3846, 1.442695
    %v3906 = vpow.pop %v3905
    %v3907 = vmul.f32 %v3847, 1.442695
    %v3908 = vpow.pop %v3907
    %v3909 = vmul.f32 %v3848, 1.442695
    %v3910 = vpow.pop %v3909
    %v3911 = vmul.f32 %v3849, 1.442695
    %v3912 = vpow.pop %v3911
    %v3913 = vmul.f32 %v3850, 1.442695
    %v3914 = vpow.pop %v3913
    %v3915 = vmul.f32 %v3755, %v3852
    %v3916 = vmul.f32 %v3756, %v3854
    %v3917 = vmul.f32 %v3757, %v3856
    %v3918 = vmul.f32 %v3758, %v3858
    %v3919 = vmul.f32 %v3759, %v3860
    %v3920 = vmul.f32 %v3760, %v3862
    %v3921 = vmul.f32 %v3761, %v3864
    %v3922 = vmul.f32 %v3762, %v3866
    %v3923 = vmul.f32 %v3763, %v3868
    %v3924 = vmul.f32 %v3764, %v3870
    %v3925 = vmul.f32 %v3765, %v3872
    %v3926 = vmul.f32 %v3766, %v3874
    %v3927 = vmul.f32 %v3767, %v3876
    %v3928 = vmul.f32 %v3768, %v3878
    %v3929 = vmul.f32 %v3769, %v3880
    %v3930 = vmul.f32 %v3770, %v3882
    %v3931 = vmul.f32 %v3771, %v3884
    %v3932 = vmul.f32 %v3772, %v3886
    %v3933 = vmul.f32 %v3773, %v3888
    %v3934 = vmul.f32 %v3774, %v3890
    %v3935 = vmul.f32 %v3775, %v3892
    %v3936 = vmul.f32 %v3776, %v3894
    %v3937 = vmul.f32 %v3777, %v3896
    %v3938 = vmul.f32 %v3778, %v3898
    %v3939 = vmul.f32 %v3779, %v3900
    %v3940 = vmul.f32 %v3780, %v3902
    %v3941 = vmul.f32 %v3781, %v3904
    %v3942 = vmul.f32 %v3782, %v3906
    %v3943 = vmul.f32 %v3783, %v3908
    %v3944 = vmul.f32 %v3784, %v3910
    %v3945 = vmul.f32 %v3785, %v3912
    %v3946 = vmul.f32 %v3786, %v3914
    %v3947 = vsub.f32 1.0, %v3915
    %v3948 = vsub.f32 1.0, %v3916
    %v3949 = vsub.f32 1.0, %v3917
    %v3950 = vsub.f32 1.0, %v3918
    %v3951 = vsub.f32 1.0, %v3919
    %v3952 = vsub.f32 1.0, %v3920
    %v3953 = vsub.f32 1.0, %v3921
    %v3954 = vsub.f32 1.0, %v3922
    %v3955 = vsub.f32 1.0, %v3923
    %v3956 = vsub.f32 1.0, %v3924
    %v3957 = vsub.f32 1.0, %v3925
    %v3958 = vsub.f32 1.0, %v3926
    %v3959 = vsub.f32 1.0, %v3927
    %v3960 = vsub.f32 1.0, %v3928
    %v3961 = vsub.f32 1.0, %v3929
    %v3962 = vsub.f32 1.0, %v3930
    %v3963 = vsub.f32 1.0, %v3931
    %v3964 = vsub.f32 1.0, %v3932
    %v3965 = vsub.f32 1.0, %v3933
    %v3966 = vsub.f32 1.0, %v3934
    %v3967 = vsub.f32 1.0, %v3935
    %v3968 = vsub.f32 1.0, %v3936
    %v3969 = vsub.f32 1.0, %v3937
    %v3970 = vsub.f32 1.0, %v3938
    %v3971 = vsub.f32 1.0, %v3939
    %v3972 = vsub.f32 1.0, %v3940
    %v3973 = vsub.f32 1.0, %v3941
    %v3974 = vsub.f32 1.0, %v3942
    %v3975 = vsub.f32 1.0, %v3943
    %v3976 = vsub.f32 1.0, %v3944
    %v3977 = vsub.f32 1.0, %v3945
    %v3978 = vsub.f32 1.0, %v3946
    %vm3979 = vcmp.ge.f32.partialorder %v2891, 0.0
    %vm3980 = vcmp.ge.f32.partialorder %v2892, 0.0
    %vm3981 = vcmp.ge.f32.partialorder %v2893, 0.0
    %vm3982 = vcmp.ge.f32.partialorder %v2894, 0.0
    %vm3983 = vcmp.ge.f32.partialorder %v2895, 0.0
    %vm3984 = vcmp.ge.f32.partialorder %v2896, 0.0
    %vm3985 = vcmp.ge.f32.partialorder %v2897, 0.0
    %vm3986 = vcmp.ge.f32.partialorder %v2898, 0.0
    %vm3987 = vcmp.ge.f32.partialorder %v2899, 0.0
    %vm3988 = vcmp.ge.f32.partialorder %v2900, 0.0
    %vm3989 = vcmp.ge.f32.partialorder %v2901, 0.0
    %vm3990 = vcmp.ge.f32.partialorder %v2902, 0.0
    %vm3991 = vcmp.ge.f32.partialorder %v2903, 0.0
    %vm3992 = vcmp.ge.f32.partialorder %v2904, 0.0
    %vm3993 = vcmp.ge.f32.partialorder %v2905, 0.0
    %vm3994 = vcmp.ge.f32.partialorder %v2906, 0.0
    %vm3995 = vcmp.ge.f32.partialorder %v2907, 0.0
    %vm3996 = vcmp.ge.f32.partialorder %v2908, 0.0
    %vm3997 = vcmp.ge.f32.partialorder %v2909, 0.0
    %vm3998 = vcmp.ge.f32.partialorder %v2910, 0.0
    %vm3999 = vcmp.ge.f32.partialorder %v2911, 0.0
    %vm4000 = vcmp.ge.f32.partialorder %v2912, 0.0
    %vm4001 = vcmp.ge.f32.partialorder %v2913, 0.0
    %vm4002 = vcmp.ge.f32.partialorder %v2914, 0.0
    %vm4003 = vcmp.ge.f32.partialorder %v2915, 0.0
    %vm4004 = vcmp.ge.f32.partialorder %v2916, 0.0
    %vm4005 = vcmp.ge.f32.partialorder %v2917, 0.0
    %vm4006 = vcmp.ge.f32.partialorder %v2918, 0.0
    %vm4007 = vcmp.ge.f32.partialorder %v2919, 0.0
    %vm4008 = vcmp.ge.f32.partialorder %v2920, 0.0
    %vm4009 = vcmp.ge.f32.partialorder %v2921, 0.0
    %vm4010 = vcmp.ge.f32.partialorder %v2922, 0.0
    %v4011 = vsub.f32 0.0, %v3947
    %v4012 = vsub.f32 0.0, %v3948
    %v4013 = vsub.f32 0.0, %v3949
    %v4014 = vsub.f32 0.0, %v3950
    %v4015 = vsub.f32 0.0, %v3951
    %v4016 = vsub.f32 0.0, %v3952
    %v4017 = vsub.f32 0.0, %v3953
    %v4018 = vsub.f32 0.0, %v3954
    %v4019 = vsub.f32 0.0, %v3955
    %v4020 = vsub.f32 0.0, %v3956
    %v4021 = vsub.f32 0.0, %v3957
    %v4022 = vsub.f32 0.0, %v3958
    %v4023 = vsub.f32 0.0, %v3959
    %v4024 = vsub.f32 0.0, %v3960
    %v4025 = vsub.f32 0.0, %v3961
    %v4026 = vsub.f32 0.0, %v3962
    %v4027 = vsub.f32 0.0, %v3963
    %v4028 = vsub.f32 0.0, %v3964
    %v4029 = vsub.f32 0.0, %v3965
    %v4030 = vsub.f32 0.0, %v3966
    %v4031 = vsub.f32 0.0, %v3967
    %v4032 = vsub.f32 0.0, %v3968
    %v4033 = vsub.f32 0.0, %v3969
    %v4034 = vsub.f32 0.0, %v3970
    %v4035 = vsub.f32 0.0, %v3971
    %v4036 = vsub.f32 0.0, %v3972
    %v4037 = vsub.f32 0.0, %v3973
    %v4038 = vsub.f32 0.0, %v3974
    %v4039 = vsub.f32 0.0, %v3975
    %v4040 = vsub.f32 0.0, %v3976
    %v4041 = vsub.f32 0.0, %v3977
    %v4042 = vsub.f32 0.0, %v3978
    %v4043 = vsel %vm3979, %v3947, %v4011
    %v4044 = vsel %vm3980, %v3948, %v4012
    %v4045 = vsel %vm3981, %v3949, %v4013
    %v4046 = vsel %vm3982, %v3950, %v4014
    %v4047 = vsel %vm3983, %v3951, %v4015
    %v4048 = vsel %vm3984, %v3952, %v4016
    %v4049 = vsel %vm3985, %v3953, %v4017
    %v4050 = vsel %vm3986, %v3954, %v4018
    %v4051 = vsel %vm3987, %v3955, %v4019
    %v4052 = vsel %vm3988, %v3956, %v4020
    %v4053 = vsel %vm3989, %v3957, %v4021
    %v4054 = vsel %vm3990, %v3958, %v4022
    %v4055 = vsel %vm3991, %v3959, %v4023
    %v4056 = vsel %vm3992, %v3960, %v4024
    %v4057 = vsel %vm3993, %v3961, %v4025
    %v4058 = vsel %vm3994, %v3962, %v4026
    %v4059 = vsel %vm3995, %v3963, %v4027
    %v4060 = vsel %vm3996, %v3964, %v4028
    %v4061 = vsel %vm3997, %v3965, %v4029
    %v4062 = vsel %vm3998, %v3966, %v4030
    %v4063 = vsel %vm3999, %v3967, %v4031
    %v4064 = vsel %vm4000, %v3968, %v4032
    %v4065 = vsel %vm4001, %v3969, %v4033
    %v4066 = vsel %vm4002, %v3970, %v4034
    %v4067 = vsel %vm4003, %v3971, %v4035
    %v4068 = vsel %vm4004, %v3972, %v4036
    %v4069 = vsel %vm4005, %v3973, %v4037
    %v4070 = vsel %vm4006, %v3974, %v4038
    %v4071 = vsel %vm4007, %v3975, %v4039
    %v4072 = vsel %vm4008, %v3976, %v4040
    %v4073 = vsel %vm4009, %v3977, %v4041
    %v4074 = vsel %vm4010, %v3978, %v4042
    %v4075 = vadd.f32 %v4043, 1.0
    %v4076 = vadd.f32 %v4044, 1.0
    %v4077 = vadd.f32 %v4045, 1.0
    %v4078 = vadd.f32 %v4046, 1.0
    %v4079 = vadd.f32 %v4047, 1.0
    %v4080 = vadd.f32 %v4048, 1.0
    %v4081 = vadd.f32 %v4049, 1.0
    %v4082 = vadd.f32 %v4050, 1.0
    %v4083 = vadd.f32 %v4051, 1.0
    %v4084 = vadd.f32 %v4052, 1.0
    %v4085 = vadd.f32 %v4053, 1.0
    %v4086 = vadd.f32 %v4054, 1.0
    %v4087 = vadd.f32 %v4055, 1.0
    %v4088 = vadd.f32 %v4056, 1.0
    %v4089 = vadd.f32 %v4057, 1.0
    %v4090 = vadd.f32 %v4058, 1.0
    %v4091 = vadd.f32 %v4059, 1.0
    %v4092 = vadd.f32 %v4060, 1.0
    %v4093 = vadd.f32 %v4061, 1.0
    %v4094 = vadd.f32 %v4062, 1.0
    %v4095 = vadd.f32 %v4063, 1.0
    %v4096 = vadd.f32 %v4064, 1.0
    %v4097 = vadd.f32 %v4065, 1.0
    %v4098 = vadd.f32 %v4066, 1.0
    %v4099 = vadd.f32 %v4067, 1.0
    %v4100 = vadd.f32 %v4068, 1.0
    %v4101 = vadd.f32 %v4069, 1.0
    %v4102 = vadd.f32 %v4070, 1.0
    %v4103 = vadd.f32 %v4071, 1.0
    %v4104 = vadd.f32 %v4072, 1.0
    %v4105 = vadd.f32 %v4073, 1.0
    %v4106 = vadd.f32 %v4074, 1.0
    %v4107 = vmul.f32 %v2852, %v4075
    %v4108 = vmul.f32 %v2853, %v4076
    %v4109 = vmul.f32 %v2854, %v4077
    %v4110 = vmul.f32 %v2855, %v4078
    %v4111 = vmul.f32 %v2856, %v4079
    %v4112 = vmul.f32 %v2857, %v4080
    %v4113 = vmul.f32 %v2858, %v4081
    %v4114 = vmul.f32 %v2859, %v4082
    %v4115 = vmul.f32 %v2860, %v4083
    %v4116 = vmul.f32 %v2861, %v4084
    %v4117 = vmul.f32 %v2862, %v4085
    %v4118 = vmul.f32 %v2863, %v4086
    %v4119 = vmul.f32 %v2864, %v4087
    %v4120 = vmul.f32 %v2865, %v4088
    %v4121 = vmul.f32 %v2866, %v4089
    %v4122 = vmul.f32 %v2867, %v4090
    %v4123 = vmul.f32 %v2868, %v4091
    %v4124 = vmul.f32 %v2869, %v4092
    %v4125 = vmul.f32 %v2870, %v4093
    %v4126 = vmul.f32 %v2871, %v4094
    %v4127 = vmul.f32 %v2872, %v4095
    %v4128 = vmul.f32 %v2873, %v4096
    %v4129 = vmul.f32 %v2874, %v4097
    %v4130 = vmul.f32 %v2875, %v4098
    %v4131 = vmul.f32 %v2876, %v4099
    %v4132 = vmul.f32 %v2877, %v4100
    %v4133 = vmul.f32 %v2878, %v4101
    %v4134 = vmul.f32 %v2879, %v4102
    %v4135 = vmul.f32 %v2880, %v4103
    %v4136 = vmul.f32 %v2881, %v4104
    %v4137 = vmul.f32 %v2882, %v4105
    %v4138 = vmul.f32 %v2883, %v4106
    %v4140 = vperm.slane %v2668, 0
    %4142 = vmatpush.msra.mxu0 %v2651
    %4143 = vmatpush.msra.mxu0 %v2650
    %4144 = vmatpush.msra.mxu0 %v2649
    %4145 = vmatpush.msra.mxu0 %v2648
    %4146 = vmatpush.msra.mxu0 %v2647
    %4147 = vmatpush.msra.mxu0 %v2646
    %4148 = vmatpush.msra.mxu0 %v2645
    %4149 = vmatpush.msra.mxu0 %v2644
    %4150 = vmatpush.msra.mxu0 %v2643
    %4151 = vmatpush.msra.mxu0 %v2642
    %4152 = vmatpush.msra.mxu0 %v2641
    %4153 = vmatpush.msra.mxu0 %v2640
    %4154 = vmatpush.msra.mxu0 %v2639
    %4155 = vmatpush.msra.mxu0 %v2638
    %4156 = vmatpush.msra.mxu0 %v2637
    %4157 = vmatpush.msra.mxu0 %v2636
    %4158 = vmatmul.f32.gmra.mxu0 %v4107
    %v4159 = vpop.f32.mrf.mxu0
    %v4160 = vadd.f32 %v4140, %v4159
    %4161 = vmatmul.f32.gmra.mxu0 %v4109
    %v4162 = vpop.f32.mrf.mxu0
    %v4163 = vadd.f32 %v4140, %v4162
    %4164 = vmatmul.f32.gmra.mxu0 %v4111
    %v4165 = vpop.f32.mrf.mxu0
    %v4166 = vadd.f32 %v4140, %v4165
    %4167 = vmatmul.f32.gmra.mxu0 %v4113
    %v4168 = vpop.f32.mrf.mxu0
    %v4169 = vadd.f32 %v4140, %v4168
    %4170 = vmatmul.f32.gmra.mxu0 %v4115
    %v4171 = vpop.f32.mrf.mxu0
    %v4172 = vadd.f32 %v4140, %v4171
    %4173 = vmatmul.f32.gmra.mxu0 %v4117
    %v4174 = vpop.f32.mrf.mxu0
    %v4175 = vadd.f32 %v4140, %v4174
    %4176 = vmatmul.f32.gmra.mxu0 %v4119
    %v4177 = vpop.f32.mrf.mxu0
    %v4178 = vadd.f32 %v4140, %v4177
    %4179 = vmatmul.f32.gmra.mxu0 %v4121
    %v4180 = vpop.f32.mrf.mxu0
    %v4181 = vadd.f32 %v4140, %v4180
    %4182 = vmatmul.f32.gmra.mxu0 %v4123
    %v4183 = vpop.f32.mrf.mxu0
    %v4184 = vadd.f32 %v4140, %v4183
    %4185 = vmatmul.f32.gmra.mxu0 %v4125
    %v4186 = vpop.f32.mrf.mxu0
    %v4187 = vadd.f32 %v4140, %v4186
    %4188 = vmatmul.f32.gmra.mxu0 %v4127
    %v4189 = vpop.f32.mrf.mxu0
    %v4190 = vadd.f32 %v4140, %v4189
    %4191 = vmatmul.f32.gmra.mxu0 %v4129
    %v4192 = vpop.f32.mrf.mxu0
    %v4193 = vadd.f32 %v4140, %v4192
    %4194 = vmatmul.f32.gmra.mxu0 %v4131
    %v4195 = vpop.f32.mrf.mxu0
    %v4196 = vadd.f32 %v4140, %v4195
    %4197 = vmatmul.f32.gmra.mxu0 %v4133
    %v4198 = vpop.f32.mrf.mxu0
    %v4199 = vadd.f32 %v4140, %v4198
    %4200 = vmatmul.f32.gmra.mxu0 %v4135
    %v4201 = vpop.f32.mrf.mxu0
    %v4202 = vadd.f32 %v4140, %v4201
    %4203 = vmatmul.f32.gmra.mxu0 %v4137
    %v4204 = vpop.f32.mrf.mxu0
    %v4205 = vadd.f32 %v4140, %v4204
    %4206 = vdwg.mxu0
    %4207 = vmatpush.msra.mxu0 %v2667
    %4208 = vmatpush.msra.mxu0 %v2666
    %4209 = vmatpush.msra.mxu0 %v2665
    %4210 = vmatpush.msra.mxu0 %v2664
    %4211 = vmatpush.msra.mxu0 %v2663
    %4212 = vmatpush.msra.mxu0 %v2662
    %4213 = vmatpush.msra.mxu0 %v2661
    %4214 = vmatpush.msra.mxu0 %v2660
    %4215 = vmatpush.msra.mxu0 %v2659
    %4216 = vmatpush.msra.mxu0 %v2658
    %4217 = vmatpush.msra.mxu0 %v2657
    %4218 = vmatpush.msra.mxu0 %v2656
    %4219 = vmatpush.msra.mxu0 %v2655
    %4220 = vmatpush.msra.mxu0 %v2654
    %4221 = vmatpush.msra.mxu0 %v2653
    %4222 = vmatpush.msra.mxu0 %v2652
    %4223 = vmatmul.f32.gmra.mxu0 %v4108
    %v4224 = vpop.f32.mrf.mxu0
    %v4225 = vadd.f32 %v4160, %v4224
    %4226 = vmatmul.f32.gmra.mxu0 %v4110
    %v4227 = vpop.f32.mrf.mxu0
    %v4228 = vadd.f32 %v4163, %v4227
    %4229 = vmatmul.f32.gmra.mxu0 %v4112
    %v4230 = vpop.f32.mrf.mxu0
    %v4231 = vadd.f32 %v4166, %v4230
    %4232 = vmatmul.f32.gmra.mxu0 %v4114
    %v4233 = vpop.f32.mrf.mxu0
    %v4234 = vadd.f32 %v4169, %v4233
    %4235 = vmatmul.f32.gmra.mxu0 %v4116
    %v4236 = vpop.f32.mrf.mxu0
    %v4237 = vadd.f32 %v4172, %v4236
    %4238 = vmatmul.f32.gmra.mxu0 %v4118
    %v4239 = vpop.f32.mrf.mxu0
    %v4240 = vadd.f32 %v4175, %v4239
    %4241 = vmatmul.f32.gmra.mxu0 %v4120
    %v4242 = vpop.f32.mrf.mxu0
    %v4243 = vadd.f32 %v4178, %v4242
    %4244 = vmatmul.f32.gmra.mxu0 %v4122
    %v4245 = vpop.f32.mrf.mxu0
    %v4246 = vadd.f32 %v4181, %v4245
    %4247 = vmatmul.f32.gmra.mxu0 %v4124
    %v4248 = vpop.f32.mrf.mxu0
    %v4249 = vadd.f32 %v4184, %v4248
    %4250 = vmatmul.f32.gmra.mxu0 %v4126
    %v4251 = vpop.f32.mrf.mxu0
    %v4252 = vadd.f32 %v4187, %v4251
    %4253 = vmatmul.f32.gmra.mxu0 %v4128
    %v4254 = vpop.f32.mrf.mxu0
    %v4255 = vadd.f32 %v4190, %v4254
    %4256 = vmatmul.f32.gmra.mxu0 %v4130
    %v4257 = vpop.f32.mrf.mxu0
    %v4258 = vadd.f32 %v4193, %v4257
    %4259 = vmatmul.f32.gmra.mxu0 %v4132
    %v4260 = vpop.f32.mrf.mxu0
    %v4261 = vadd.f32 %v4196, %v4260
    %4262 = vmatmul.f32.gmra.mxu0 %v4134
    %v4263 = vpop.f32.mrf.mxu0
    %v4264 = vadd.f32 %v4199, %v4263
    %4265 = vmatmul.f32.gmra.mxu0 %v4136
    %v4266 = vpop.f32.mrf.mxu0
    %v4267 = vadd.f32 %v4202, %v4266
    %4268 = vmatmul.f32.gmra.mxu0 %v4138
    %v4269 = vpop.f32.mrf.mxu0
    %v4270 = vadd.f32 %v4205, %v4269
    %4271 = vdwg.mxu0
    %v4272 = vld [vmem:[%s21] sm:$0xff]
    %v4273 = vld [vmem:[%s21 + $0x8] sm:$0xff]
    %v4274 = vld [vmem:[%s21 + $0x10] sm:$0xff]
    %v4275 = vld [vmem:[%s21 + $0x18] sm:$0xff]
    %v4276 = vld [vmem:[%s21 + $0x20] sm:$0xff]
    %v4277 = vld [vmem:[%s21 + $0x28] sm:$0xff]
    %v4278 = vld [vmem:[%s21 + $0x30] sm:$0xff]
    %v4279 = vld [vmem:[%s21 + $0x38] sm:$0xff]
    %v4280 = vld [vmem:[%s23] sm:$0x1]
    %v4282 = vperm.slane %v4280, 0
    %v4285 = vsel %vm366, %v4225, 0
    %v4288 = vsel %vm366, %v4228, 0
    %v4291 = vsel %vm366, %v4231, 0
    %v4294 = vsel %vm366, %v4234, 0
    %v4297 = vsel %vm366, %v4237, 0
    %v4300 = vsel %vm366, %v4240, 0
    %v4303 = vsel %vm366, %v4243, 0
    %v4306 = vsel %vm366, %v4246, 0
    %v4309 = vsel %vm366, %v4249, 0
    %v4312 = vsel %vm366, %v4252, 0
    %v4315 = vsel %vm366, %v4255, 0
    %v4318 = vsel %vm366, %v4258, 0
    %v4321 = vsel %vm366, %v4261, 0
    %v4324 = vsel %vm366, %v4264, 0
    %v4327 = vsel %vm366, %v4267, 0
    %v4330 = vsel %vm366, %v4270, 0
    %4332 = vmatpush.msra.mxu0 0.0
    %4333 = vmatpush.msra.mxu0 0.0
    %4334 = vmatpush.msra.mxu0 0.0
    %4335 = vmatpush.msra.mxu0 0.0
    %4336 = vmatpush.msra.mxu0 0.0
    %4337 = vmatpush.msra.mxu0 0.0
    %4338 = vmatpush.msra.mxu0 0.0
    %4339 = vmatpush.msra.mxu0 0.0
    %4340 = vmatpush.msra.mxu0 %v4279
    %4341 = vmatpush.msra.mxu0 %v4278
    %4342 = vmatpush.msra.mxu0 %v4277
    %4343 = vmatpush.msra.mxu0 %v4276
    %4344 = vmatpush.msra.mxu0 %v4275
    %4345 = vmatpush.msra.mxu0 %v4274
    %4346 = vmatpush.msra.mxu0 %v4273
    %4347 = vmatpush.msra.mxu0 %v4272
    %4348 = vmatmul.f32.gmra.mxu0 %v4285
    %v4349 = vpop.f32.mrf.mxu0
    %v4350 = vadd.f32 %v4282, %v4349
    %4351 = vmatmul.f32.gmra.mxu0 %v4288
    %v4352 = vpop.f32.mrf.mxu0
    %v4353 = vadd.f32 %v4282, %v4352
    %4354 = vmatmul.f32.gmra.mxu0 %v4291
    %v4355 = vpop.f32.mrf.mxu0
    %v4356 = vadd.f32 %v4282, %v4355
    %4357 = vmatmul.f32.gmra.mxu0 %v4294
    %v4358 = vpop.f32.mrf.mxu0
    %v4359 = vadd.f32 %v4282, %v4358
    %4360 = vmatmul.f32.gmra.mxu0 %v4297
    %v4361 = vpop.f32.mrf.mxu0
    %v4362 = vadd.f32 %v4282, %v4361
    %4363 = vmatmul.f32.gmra.mxu0 %v4300
    %v4364 = vpop.f32.mrf.mxu0
    %v4365 = vadd.f32 %v4282, %v4364
    %4366 = vmatmul.f32.gmra.mxu0 %v4303
    %v4367 = vpop.f32.mrf.mxu0
    %v4368 = vadd.f32 %v4282, %v4367
    %4369 = vmatmul.f32.gmra.mxu0 %v4306
    %v4370 = vpop.f32.mrf.mxu0
    %v4371 = vadd.f32 %v4282, %v4370
    %4372 = vmatmul.f32.gmra.mxu0 %v4309
    %v4373 = vpop.f32.mrf.mxu0
    %v4374 = vadd.f32 %v4282, %v4373
    %4375 = vmatmul.f32.gmra.mxu0 %v4312
    %v4376 = vpop.f32.mrf.mxu0
    %v4377 = vadd.f32 %v4282, %v4376
    %4378 = vmatmul.f32.gmra.mxu0 %v4315
    %v4379 = vpop.f32.mrf.mxu0
    %v4380 = vadd.f32 %v4282, %v4379
    %4381 = vmatmul.f32.gmra.mxu0 %v4318
    %v4382 = vpop.f32.mrf.mxu0
    %v4383 = vadd.f32 %v4282, %v4382
    %4384 = vmatmul.f32.gmra.mxu0 %v4321
    %v4385 = vpop.f32.mrf.mxu0
    %v4386 = vadd.f32 %v4282, %v4385
    %4387 = vmatmul.f32.gmra.mxu0 %v4324
    %v4388 = vpop.f32.mrf.mxu0
    %v4389 = vadd.f32 %v4282, %v4388
    %4390 = vmatmul.f32.gmra.mxu0 %v4327
    %v4391 = vpop.f32.mrf.mxu0
    %v4392 = vadd.f32 %v4282, %v4391
    %4393 = vmatmul.f32.gmra.mxu0 %v4330
    %v4394 = vpop.f32.mrf.mxu0
    %v4395 = vadd.f32 %v4282, %v4394
    %4396 = vdwg.mxu0
    %4397 = vst [vmem:[%s67] sm:$0xff] %v4350
    %4398 = vst [vmem:[%s67 + $0x8] sm:$0xff] %v4353
    %4399 = vst [vmem:[%s67 + $0x10] sm:$0xff] %v4356
    %4400 = vst [vmem:[%s67 + $0x18] sm:$0xff] %v4359
    %4401 = vst [vmem:[%s67 + $0x20] sm:$0xff] %v4362
    %4402 = vst [vmem:[%s67 + $0x28] sm:$0xff] %v4365
    %4403 = vst [vmem:[%s67 + $0x30] sm:$0xff] %v4368
    %4404 = vst [vmem:[%s67 + $0x38] sm:$0xff] %v4371
    %4405 = vst [vmem:[%s67 + $0x40] sm:$0xff] %v4374
    %4406 = vst [vmem:[%s67 + $0x48] sm:$0xff] %v4377
    %4407 = vst [vmem:[%s67 + $0x50] sm:$0xff] %v4380
    %4408 = vst [vmem:[%s67 + $0x58] sm:$0xff] %v4383
    %4409 = vst [vmem:[%s67 + $0x60] sm:$0xff] %v4386
    %4410 = vst [vmem:[%s67 + $0x68] sm:$0xff] %v4389
    %4411 = vst [vmem:[%s67 + $0x70] sm:$0xff] %v4392
    %4412 = vst [vmem:[%s67 + $0x78] sm:$0xff] %v4395
    %v4413 = vld [vmem:[#allocation5] sm:$0xff]
    %v4414 = vld [vmem:[%s33] sm:$0xff]
    %v4415 = vld [vmem:[%s33 + $0x8] sm:$0xff]
    %v4416 = vld [vmem:[%s33 + $0x10] sm:$0xff]
    %v4417 = vld [vmem:[%s33 + $0x18] sm:$0xff]
    %v4418 = vld [vmem:[%s33 + $0x20] sm:$0xff]
    %v4419 = vld [vmem:[%s33 + $0x28] sm:$0xff]
    %v4420 = vld [vmem:[%s33 + $0x30] sm:$0xff]
    %v4421 = vld [vmem:[%s33 + $0x38] sm:$0xff]
    %v4422 = vld [vmem:[%s33 + $0x40] sm:$0xff]
    %v4423 = vld [vmem:[%s33 + $0x48] sm:$0xff]
    %v4424 = vld [vmem:[%s33 + $0x50] sm:$0xff]
    %v4425 = vld [vmem:[%s33 + $0x58] sm:$0xff]
    %v4426 = vld [vmem:[%s33 + $0x60] sm:$0xff]
    %v4427 = vld [vmem:[%s33 + $0x68] sm:$0xff]
    %v4428 = vld [vmem:[%s33 + $0x70] sm:$0xff]
    %v4429 = vld [vmem:[%s33 + $0x78] sm:$0xff]
    %v4430 = vld [vmem:[%s35] sm:$0x3]
    %v4431 = vld [vmem:[%s37] sm:$0xff]
    %v4432 = vld [vmem:[%s37 + $0x8] sm:$0xff]
    %v4433 = vld [vmem:[%s37 + $0x10] sm:$0xff]
    %v4434 = vld [vmem:[%s37 + $0x18] sm:$0xff]
    %v4435 = vld [vmem:[%s37 + $0x20] sm:$0xff]
    %v4436 = vld [vmem:[%s37 + $0x28] sm:$0xff]
    %v4437 = vld [vmem:[%s37 + $0x30] sm:$0xff]
    %v4438 = vld [vmem:[%s37 + $0x38] sm:$0xff]
    %v4439 = vld [vmem:[%s37 + $0x40] sm:$0xff]
    %v4440 = vld [vmem:[%s37 + $0x48] sm:$0xff]
    %v4441 = vld [vmem:[%s37 + $0x50] sm:$0xff]
    %v4442 = vld [vmem:[%s37 + $0x58] sm:$0xff]
    %v4443 = vld [vmem:[%s37 + $0x60] sm:$0xff]
    %v4444 = vld [vmem:[%s37 + $0x68] sm:$0xff]
    %v4445 = vld [vmem:[%s37 + $0x70] sm:$0xff]
    %v4446 = vld [vmem:[%s37 + $0x78] sm:$0xff]
    %v4447 = vld [vmem:[%s37 + $0x80] sm:$0xff]
    %v4448 = vld [vmem:[%s37 + $0x88] sm:$0xff]
    %v4449 = vld [vmem:[%s37 + $0x90] sm:$0xff]
    %v4450 = vld [vmem:[%s37 + $0x98] sm:$0xff]
    %v4451 = vld [vmem:[%s37 + $0xa0] sm:$0xff]
    %v4452 = vld [vmem:[%s37 + $0xa8] sm:$0xff]
    %v4453 = vld [vmem:[%s37 + $0xb0] sm:$0xff]
    %v4454 = vld [vmem:[%s37 + $0xb8] sm:$0xff]
    %v4455 = vld [vmem:[%s37 + $0xc0] sm:$0xff]
    %v4456 = vld [vmem:[%s37 + $0xc8] sm:$0xff]
    %v4457 = vld [vmem:[%s37 + $0xd0] sm:$0xff]
    %v4458 = vld [vmem:[%s37 + $0xd8] sm:$0xff]
    %v4459 = vld [vmem:[%s37 + $0xe0] sm:$0xff]
    %v4460 = vld [vmem:[%s37 + $0xe8] sm:$0xff]
    %v4461 = vld [vmem:[%s37 + $0xf0] sm:$0xff]
    %v4462 = vld [vmem:[%s37 + $0xf8] sm:$0xff]
    %v4463 = vld [vmem:[%s39] sm:$0x1]
    %v4465 = vperm.slane %v4430, 0
    %v4466 = vperm.slane %v4430, 1
    %v4470 = vsel %vm366, %v4413, 0
    %4472 = vmatpush.msra.mxu0 0.0
    %4473 = vmatpush.msra.mxu0 0.0
    %4474 = vmatpush.msra.mxu0 0.0
    %4475 = vmatpush.msra.mxu0 0.0
    %4476 = vmatpush.msra.mxu0 0.0
    %4477 = vmatpush.msra.mxu0 0.0
    %4478 = vmatpush.msra.mxu0 0.0
    %4479 = vmatpush.msra.mxu0 0.0
    %4480 = vmatpush.msra.mxu0 %v4428
    %4481 = vmatpush.msra.mxu0 %v4426
    %4482 = vmatpush.msra.mxu0 %v4424
    %4483 = vmatpush.msra.mxu0 %v4422
    %4484 = vmatpush.msra.mxu0 %v4420
    %4485 = vmatpush.msra.mxu0 %v4418
    %4486 = vmatpush.msra.mxu0 %v4416
    %4487 = vmatpush.msra.mxu0 %v4414
    %4488 = vmatmul.f32.gmra.mxu0 %v4470
    %v4489 = vpop.f32.mrf.mxu0
    %v4490 = vadd.f32 %v4465, %v4489
    %4491 = vdwg.mxu0
    %4492 = vmatpush.msra.mxu0 0.0
    %4493 = vmatpush.msra.mxu0 0.0
    %4494 = vmatpush.msra.mxu0 0.0
    %4495 = vmatpush.msra.mxu0 0.0
    %4496 = vmatpush.msra.mxu0 0.0
    %4497 = vmatpush.msra.mxu0 0.0
    %4498 = vmatpush.msra.mxu0 0.0
    %4499 = vmatpush.msra.mxu0 0.0
    %4500 = vmatpush.msra.mxu0 %v4429
    %4501 = vmatpush.msra.mxu0 %v4427
    %4502 = vmatpush.msra.mxu0 %v4425
    %4503 = vmatpush.msra.mxu0 %v4423
    %4504 = vmatpush.msra.mxu0 %v4421
    %4505 = vmatpush.msra.mxu0 %v4419
    %4506 = vmatpush.msra.mxu0 %v4417
    %4507 = vmatpush.msra.mxu0 %v4415
    %4508 = vmatmul.f32.gmra.mxu0 %v4470
    %v4509 = vpop.f32.mrf.mxu0
    %v4510 = vadd.f32 %v4466, %v4509
    %4511 = vdwg.mxu0
    %v4512 = vmul.f32 %v4490, 0.5
    %v4513 = vmul.f32 %v4510, 0.5
    %v4514 = vmul.f32 %v4490, %v2890
    %v4515 = vmul.f32 %v4510, %v2890
    %v4516 = vand.u32 2147483647, %v4514
    %v4517 = vand.u32 2147483647, %v4515
    %v4518 = vmul.f32 %v4516, 0.3275911
    %v4519 = vmul.f32 %v4517, 0.3275911
    %v4520 = vadd.f32 %v4518, 1.0
    %v4521 = vadd.f32 %v4519, 1.0
    %v4522 = vrcp.pop %v4520
    %v4523 = vmul.f32 %v4520, %v4522
    %v4524 = vsub.f32 1.0, %v4523
    %v4525 = vmul.f32 %v4522, %v4524
    %v4526 = vadd.f32 %v4522, %v4525
    %vm4527 = vweird.f32 %v4520
    %vm4528 = vweird.f32 %v4522
    %vm4529 = vmor %vm4527, %vm4528
    %v4530 = vsel %vm4529, %v4522, %v4526
    %v4531 = vand.u32 2147483647, %v4520
    %vm4532 = vcmp.eq.f32.partialorder %v4531, 8.507059e+37
    %v4533 = vand.u32 %v4520, 2147483648
    %v4534 = vor.u32 1.1754944e-38, %v4533
    %v4535 = vsel %vm4532, %v4534, %v4530
    %v4536 = vmul.f32 1.0, %v4535
    %v4537 = vrcp.pop %v4521
    %v4538 = vmul.f32 %v4521, %v4537
    %v4539 = vsub.f32 1.0, %v4538
    %v4540 = vmul.f32 %v4537, %v4539
    %v4541 = vadd.f32 %v4537, %v4540
    %vm4542 = vweird.f32 %v4521
    %vm4543 = vweird.f32 %v4537
    %vm4544 = vmor %vm4542, %vm4543
    %v4545 = vsel %vm4544, %v4537, %v4541
    %v4546 = vand.u32 2147483647, %v4521
    %vm4547 = vcmp.eq.f32.partialorder %v4546, 8.507059e+37
    %v4548 = vand.u32 %v4521, 2147483648
    %v4549 = vor.u32 1.1754944e-38, %v4548
    %v4550 = vsel %vm4547, %v4549, %v4545
    %v4551 = vmul.f32 1.0, %v4550
    %v4552 = vmul.f32 %v4536, 1.0614054
    %v4553 = vmul.f32 %v4551, 1.0614054
    %v4554 = vadd.f32 %v4552, -1.4531521
    %v4555 = vadd.f32 %v4553, -1.4531521
    %v4556 = vmul.f32 %v4554, %v4536
    %v4557 = vmul.f32 %v4555, %v4551
    %v4558 = vadd.f32 %v4556, 1.4214138
    %v4559 = vadd.f32 %v4557, 1.4214138
    %v4560 = vmul.f32 %v4558, %v4536
    %v4561 = vmul.f32 %v4559, %v4551
    %v4562 = vadd.f32 %v4560, -0.28449672
    %v4563 = vadd.f32 %v4561, -0.28449672
    %v4564 = vmul.f32 %v4562, %v4536
    %v4565 = vmul.f32 %v4563, %v4551
    %v4566 = vadd.f32 %v4564, 0.2548296
    %v4567 = vadd.f32 %v4565, 0.2548296
    %v4568 = vmul.f32 %v4566, %v4536
    %v4569 = vmul.f32 %v4567, %v4551
    %v4570 = vsub.f32 0.0, %v4516
    %v4571 = vsub.f32 0.0, %v4517
    %v4572 = vmul.f32 %v4570, %v4516
    %v4573 = vmul.f32 %v4571, %v4517
    %v4574 = vmul.f32 %v4572, 1.442695
    %v4575 = vpow.pop %v4574
    %v4576 = vmul.f32 %v4573, 1.442695
    %v4577 = vpow.pop %v4576
    %v4578 = vmul.f32 %v4568, %v4575
    %v4579 = vmul.f32 %v4569, %v4577
    %v4580 = vsub.f32 1.0, %v4578
    %v4581 = vsub.f32 1.0, %v4579
    %vm4582 = vcmp.ge.f32.partialorder %v4514, 0.0
    %vm4583 = vcmp.ge.f32.partialorder %v4515, 0.0
    %v4584 = vsub.f32 0.0, %v4580
    %v4585 = vsub.f32 0.0, %v4581
    %v4586 = vsel %vm4582, %v4580, %v4584
    %v4587 = vsel %vm4583, %v4581, %v4585
    %v4588 = vadd.f32 %v4586, 1.0
    %v4589 = vadd.f32 %v4587, 1.0
    %v4590 = vmul.f32 %v4512, %v4588
    %v4591 = vmul.f32 %v4513, %v4589
    %v4593 = vperm.slane %v4463, 0
    %4595 = vmatpush.msra.mxu0 %v4446
    %4596 = vmatpush.msra.mxu0 %v4445
    %4597 = vmatpush.msra.mxu0 %v4444
    %4598 = vmatpush.msra.mxu0 %v4443
    %4599 = vmatpush.msra.mxu0 %v4442
    %4600 = vmatpush.msra.mxu0 %v4441
    %4601 = vmatpush.msra.mxu0 %v4440
    %4602 = vmatpush.msra.mxu0 %v4439
    %4603 = vmatpush.msra.mxu0 %v4438
    %4604 = vmatpush.msra.mxu0 %v4437
    %4605 = vmatpush.msra.mxu0 %v4436
    %4606 = vmatpush.msra.mxu0 %v4435
    %4607 = vmatpush.msra.mxu0 %v4434
    %4608 = vmatpush.msra.mxu0 %v4433
    %4609 = vmatpush.msra.mxu0 %v4432
    %4610 = vmatpush.msra.mxu0 %v4431
    %4611 = vmatmul.f32.gmra.mxu0 %v4590
    %v4612 = vpop.f32.mrf.mxu0
    %v4613 = vadd.f32 %v4593, %v4612
    %4614 = vdwg.mxu0
    %4615 = vmatpush.msra.mxu0 %v4462
    %4616 = vmatpush.msra.mxu0 %v4461
    %4617 = vmatpush.msra.mxu0 %v4460
    %4618 = vmatpush.msra.mxu0 %v4459
    %4619 = vmatpush.msra.mxu0 %v4458
    %4620 = vmatpush.msra.mxu0 %v4457
    %4621 = vmatpush.msra.mxu0 %v4456
    %4622 = vmatpush.msra.mxu0 %v4455
    %4623 = vmatpush.msra.mxu0 %v4454
    %4624 = vmatpush.msra.mxu0 %v4453
    %4625 = vmatpush.msra.mxu0 %v4452
    %4626 = vmatpush.msra.mxu0 %v4451
    %4627 = vmatpush.msra.mxu0 %v4450
    %4628 = vmatpush.msra.mxu0 %v4449
    %4629 = vmatpush.msra.mxu0 %v4448
    %4630 = vmatpush.msra.mxu0 %v4447
    %4631 = vmatmul.f32.gmra.mxu0 %v4591
    %v4632 = vpop.f32.mrf.mxu0
    %v4633 = vadd.f32 %v4613, %v4632
    %4634 = vdwg.mxu0
    %v4635 = vld [vmem:[%s41] sm:$0xff]
    %v4636 = vld [vmem:[%s41 + $0x8] sm:$0xff]
    %v4637 = vld [vmem:[%s41 + $0x10] sm:$0xff]
    %v4638 = vld [vmem:[%s41 + $0x18] sm:$0xff]
    %v4639 = vld [vmem:[%s41 + $0x20] sm:$0xff]
    %v4640 = vld [vmem:[%s41 + $0x28] sm:$0xff]
    %v4641 = vld [vmem:[%s41 + $0x30] sm:$0xff]
    %v4642 = vld [vmem:[%s41 + $0x38] sm:$0xff]
    %v4643 = vld [vmem:[#allocation6] sm:$0x1]
    %v4645 = vperm.slane %v4643, 0
    %v4648 = vsel %vm366, %v4633, 0
    %4650 = vmatpush.msra.mxu0 0.0
    %4651 = vmatpush.msra.mxu0 0.0
    %4652 = vmatpush.msra.mxu0 0.0
    %4653 = vmatpush.msra.mxu0 0.0
    %4654 = vmatpush.msra.mxu0 0.0
    %4655 = vmatpush.msra.mxu0 0.0
    %4656 = vmatpush.msra.mxu0 0.0
    %4657 = vmatpush.msra.mxu0 0.0
    %4658 = vmatpush.msra.mxu0 %v4642
    %4659 = vmatpush.msra.mxu0 %v4641
    %4660 = vmatpush.msra.mxu0 %v4640
    %4661 = vmatpush.msra.mxu0 %v4639
    %4662 = vmatpush.msra.mxu0 %v4638
    %4663 = vmatpush.msra.mxu0 %v4637
    %4664 = vmatpush.msra.mxu0 %v4636
    %4665 = vmatpush.msra.mxu0 %v4635
    %4666 = vmatmul.f32.gmra.mxu0 %v4648
    %v4667 = vpop.f32.mrf.mxu0
    %v4668 = vadd.f32 %v4645, %v4667
    %4669 = vdwg.mxu0
    %vm4670 = vcmask 7168
    %4671 = vst.msk [vmem:[%s69] sm:$0xff] %vm4670, %v4668
    %v4672 = vld [vmem:[%s45] sm:$0xff]
    %v4673 = vld [vmem:[%s45 + $0x8] sm:$0xff]
    %v4674 = vld [vmem:[%s45 + $0x10] sm:$0xff]
    %v4675 = vld [vmem:[%s45 + $0x18] sm:$0xff]
    %v4676 = vld [vmem:[%s45 + $0x20] sm:$0xff]
    %v4677 = vld [vmem:[%s45 + $0x28] sm:$0xff]
    %v4678 = vld [vmem:[%s45 + $0x30] sm:$0xff]
    %v4679 = vld [vmem:[%s45 + $0x38] sm:$0xff]
    %v4680 = vld [vmem:[%s45 + $0x40] sm:$0xff]
    %v4681 = vld [vmem:[%s45 + $0x48] sm:$0xff]
    %v4682 = vld [vmem:[%s45 + $0x50] sm:$0xff]
    %v4683 = vld [vmem:[%s45 + $0x58] sm:$0xff]
    %v4684 = vld [vmem:[%s45 + $0x60] sm:$0xff]
    %v4685 = vld [vmem:[%s45 + $0x68] sm:$0xff]
    %v4686 = vld [vmem:[%s45 + $0x70] sm:$0xff]
    %v4687 = vld [vmem:[%s45 + $0x78] sm:$0xff]
    %v4688 = vld [vmem:[%s47] sm:$0x3]
    %v4689 = vld [vmem:[%s49] sm:$0xff]
    %v4690 = vld [vmem:[%s49 + $0x8] sm:$0xff]
    %v4691 = vld [vmem:[%s49 + $0x10] sm:$0xff]
    %v4692 = vld [vmem:[%s49 + $0x18] sm:$0xff]
    %v4693 = vld [vmem:[%s49 + $0x20] sm:$0xff]
    %v4694 = vld [vmem:[%s49 + $0x28] sm:$0xff]
    %v4695 = vld [vmem:[%s49 + $0x30] sm:$0xff]
    %v4696 = vld [vmem:[%s49 + $0x38] sm:$0xff]
    %v4697 = vld [vmem:[%s49 + $0x40] sm:$0xff]
    %v4698 = vld [vmem:[%s49 + $0x48] sm:$0xff]
    %v4699 = vld [vmem:[%s49 + $0x50] sm:$0xff]
    %v4700 = vld [vmem:[%s49 + $0x58] sm:$0xff]
    %v4701 = vld [vmem:[%s49 + $0x60] sm:$0xff]
    %v4702 = vld [vmem:[%s49 + $0x68] sm:$0xff]
    %v4703 = vld [vmem:[%s49 + $0x70] sm:$0xff]
    %v4704 = vld [vmem:[%s49 + $0x78] sm:$0xff]
    %v4705 = vld [vmem:[%s49 + $0x80] sm:$0xff]
    %v4706 = vld [vmem:[%s49 + $0x88] sm:$0xff]
    %v4707 = vld [vmem:[%s49 + $0x90] sm:$0xff]
    %v4708 = vld [vmem:[%s49 + $0x98] sm:$0xff]
    %v4709 = vld [vmem:[%s49 + $0xa0] sm:$0xff]
    %v4710 = vld [vmem:[%s49 + $0xa8] sm:$0xff]
    %v4711 = vld [vmem:[%s49 + $0xb0] sm:$0xff]
    %v4712 = vld [vmem:[%s49 + $0xb8] sm:$0xff]
    %v4713 = vld [vmem:[%s49 + $0xc0] sm:$0xff]
    %v4714 = vld [vmem:[%s49 + $0xc8] sm:$0xff]
    %v4715 = vld [vmem:[%s49 + $0xd0] sm:$0xff]
    %v4716 = vld [vmem:[%s49 + $0xd8] sm:$0xff]
    %v4717 = vld [vmem:[%s49 + $0xe0] sm:$0xff]
    %v4718 = vld [vmem:[%s49 + $0xe8] sm:$0xff]
    %v4719 = vld [vmem:[%s49 + $0xf0] sm:$0xff]
    %v4720 = vld [vmem:[%s49 + $0xf8] sm:$0xff]
    %v4721 = vld [vmem:[%s51] sm:$0x1]
    %v4723 = vperm.slane %v4688, 0
    %v4724 = vperm.slane %v4688, 1
    %4727 = vmatpush.msra.mxu0 0.0
    %4728 = vmatpush.msra.mxu0 0.0
    %4729 = vmatpush.msra.mxu0 0.0
    %4730 = vmatpush.msra.mxu0 0.0
    %4731 = vmatpush.msra.mxu0 0.0
    %4732 = vmatpush.msra.mxu0 0.0
    %4733 = vmatpush.msra.mxu0 0.0
    %4734 = vmatpush.msra.mxu0 0.0
    %4735 = vmatpush.msra.mxu0 %v4686
    %4736 = vmatpush.msra.mxu0 %v4684
    %4737 = vmatpush.msra.mxu0 %v4682
    %4738 = vmatpush.msra.mxu0 %v4680
    %4739 = vmatpush.msra.mxu0 %v4678
    %4740 = vmatpush.msra.mxu0 %v4676
    %4741 = vmatpush.msra.mxu0 %v4674
    %4742 = vmatpush.msra.mxu0 %v4672
    %4743 = vmatmul.f32.gmra.mxu0 %v4470
    %v4744 = vpop.f32.mrf.mxu0
    %v4745 = vadd.f32 %v4723, %v4744
    %4746 = vdwg.mxu0
    %4747 = vmatpush.msra.mxu0 0.0
    %4748 = vmatpush.msra.mxu0 0.0
    %4749 = vmatpush.msra.mxu0 0.0
    %4750 = vmatpush.msra.mxu0 0.0
    %4751 = vmatpush.msra.mxu0 0.0
    %4752 = vmatpush.msra.mxu0 0.0
    %4753 = vmatpush.msra.mxu0 0.0
    %4754 = vmatpush.msra.mxu0 0.0
    %4755 = vmatpush.msra.mxu0 %v4687
    %4756 = vmatpush.msra.mxu0 %v4685
    %4757 = vmatpush.msra.mxu0 %v4683
    %4758 = vmatpush.msra.mxu0 %v4681
    %4759 = vmatpush.msra.mxu0 %v4679
    %4760 = vmatpush.msra.mxu0 %v4677
    %4761 = vmatpush.msra.mxu0 %v4675
    %4762 = vmatpush.msra.mxu0 %v4673
    %4763 = vmatmul.f32.gmra.mxu0 %v4470
    %v4764 = vpop.f32.mrf.mxu0
    %v4765 = vadd.f32 %v4724, %v4764
    %4766 = vdwg.mxu0
    %v4767 = vmul.f32 %v4745, 0.5
    %v4768 = vmul.f32 %v4765, 0.5
    %v4769 = vmul.f32 %v4745, %v2890
    %v4770 = vmul.f32 %v4765, %v2890
    %v4771 = vand.u32 2147483647, %v4769
    %v4772 = vand.u32 2147483647, %v4770
    %v4773 = vmul.f32 %v4771, 0.3275911
    %v4774 = vmul.f32 %v4772, 0.3275911
    %v4775 = vadd.f32 %v4773, 1.0
    %v4776 = vadd.f32 %v4774, 1.0
    %v4777 = vrcp.pop %v4775
    %v4778 = vmul.f32 %v4775, %v4777
    %v4779 = vsub.f32 1.0, %v4778
    %v4780 = vmul.f32 %v4777, %v4779
    %v4781 = vadd.f32 %v4777, %v4780
    %vm4782 = vweird.f32 %v4775
    %vm4783 = vweird.f32 %v4777
    %vm4784 = vmor %vm4782, %vm4783
    %v4785 = vsel %vm4784, %v4777, %v4781
    %v4786 = vand.u32 2147483647, %v4775
    %vm4787 = vcmp.eq.f32.partialorder %v4786, 8.507059e+37
    %v4788 = vand.u32 %v4775, 2147483648
    %v4789 = vor.u32 1.1754944e-38, %v4788
    %v4790 = vsel %vm4787, %v4789, %v4785
    %v4791 = vmul.f32 1.0, %v4790
    %v4792 = vrcp.pop %v4776
    %v4793 = vmul.f32 %v4776, %v4792
    %v4794 = vsub.f32 1.0, %v4793
    %v4795 = vmul.f32 %v4792, %v4794
    %v4796 = vadd.f32 %v4792, %v4795
    %vm4797 = vweird.f32 %v4776
    %vm4798 = vweird.f32 %v4792
    %vm4799 = vmor %vm4797, %vm4798
    %v4800 = vsel %vm4799, %v4792, %v4796
    %v4801 = vand.u32 2147483647, %v4776
    %vm4802 = vcmp.eq.f32.partialorder %v4801, 8.507059e+37
    %v4803 = vand.u32 %v4776, 2147483648
    %v4804 = vor.u32 1.1754944e-38, %v4803
    %v4805 = vsel %vm4802, %v4804, %v4800
    %v4806 = vmul.f32 1.0, %v4805
    %v4807 = vmul.f32 %v4791, 1.0614054
    %v4808 = vmul.f32 %v4806, 1.0614054
    %v4809 = vadd.f32 %v4807, -1.4531521
    %v4810 = vadd.f32 %v4808, -1.4531521
    %v4811 = vmul.f32 %v4809, %v4791
    %v4812 = vmul.f32 %v4810, %v4806
    %v4813 = vadd.f32 %v4811, 1.4214138
    %v4814 = vadd.f32 %v4812, 1.4214138
    %v4815 = vmul.f32 %v4813, %v4791
    %v4816 = vmul.f32 %v4814, %v4806
    %v4817 = vadd.f32 %v4815, -0.28449672
    %v4818 = vadd.f32 %v4816, -0.28449672
    %v4819 = vmul.f32 %v4817, %v4791
    %v4820 = vmul.f32 %v4818, %v4806
    %v4821 = vadd.f32 %v4819, 0.2548296
    %v4822 = vadd.f32 %v4820, 0.2548296
    %v4823 = vmul.f32 %v4821, %v4791
    %v4824 = vmul.f32 %v4822, %v4806
    %v4825 = vsub.f32 0.0, %v4771
    %v4826 = vsub.f32 0.0, %v4772
    %v4827 = vmul.f32 %v4825, %v4771
    %v4828 = vmul.f32 %v4826, %v4772
    %v4829 = vmul.f32 %v4827, 1.442695
    %v4830 = vpow.pop %v4829
    %v4831 = vmul.f32 %v4828, 1.442695
    %v4832 = vpow.pop %v4831
    %v4833 = vmul.f32 %v4823, %v4830
    %v4834 = vmul.f32 %v4824, %v4832
    %v4835 = vsub.f32 1.0, %v4833
    %v4836 = vsub.f32 1.0, %v4834
    %vm4837 = vcmp.ge.f32.partialorder %v4769, 0.0
    %vm4838 = vcmp.ge.f32.partialorder %v4770, 0.0
    %v4839 = vsub.f32 0.0, %v4835
    %v4840 = vsub.f32 0.0, %v4836
    %v4841 = vsel %vm4837, %v4835, %v4839
    %v4842 = vsel %vm4838, %v4836, %v4840
    %v4843 = vadd.f32 %v4841, 1.0
    %v4844 = vadd.f32 %v4842, 1.0
    %v4845 = vmul.f32 %v4767, %v4843
    %v4846 = vmul.f32 %v4768, %v4844
    %v4848 = vperm.slane %v4721, 0
    %4850 = vmatpush.msra.mxu0 %v4704
    %4851 = vmatpush.msra.mxu0 %v4703
    %4852 = vmatpush.msra.mxu0 %v4702
    %4853 = vmatpush.msra.mxu0 %v4701
    %4854 = vmatpush.msra.mxu0 %v4700
    %4855 = vmatpush.msra.mxu0 %v4699
    %4856 = vmatpush.msra.mxu0 %v4698
    %4857 = vmatpush.msra.mxu0 %v4697
    %4858 = vmatpush.msra.mxu0 %v4696
    %4859 = vmatpush.msra.mxu0 %v4695
    %4860 = vmatpush.msra.mxu0 %v4694
    %4861 = vmatpush.msra.mxu0 %v4693
    %4862 = vmatpush.msra.mxu0 %v4692
    %4863 = vmatpush.msra.mxu0 %v4691
    %4864 = vmatpush.msra.mxu0 %v4690
    %4865 = vmatpush.msra.mxu0 %v4689
    %4866 = vmatmul.f32.gmra.mxu0 %v4845
    %v4867 = vpop.f32.mrf.mxu0
    %v4868 = vadd.f32 %v4848, %v4867
    %4869 = vdwg.mxu0
    %4870 = vmatpush.msra.mxu0 %v4720
    %4871 = vmatpush.msra.mxu0 %v4719
    %4872 = vmatpush.msra.mxu0 %v4718
    %4873 = vmatpush.msra.mxu0 %v4717
    %4874 = vmatpush.msra.mxu0 %v4716
    %4875 = vmatpush.msra.mxu0 %v4715
    %4876 = vmatpush.msra.mxu0 %v4714
    %4877 = vmatpush.msra.mxu0 %v4713
    %4878 = vmatpush.msra.mxu0 %v4712
    %4879 = vmatpush.msra.mxu0 %v4711
    %4880 = vmatpush.msra.mxu0 %v4710
    %4881 = vmatpush.msra.mxu0 %v4709
    %4882 = vmatpush.msra.mxu0 %v4708
    %4883 = vmatpush.msra.mxu0 %v4707
    %4884 = vmatpush.msra.mxu0 %v4706
    %4885 = vmatpush.msra.mxu0 %v4705
    %4886 = vmatmul.f32.gmra.mxu0 %v4846
    %v4887 = vpop.f32.mrf.mxu0
    %v4888 = vadd.f32 %v4868, %v4887
    %4889 = vdwg.mxu0
    %v4890 = vld [vmem:[%s53] sm:$0xff]
    %v4891 = vld [vmem:[%s53 + $0x8] sm:$0xff]
    %v4892 = vld [vmem:[%s53 + $0x10] sm:$0xff]
    %v4893 = vld [vmem:[%s53 + $0x18] sm:$0xff]
    %v4894 = vld [vmem:[%s53 + $0x20] sm:$0xff]
    %v4895 = vld [vmem:[%s53 + $0x28] sm:$0xff]
    %v4896 = vld [vmem:[%s53 + $0x30] sm:$0xff]
    %v4897 = vld [vmem:[%s53 + $0x38] sm:$0xff]
    %v4899 = vsel %vm366, %v4888, 0
    %4901 = vmatpush.msra.mxu0 0.0
    %4902 = vmatpush.msra.mxu0 0.0
    %4903 = vmatpush.msra.mxu0 0.0
    %4904 = vmatpush.msra.mxu0 0.0
    %4905 = vmatpush.msra.mxu0 0.0
    %4906 = vmatpush.msra.mxu0 0.0
    %4907 = vmatpush.msra.mxu0 0.0
    %4908 = vmatpush.msra.mxu0 0.0
    %4909 = vmatpush.msra.mxu0 %v4897
    %4910 = vmatpush.msra.mxu0 %v4896
    %4911 = vmatpush.msra.mxu0 %v4895
    %4912 = vmatpush.msra.mxu0 %v4894
    %4913 = vmatpush.msra.mxu0 %v4893
    %4914 = vmatpush.msra.mxu0 %v4892
    %4915 = vmatpush.msra.mxu0 %v4891
    %4916 = vmatpush.msra.mxu0 %v4890
    %4917 = vmatmul.f32.gmra.mxu0 %v4899
    %v4918 = vpop.f32.mrf.mxu0
    %v4919 = vadd.f32 0.0, %v4918
    %4920 = vdwg.mxu0
    %v4922 = vsel %vm366, %v4919, 0
    %4924 = vmatpush.xpose.msra.mxu0 0.0
    %4925 = vmatpush.xpose.msra.mxu0 0.0
    %4926 = vmatpush.xpose.msra.mxu0 0.0
    %4927 = vmatpush.xpose.msra.mxu0 0.0
    %4928 = vmatpush.xpose.msra.mxu0 0.0
    %4929 = vmatpush.xpose.msra.mxu0 0.0
    %4930 = vmatpush.xpose.msra.mxu0 0.0
    %4931 = vmatpush.xpose.msra.mxu0 0.0
    %4932 = vmatpush.xpose.msra.mxu0 0.0
    %4933 = vmatpush.xpose.msra.mxu0 0.0
    %4934 = vmatpush.xpose.msra.mxu0 0.0
    %4935 = vmatpush.xpose.msra.mxu0 0.0
    %4936 = vmatpush.xpose.msra.mxu0 0.0
    %4937 = vmatpush.xpose.msra.mxu0 0.0
    %4938 = vmatpush.xpose.msra.mxu0 0.0
    %4939 = vmatpush.xpose.msra.mxu0 %v4899
    %4940 = vmatmul.f32.gmra.mxu0 %v4922
    %v4941 = vpop.f32.mrf.mxu0
    %v4942 = vadd.f32 0.0, %v4941
    %4943 = vdwg.mxu0
    %vm4944 = vcmask 64512
    %4945 = vst.msk [vmem:[#allocation10] sm:$0xff] %vm4944, %v4942
    %4947 = vrot.lane.b32.xlu0 %v2584, 96
    %v4948 = vpop.permute.xlu0 %4947
    %v4950 = vadd.f32 %v2584, %v4948
    %v4951 = vld [vmem:[%s55] sm:$0xff]
    %v4952 = vld [vmem:[%s55 + $0x8] sm:$0xff]
    %v4953 = vld [vmem:[%s55 + $0x10] sm:$0xff]
    %v4954 = vld [vmem:[%s55 + $0x18] sm:$0xff]
    %v4955 = vld [vmem:[%s57] sm:$0x1]
    %v4956 = vld [vmem:[%s59] sm:$0xff]
    %v4957 = vld [vmem:[%s59 + $0x8] sm:$0xff]
    %v4958 = vld [vmem:[%s59 + $0x10] sm:$0xff]
    %v4959 = vld [vmem:[%s59 + $0x18] sm:$0xff]
    %v4960 = vld [vmem:[%s59 + $0x20] sm:$0xff]
    %v4961 = vld [vmem:[%s59 + $0x28] sm:$0xff]
    %v4962 = vld [vmem:[%s59 + $0x30] sm:$0xff]
    %v4963 = vld [vmem:[%s59 + $0x38] sm:$0xff]
    %v4964 = vld [vmem:[%s59 + $0x40] sm:$0xff]
    %v4965 = vld [vmem:[%s59 + $0x48] sm:$0xff]
    %v4966 = vld [vmem:[%s59 + $0x50] sm:$0xff]
    %v4967 = vld [vmem:[%s59 + $0x58] sm:$0xff]
    %v4968 = vld [vmem:[%s59 + $0x60] sm:$0xff]
    %v4969 = vld [vmem:[%s59 + $0x68] sm:$0xff]
    %v4970 = vld [vmem:[%s59 + $0x70] sm:$0xff]
    %v4971 = vld [vmem:[%s59 + $0x78] sm:$0xff]
    %v4972 = vld [vmem:[%s61] sm:$0x1]
    %v4974 = vsel %vm1837, %v4950, 0
    %4976 = vmatpush.msra.mxu0 0.0
    %4977 = vmatpush.msra.mxu0 0.0
    %4978 = vmatpush.msra.mxu0 0.0
    %4979 = vmatpush.msra.mxu0 0.0
    %4980 = vmatpush.msra.mxu0 0.0
    %4981 = vmatpush.msra.mxu0 0.0
    %4982 = vmatpush.msra.mxu0 0.0
    %4983 = vmatpush.msra.mxu0 0.0
    %4984 = vmatpush.msra.mxu0 0.0
    %4985 = vmatpush.msra.mxu0 0.0
    %4986 = vmatpush.msra.mxu0 0.0
    %4987 = vmatpush.msra.mxu0 0.0
    %4988 = vmatpush.msra.mxu0 %v4954
    %4989 = vmatpush.msra.mxu0 %v4953
    %4990 = vmatpush.msra.mxu0 %v4952
    %4991 = vmatpush.msra.mxu0 %v4951
    %4992 = vmatmul.f32.gmra.mxu0 %v4974
    %v4993 = vpop.f32.mrf.mxu0
    %v4994 = vadd.f32 %v4955, %v4993
    %4995 = vdwg.mxu0
    %v4996 = vmul.f32 %v4994, 0.5
    %v4997 = vmul.f32 %v4994, %v2890
    %v4998 = vand.u32 2147483647, %v4997
    %v4999 = vmul.f32 %v4998, 0.3275911
    %v5000 = vadd.f32 %v4999, 1.0
    %v5001 = vrcp.pop %v5000
    %v5002 = vmul.f32 %v5000, %v5001
    %v5003 = vsub.f32 1.0, %v5002
    %v5004 = vmul.f32 %v5001, %v5003
    %v5005 = vadd.f32 %v5001, %v5004
    %vm5006 = vweird.f32 %v5000
    %vm5007 = vweird.f32 %v5001
    %vm5008 = vmor %vm5006, %vm5007
    %v5009 = vsel %vm5008, %v5001, %v5005
    %v5010 = vand.u32 2147483647, %v5000
    %vm5011 = vcmp.eq.f32.partialorder %v5010, 8.507059e+37
    %v5012 = vand.u32 %v5000, 2147483648
    %v5013 = vor.u32 1.1754944e-38, %v5012
    %v5014 = vsel %vm5011, %v5013, %v5009
    %v5015 = vmul.f32 1.0, %v5014
    %v5016 = vmul.f32 %v5015, 1.0614054
    %v5017 = vadd.f32 %v5016, -1.4531521
    %v5018 = vmul.f32 %v5017, %v5015
    %v5019 = vadd.f32 %v5018, 1.4214138
    %v5020 = vmul.f32 %v5019, %v5015
    %v5021 = vadd.f32 %v5020, -0.28449672
    %v5022 = vmul.f32 %v5021, %v5015
    %v5023 = vadd.f32 %v5022, 0.2548296
    %v5024 = vmul.f32 %v5023, %v5015
    %v5025 = vsub.f32 0.0, %v4998
    %v5026 = vmul.f32 %v5025, %v4998
    %v5027 = vmul.f32 %v5026, 1.442695
    %v5028 = vpow.pop %v5027
    %v5029 = vmul.f32 %v5024, %v5028
    %v5030 = vsub.f32 1.0, %v5029
    %vm5031 = vcmp.ge.f32.partialorder %v4997, 0.0
    %v5032 = vsub.f32 0.0, %v5030
    %v5033 = vsel %vm5031, %v5030, %v5032
    %v5034 = vadd.f32 %v5033, 1.0
    %v5035 = vmul.f32 %v4996, %v5034
    %5036 = vmatpush.msra.mxu0 %v4971
    %5037 = vmatpush.msra.mxu0 %v4970
    %5038 = vmatpush.msra.mxu0 %v4969
    %5039 = vmatpush.msra.mxu0 %v4968
    %5040 = vmatpush.msra.mxu0 %v4967
    %5041 = vmatpush.msra.mxu0 %v4966
    %5042 = vmatpush.msra.mxu0 %v4965
    %5043 = vmatpush.msra.mxu0 %v4964
    %5044 = vmatpush.msra.mxu0 %v4963
    %5045 = vmatpush.msra.mxu0 %v4962
    %5046 = vmatpush.msra.mxu0 %v4961
    %5047 = vmatpush.msra.mxu0 %v4960
    %5048 = vmatpush.msra.mxu0 %v4959
    %5049 = vmatpush.msra.mxu0 %v4958
    %5050 = vmatpush.msra.mxu0 %v4957
    %5051 = vmatpush.msra.mxu0 %v4956
    %5052 = vmatmul.f32.gmra.mxu0 %v5035
    %v5053 = vpop.f32.mrf.mxu0
    %v5054 = vadd.f32 %v4972, %v5053
    %5055 = vdwg.mxu0
    %v5056 = vld [vmem:[%s63] sm:$0xff]
    %v5057 = vld [vmem:[%s63 + $0x8] sm:$0xff]
    %v5058 = vld [vmem:[%s63 + $0x10] sm:$0xff]
    %v5059 = vld [vmem:[%s63 + $0x18] sm:$0xff]
    %v5060 = vld [vmem:[#allocation7] sm:$0x1]
    %v5062 = vsel %vm1837, %v5054, 0
    %5064 = vmatpush.msra.mxu0 0.0
    %5065 = vmatpush.msra.mxu0 0.0
    %5066 = vmatpush.msra.mxu0 0.0
    %5067 = vmatpush.msra.mxu0 0.0
    %5068 = vmatpush.msra.mxu0 0.0
    %5069 = vmatpush.msra.mxu0 0.0
    %5070 = vmatpush.msra.mxu0 0.0
    %5071 = vmatpush.msra.mxu0 0.0
    %5072 = vmatpush.msra.mxu0 0.0
    %5073 = vmatpush.msra.mxu0 0.0
    %5074 = vmatpush.msra.mxu0 0.0
    %5075 = vmatpush.msra.mxu0 0.0
    %5076 = vmatpush.msra.mxu0 %v5059
    %5077 = vmatpush.msra.mxu0 %v5058
    %5078 = vmatpush.msra.mxu0 %v5057
    %5079 = vmatpush.msra.mxu0 %v5056
    %5080 = vmatmul.f32.gmra.mxu0 %v5062
    %v5081 = vpop.f32.mrf.mxu0
    %v5082 = vadd.f32 %v5060, %v5081
    %5083 = vdwg.mxu0
    %vm5084 = vcmask 0
    %5085 = vst.msk [vmem:[#allocation8] sm:$0x1] %vm5084, %v5082
    // Predicated region
    $region134: #{scopeit_forward.1} parent=1 // pred_check
      _
    $region135: #{scopeit_forward.1} parent=1 // pred_check_branch
      %5087 = sbr.rel (0) target = $region137
    $region136: #{scopeit_forward.1} parent=1 // pred_region
      _
    $region137: #{scopeit_forward.1} parent=1 // pred_fallthru
      _
    // Predicated region
    $region138: #{scopeit_forward.1} parent=1 // pred_check
      _
    $region139: #{scopeit_forward.1} parent=1 // pred_check_branch
      %5089 = sbr.rel (0) target = $region141
    $region140: #{scopeit_forward.1} parent=1 // pred_region
      _
    $region141: #{scopeit_forward.1} parent=1 // pred_fallthru
      _
    // Predicated region
    $region142: #{scopeit_forward.1} parent=1 // pred_check
      _
    $region143: #{scopeit_forward.1} parent=1 // pred_check_branch
      %5091 = sbr.rel (0) target = $region145
    $region144: #{scopeit_forward.1} parent=1 // pred_region
      %5093 = vsyncadd [#allocation9], 0
      %s5095 = sshll.u32 [#allocation8], 4
      %s5096 = int_to_ptr.vmem [resolvable:$true] %s5095
      %s5097 = sshll.u32 %s71, 4
      %s5098 = int_to_ptr.hbm [resolvable:$true] %s5097
      %5100 = dma.vmem_to_hbm [thread:$0]  %s5096, 16, %s5098, [#allocation9]
    $region145: #{scopeit_forward.1} parent=1 // pred_fallthru
      _
    // Predicated region
    $region146: #{scopeit_forward.1} parent=1 // pred_check
      _
    $region147: #{scopeit_forward.1} parent=1 // pred_check_branch
      %5102 = sbr.rel (0) target = $region149
    $region148: #{scopeit_forward.1} parent=1 // pred_region
      %5104 = vsyncadd [#allocation11], 0
      %s5106 = sshll.u32 [#allocation10], 4
      %s5107 = int_to_ptr.vmem [resolvable:$true] %s5106
      %s5108 = sshll.u32 %s73, 4
      %s5109 = int_to_ptr.hbm [resolvable:$true] %s5108
      %5111 = dma.vmem_to_hbm [thread:$0]  %s5107, 128, %s5109, [#allocation11]
    $region149: #{scopeit_forward.1} parent=1 // pred_fallthru
      _
    // Predicated region
    $region150: #{scopeit_forward.1} parent=1 // pred_check
      _
    $region151: #{scopeit_forward.1} parent=1 // pred_check_branch
      %5113 = sbr.rel (0) target = $region153
    $region152: #{scopeit_forward.1} parent=1 // pred_region
      _
    $region153: #{scopeit_forward.1} parent=1 // pred_fallthru
      _
    // Predicated region
    $region154: #{scopeit_forward.1} parent=1 // pred_check
      _
    $region155: #{scopeit_forward.1} parent=1 // pred_check_branch
      %5115 = sbr.rel (0) target = $region157
    $region156: #{scopeit_forward.1} parent=1 // pred_region
      _
    $region157: #{scopeit_forward.1} parent=1 // pred_fallthru
      _
    // Predicated region
    $region158: #{scopeit_forward.1} parent=1 // pred_check
      _
    $region159: #{scopeit_forward.1} parent=1 // pred_check_branch
      %5117 = sbr.rel (0) target = $region161
    $region160: #{scopeit_forward.1} parent=1 // pred_region
      %5119 = dma.done [#allocation9], 16
    $region161: #{scopeit_forward.1} parent=1 // pred_fallthru
      _
    // Predicated region
    $region162: #{scopeit_forward.1} parent=1 // pred_check
      _
    $region163: #{scopeit_forward.1} parent=1 // pred_check_branch
      %5121 = sbr.rel (0) target = $region165
    $region164: #{scopeit_forward.1} parent=1 // pred_region
      %5123 = dma.done [#allocation11], 128
    $region165: #{scopeit_forward.1} parent=1 // pred_fallthru
      _
    %5124 = vsyncpa [#allocation9], 1
    %5125 = vsyncpa [#allocation11], 1

</llo_original>
